<compile_context>
chip_gen: v5e
topology: v5e:2x2
jax: 0.10.0
libtpu: 0.0.40
codegen_flags: <defaults>
</compile_context>

<pallas_src>
import functools

import jax
import jax.numpy as jnp
from jax import lax
from jax.experimental import pallas as pl
from jax.experimental.pallas import tpu as pltpu

_LRELU_SLOPE = 0.2


def _oihw_to_flat(w_oihw):
    """PyTorch (Cout, Cin, 3, 3) -> tap-major flattened (9*Cin, Cout) [dy-major, dx, ci]."""
    co, ci = w_oihw.shape[0], w_oihw.shape[1]
    w_hwio = jnp.transpose(w_oihw, (2, 3, 1, 0))          # (3, 3, Cin, Cout)
    return w_hwio.reshape(9 * ci, co)


def _rdb_kernel(*refs, cin, cgrow, H, W, bt, res_scale, outer_res_scale, compute_dtype):
    """One Residual Dense Block on a (bt, H, W, cin) batch tile.

    refs layout:
      [x_ref, (res_ref if fused), w1, b1, ..., w5, b5, o_ref, pad_scratch]
    """
    fuse = outer_res_scale is not None
    x_ref = refs[0]
    res_ref = refs[1] if fuse else None
    off = 2 if fuse else 1
    wb = refs[off:off + 10]
    o_ref = refs[off + 10]
    pad_ref = refs[off + 11]

    cmax = cin + 4 * cgrow

    # Zero only the 1-pixel halo (interior is fully overwritten every step).
    # Done unconditionally so it stays correct when the grid is sharded across
    # TensorCores ("parallel" semantics) - each core's scratch gets its own halo.
    pad_ref[:, 0:1, :, :] = jnp.zeros((bt, 1, W + 2, cmax), compute_dtype)
    pad_ref[:, H + 1:H + 2, :, :] = jnp.zeros((bt, 1, W + 2, cmax), compute_dtype)
    pad_ref[:, :, 0:1, :] = jnp.zeros((bt, H + 2, 1, cmax), compute_dtype)
    pad_ref[:, :, W + 1:W + 2, :] = jnp.zeros((bt, H + 2, 1, cmax), compute_dtype)

    x0 = x_ref[...].astype(jnp.float32)                   # (bt, H, W, cin), f32
    pad_ref[:, 1:H + 1, 1:W + 1, 0:cin] = x0.astype(compute_dtype)

    def conv3x3(cl, w_ref, b_ref):
        """im2col + single MXU matmul over the first `cl` channels of the scratch."""
        cols = []
        for dy in range(3):
            for dx in range(3):
                win = pad_ref[:, dy:dy + H, dx:dx + W, 0:cl]   # (bt, H, W, cl)
                cols.append(win.reshape(bt * H * W, cl))
        patches = jnp.concatenate(cols, axis=-1)               # (bt*H*W, 9*cl), compute_dtype
        y = jnp.dot(patches, w_ref[...],
                    preferred_element_type=jnp.float32)        # f32 accumulate on MXU
        return y + b_ref[...]                                  # (1, cout) broadcast, f32

    c = cin
    for layer in range(4):
        w_ref, b_ref = wb[2 * layer], wb[2 * layer + 1]
        y = conv3x3(c, w_ref, b_ref)                           # (bt*H*W, cgrow) f32
        y = jnp.maximum(y, _LRELU_SLOPE * y)                   # LeakyReLU(0.2), f32 VPU
        pad_ref[:, 1:H + 1, 1:W + 1, c:c + cgrow] = (
            y.reshape(bt, H, W, cgrow).astype(compute_dtype))
        c += cgrow

    y5 = conv3x3(c, wb[8], wb[9]).reshape(bt, H, W, cin)       # no activation, f32
    out = y5 * res_scale + x0                                  # inner dense-block residual
    if fuse:
        # Fused Basic_Block residual: (rdb3_out) * res_scale + original input.
        out = out * outer_res_scale + res_ref[...].astype(jnp.float32)
    o_ref[...] = out.astype(o_ref.dtype)


def dense_block_pallas(x, params, *, cin, cgrow, res_scale=0.2,
                       residual=None, outer_res_scale=None,
                       batch_tile=1, compute_dtype=jnp.bfloat16):
    """One DenseBlock (5 convs).  If `residual`/`outer_res_scale` are given, the
    Basic_Block outer residual is fused into this call.
    x: (N, H, W, cin) NHWC float32.  params: list of 5 (w_oihw, b) pairs."""
    N, H, W, C = x.shape
    assert C == cin
    bt = batch_tile
    assert N % bt == 0
    cmax = cin + 4 * cgrow
    fuse = residual is not None
    assert fuse == (outer_res_scale is not None)

    act_spec = pl.BlockSpec((bt, H, W, cin), lambda n: (n, 0, 0, 0))

    args = [x]
    in_specs = [act_spec]
    if fuse:
        args.append(residual)
        in_specs.append(act_spec)

    for (w_oihw, b) in params:
        wf = _oihw_to_flat(w_oihw).astype(compute_dtype)       # matmul operand dtype
        bf = b.reshape(1, -1).astype(jnp.float32)              # bias stays f32
        args += [wf, bf]
        in_specs.append(pl.BlockSpec(wf.shape, lambda n: (0, 0)))   # resident across grid
        in_specs.append(pl.BlockSpec(bf.shape, lambda n: (0, 0)))

    kernel = functools.partial(
        _rdb_kernel, cin=cin, cgrow=cgrow, H=H, W=W, bt=bt,
        res_scale=res_scale,
        outer_res_scale=outer_res_scale if fuse else None,
        compute_dtype=compute_dtype)

    flops = 2 * N * H * W * sum(
        9 * (cin + l * cgrow) * (cgrow if l < 4 else cin) for l in range(5))
    itemsize = x.dtype.itemsize
    bytes_accessed = int(x.size * itemsize * (3 if fuse else 2))
    for a in args[(2 if fuse else 1):]:
        bytes_accessed += int(a.size * a.dtype.itemsize)

    return pl.pallas_call(
        kernel,
        out_shape=jax.ShapeDtypeStruct((N, H, W, cin), x.dtype),
        grid=(N // bt,),
        in_specs=in_specs,
        out_specs=act_spec,
        scratch_shapes=[pltpu.VMEM((bt, H + 2, W + 2, cmax), compute_dtype)],
        compiler_params=pltpu.CompilerParams(
            dimension_semantics=("parallel",),
            vmem_limit_bytes=64 * 1024 * 1024),
        cost_estimate=pl.CostEstimate(flops=int(flops), transcendentals=0,
                                      bytes_accessed=bytes_accessed),
    )(*args)


def basic_block_pallas(x, block_params, *, cin, cgrow, res_scale=0.2,
                       inner_res_scale=0.2, batch_tile=1,
                       compute_dtype=jnp.bfloat16):
    """Basic_Block forward: 3 DenseBlocks + outer residual (fused into the last block)."""
    residual = x
    h = x
    n_blocks = len(block_params)
    for i, params in enumerate(block_params):
        last = (i == n_blocks - 1)
        h = dense_block_pallas(
            h, params, cin=cin, cgrow=cgrow, res_scale=inner_res_scale,
            residual=residual if last else None,
            outer_res_scale=res_scale if last else None,
            batch_tile=batch_tile, compute_dtype=compute_dtype)
    return h


# ---------------- pure-JAX reference (for correctness check) ----------------
def dense_block_ref(x, params, res_scale=0.2):
    def conv(inp, w_oihw, b):
        w = jnp.transpose(w_oihw, (2, 3, 1, 0))                 # HWIO
        y = lax.conv_general_dilated(
            inp, w, window_strides=(1, 1), padding="SAME",
            dimension_numbers=("NHWC", "HWIO", "NHWC"))
        return y + b.reshape(1, 1, 1, -1)

    act = lambda v: jnp.where(v > 0, v, _LRELU_SLOPE * v)
    outs = [x]
    for i, (w, b) in enumerate(params):
        inp = outs[0] if i == 0 else jnp.concatenate(outs, axis=-1)
        y = conv(inp, w, b)
        outs.append(act(y) if i != 4 else y)
    return outs[-1] * res_scale + outs[0]


def basic_block_ref(x, block_params, res_scale=0.2, inner_res_scale=0.2):
    residual = x
    h = x
    for params in block_params:
        h = dense_block_ref(h, params, inner_res_scale)
    return h * res_scale + residual


if __name__ == "__main__":
    # Small, TPU-friendly shapes consistent with the module structure.
    N, H, W = 2, 16, 16
    in_channels, channels_per_conv, res_scale = 16, 8, 0.2

    key = jax.random.PRNGKey(0)
    kx, kp = jax.random.split(key)
    x = jax.random.normal(kx, (N, H, W, in_channels), dtype=jnp.float32)

    # Deterministic synthetic params for 3 dense blocks x 5 convs
    # (kaiming-like normal scaled by 0.1 as in default_init_weights, small biases).
    pkeys = jax.random.split(kp, 3 * 5 * 2)
    block_params = []
    ki = 0
    for blk in range(3):
        params = []
        for layer in range(5):
            ci = in_channels + layer * channels_per_conv
            co = channels_per_conv if layer < 4 else in_channels
            std = 0.1 * (2.0 / (ci * 9)) ** 0.5
            w = jax.random.normal(pkeys[ki], (co, ci, 3, 3), jnp.float32) * std
            b = jax.random.normal(pkeys[ki + 1], (co,), jnp.float32) * 0.01
            params.append((w, b))
            ki += 2
        block_params.append(params)

    ref = jax.block_until_ready(
        basic_block_ref(x, block_params, res_scale, res_scale))

    # 1) f32 matmul path, batch_tile=1: tight structural-correctness check.
    out_f32 = jax.block_until_ready(basic_block_pallas(
        x, block_params, cin=in_channels, cgrow=channels_per_conv,
        res_scale=res_scale, inner_res_scale=res_scale,
        batch_tile=1, compute_dtype=jnp.float32))
    assert out_f32.shape == (N, H, W, in_channels)
    assert jnp.allclose(out_f32, ref, rtol=1e-4, atol=1e-4), (
        float(jnp.max(jnp.abs(out_f32 - ref))))

    # 2) bf16 MXU path (f32 accumulate / f32 elementwise), batch_tile=2:
    #    looser tolerance vs the pure-f32 reference.
    out_bf16 = jax.block_until_ready(basic_block_pallas(
        x, block_params, cin=in_channels, cgrow=channels_per_conv,
        res_scale=res_scale, inner_res_scale=res_scale,
        batch_tile=2, compute_dtype=jnp.bfloat16))
    assert out_bf16.shape == (N, H, W, in_channels)
    assert jnp.allclose(out_bf16, ref, rtol=2e-2, atol=2e-2), (
        float(jnp.max(jnp.abs(out_bf16 - ref))))

    print("KERNEL_OK")
</pallas_src>

<mosaic_0001>
module attributes {stable_mosaic.version = 11 : i64} {
  func.func @_rdb_kernel(%arg0: i32, %arg1: memref<1x16x16x16xf32, #tpu.memory_space<vmem>>, %arg2: memref<144x8xf32, #tpu.memory_space<vmem>>, %arg3: memref<1x8xf32, #tpu.memory_space<vmem>>, %arg4: memref<216x8xf32, #tpu.memory_space<vmem>>, %arg5: memref<1x8xf32, #tpu.memory_space<vmem>>, %arg6: memref<288x8xf32, #tpu.memory_space<vmem>>, %arg7: memref<1x8xf32, #tpu.memory_space<vmem>>, %arg8: memref<360x8xf32, #tpu.memory_space<vmem>>, %arg9: memref<1x8xf32, #tpu.memory_space<vmem>>, %arg10: memref<432x16xf32, #tpu.memory_space<vmem>>, %arg11: memref<1x16xf32, #tpu.memory_space<vmem>>, %arg12: memref<1x16x16x16xf32, #tpu.memory_space<vmem>>, %arg13: memref<1x18x18x48xf32, #tpu.memory_space<vmem>>) attributes {dimension_semantics = [#tpu.dimension_semantics<parallel>], iteration_bounds = array<i64: 2>, scalar_prefetch = 0 : i64, scratch_operands = 1 : i64, tpu.core_type = #tpu.core_type<tc>, window_params = [{transform_indices = @transform_0, window_bounds = array<i64: 1, 16, 16, 16>}, {pipeline_mode = #tpu.pipeline_mode<synchronous>, transform_indices = @transform_1, window_bounds = array<i64: 144, 8>}, {pipeline_mode = #tpu.pipeline_mode<synchronous>, transform_indices = @transform_2, window_bounds = array<i64: 1, 8>}, {pipeline_mode = #tpu.pipeline_mode<synchronous>, transform_indices = @transform_3, window_bounds = array<i64: 216, 8>}, {pipeline_mode = #tpu.pipeline_mode<synchronous>, transform_indices = @transform_4, window_bounds = array<i64: 1, 8>}, {pipeline_mode = #tpu.pipeline_mode<synchronous>, transform_indices = @transform_5, window_bounds = array<i64: 288, 8>}, {pipeline_mode = #tpu.pipeline_mode<synchronous>, transform_indices = @transform_6, window_bounds = array<i64: 1, 8>}, {pipeline_mode = #tpu.pipeline_mode<synchronous>, transform_indices = @transform_7, window_bounds = array<i64: 360, 8>}, {pipeline_mode = #tpu.pipeline_mode<synchronous>, transform_indices = @transform_8, window_bounds = array<i64: 1, 8>}, {pipeline_mode = #tpu.pipeline_mode<synchronous>, transform_indices = @transform_9, window_bounds = array<i64: 432, 16>}, {pipeline_mode = #tpu.pipeline_mode<synchronous>, transform_indices = @transform_10, window_bounds = array<i64: 1, 16>}, {transform_indices = @transform_11, window_bounds = array<i64: 1, 16, 16, 16>}]} {
    %cst = arith.constant 0.000000e+00 : f32
    %0 = vector.broadcast %cst : f32 to vector<1x1x18x48xf32>
    %c0 = arith.constant 0 : index
    %c0_0 = arith.constant 0 : index
    %c0_1 = arith.constant 0 : index
    %c0_2 = arith.constant 0 : index
    %1 = vector.load %arg13[%c0, %c0_0, %c0_1, %c0_2] : memref<1x18x18x48xf32, #tpu.memory_space<vmem>>, vector<1x1x18x48xf32>
    tpu.vector_store %arg13[%c0, %c0_0, %c0_1, %c0_2], %0 {strides = array<i32>} : memref<1x18x18x48xf32, #tpu.memory_space<vmem>>, vector<1x1x18x48xf32>,
    %cst_3 = arith.constant 0.000000e+00 : f32
    %2 = vector.broadcast %cst_3 : f32 to vector<1x1x18x48xf32>
    %c0_4 = arith.constant 0 : index
    %c17 = arith.constant 17 : index
    %c0_5 = arith.constant 0 : index
    %c0_6 = arith.constant 0 : index
    %3 = vector.load %arg13[%c0_4, %c17, %c0_5, %c0_6] : memref<1x18x18x48xf32, #tpu.memory_space<vmem>>, vector<1x1x18x48xf32>
    tpu.vector_store %arg13[%c0_4, %c17, %c0_5, %c0_6], %2 {strides = array<i32>} : memref<1x18x18x48xf32, #tpu.memory_space<vmem>>, vector<1x1x18x48xf32>,
    %cst_7 = arith.constant 0.000000e+00 : f32
    %4 = vector.broadcast %cst_7 : f32 to vector<1x18x1x48xf32>
    %c0_8 = arith.constant 0 : index
    %c0_9 = arith.constant 0 : index
    %c0_10 = arith.constant 0 : index
    %c0_11 = arith.constant 0 : index
    %5 = vector.load %arg13[%c0_8, %c0_9, %c0_10, %c0_11] : memref<1x18x18x48xf32, #tpu.memory_space<vmem>>, vector<1x18x1x48xf32>
    tpu.vector_store %arg13[%c0_8, %c0_9, %c0_10, %c0_11], %4 {strides = array<i32>} : memref<1x18x18x48xf32, #tpu.memory_space<vmem>>, vector<1x18x1x48xf32>,
    %cst_12 = arith.constant 0.000000e+00 : f32
    %6 = vector.broadcast %cst_12 : f32 to vector<1x18x1x48xf32>
    %c0_13 = arith.constant 0 : index
    %c0_14 = arith.constant 0 : index
    %c17_15 = arith.constant 17 : index
    %c0_16 = arith.constant 0 : index
    %7 = vector.load %arg13[%c0_13, %c0_14, %c17_15, %c0_16] : memref<1x18x18x48xf32, #tpu.memory_space<vmem>>, vector<1x18x1x48xf32>
    tpu.vector_store %arg13[%c0_13, %c0_14, %c17_15, %c0_16], %6 {strides = array<i32>} : memref<1x18x18x48xf32, #tpu.memory_space<vmem>>, vector<1x18x1x48xf32>,
    %c0_17 = arith.constant 0 : index
    %c0_18 = arith.constant 0 : index
    %c0_19 = arith.constant 0 : index
    %c0_20 = arith.constant 0 : index
    %8 = vector.load %arg1[%c0_17, %c0_18, %c0_19, %c0_20] : memref<1x16x16x16xf32, #tpu.memory_space<vmem>>, vector<1x16x16x16xf32>
    %c0_21 = arith.constant 0 : index
    %c1 = arith.constant 1 : index
    %c1_22 = arith.constant 1 : index
    %c0_23 = arith.constant 0 : index
    %9 = vector.load %arg13[%c0_21, %c1, %c1_22, %c0_23] : memref<1x18x18x48xf32, #tpu.memory_space<vmem>>, vector<1x16x16x16xf32>
    tpu.vector_store %arg13[%c0_21, %c1, %c1_22, %c0_23], %8 {strides = array<i32>} : memref<1x18x18x48xf32, #tpu.memory_space<vmem>>, vector<1x16x16x16xf32>,
    %c0_24 = arith.constant 0 : index
    %c0_25 = arith.constant 0 : index
    %c0_26 = arith.constant 0 : index
    %c0_27 = arith.constant 0 : index
    %10 = vector.load %arg13[%c0_24, %c0_25, %c0_26, %c0_27] : memref<1x18x18x48xf32, #tpu.memory_space<vmem>>, vector<1x16x16x16xf32>
    %11 = vector.shape_cast %10 : vector<1x16x16x16xf32> to vector<256x16xf32>
    %c0_28 = arith.constant 0 : index
    %c0_29 = arith.constant 0 : index
    %c1_30 = arith.constant 1 : index
    %c0_31 = arith.constant 0 : index
    %12 = vector.load %arg13[%c0_28, %c0_29, %c1_30, %c0_31] : memref<1x18x18x48xf32, #tpu.memory_space<vmem>>, vector<1x16x16x16xf32>
    %13 = vector.shape_cast %12 : vector<1x16x16x16xf32> to vector<256x16xf32>
    %c0_32 = arith.constant 0 : index
    %c0_33 = arith.constant 0 : index
    %c2 = arith.constant 2 : index
    %c0_34 = arith.constant 0 : index
    %14 = vector.load %arg13[%c0_32, %c0_33, %c2, %c0_34] : memref<1x18x18x48xf32, #tpu.memory_space<vmem>>, vector<1x16x16x16xf32>
    %15 = vector.shape_cast %14 : vector<1x16x16x16xf32> to vector<256x16xf32>
    %c0_35 = arith.constant 0 : index
    %c1_36 = arith.constant 1 : index
    %c0_37 = arith.constant 0 : index
    %c0_38 = arith.constant 0 : index
    %16 = vector.load %arg13[%c0_35, %c1_36, %c0_37, %c0_38] : memref<1x18x18x48xf32, #tpu.memory_space<vmem>>, vector<1x16x16x16xf32>
    %17 = vector.shape_cast %16 : vector<1x16x16x16xf32> to vector<256x16xf32>
    %c0_39 = arith.constant 0 : index
    %c1_40 = arith.constant 1 : index
    %c1_41 = arith.constant 1 : index
    %c0_42 = arith.constant 0 : index
    %18 = vector.load %arg13[%c0_39, %c1_40, %c1_41, %c0_42] : memref<1x18x18x48xf32, #tpu.memory_space<vmem>>, vector<1x16x16x16xf32>
    %19 = vector.shape_cast %18 : vector<1x16x16x16xf32> to vector<256x16xf32>
    %c0_43 = arith.constant 0 : index
    %c1_44 = arith.constant 1 : index
    %c2_45 = arith.constant 2 : index
    %c0_46 = arith.constant 0 : index
    %20 = vector.load %arg13[%c0_43, %c1_44, %c2_45, %c0_46] : memref<1x18x18x48xf32, #tpu.memory_space<vmem>>, vector<1x16x16x16xf32>
    %21 = vector.shape_cast %20 : vector<1x16x16x16xf32> to vector<256x16xf32>
    %c0_47 = arith.constant 0 : index
    %c2_48 = arith.constant 2 : index
    %c0_49 = arith.constant 0 : index
    %c0_50 = arith.constant 0 : index
    %22 = vector.load %arg13[%c0_47, %c2_48, %c0_49, %c0_50] : memref<1x18x18x48xf32, #tpu.memory_space<vmem>>, vector<1x16x16x16xf32>
    %23 = vector.shape_cast %22 : vector<1x16x16x16xf32> to vector<256x16xf32>
    %c0_51 = arith.constant 0 : index
    %c2_52 = arith.constant 2 : index
    %c1_53 = arith.constant 1 : index
    %c0_54 = arith.constant 0 : index
    %24 = vector.load %arg13[%c0_51, %c2_52, %c1_53, %c0_54] : memref<1x18x18x48xf32, #tpu.memory_space<vmem>>, vector<1x16x16x16xf32>
    %25 = vector.shape_cast %24 : vector<1x16x16x16xf32> to vector<256x16xf32>
    %c0_55 = arith.constant 0 : index
    %c2_56 = arith.constant 2 : index
    %c2_57 = arith.constant 2 : index
    %c0_58 = arith.constant 0 : index
    %26 = vector.load %arg13[%c0_55, %c2_56, %c2_57, %c0_58] : memref<1x18x18x48xf32, #tpu.memory_space<vmem>>, vector<1x16x16x16xf32>
    %27 = vector.shape_cast %26 : vector<1x16x16x16xf32> to vector<256x16xf32>
    %28 = tpu.concatenate %11, %13, %15, %17, %19, %21, %23, %25, %27 in 1 : vector<256x16xf32>, vector<256x16xf32>, vector<256x16xf32>, vector<256x16xf32>, vector<256x16xf32>, vector<256x16xf32>, vector<256x16xf32>, vector<256x16xf32>, vector<256x16xf32> -> vector<256x144xf32>
    %c0_59 = arith.constant 0 : index
    %c0_60 = arith.constant 0 : index
    %29 = vector.load %arg2[%c0_59, %c0_60] : memref<144x8xf32, #tpu.memory_space<vmem>>, vector<144x8xf32>
    %cst_61 = arith.constant dense<0.000000e+00> : vector<256x8xf32>
    %30 = tpu.matmul %28, %29, %cst_61 {dimension_numbers = #tpu.dot_dimension_numbers<[1], [0], [0], [1], [0, 0, 1, 1], [], []>} : vector<256x144xf32>, vector<144x8xf32>, vector<256x8xf32> -> vector<256x8xf32>
    %c0_62 = arith.constant 0 : index
    %c0_63 = arith.constant 0 : index
    %31 = vector.load %arg3[%c0_62, %c0_63] : memref<1x8xf32, #tpu.memory_space<vmem>>, vector<1x8xf32>
    %32 = vector.broadcast %31 : vector<1x8xf32> to vector<256x8xf32>
    %33 = arith.addf %30, %32 : vector<256x8xf32>
    %cst_64 = arith.constant 2.000000e-01 : f32
    %34 = vector.broadcast %cst_64 : f32 to vector<256x8xf32>
    %35 = arith.mulf %34, %33 : vector<256x8xf32>
    %36 = arith.maximumf %33, %35 : vector<256x8xf32>
    %37 = vector.shape_cast %36 : vector<256x8xf32> to vector<1x16x16x8xf32>
    %c0_65 = arith.constant 0 : index
    %c1_66 = arith.constant 1 : index
    %c1_67 = arith.constant 1 : index
    %c16 = arith.constant 16 : index
    %38 = vector.load %arg13[%c0_65, %c1_66, %c1_67, %c16] : memref<1x18x18x48xf32, #tpu.memory_space<vmem>>, vector<1x16x16x8xf32>
    tpu.vector_store %arg13[%c0_65, %c1_66, %c1_67, %c16], %37 {strides = array<i32>} : memref<1x18x18x48xf32, #tpu.memory_space<vmem>>, vector<1x16x16x8xf32>,
    %c0_68 = arith.constant 0 : index
    %c0_69 = arith.constant 0 : index
    %c0_70 = arith.constant 0 : index
    %c0_71 = arith.constant 0 : index
    %39 = vector.load %arg13[%c0_68, %c0_69, %c0_70, %c0_71] : memref<1x18x18x48xf32, #tpu.memory_space<vmem>>, vector<1x16x16x24xf32>
    %40 = vector.shape_cast %39 : vector<1x16x16x24xf32> to vector<256x24xf32>
    %c0_72 = arith.constant 0 : index
    %c0_73 = arith.constant 0 : index
    %c1_74 = arith.constant 1 : index
    %c0_75 = arith.constant 0 : index
    %41 = vector.load %arg13[%c0_72, %c0_73, %c1_74, %c0_75] : memref<1x18x18x48xf32, #tpu.memory_space<vmem>>, vector<1x16x16x24xf32>
    %42 = vector.shape_cast %41 : vector<1x16x16x24xf32> to vector<256x24xf32>
    %c0_76 = arith.constant 0 : index
    %c0_77 = arith.constant 0 : index
    %c2_78 = arith.constant 2 : index
    %c0_79 = arith.constant 0 : index
    %43 = vector.load %arg13[%c0_76, %c0_77, %c2_78, %c0_79] : memref<1x18x18x48xf32, #tpu.memory_space<vmem>>, vector<1x16x16x24xf32>
    %44 = vector.shape_cast %43 : vector<1x16x16x24xf32> to vector<256x24xf32>
    %c0_80 = arith.constant 0 : index
    %c1_81 = arith.constant 1 : index
    %c0_82 = arith.constant 0 : index
    %c0_83 = arith.constant 0 : index
    %45 = vector.load %arg13[%c0_80, %c1_81, %c0_82, %c0_83] : memref<1x18x18x48xf32, #tpu.memory_space<vmem>>, vector<1x16x16x24xf32>
    %46 = vector.shape_cast %45 : vector<1x16x16x24xf32> to vector<256x24xf32>
    %c0_84 = arith.constant 0 : index
    %c1_85 = arith.constant 1 : index
    %c1_86 = arith.constant 1 : index
    %c0_87 = arith.constant 0 : index
    %47 = vector.load %arg13[%c0_84, %c1_85, %c1_86, %c0_87] : memref<1x18x18x48xf32, #tpu.memory_space<vmem>>, vector<1x16x16x24xf32>
    %48 = vector.shape_cast %47 : vector<1x16x16x24xf32> to vector<256x24xf32>
    %c0_88 = arith.constant 0 : index
    %c1_89 = arith.constant 1 : index
    %c2_90 = arith.constant 2 : index
    %c0_91 = arith.constant 0 : index
    %49 = vector.load %arg13[%c0_88, %c1_89, %c2_90, %c0_91] : memref<1x18x18x48xf32, #tpu.memory_space<vmem>>, vector<1x16x16x24xf32>
    %50 = vector.shape_cast %49 : vector<1x16x16x24xf32> to vector<256x24xf32>
    %c0_92 = arith.constant 0 : index
    %c2_93 = arith.constant 2 : index
    %c0_94 = arith.constant 0 : index
    %c0_95 = arith.constant 0 : index
    %51 = vector.load %arg13[%c0_92, %c2_93, %c0_94, %c0_95] : memref<1x18x18x48xf32, #tpu.memory_space<vmem>>, vector<1x16x16x24xf32>
    %52 = vector.shape_cast %51 : vector<1x16x16x24xf32> to vector<256x24xf32>
    %c0_96 = arith.constant 0 : index
    %c2_97 = arith.constant 2 : index
    %c1_98 = arith.constant 1 : index
    %c0_99 = arith.constant 0 : index
    %53 = vector.load %arg13[%c0_96, %c2_97, %c1_98, %c0_99] : memref<1x18x18x48xf32, #tpu.memory_space<vmem>>, vector<1x16x16x24xf32>
    %54 = vector.shape_cast %53 : vector<1x16x16x24xf32> to vector<256x24xf32>
    %c0_100 = arith.constant 0 : index
    %c2_101 = arith.constant 2 : index
    %c2_102 = arith.constant 2 : index
    %c0_103 = arith.constant 0 : index
    %55 = vector.load %arg13[%c0_100, %c2_101, %c2_102, %c0_103] : memref<1x18x18x48xf32, #tpu.memory_space<vmem>>, vector<1x16x16x24xf32>
    %56 = vector.shape_cast %55 : vector<1x16x16x24xf32> to vector<256x24xf32>
    %57 = tpu.concatenate %40, %42, %44, %46, %48, %50, %52, %54, %56 in 1 : vector<256x24xf32>, vector<256x24xf32>, vector<256x24xf32>, vector<256x24xf32>, vector<256x24xf32>, vector<256x24xf32>, vector<256x24xf32>, vector<256x24xf32>, vector<256x24xf32> -> vector<256x216xf32>
    %c0_104 = arith.constant 0 : index
    %c0_105 = arith.constant 0 : index
    %58 = vector.load %arg4[%c0_104, %c0_105] : memref<216x8xf32, #tpu.memory_space<vmem>>, vector<216x8xf32>
    %cst_106 = arith.constant dense<0.000000e+00> : vector<256x8xf32>
    %59 = tpu.matmul %57, %58, %cst_106 {dimension_numbers = #tpu.dot_dimension_numbers<[1], [0], [0], [1], [0, 0, 1, 1], [], []>} : vector<256x216xf32>, vector<216x8xf32>, vector<256x8xf32> -> vector<256x8xf32>
    %c0_107 = arith.constant 0 : index
    %c0_108 = arith.constant 0 : index
    %60 = vector.load %arg5[%c0_107, %c0_108] : memref<1x8xf32, #tpu.memory_space<vmem>>, vector<1x8xf32>
    %61 = vector.broadcast %60 : vector<1x8xf32> to vector<256x8xf32>
    %62 = arith.addf %59, %61 : vector<256x8xf32>
    %cst_109 = arith.constant 2.000000e-01 : f32
    %63 = vector.broadcast %cst_109 : f32 to vector<256x8xf32>
    %64 = arith.mulf %63, %62 : vector<256x8xf32>
    %65 = arith.maximumf %62, %64 : vector<256x8xf32>
    %66 = vector.shape_cast %65 : vector<256x8xf32> to vector<1x16x16x8xf32>
    %c0_110 = arith.constant 0 : index
    %c1_111 = arith.constant 1 : index
    %c1_112 = arith.constant 1 : index
    %c24 = arith.constant 24 : index
    %67 = vector.load %arg13[%c0_110, %c1_111, %c1_112, %c24] : memref<1x18x18x48xf32, #tpu.memory_space<vmem>>, vector<1x16x16x8xf32>
    tpu.vector_store %arg13[%c0_110, %c1_111, %c1_112, %c24], %66 {strides = array<i32>} : memref<1x18x18x48xf32, #tpu.memory_space<vmem>>, vector<1x16x16x8xf32>,
    %c0_113 = arith.constant 0 : index
    %c0_114 = arith.constant 0 : index
    %c0_115 = arith.constant 0 : index
    %c0_116 = arith.constant 0 : index
    %68 = vector.load %arg13[%c0_113, %c0_114, %c0_115, %c0_116] : memref<1x18x18x48xf32, #tpu.memory_space<vmem>>, vector<1x16x16x32xf32>
    %69 = vector.shape_cast %68 : vector<1x16x16x32xf32> to vector<256x32xf32>
    %c0_117 = arith.constant 0 : index
    %c0_118 = arith.constant 0 : index
    %c1_119 = arith.constant 1 : index
    %c0_120 = arith.constant 0 : index
    %70 = vector.load %arg13[%c0_117, %c0_118, %c1_119, %c0_120] : memref<1x18x18x48xf32, #tpu.memory_space<vmem>>, vector<1x16x16x32xf32>
    %71 = vector.shape_cast %70 : vector<1x16x16x32xf32> to vector<256x32xf32>
    %c0_121 = arith.constant 0 : index
    %c0_122 = arith.constant 0 : index
    %c2_123 = arith.constant 2 : index
    %c0_124 = arith.constant 0 : index
    %72 = vector.load %arg13[%c0_121, %c0_122, %c2_123, %c0_124] : memref<1x18x18x48xf32, #tpu.memory_space<vmem>>, vector<1x16x16x32xf32>
    %73 = vector.shape_cast %72 : vector<1x16x16x32xf32> to vector<256x32xf32>
    %c0_125 = arith.constant 0 : index
    %c1_126 = arith.constant 1 : index
    %c0_127 = arith.constant 0 : index
    %c0_128 = arith.constant 0 : index
    %74 = vector.load %arg13[%c0_125, %c1_126, %c0_127, %c0_128] : memref<1x18x18x48xf32, #tpu.memory_space<vmem>>, vector<1x16x16x32xf32>
    %75 = vector.shape_cast %74 : vector<1x16x16x32xf32> to vector<256x32xf32>
    %c0_129 = arith.constant 0 : index
    %c1_130 = arith.constant 1 : index
    %c1_131 = arith.constant 1 : index
    %c0_132 = arith.constant 0 : index
    %76 = vector.load %arg13[%c0_129, %c1_130, %c1_131, %c0_132] : memref<1x18x18x48xf32, #tpu.memory_space<vmem>>, vector<1x16x16x32xf32>
    %77 = vector.shape_cast %76 : vector<1x16x16x32xf32> to vector<256x32xf32>
    %c0_133 = arith.constant 0 : index
    %c1_134 = arith.constant 1 : index
    %c2_135 = arith.constant 2 : index
    %c0_136 = arith.constant 0 : index
    %78 = vector.load %arg13[%c0_133, %c1_134, %c2_135, %c0_136] : memref<1x18x18x48xf32, #tpu.memory_space<vmem>>, vector<1x16x16x32xf32>
    %79 = vector.shape_cast %78 : vector<1x16x16x32xf32> to vector<256x32xf32>
    %c0_137 = arith.constant 0 : index
    %c2_138 = arith.constant 2 : index
    %c0_139 = arith.constant 0 : index
    %c0_140 = arith.constant 0 : index
    %80 = vector.load %arg13[%c0_137, %c2_138, %c0_139, %c0_140] : memref<1x18x18x48xf32, #tpu.memory_space<vmem>>, vector<1x16x16x32xf32>
    %81 = vector.shape_cast %80 : vector<1x16x16x32xf32> to vector<256x32xf32>
    %c0_141 = arith.constant 0 : index
    %c2_142 = arith.constant 2 : index
    %c1_143 = arith.constant 1 : index
    %c0_144 = arith.constant 0 : index
    %82 = vector.load %arg13[%c0_141, %c2_142, %c1_143, %c0_144] : memref<1x18x18x48xf32, #tpu.memory_space<vmem>>, vector<1x16x16x32xf32>
    %83 = vector.shape_cast %82 : vector<1x16x16x32xf32> to vector<256x32xf32>
    %c0_145 = arith.constant 0 : index
    %c2_146 = arith.constant 2 : index
    %c2_147 = arith.constant 2 : index
    %c0_148 = arith.constant 0 : index
    %84 = vector.load %arg13[%c0_145, %c2_146, %c2_147, %c0_148] : memref<1x18x18x48xf32, #tpu.memory_space<vmem>>, vector<1x16x16x32xf32>
    %85 = vector.shape_cast %84 : vector<1x16x16x32xf32> to vector<256x32xf32>
    %86 = tpu.concatenate %69, %71, %73, %75, %77, %79, %81, %83, %85 in 1 : vector<256x32xf32>, vector<256x32xf32>, vector<256x32xf32>, vector<256x32xf32>, vector<256x32xf32>, vector<256x32xf32>, vector<256x32xf32>, vector<256x32xf32>, vector<256x32xf32> -> vector<256x288xf32>
    %c0_149 = arith.constant 0 : index
    %c0_150 = arith.constant 0 : index
    %87 = vector.load %arg6[%c0_149, %c0_150] : memref<288x8xf32, #tpu.memory_space<vmem>>, vector<288x8xf32>
    %cst_151 = arith.constant dense<0.000000e+00> : vector<256x8xf32>
    %88 = tpu.matmul %86, %87, %cst_151 {dimension_numbers = #tpu.dot_dimension_numbers<[1], [0], [0], [1], [0, 0, 1, 1], [], []>} : vector<256x288xf32>, vector<288x8xf32>, vector<256x8xf32> -> vector<256x8xf32>
    %c0_152 = arith.constant 0 : index
    %c0_153 = arith.constant 0 : index
    %89 = vector.load %arg7[%c0_152, %c0_153] : memref<1x8xf32, #tpu.memory_space<vmem>>, vector<1x8xf32>
    %90 = vector.broadcast %89 : vector<1x8xf32> to vector<256x8xf32>
    %91 = arith.addf %88, %90 : vector<256x8xf32>
    %cst_154 = arith.constant 2.000000e-01 : f32
    %92 = vector.broadcast %cst_154 : f32 to vector<256x8xf32>
    %93 = arith.mulf %92, %91 : vector<256x8xf32>
    %94 = arith.maximumf %91, %93 : vector<256x8xf32>
    %95 = vector.shape_cast %94 : vector<256x8xf32> to vector<1x16x16x8xf32>
    %c0_155 = arith.constant 0 : index
    %c1_156 = arith.constant 1 : index
    %c1_157 = arith.constant 1 : index
    %c32 = arith.constant 32 : index
    %96 = vector.load %arg13[%c0_155, %c1_156, %c1_157, %c32] : memref<1x18x18x48xf32, #tpu.memory_space<vmem>>, vector<1x16x16x8xf32>
    tpu.vector_store %arg13[%c0_155, %c1_156, %c1_157, %c32], %95 {strides = array<i32>} : memref<1x18x18x48xf32, #tpu.memory_space<vmem>>, vector<1x16x16x8xf32>,
    %c0_158 = arith.constant 0 : index
    %c0_159 = arith.constant 0 : index
    %c0_160 = arith.constant 0 : index
    %c0_161 = arith.constant 0 : index
    %97 = vector.load %arg13[%c0_158, %c0_159, %c0_160, %c0_161] : memref<1x18x18x48xf32, #tpu.memory_space<vmem>>, vector<1x16x16x40xf32>
    %98 = vector.shape_cast %97 : vector<1x16x16x40xf32> to vector<256x40xf32>
    %c0_162 = arith.constant 0 : index
    %c0_163 = arith.constant 0 : index
    %c1_164 = arith.constant 1 : index
    %c0_165 = arith.constant 0 : index
    %99 = vector.load %arg13[%c0_162, %c0_163, %c1_164, %c0_165] : memref<1x18x18x48xf32, #tpu.memory_space<vmem>>, vector<1x16x16x40xf32>
    %100 = vector.shape_cast %99 : vector<1x16x16x40xf32> to vector<256x40xf32>
    %c0_166 = arith.constant 0 : index
    %c0_167 = arith.constant 0 : index
    %c2_168 = arith.constant 2 : index
    %c0_169 = arith.constant 0 : index
    %101 = vector.load %arg13[%c0_166, %c0_167, %c2_168, %c0_169] : memref<1x18x18x48xf32, #tpu.memory_space<vmem>>, vector<1x16x16x40xf32>
    %102 = vector.shape_cast %101 : vector<1x16x16x40xf32> to vector<256x40xf32>
    %c0_170 = arith.constant 0 : index
    %c1_171 = arith.constant 1 : index
    %c0_172 = arith.constant 0 : index
    %c0_173 = arith.constant 0 : index
    %103 = vector.load %arg13[%c0_170, %c1_171, %c0_172, %c0_173] : memref<1x18x18x48xf32, #tpu.memory_space<vmem>>, vector<1x16x16x40xf32>
    %104 = vector.shape_cast %103 : vector<1x16x16x40xf32> to vector<256x40xf32>
    %c0_174 = arith.constant 0 : index
    %c1_175 = arith.constant 1 : index
    %c1_176 = arith.constant 1 : index
    %c0_177 = arith.constant 0 : index
    %105 = vector.load %arg13[%c0_174, %c1_175, %c1_176, %c0_177] : memref<1x18x18x48xf32, #tpu.memory_space<vmem>>, vector<1x16x16x40xf32>
    %106 = vector.shape_cast %105 : vector<1x16x16x40xf32> to vector<256x40xf32>
    %c0_178 = arith.constant 0 : index
    %c1_179 = arith.constant 1 : index
    %c2_180 = arith.constant 2 : index
    %c0_181 = arith.constant 0 : index
    %107 = vector.load %arg13[%c0_178, %c1_179, %c2_180, %c0_181] : memref<1x18x18x48xf32, #tpu.memory_space<vmem>>, vector<1x16x16x40xf32>
    %108 = vector.shape_cast %107 : vector<1x16x16x40xf32> to vector<256x40xf32>
    %c0_182 = arith.constant 0 : index
    %c2_183 = arith.constant 2 : index
    %c0_184 = arith.constant 0 : index
    %c0_185 = arith.constant 0 : index
    %109 = vector.load %arg13[%c0_182, %c2_183, %c0_184, %c0_185] : memref<1x18x18x48xf32, #tpu.memory_space<vmem>>, vector<1x16x16x40xf32>
    %110 = vector.shape_cast %109 : vector<1x16x16x40xf32> to vector<256x40xf32>
    %c0_186 = arith.constant 0 : index
    %c2_187 = arith.constant 2 : index
    %c1_188 = arith.constant 1 : index
    %c0_189 = arith.constant 0 : index
    %111 = vector.load %arg13[%c0_186, %c2_187, %c1_188, %c0_189] : memref<1x18x18x48xf32, #tpu.memory_space<vmem>>, vector<1x16x16x40xf32>
    %112 = vector.shape_cast %111 : vector<1x16x16x40xf32> to vector<256x40xf32>
    %c0_190 = arith.constant 0 : index
    %c2_191 = arith.constant 2 : index
    %c2_192 = arith.constant 2 : index
    %c0_193 = arith.constant 0 : index
    %113 = vector.load %arg13[%c0_190, %c2_191, %c2_192, %c0_193] : memref<1x18x18x48xf32, #tpu.memory_space<vmem>>, vector<1x16x16x40xf32>
    %114 = vector.shape_cast %113 : vector<1x16x16x40xf32> to vector<256x40xf32>
    %115 = tpu.concatenate %98, %100, %102, %104, %106, %108, %110, %112, %114 in 1 : vector<256x40xf32>, vector<256x40xf32>, vector<256x40xf32>, vector<256x40xf32>, vector<256x40xf32>, vector<256x40xf32>, vector<256x40xf32>, vector<256x40xf32>, vector<256x40xf32> -> vector<256x360xf32>
    %c0_194 = arith.constant 0 : index
    %c0_195 = arith.constant 0 : index
    %116 = vector.load %arg8[%c0_194, %c0_195] : memref<360x8xf32, #tpu.memory_space<vmem>>, vector<360x8xf32>
    %cst_196 = arith.constant dense<0.000000e+00> : vector<256x8xf32>
    %117 = tpu.matmul %115, %116, %cst_196 {dimension_numbers = #tpu.dot_dimension_numbers<[1], [0], [0], [1], [0, 0, 1, 1], [], []>} : vector<256x360xf32>, vector<360x8xf32>, vector<256x8xf32> -> vector<256x8xf32>
    %c0_197 = arith.constant 0 : index
    %c0_198 = arith.constant 0 : index
    %118 = vector.load %arg9[%c0_197, %c0_198] : memref<1x8xf32, #tpu.memory_space<vmem>>, vector<1x8xf32>
    %119 = vector.broadcast %118 : vector<1x8xf32> to vector<256x8xf32>
    %120 = arith.addf %117, %119 : vector<256x8xf32>
    %cst_199 = arith.constant 2.000000e-01 : f32
    %121 = vector.broadcast %cst_199 : f32 to vector<256x8xf32>
    %122 = arith.mulf %121, %120 : vector<256x8xf32>
    %123 = arith.maximumf %120, %122 : vector<256x8xf32>
    %124 = vector.shape_cast %123 : vector<256x8xf32> to vector<1x16x16x8xf32>
    %c0_200 = arith.constant 0 : index
    %c1_201 = arith.constant 1 : index
    %c1_202 = arith.constant 1 : index
    %c40 = arith.constant 40 : index
    %125 = vector.load %arg13[%c0_200, %c1_201, %c1_202, %c40] : memref<1x18x18x48xf32, #tpu.memory_space<vmem>>, vector<1x16x16x8xf32>
    tpu.vector_store %arg13[%c0_200, %c1_201, %c1_202, %c40], %124 {strides = array<i32>} : memref<1x18x18x48xf32, #tpu.memory_space<vmem>>, vector<1x16x16x8xf32>,
    %c0_203 = arith.constant 0 : index
    %c0_204 = arith.constant 0 : index
    %c0_205 = arith.constant 0 : index
    %c0_206 = arith.constant 0 : index
    %126 = vector.load %arg13[%c0_203, %c0_204, %c0_205, %c0_206] : memref<1x18x18x48xf32, #tpu.memory_space<vmem>>, vector<1x16x16x48xf32>
    %127 = vector.shape_cast %126 : vector<1x16x16x48xf32> to vector<256x48xf32>
    %c0_207 = arith.constant 0 : index
    %c0_208 = arith.constant 0 : index
    %c1_209 = arith.constant 1 : index
    %c0_210 = arith.constant 0 : index
    %128 = vector.load %arg13[%c0_207, %c0_208, %c1_209, %c0_210] : memref<1x18x18x48xf32, #tpu.memory_space<vmem>>, vector<1x16x16x48xf32>
    %129 = vector.shape_cast %128 : vector<1x16x16x48xf32> to vector<256x48xf32>
    %c0_211 = arith.constant 0 : index
    %c0_212 = arith.constant 0 : index
    %c2_213 = arith.constant 2 : index
    %c0_214 = arith.constant 0 : index
    %130 = vector.load %arg13[%c0_211, %c0_212, %c2_213, %c0_214] : memref<1x18x18x48xf32, #tpu.memory_space<vmem>>, vector<1x16x16x48xf32>
    %131 = vector.shape_cast %130 : vector<1x16x16x48xf32> to vector<256x48xf32>
    %c0_215 = arith.constant 0 : index
    %c1_216 = arith.constant 1 : index
    %c0_217 = arith.constant 0 : index
    %c0_218 = arith.constant 0 : index
    %132 = vector.load %arg13[%c0_215, %c1_216, %c0_217, %c0_218] : memref<1x18x18x48xf32, #tpu.memory_space<vmem>>, vector<1x16x16x48xf32>
    %133 = vector.shape_cast %132 : vector<1x16x16x48xf32> to vector<256x48xf32>
    %c0_219 = arith.constant 0 : index
    %c1_220 = arith.constant 1 : index
    %c1_221 = arith.constant 1 : index
    %c0_222 = arith.constant 0 : index
    %134 = vector.load %arg13[%c0_219, %c1_220, %c1_221, %c0_222] : memref<1x18x18x48xf32, #tpu.memory_space<vmem>>, vector<1x16x16x48xf32>
    %135 = vector.shape_cast %134 : vector<1x16x16x48xf32> to vector<256x48xf32>
    %c0_223 = arith.constant 0 : index
    %c1_224 = arith.constant 1 : index
    %c2_225 = arith.constant 2 : index
    %c0_226 = arith.constant 0 : index
    %136 = vector.load %arg13[%c0_223, %c1_224, %c2_225, %c0_226] : memref<1x18x18x48xf32, #tpu.memory_space<vmem>>, vector<1x16x16x48xf32>
    %137 = vector.shape_cast %136 : vector<1x16x16x48xf32> to vector<256x48xf32>
    %c0_227 = arith.constant 0 : index
    %c2_228 = arith.constant 2 : index
    %c0_229 = arith.constant 0 : index
    %c0_230 = arith.constant 0 : index
    %138 = vector.load %arg13[%c0_227, %c2_228, %c0_229, %c0_230] : memref<1x18x18x48xf32, #tpu.memory_space<vmem>>, vector<1x16x16x48xf32>
    %139 = vector.shape_cast %138 : vector<1x16x16x48xf32> to vector<256x48xf32>
    %c0_231 = arith.constant 0 : index
    %c2_232 = arith.constant 2 : index
    %c1_233 = arith.constant 1 : index
    %c0_234 = arith.constant 0 : index
    %140 = vector.load %arg13[%c0_231, %c2_232, %c1_233, %c0_234] : memref<1x18x18x48xf32, #tpu.memory_space<vmem>>, vector<1x16x16x48xf32>
    %141 = vector.shape_cast %140 : vector<1x16x16x48xf32> to vector<256x48xf32>
    %c0_235 = arith.constant 0 : index
    %c2_236 = arith.constant 2 : index
    %c2_237 = arith.constant 2 : index
    %c0_238 = arith.constant 0 : index
    %142 = vector.load %arg13[%c0_235, %c2_236, %c2_237, %c0_238] : memref<1x18x18x48xf32, #tpu.memory_space<vmem>>, vector<1x16x16x48xf32>
    %143 = vector.shape_cast %142 : vector<1x16x16x48xf32> to vector<256x48xf32>
    %144 = tpu.concatenate %127, %129, %131, %133, %135, %137, %139, %141, %143 in 1 : vector<256x48xf32>, vector<256x48xf32>, vector<256x48xf32>, vector<256x48xf32>, vector<256x48xf32>, vector<256x48xf32>, vector<256x48xf32>, vector<256x48xf32>, vector<256x48xf32> -> vector<256x432xf32>
    %c0_239 = arith.constant 0 : index
    %c0_240 = arith.constant 0 : index
    %145 = vector.load %arg10[%c0_239, %c0_240] : memref<432x16xf32, #tpu.memory_space<vmem>>, vector<432x16xf32>
    %cst_241 = arith.constant dense<0.000000e+00> : vector<256x16xf32>
    %146 = tpu.matmul %144, %145, %cst_241 {dimension_numbers = #tpu.dot_dimension_numbers<[1], [0], [0], [1], [0, 0, 1, 1], [], []>} : vector<256x432xf32>, vector<432x16xf32>, vector<256x16xf32> -> vector<256x16xf32>
    %c0_242 = arith.constant 0 : index
    %c0_243 = arith.constant 0 : index
    %147 = vector.load %arg11[%c0_242, %c0_243] : memref<1x16xf32, #tpu.memory_space<vmem>>, vector<1x16xf32>
    %148 = vector.broadcast %147 : vector<1x16xf32> to vector<256x16xf32>
    %149 = arith.addf %146, %148 : vector<256x16xf32>
    %150 = vector.shape_cast %149 : vector<256x16xf32> to vector<1x16x16x16xf32>
    %cst_244 = arith.constant 2.000000e-01 : f32
    %151 = vector.broadcast %cst_244 : f32 to vector<1x16x16x16xf32>
    %152 = arith.mulf %150, %151 : vector<1x16x16x16xf32>
    %153 = arith.addf %152, %8 : vector<1x16x16x16xf32>
    %c0_245 = arith.constant 0 : index
    %c0_246 = arith.constant 0 : index
    %c0_247 = arith.constant 0 : index
    %c0_248 = arith.constant 0 : index
    %154 = vector.load %arg12[%c0_245, %c0_246, %c0_247, %c0_248] : memref<1x16x16x16xf32, #tpu.memory_space<vmem>>, vector<1x16x16x16xf32>
    tpu.vector_store %arg12[%c0_245, %c0_246, %c0_247, %c0_248], %153 {strides = array<i32>} : memref<1x16x16x16xf32, #tpu.memory_space<vmem>>, vector<1x16x16x16xf32>,
    return
  }
  func.func @transform_0(%arg0: i32) -> (i32, i32, i32, i32) {
    %c0_i32 = arith.constant 0 : i32
    %c0_i32_0 = arith.constant 0 : i32
    %c0_i32_1 = arith.constant 0 : i32
    %c0_i32_2 = arith.constant 0 : i32
    return %arg0, %c0_i32, %c0_i32_0, %c0_i32_1 : i32, i32, i32, i32
  }
  func.func @transform_1(%arg0: i32) -> (i32, i32) {
    %c0_i32 = arith.constant 0 : i32
    %c0_i32_0 = arith.constant 0 : i32
    %c0_i32_1 = arith.constant 0 : i32
    return %c0_i32, %c0_i32_0 : i32, i32
  }
  func.func @transform_2(%arg0: i32) -> (i32, i32) {
    %c0_i32 = arith.constant 0 : i32
    %c0_i32_0 = arith.constant 0 : i32
    %c0_i32_1 = arith.constant 0 : i32
    return %c0_i32, %c0_i32_0 : i32, i32
  }
  func.func @transform_3(%arg0: i32) -> (i32, i32) {
    %c0_i32 = arith.constant 0 : i32
    %c0_i32_0 = arith.constant 0 : i32
    %c0_i32_1 = arith.constant 0 : i32
    return %c0_i32, %c0_i32_0 : i32, i32
  }
  func.func @transform_4(%arg0: i32) -> (i32, i32) {
    %c0_i32 = arith.constant 0 : i32
    %c0_i32_0 = arith.constant 0 : i32
    %c0_i32_1 = arith.constant 0 : i32
    return %c0_i32, %c0_i32_0 : i32, i32
  }
  func.func @transform_5(%arg0: i32) -> (i32, i32) {
    %c0_i32 = arith.constant 0 : i32
    %c0_i32_0 = arith.constant 0 : i32
    %c0_i32_1 = arith.constant 0 : i32
    return %c0_i32, %c0_i32_0 : i32, i32
  }
  func.func @transform_6(%arg0: i32) -> (i32, i32) {
    %c0_i32 = arith.constant 0 : i32
    %c0_i32_0 = arith.constant 0 : i32
    %c0_i32_1 = arith.constant 0 : i32
    return %c0_i32, %c0_i32_0 : i32, i32
  }
  func.func @transform_7(%arg0: i32) -> (i32, i32) {
    %c0_i32 = arith.constant 0 : i32
    %c0_i32_0 = arith.constant 0 : i32
    %c0_i32_1 = arith.constant 0 : i32
    return %c0_i32, %c0_i32_0 : i32, i32
  }
  func.func @transform_8(%arg0: i32) -> (i32, i32) {
    %c0_i32 = arith.constant 0 : i32
    %c0_i32_0 = arith.constant 0 : i32
    %c0_i32_1 = arith.constant 0 : i32
    return %c0_i32, %c0_i32_0 : i32, i32
  }
  func.func @transform_9(%arg0: i32) -> (i32, i32) {
    %c0_i32 = arith.constant 0 : i32
    %c0_i32_0 = arith.constant 0 : i32
    %c0_i32_1 = arith.constant 0 : i32
    return %c0_i32, %c0_i32_0 : i32, i32
  }
  func.func @transform_10(%arg0: i32) -> (i32, i32) {
    %c0_i32 = arith.constant 0 : i32
    %c0_i32_0 = arith.constant 0 : i32
    %c0_i32_1 = arith.constant 0 : i32
    return %c0_i32, %c0_i32_0 : i32, i32
  }
  func.func @transform_11(%arg0: i32) -> (i32, i32, i32, i32) {
    %c0_i32 = arith.constant 0 : i32
    %c0_i32_0 = arith.constant 0 : i32
    %c0_i32_1 = arith.constant 0 : i32
    %c0_i32_2 = arith.constant 0 : i32
    return %arg0, %c0_i32, %c0_i32_0, %c0_i32_1 : i32, i32, i32, i32
  }
}

</mosaic_0001>

<llo_original>
// kernel: tpu_custom_call.1
$region0: #{tpu_custom_call.1}
  #allocation0 [shape = 'u32[]', space=smem, size = 0x4, offset = 0x4, fixed_abs, tag = 'smem constant byte address 0x4 - core index']
  #allocation1 [shape = 'u32[72,128]{1,0:T(1,128)}', space=vmem, size = 0x9000, scoped, tag = 'internal scratch']
  #allocation2 [shape = 'f32[1,18,18,48]{3,2,1,0:T(8,128)}', space=vmem, size = 0x36000, scoped, tag = 'scratch operand']
  %s0 = inlined_call_operand.vmem [shape: f32[2,16,16,16], index: 0, kind: input, shape index: {}]
  %s1 = inlined_call_operand.vmem [shape: f32[144,8], index: 1, kind: input, shape index: {}]
  %s2 = inlined_call_operand.vmem [shape: f32[1,8], index: 2, kind: input, shape index: {}]
  %s3 = inlined_call_operand.vmem [shape: f32[216,8], index: 3, kind: input, shape index: {}]
  %s4 = inlined_call_operand.vmem [shape: f32[1,8], index: 4, kind: input, shape index: {}]
  %s5 = inlined_call_operand.vmem [shape: f32[288,8], index: 5, kind: input, shape index: {}]
  %s6 = inlined_call_operand.vmem [shape: f32[1,8], index: 6, kind: input, shape index: {}]
  %s7 = inlined_call_operand.vmem [shape: f32[360,8], index: 7, kind: input, shape index: {}]
  %s8 = inlined_call_operand.vmem [shape: f32[1,8], index: 8, kind: input, shape index: {}]
  %s9 = inlined_call_operand.vmem [shape: f32[432,16], index: 9, kind: input, shape index: {}]
  %s10 = inlined_call_operand.vmem [shape: f32[1,16], index: 10, kind: input, shape index: {}]
  %s11 = inlined_call_operand.hbm [shape: f32[2,16,16,16], index: 11, kind: output, shape index: {}]
  %s12 = sld [smem:[#allocation0]]
  $region77: #{tpu_custom_call.1} parent=0
    _
  %s14 = ssub.s32 1, %s12
  %s15 = scalar_select 0, %s14, %s12
  $region1: #{tpu_custom_call.1} parent=0
    #allocation3 [shape = 'u8[262144]{0}', space=vmem, size = 0x40000, scoped, tag = 'output window, operand 0']
    #allocation4 [shape = 's32[2]{0}', space=sflag, size = 0x8, scoped, tag = 'scoped memory for tpu_custom_call.1']
    %16 = vsyncpa [#allocation4], 0
    %s17 = scalar_lea.sflag [#allocation4], 1
    %18 = vsyncpa %s17, 0
    loop: start=0, step=1, limit=4
    $region2: #{tpu_custom_call.1} parent=1 // loop_pre_header
      _
    $region3: #{tpu_custom_call.1} parent=1 // loop_header
      %s20 = sphi 0, %s24
      %p21 = scmp.ge.s32.totalorder %s20, 4
      %s30 = sphi 0, %s32
      %s33 = sphi 0, %s30
      %s34 = sphi 0, %s33
      %s50 = sphi 0, %s34
      %s54 = sphi 0, %s54
      %s56 = sphi 0, %s54
      %s57 = sphi 0, %s56
      %s71 = sphi 0, %s57
      %s75 = sphi 0, %s75
      %s77 = sphi 0, %s75
      %s78 = sphi 0, %s77
      %s92 = sphi 0, %s78
      %s96 = sphi 0, %s96
      %s98 = sphi 0, %s96
      %s99 = sphi 0, %s98
      %s113 = sphi 0, %s99
      %s117 = sphi 0, %s117
      %s119 = sphi 0, %s117
      %s120 = sphi 0, %s119
      %s134 = sphi 0, %s120
      %s138 = sphi 0, %s138
      %s140 = sphi 0, %s138
      %s141 = sphi 0, %s140
      %s155 = sphi 0, %s141
      %s159 = sphi 0, %s159
      %s161 = sphi 0, %s159
      %s162 = sphi 0, %s161
      %s176 = sphi 0, %s162
      %s180 = sphi 0, %s180
      %s182 = sphi 0, %s180
      %s183 = sphi 0, %s182
      %s197 = sphi 0, %s183
      %s201 = sphi 0, %s201
      %s203 = sphi 0, %s201
      %s204 = sphi 0, %s203
      %s218 = sphi 0, %s204
      %s222 = sphi 0, %s222
      %s224 = sphi 0, %s222
      %s225 = sphi 0, %s224
      %s239 = sphi 0, %s225
      %s243 = sphi 0, %s243
      %s245 = sphi 0, %s243
      %s246 = sphi 0, %s245
      %s260 = sphi 0, %s246
      %s266 = sphi 0, %s268
      %s269 = sphi 0, %s266
      %s270 = sphi 0, %s269
      %s286 = sphi 0, %s270
    $region4: #{tpu_custom_call.1} parent=1 // loop_header_branch
      %23 = sbr.rel (%p21) target = $region8
    $region5: #{tpu_custom_call.1} parent=1 // loop_body
      %s25 = ssub.s32 %s20, 1
      %s26 = ssub.s32 %s20, 2
      %s27 = sadd.s32 %s20, 1
      %s28 = ssub.s32 %s20, %s27
      %p29 = scmp.eq.s32.totalorder %s28, 0
      %s31 = sadd.s32 %s30, 1
      %s32 = scalar_select %p29, %s30, %s31
      %p35 = pneg %p29
      %p36 = scmp.eq.s32.totalorder %s20, 1
      %p37 = por %p35, %p36
      %p38 = scmp.ne.s32.totalorder %s30, %s33
      %p39 = scmp.eq.s32.totalorder %s20, 0
      %p40 = por %p38, %p39
      %p41 = scmp.ne.s32.totalorder %s30, %s33
      %p42 = scmp.eq.s32.totalorder %s25, 1
      %p43 = por %p41, %p42
      %p44 = scmp.ne.s32.totalorder %s33, %s34
      %p45 = scmp.eq.s32.totalorder %s25, 0
      %p46 = por %p44, %p45
      %p47 = scmp.ne.s32.totalorder %s33, %s34
      %p48 = scmp.eq.s32.totalorder %s26, 1
      %p49 = por %p47, %p48
      %p51 = scmp.ne.s32.totalorder %s34, %s50
      %p52 = scmp.eq.s32.totalorder %s26, 0
      %p53 = por %p51, %p52
      %s55 = sadd.s32 %s54, 1
      %p58 = scmp.eq.s32.totalorder %s20, 1
      %p59 = scmp.ne.s32.totalorder %s54, %s56
      %p60 = scmp.eq.s32.totalorder %s20, 0
      %p61 = por %p59, %p60
      %p62 = scmp.ne.s32.totalorder %s54, %s56
      %p63 = scmp.eq.s32.totalorder %s25, 1
      %p64 = por %p62, %p63
      %p65 = scmp.ne.s32.totalorder %s56, %s57
      %p66 = scmp.eq.s32.totalorder %s25, 0
      %p67 = por %p65, %p66
      %p68 = scmp.ne.s32.totalorder %s56, %s57
      %p69 = scmp.eq.s32.totalorder %s26, 1
      %p70 = por %p68, %p69
      %p72 = scmp.ne.s32.totalorder %s57, %s71
      %p73 = scmp.eq.s32.totalorder %s26, 0
      %p74 = por %p72, %p73
      %s76 = sadd.s32 %s75, 1
      %p79 = scmp.eq.s32.totalorder %s20, 1
      %p80 = scmp.ne.s32.totalorder %s75, %s77
      %p81 = scmp.eq.s32.totalorder %s20, 0
      %p82 = por %p80, %p81
      %p83 = scmp.ne.s32.totalorder %s75, %s77
      %p84 = scmp.eq.s32.totalorder %s25, 1
      %p85 = por %p83, %p84
      %p86 = scmp.ne.s32.totalorder %s77, %s78
      %p87 = scmp.eq.s32.totalorder %s25, 0
      %p88 = por %p86, %p87
      %p89 = scmp.ne.s32.totalorder %s77, %s78
      %p90 = scmp.eq.s32.totalorder %s26, 1
      %p91 = por %p89, %p90
      %p93 = scmp.ne.s32.totalorder %s78, %s92
      %p94 = scmp.eq.s32.totalorder %s26, 0
      %p95 = por %p93, %p94
      %s97 = sadd.s32 %s96, 1
      %p100 = scmp.eq.s32.totalorder %s20, 1
      %p101 = scmp.ne.s32.totalorder %s96, %s98
      %p102 = scmp.eq.s32.totalorder %s20, 0
      %p103 = por %p101, %p102
      %p104 = scmp.ne.s32.totalorder %s96, %s98
      %p105 = scmp.eq.s32.totalorder %s25, 1
      %p106 = por %p104, %p105
      %p107 = scmp.ne.s32.totalorder %s98, %s99
      %p108 = scmp.eq.s32.totalorder %s25, 0
      %p109 = por %p107, %p108
      %p110 = scmp.ne.s32.totalorder %s98, %s99
      %p111 = scmp.eq.s32.totalorder %s26, 1
      %p112 = por %p110, %p111
      %p114 = scmp.ne.s32.totalorder %s99, %s113
      %p115 = scmp.eq.s32.totalorder %s26, 0
      %p116 = por %p114, %p115
      %s118 = sadd.s32 %s117, 1
      %p121 = scmp.eq.s32.totalorder %s20, 1
      %p122 = scmp.ne.s32.totalorder %s117, %s119
      %p123 = scmp.eq.s32.totalorder %s20, 0
      %p124 = por %p122, %p123
      %p125 = scmp.ne.s32.totalorder %s117, %s119
      %p126 = scmp.eq.s32.totalorder %s25, 1
      %p127 = por %p125, %p126
      %p128 = scmp.ne.s32.totalorder %s119, %s120
      %p129 = scmp.eq.s32.totalorder %s25, 0
      %p130 = por %p128, %p129
      %p131 = scmp.ne.s32.totalorder %s119, %s120
      %p132 = scmp.eq.s32.totalorder %s26, 1
      %p133 = por %p131, %p132
      %p135 = scmp.ne.s32.totalorder %s120, %s134
      %p136 = scmp.eq.s32.totalorder %s26, 0
      %p137 = por %p135, %p136
      %s139 = sadd.s32 %s138, 1
      %p142 = scmp.eq.s32.totalorder %s20, 1
      %p143 = scmp.ne.s32.totalorder %s138, %s140
      %p144 = scmp.eq.s32.totalorder %s20, 0
      %p145 = por %p143, %p144
      %p146 = scmp.ne.s32.totalorder %s138, %s140
      %p147 = scmp.eq.s32.totalorder %s25, 1
      %p148 = por %p146, %p147
      %p149 = scmp.ne.s32.totalorder %s140, %s141
      %p150 = scmp.eq.s32.totalorder %s25, 0
      %p151 = por %p149, %p150
      %p152 = scmp.ne.s32.totalorder %s140, %s141
      %p153 = scmp.eq.s32.totalorder %s26, 1
      %p154 = por %p152, %p153
      %p156 = scmp.ne.s32.totalorder %s141, %s155
      %p157 = scmp.eq.s32.totalorder %s26, 0
      %p158 = por %p156, %p157
      %s160 = sadd.s32 %s159, 1
      %p163 = scmp.eq.s32.totalorder %s20, 1
      %p164 = scmp.ne.s32.totalorder %s159, %s161
      %p165 = scmp.eq.s32.totalorder %s20, 0
      %p166 = por %p164, %p165
      %p167 = scmp.ne.s32.totalorder %s159, %s161
      %p168 = scmp.eq.s32.totalorder %s25, 1
      %p169 = por %p167, %p168
      %p170 = scmp.ne.s32.totalorder %s161, %s162
      %p171 = scmp.eq.s32.totalorder %s25, 0
      %p172 = por %p170, %p171
      %p173 = scmp.ne.s32.totalorder %s161, %s162
      %p174 = scmp.eq.s32.totalorder %s26, 1
      %p175 = por %p173, %p174
      %p177 = scmp.ne.s32.totalorder %s162, %s176
      %p178 = scmp.eq.s32.totalorder %s26, 0
      %p179 = por %p177, %p178
      %s181 = sadd.s32 %s180, 1
      %p184 = scmp.eq.s32.totalorder %s20, 1
      %p185 = scmp.ne.s32.totalorder %s180, %s182
      %p186 = scmp.eq.s32.totalorder %s20, 0
      %p187 = por %p185, %p186
      %p188 = scmp.ne.s32.totalorder %s180, %s182
      %p189 = scmp.eq.s32.totalorder %s25, 1
      %p190 = por %p188, %p189
      %p191 = scmp.ne.s32.totalorder %s182, %s183
      %p192 = scmp.eq.s32.totalorder %s25, 0
      %p193 = por %p191, %p192
      %p194 = scmp.ne.s32.totalorder %s182, %s183
      %p195 = scmp.eq.s32.totalorder %s26, 1
      %p196 = por %p194, %p195
      %p198 = scmp.ne.s32.totalorder %s183, %s197
      %p199 = scmp.eq.s32.totalorder %s26, 0
      %p200 = por %p198, %p199
      %s202 = sadd.s32 %s201, 1
      %p205 = scmp.eq.s32.totalorder %s20, 1
      %p206 = scmp.ne.s32.totalorder %s201, %s203
      %p207 = scmp.eq.s32.totalorder %s20, 0
      %p208 = por %p206, %p207
      %p209 = scmp.ne.s32.totalorder %s201, %s203
      %p210 = scmp.eq.s32.totalorder %s25, 1
      %p211 = por %p209, %p210
      %p212 = scmp.ne.s32.totalorder %s203, %s204
      %p213 = scmp.eq.s32.totalorder %s25, 0
      %p214 = por %p212, %p213
      %p215 = scmp.ne.s32.totalorder %s203, %s204
      %p216 = scmp.eq.s32.totalorder %s26, 1
      %p217 = por %p215, %p216
      %p219 = scmp.ne.s32.totalorder %s204, %s218
      %p220 = scmp.eq.s32.totalorder %s26, 0
      %p221 = por %p219, %p220
      %s223 = sadd.s32 %s222, 1
      %p226 = scmp.eq.s32.totalorder %s20, 1
      %p227 = scmp.ne.s32.totalorder %s222, %s224
      %p228 = scmp.eq.s32.totalorder %s20, 0
      %p229 = por %p227, %p228
      %p230 = scmp.ne.s32.totalorder %s222, %s224
      %p231 = scmp.eq.s32.totalorder %s25, 1
      %p232 = por %p230, %p231
      %p233 = scmp.ne.s32.totalorder %s224, %s225
      %p234 = scmp.eq.s32.totalorder %s25, 0
      %p235 = por %p233, %p234
      %p236 = scmp.ne.s32.totalorder %s224, %s225
      %p237 = scmp.eq.s32.totalorder %s26, 1
      %p238 = por %p236, %p237
      %p240 = scmp.ne.s32.totalorder %s225, %s239
      %p241 = scmp.eq.s32.totalorder %s26, 0
      %p242 = por %p240, %p241
      %s244 = sadd.s32 %s243, 1
      %p247 = scmp.eq.s32.totalorder %s20, 1
      %p248 = scmp.ne.s32.totalorder %s243, %s245
      %p249 = scmp.eq.s32.totalorder %s20, 0
      %p250 = por %p248, %p249
      %p251 = scmp.ne.s32.totalorder %s243, %s245
      %p252 = scmp.eq.s32.totalorder %s25, 1
      %p253 = por %p251, %p252
      %p254 = scmp.ne.s32.totalorder %s245, %s246
      %p255 = scmp.eq.s32.totalorder %s25, 0
      %p256 = por %p254, %p255
      %p257 = scmp.ne.s32.totalorder %s245, %s246
      %p258 = scmp.eq.s32.totalorder %s26, 1
      %p259 = por %p257, %p258
      %p261 = scmp.ne.s32.totalorder %s246, %s260
      %p262 = scmp.eq.s32.totalorder %s26, 0
      %p263 = por %p261, %p262
      %s264 = ssub.s32 %s20, %s27
      %p265 = scmp.eq.s32.totalorder %s264, 0
      %s267 = sadd.s32 %s266, 1
      %s268 = scalar_select %p265, %s266, %s267
      %p271 = pneg %p265
      %p272 = scmp.eq.s32.totalorder %s20, 1
      %p273 = por %p271, %p272
      %p274 = scmp.ne.s32.totalorder %s266, %s269
      %p275 = scmp.eq.s32.totalorder %s20, 0
      %p276 = por %p274, %p275
      %p277 = scmp.ne.s32.totalorder %s266, %s269
      %p278 = scmp.eq.s32.totalorder %s25, 1
      %p279 = por %p277, %p278
      %p280 = scmp.ne.s32.totalorder %s269, %s270
      %p281 = scmp.eq.s32.totalorder %s25, 0
      %p282 = por %p280, %p281
      %p283 = scmp.ne.s32.totalorder %s269, %s270
      %p284 = scmp.eq.s32.totalorder %s26, 1
      %p285 = por %p283, %p284
      %p287 = scmp.ne.s32.totalorder %s270, %s286
      %p288 = scmp.eq.s32.totalorder %s26, 0
      %p289 = por %p287, %p288
      %p290 = scmp.le.s32.totalorder 1, %s20
      %p291 = scmp.lt.s32.totalorder %s20, 3
      %p292 = pnand %p290, %p291
      %p293 = pneg %p292
      // Predicated region
      $region9: #{tpu_custom_call.1} parent=5 // pred_check
        _
      $region10: #{tpu_custom_call.1} parent=5 // pred_check_branch
        %295 = sbr.rel (%p292) target = $region12
      $region11: #{tpu_custom_call.1} parent=5 // pred_region
        %s296 = ssub.s32 %s20, 1
        // Predicated region
        $region13: #{tpu_custom_call.1} parent=11 // pred_check
          %p297 = pneg %p67
        $region14: #{tpu_custom_call.1} parent=11 // pred_check_branch
          %299 = sbr.rel (%p297) target = $region16
        $region15: #{tpu_custom_call.1} parent=11 // pred_region
          _
        $region16: #{tpu_custom_call.1} parent=11 // pred_fallthru
          _
        // Predicated region
        $region17: #{tpu_custom_call.1} parent=11 // pred_check
          %p300 = pneg %p88
        $region18: #{tpu_custom_call.1} parent=11 // pred_check_branch
          %302 = sbr.rel (%p300) target = $region20
        $region19: #{tpu_custom_call.1} parent=11 // pred_region
          _
        $region20: #{tpu_custom_call.1} parent=11 // pred_fallthru
          _
        // Predicated region
        $region21: #{tpu_custom_call.1} parent=11 // pred_check
          %p303 = pneg %p109
        $region22: #{tpu_custom_call.1} parent=11 // pred_check_branch
          %305 = sbr.rel (%p303) target = $region24
        $region23: #{tpu_custom_call.1} parent=11 // pred_region
          _
        $region24: #{tpu_custom_call.1} parent=11 // pred_fallthru
          _
        // Predicated region
        $region25: #{tpu_custom_call.1} parent=11 // pred_check
          %p306 = pneg %p130
        $region26: #{tpu_custom_call.1} parent=11 // pred_check_branch
          %308 = sbr.rel (%p306) target = $region28
        $region27: #{tpu_custom_call.1} parent=11 // pred_region
          _
        $region28: #{tpu_custom_call.1} parent=11 // pred_fallthru
          _
        // Predicated region
        $region29: #{tpu_custom_call.1} parent=11 // pred_check
          %p309 = pneg %p151
        $region30: #{tpu_custom_call.1} parent=11 // pred_check_branch
          %311 = sbr.rel (%p309) target = $region32
        $region31: #{tpu_custom_call.1} parent=11 // pred_region
          _
        $region32: #{tpu_custom_call.1} parent=11 // pred_fallthru
          _
        // Predicated region
        $region33: #{tpu_custom_call.1} parent=11 // pred_check
          %p312 = pneg %p172
        $region34: #{tpu_custom_call.1} parent=11 // pred_check_branch
          %314 = sbr.rel (%p312) target = $region36
        $region35: #{tpu_custom_call.1} parent=11 // pred_region
          _
        $region36: #{tpu_custom_call.1} parent=11 // pred_fallthru
          _
        // Predicated region
        $region37: #{tpu_custom_call.1} parent=11 // pred_check
          %p315 = pneg %p193
        $region38: #{tpu_custom_call.1} parent=11 // pred_check_branch
          %317 = sbr.rel (%p315) target = $region40
        $region39: #{tpu_custom_call.1} parent=11 // pred_region
          _
        $region40: #{tpu_custom_call.1} parent=11 // pred_fallthru
          _
        // Predicated region
        $region41: #{tpu_custom_call.1} parent=11 // pred_check
          %p318 = pneg %p214
        $region42: #{tpu_custom_call.1} parent=11 // pred_check_branch
          %320 = sbr.rel (%p318) target = $region44
        $region43: #{tpu_custom_call.1} parent=11 // pred_region
          _
        $region44: #{tpu_custom_call.1} parent=11 // pred_fallthru
          _
        // Predicated region
        $region45: #{tpu_custom_call.1} parent=11 // pred_check
          %p321 = pneg %p235
        $region46: #{tpu_custom_call.1} parent=11 // pred_check_branch
          %323 = sbr.rel (%p321) target = $region48
        $region47: #{tpu_custom_call.1} parent=11 // pred_region
          _
        $region48: #{tpu_custom_call.1} parent=11 // pred_fallthru
          _
        // Predicated region
        $region49: #{tpu_custom_call.1} parent=11 // pred_check
          %p324 = pneg %p256
        $region50: #{tpu_custom_call.1} parent=11 // pred_check_branch
          %326 = sbr.rel (%p324) target = $region52
        $region51: #{tpu_custom_call.1} parent=11 // pred_region
          _
        $region52: #{tpu_custom_call.1} parent=11 // pred_fallthru
          _
      $region12: #{tpu_custom_call.1} parent=5 // pred_fallthru
        _
      %p327 = scmp.lt.s32.totalorder %s20, 2
      // Predicated region
      $region53: #{tpu_custom_call.1} parent=5 // pred_check
        %p328 = pneg %p327
      $region54: #{tpu_custom_call.1} parent=5 // pred_check_branch
        %330 = sbr.rel (%p328) target = $region56
      $region55: #{tpu_custom_call.1} parent=5 // pred_region
        // Predicated region
        $region57: #{tpu_custom_call.1} parent=55 // pred_check
          %p331 = pneg %p40
        $region58: #{tpu_custom_call.1} parent=55 // pred_check_branch
          %333 = sbr.rel (%p331) target = $region60
        $region59: #{tpu_custom_call.1} parent=55 // pred_region
          %p334 = scmp.lt.s32.totalorder %s20, 1
          %s335 = scalar_select %p334, %s20, 1
          %s336 = smul.addr %s335, 32
          %s337 = smul.addr %s336, 8
          %s338 = scalar_lea.vmem %s0, %s337
        $region60: #{tpu_custom_call.1} parent=55 // pred_fallthru
          _
      $region56: #{tpu_custom_call.1} parent=5 // pred_fallthru
        _
      %p339 = scmp.le.s32.totalorder 1, %s20
      %p340 = scmp.lt.s32.totalorder %s20, 3
      %p341 = pnand %p339, %p340
      %p342 = pneg %p341
      // Predicated region
      $region61: #{tpu_custom_call.1} parent=5 // pred_check
        _
      $region62: #{tpu_custom_call.1} parent=5 // pred_check_branch
        %344 = sbr.rel (%p341) target = $region64
      $region63: #{tpu_custom_call.1} parent=5 // pred_region
        %s345 = ssub.s32 %s20, 1
        %p346 = scmp.lt.s32.totalorder %s25, 1
        %s347 = scalar_select %p346, %s25, 1
        %s348 = smul.addr %s347, 32
        %s349 = smul.addr %s348, 8
        %s350 = scalar_lea.vmem %s0, %s349
        %p351 = pneg %p46
        %p352 = pneg %p43
        %p353 = pneg %p67
        %p354 = pneg %p64
        %p355 = pneg %p88
        %p356 = pneg %p85
        %p357 = pneg %p109
        %p358 = pneg %p106
        %p359 = pneg %p130
        %p360 = pneg %p127
        %p361 = pneg %p151
        %p362 = pneg %p148
        %p363 = pneg %p172
        %p364 = pneg %p169
        %p365 = pneg %p193
        %p366 = pneg %p190
        %p367 = pneg %p214
        %p368 = pneg %p211
        %p369 = pneg %p235
        %p370 = pneg %p232
        %p371 = pneg %p256
        %p372 = pneg %p253
        %p373 = pneg %p282
        %p374 = pneg %p279
        %s375 = sand.u32 %s269, 1
        %s376 = scalar_lea.sflag [#allocation4], %s375
        %s377 = sand.u32 %s269, 1
        %s378 = smul.addr %s377, 256
        %s379 = scalar_lea.vmem [#allocation3], %s378
        %p380 = scmp.lt.s32.totalorder %s25, 1
        %s381 = scalar_select %p380, %s25, 1
        %s382 = smul.addr %s381, 32
        %s383 = smul.addr %s382, 8
        %s384 = scalar_lea.vmem %s0, %s383
        %vm385 = vcmask 392192
        %386 = vst.msk [vmem:[#allocation2] sm:$0xff] %vm385, 0.0
        %387 = vst.msk [vmem:[#allocation2 + $0x8] sm:$0xff] %vm385, 0.0
        %vm388 = vcmask 386048
        %389 = vst.msk [vmem:[#allocation2 + $0x10] sm:$0x3] %vm388, 0.0
        %s390 = scalar_lea.vmem [#allocation2], 408
        %391 = vst.msk [vmem:[%s390] sm:$0xff] %vm385, 0.0
        %392 = vst.msk [vmem:[%s390 + $0x8] sm:$0xff] %vm385, 0.0
        %393 = vst.msk [vmem:[%s390 + $0x10] sm:$0x3] %vm388, 0.0
        %vm394 = vcmask 385024
        %395 = vst.msk [vmem:[#allocation2] sm:$0x1] %vm394, 0.0
        %396 = vst.msk [vmem:[#allocation2 + $0x18] sm:$0x1] %vm394, 0.0
        %397 = vst.msk [vmem:[#allocation2 + $0x30] sm:$0x1] %vm394, 0.0
        %398 = vst.msk [vmem:[#allocation2 + $0x48] sm:$0x1] %vm394, 0.0
        %399 = vst.msk [vmem:[#allocation2 + $0x60] sm:$0x1] %vm394, 0.0
        %400 = vst.msk [vmem:[#allocation2 + $0x78] sm:$0x1] %vm394, 0.0
        %401 = vst.msk [vmem:[#allocation2 + $0x90] sm:$0x1] %vm394, 0.0
        %402 = vst.msk [vmem:[#allocation2 + $0xa8] sm:$0x1] %vm394, 0.0
        %403 = vst.msk [vmem:[#allocation2 + $0xc0] sm:$0x1] %vm394, 0.0
        %404 = vst.msk [vmem:[#allocation2 + $0xd8] sm:$0x1] %vm394, 0.0
        %405 = vst.msk [vmem:[#allocation2 + $0xf0] sm:$0x1] %vm394, 0.0
        %406 = vst.msk [vmem:[#allocation2 + $0x108] sm:$0x1] %vm394, 0.0
        %407 = vst.msk [vmem:[#allocation2 + $0x120] sm:$0x1] %vm394, 0.0
        %408 = vst.msk [vmem:[#allocation2 + $0x138] sm:$0x1] %vm394, 0.0
        %409 = vst.msk [vmem:[#allocation2 + $0x150] sm:$0x1] %vm394, 0.0
        %410 = vst.msk [vmem:[#allocation2 + $0x168] sm:$0x1] %vm394, 0.0
        %411 = vst.msk [vmem:[#allocation2 + $0x180] sm:$0x1] %vm394, 0.0
        %412 = vst.msk [vmem:[#allocation2 + $0x198] sm:$0x1] %vm394, 0.0
        %413 = vst.msk [vmem:[#allocation2 + $0x11] sm:$0x1] %vm394, 0.0
        %414 = vst.msk [vmem:[#allocation2 + $0x29] sm:$0x1] %vm394, 0.0
        %415 = vst.msk [vmem:[#allocation2 + $0x41] sm:$0x1] %vm394, 0.0
        %416 = vst.msk [vmem:[#allocation2 + $0x59] sm:$0x1] %vm394, 0.0
        %417 = vst.msk [vmem:[#allocation2 + $0x71] sm:$0x1] %vm394, 0.0
        %418 = vst.msk [vmem:[#allocation2 + $0x89] sm:$0x1] %vm394, 0.0
        %419 = vst.msk [vmem:[#allocation2 + $0xa1] sm:$0x1] %vm394, 0.0
        %420 = vst.msk [vmem:[#allocation2 + $0xb9] sm:$0x1] %vm394, 0.0
        %421 = vst.msk [vmem:[#allocation2 + $0xd1] sm:$0x1] %vm394, 0.0
        %422 = vst.msk [vmem:[#allocation2 + $0xe9] sm:$0x1] %vm394, 0.0
        %423 = vst.msk [vmem:[#allocation2 + $0x101] sm:$0x1] %vm394, 0.0
        %424 = vst.msk [vmem:[#allocation2 + $0x119] sm:$0x1] %vm394, 0.0
        %425 = vst.msk [vmem:[#allocation2 + $0x131] sm:$0x1] %vm394, 0.0
        %426 = vst.msk [vmem:[#allocation2 + $0x149] sm:$0x1] %vm394, 0.0
        %427 = vst.msk [vmem:[#allocation2 + $0x161] sm:$0x1] %vm394, 0.0
        %428 = vst.msk [vmem:[#allocation2 + $0x179] sm:$0x1] %vm394, 0.0
        %429 = vst.msk [vmem:[#allocation2 + $0x191] sm:$0x1] %vm394, 0.0
        %430 = vst.msk [vmem:[#allocation2 + $0x1a9] sm:$0x1] %vm394, 0.0
        %v431 = vld [vmem:[%s384] sm:$0xff]
        %v432 = vld [vmem:[%s384 + $0x8] sm:$0xff]
        %v433 = vld [vmem:[%s384 + $0x10] sm:$0xff]
        %v434 = vld [vmem:[%s384 + $0x18] sm:$0xff]
        %v435 = vld [vmem:[%s384 + $0x20] sm:$0xff]
        %v436 = vld [vmem:[%s384 + $0x28] sm:$0xff]
        %v437 = vld [vmem:[%s384 + $0x30] sm:$0xff]
        %v438 = vld [vmem:[%s384 + $0x38] sm:$0xff]
        %v439 = vld [vmem:[%s384 + $0x40] sm:$0xff]
        %v440 = vld [vmem:[%s384 + $0x48] sm:$0xff]
        %v441 = vld [vmem:[%s384 + $0x50] sm:$0xff]
        %v442 = vld [vmem:[%s384 + $0x58] sm:$0xff]
        %v443 = vld [vmem:[%s384 + $0x60] sm:$0xff]
        %v444 = vld [vmem:[%s384 + $0x68] sm:$0xff]
        %v445 = vld [vmem:[%s384 + $0x70] sm:$0xff]
        %v446 = vld [vmem:[%s384 + $0x78] sm:$0xff]
        %v447 = vld [vmem:[%s384 + $0x80] sm:$0xff]
        %v448 = vld [vmem:[%s384 + $0x88] sm:$0xff]
        %v449 = vld [vmem:[%s384 + $0x90] sm:$0xff]
        %v450 = vld [vmem:[%s384 + $0x98] sm:$0xff]
        %v451 = vld [vmem:[%s384 + $0xa0] sm:$0xff]
        %v452 = vld [vmem:[%s384 + $0xa8] sm:$0xff]
        %v453 = vld [vmem:[%s384 + $0xb0] sm:$0xff]
        %v454 = vld [vmem:[%s384 + $0xb8] sm:$0xff]
        %v455 = vld [vmem:[%s384 + $0xc0] sm:$0xff]
        %v456 = vld [vmem:[%s384 + $0xc8] sm:$0xff]
        %v457 = vld [vmem:[%s384 + $0xd0] sm:$0xff]
        %v458 = vld [vmem:[%s384 + $0xd8] sm:$0xff]
        %v459 = vld [vmem:[%s384 + $0xe0] sm:$0xff]
        %v460 = vld [vmem:[%s384 + $0xe8] sm:$0xff]
        %v461 = vld [vmem:[%s384 + $0xf0] sm:$0xff]
        %v462 = vld [vmem:[%s384 + $0xf8] sm:$0xff]
        %s463 = scalar_lea.vmem [#allocation2], 24
        %vm464 = vcmask 130048
        %465 = vst.msk [vmem:[%s463 + $0x1] sm:$0xff] %vm464, %v431
        %466 = vst.msk [vmem:[%s463 + $0x9] sm:$0xff] %vm464, %v432
        %467 = vst.msk [vmem:[%s463 + $0x19] sm:$0xff] %vm464, %v433
        %468 = vst.msk [vmem:[%s463 + $0x21] sm:$0xff] %vm464, %v434
        %469 = vst.msk [vmem:[%s463 + $0x31] sm:$0xff] %vm464, %v435
        %470 = vst.msk [vmem:[%s463 + $0x39] sm:$0xff] %vm464, %v436
        %471 = vst.msk [vmem:[%s463 + $0x49] sm:$0xff] %vm464, %v437
        %472 = vst.msk [vmem:[%s463 + $0x51] sm:$0xff] %vm464, %v438
        %473 = vst.msk [vmem:[%s463 + $0x61] sm:$0xff] %vm464, %v439
        %474 = vst.msk [vmem:[%s463 + $0x69] sm:$0xff] %vm464, %v440
        %475 = vst.msk [vmem:[%s463 + $0x79] sm:$0xff] %vm464, %v441
        %476 = vst.msk [vmem:[%s463 + $0x81] sm:$0xff] %vm464, %v442
        %477 = vst.msk [vmem:[%s463 + $0x91] sm:$0xff] %vm464, %v443
        %478 = vst.msk [vmem:[%s463 + $0x99] sm:$0xff] %vm464, %v444
        %479 = vst.msk [vmem:[%s463 + $0xa9] sm:$0xff] %vm464, %v445
        %480 = vst.msk [vmem:[%s463 + $0xb1] sm:$0xff] %vm464, %v446
        %481 = vst.msk [vmem:[%s463 + $0xc1] sm:$0xff] %vm464, %v447
        %482 = vst.msk [vmem:[%s463 + $0xc9] sm:$0xff] %vm464, %v448
        %483 = vst.msk [vmem:[%s463 + $0xd9] sm:$0xff] %vm464, %v449
        %484 = vst.msk [vmem:[%s463 + $0xe1] sm:$0xff] %vm464, %v450
        %485 = vst.msk [vmem:[%s463 + $0xf1] sm:$0xff] %vm464, %v451
        %486 = vst.msk [vmem:[%s463 + $0xf9] sm:$0xff] %vm464, %v452
        %487 = vst.msk [vmem:[%s463 + $0x109] sm:$0xff] %vm464, %v453
        %488 = vst.msk [vmem:[%s463 + $0x111] sm:$0xff] %vm464, %v454
        %489 = vst.msk [vmem:[%s463 + $0x121] sm:$0xff] %vm464, %v455
        %490 = vst.msk [vmem:[%s463 + $0x129] sm:$0xff] %vm464, %v456
        %491 = vst.msk [vmem:[%s463 + $0x139] sm:$0xff] %vm464, %v457
        %492 = vst.msk [vmem:[%s463 + $0x141] sm:$0xff] %vm464, %v458
        %493 = vst.msk [vmem:[%s463 + $0x151] sm:$0xff] %vm464, %v459
        %494 = vst.msk [vmem:[%s463 + $0x159] sm:$0xff] %vm464, %v460
        %495 = vst.msk [vmem:[%s463 + $0x169] sm:$0xff] %vm464, %v461
        %496 = vst.msk [vmem:[%s463 + $0x171] sm:$0xff] %vm464, %v462
        %v497 = vld [vmem:[#allocation2] sm:$0xff]
        %v498 = vld [vmem:[#allocation2 + $0x8] sm:$0xff]
        %v499 = vld [vmem:[#allocation2 + $0x18] sm:$0xff]
        %v500 = vld [vmem:[#allocation2 + $0x20] sm:$0xff]
        %v501 = vld [vmem:[#allocation2 + $0x30] sm:$0xff]
        %v502 = vld [vmem:[#allocation2 + $0x38] sm:$0xff]
        %v503 = vld [vmem:[#allocation2 + $0x48] sm:$0xff]
        %v504 = vld [vmem:[#allocation2 + $0x50] sm:$0xff]
        %v505 = vld [vmem:[#allocation2 + $0x60] sm:$0xff]
        %v506 = vld [vmem:[#allocation2 + $0x68] sm:$0xff]
        %v507 = vld [vmem:[#allocation2 + $0x78] sm:$0xff]
        %v508 = vld [vmem:[#allocation2 + $0x80] sm:$0xff]
        %v509 = vld [vmem:[#allocation2 + $0x90] sm:$0xff]
        %v510 = vld [vmem:[#allocation2 + $0x98] sm:$0xff]
        %v511 = vld [vmem:[#allocation2 + $0xa8] sm:$0xff]
        %v512 = vld [vmem:[#allocation2 + $0xb0] sm:$0xff]
        %v513 = vld [vmem:[#allocation2 + $0xc0] sm:$0xff]
        %v514 = vld [vmem:[#allocation2 + $0xc8] sm:$0xff]
        %v515 = vld [vmem:[#allocation2 + $0xd8] sm:$0xff]
        %v516 = vld [vmem:[#allocation2 + $0xe0] sm:$0xff]
        %v517 = vld [vmem:[#allocation2 + $0xf0] sm:$0xff]
        %v518 = vld [vmem:[#allocation2 + $0xf8] sm:$0xff]
        %v519 = vld [vmem:[#allocation2 + $0x108] sm:$0xff]
        %v520 = vld [vmem:[#allocation2 + $0x110] sm:$0xff]
        %v521 = vld [vmem:[#allocation2 + $0x120] sm:$0xff]
        %v522 = vld [vmem:[#allocation2 + $0x128] sm:$0xff]
        %v523 = vld [vmem:[#allocation2 + $0x138] sm:$0xff]
        %v524 = vld [vmem:[#allocation2 + $0x140] sm:$0xff]
        %v525 = vld [vmem:[#allocation2 + $0x150] sm:$0xff]
        %v526 = vld [vmem:[#allocation2 + $0x158] sm:$0xff]
        %v527 = vld [vmem:[#allocation2 + $0x168] sm:$0xff]
        %v528 = vld [vmem:[#allocation2 + $0x170] sm:$0xff]
        %v529 = vld [vmem:[#allocation2 + $0x1] sm:$0xff]
        %v530 = vld [vmem:[#allocation2 + $0x9] sm:$0xff]
        %v531 = vld [vmem:[#allocation2 + $0x19] sm:$0xff]
        %v532 = vld [vmem:[#allocation2 + $0x21] sm:$0xff]
        %v533 = vld [vmem:[#allocation2 + $0x31] sm:$0xff]
        %v534 = vld [vmem:[#allocation2 + $0x39] sm:$0xff]
        %v535 = vld [vmem:[#allocation2 + $0x49] sm:$0xff]
        %v536 = vld [vmem:[#allocation2 + $0x51] sm:$0xff]
        %v537 = vld [vmem:[#allocation2 + $0x61] sm:$0xff]
        %v538 = vld [vmem:[#allocation2 + $0x69] sm:$0xff]
        %v539 = vld [vmem:[#allocation2 + $0x79] sm:$0xff]
        %v540 = vld [vmem:[#allocation2 + $0x81] sm:$0xff]
        %v541 = vld [vmem:[#allocation2 + $0x91] sm:$0xff]
        %v542 = vld [vmem:[#allocation2 + $0x99] sm:$0xff]
        %v543 = vld [vmem:[#allocation2 + $0xa9] sm:$0xff]
        %v544 = vld [vmem:[#allocation2 + $0xb1] sm:$0xff]
        %v545 = vld [vmem:[#allocation2 + $0xc1] sm:$0xff]
        %v546 = vld [vmem:[#allocation2 + $0xc9] sm:$0xff]
        %v547 = vld [vmem:[#allocation2 + $0xd9] sm:$0xff]
        %v548 = vld [vmem:[#allocation2 + $0xe1] sm:$0xff]
        %v549 = vld [vmem:[#allocation2 + $0xf1] sm:$0xff]
        %v550 = vld [vmem:[#allocation2 + $0xf9] sm:$0xff]
        %v551 = vld [vmem:[#allocation2 + $0x109] sm:$0xff]
        %v552 = vld [vmem:[#allocation2 + $0x111] sm:$0xff]
        %v553 = vld [vmem:[#allocation2 + $0x121] sm:$0xff]
        %v554 = vld [vmem:[#allocation2 + $0x129] sm:$0xff]
        %v555 = vld [vmem:[#allocation2 + $0x139] sm:$0xff]
        %v556 = vld [vmem:[#allocation2 + $0x141] sm:$0xff]
        %v557 = vld [vmem:[#allocation2 + $0x151] sm:$0xff]
        %v558 = vld [vmem:[#allocation2 + $0x159] sm:$0xff]
        %v559 = vld [vmem:[#allocation2 + $0x169] sm:$0xff]
        %v560 = vld [vmem:[#allocation2 + $0x171] sm:$0xff]
        %v561 = vld [vmem:[#allocation2 + $0x2] sm:$0xff]
        %v562 = vld [vmem:[#allocation2 + $0xa] sm:$0xff]
        %v563 = vld [vmem:[#allocation2 + $0x1a] sm:$0xff]
        %v564 = vld [vmem:[#allocation2 + $0x22] sm:$0xff]
        %v565 = vld [vmem:[#allocation2 + $0x32] sm:$0xff]
        %v566 = vld [vmem:[#allocation2 + $0x3a] sm:$0xff]
        %v567 = vld [vmem:[#allocation2 + $0x4a] sm:$0xff]
        %v568 = vld [vmem:[#allocation2 + $0x52] sm:$0xff]
        %v569 = vld [vmem:[#allocation2 + $0x62] sm:$0xff]
        %v570 = vld [vmem:[#allocation2 + $0x6a] sm:$0xff]
        %v571 = vld [vmem:[#allocation2 + $0x7a] sm:$0xff]
        %v572 = vld [vmem:[#allocation2 + $0x82] sm:$0xff]
        %v573 = vld [vmem:[#allocation2 + $0x92] sm:$0xff]
        %v574 = vld [vmem:[#allocation2 + $0x9a] sm:$0xff]
        %v575 = vld [vmem:[#allocation2 + $0xaa] sm:$0xff]
        %v576 = vld [vmem:[#allocation2 + $0xb2] sm:$0xff]
        %v577 = vld [vmem:[#allocation2 + $0xc2] sm:$0xff]
        %v578 = vld [vmem:[#allocation2 + $0xca] sm:$0xff]
        %v579 = vld [vmem:[#allocation2 + $0xda] sm:$0xff]
        %v580 = vld [vmem:[#allocation2 + $0xe2] sm:$0xff]
        %v581 = vld [vmem:[#allocation2 + $0xf2] sm:$0xff]
        %v582 = vld [vmem:[#allocation2 + $0xfa] sm:$0xff]
        %v583 = vld [vmem:[#allocation2 + $0x10a] sm:$0xff]
        %v584 = vld [vmem:[#allocation2 + $0x112] sm:$0xff]
        %v585 = vld [vmem:[#allocation2 + $0x122] sm:$0xff]
        %v586 = vld [vmem:[#allocation2 + $0x12a] sm:$0xff]
        %v587 = vld [vmem:[#allocation2 + $0x13a] sm:$0xff]
        %v588 = vld [vmem:[#allocation2 + $0x142] sm:$0xff]
        %v589 = vld [vmem:[#allocation2 + $0x152] sm:$0xff]
        %v590 = vld [vmem:[#allocation2 + $0x15a] sm:$0xff]
        %v591 = vld [vmem:[#allocation2 + $0x16a] sm:$0xff]
        %v592 = vld [vmem:[#allocation2 + $0x172] sm:$0xff]
        %v593 = vld [vmem:[%s463] sm:$0xff]
        %v594 = vld [vmem:[%s463 + $0x8] sm:$0xff]
        %v595 = vld [vmem:[%s463 + $0x18] sm:$0xff]
        %v596 = vld [vmem:[%s463 + $0x20] sm:$0xff]
        %v597 = vld [vmem:[%s463 + $0x30] sm:$0xff]
        %v598 = vld [vmem:[%s463 + $0x38] sm:$0xff]
        %v599 = vld [vmem:[%s463 + $0x48] sm:$0xff]
        %v600 = vld [vmem:[%s463 + $0x50] sm:$0xff]
        %v601 = vld [vmem:[%s463 + $0x60] sm:$0xff]
        %v602 = vld [vmem:[%s463 + $0x68] sm:$0xff]
        %v603 = vld [vmem:[%s463 + $0x78] sm:$0xff]
        %v604 = vld [vmem:[%s463 + $0x80] sm:$0xff]
        %v605 = vld [vmem:[%s463 + $0x90] sm:$0xff]
        %v606 = vld [vmem:[%s463 + $0x98] sm:$0xff]
        %v607 = vld [vmem:[%s463 + $0xa8] sm:$0xff]
        %v608 = vld [vmem:[%s463 + $0xb0] sm:$0xff]
        %v609 = vld [vmem:[%s463 + $0xc0] sm:$0xff]
        %v610 = vld [vmem:[%s463 + $0xc8] sm:$0xff]
        %v611 = vld [vmem:[%s463 + $0xd8] sm:$0xff]
        %v612 = vld [vmem:[%s463 + $0xe0] sm:$0xff]
        %v613 = vld [vmem:[%s463 + $0xf0] sm:$0xff]
        %v614 = vld [vmem:[%s463 + $0xf8] sm:$0xff]
        %v615 = vld [vmem:[%s463 + $0x108] sm:$0xff]
        %v616 = vld [vmem:[%s463 + $0x110] sm:$0xff]
        %v617 = vld [vmem:[%s463 + $0x120] sm:$0xff]
        %v618 = vld [vmem:[%s463 + $0x128] sm:$0xff]
        %v619 = vld [vmem:[%s463 + $0x138] sm:$0xff]
        %v620 = vld [vmem:[%s463 + $0x140] sm:$0xff]
        %v621 = vld [vmem:[%s463 + $0x150] sm:$0xff]
        %v622 = vld [vmem:[%s463 + $0x158] sm:$0xff]
        %v623 = vld [vmem:[%s463 + $0x168] sm:$0xff]
        %v624 = vld [vmem:[%s463 + $0x170] sm:$0xff]
        %v625 = vld [vmem:[%s463 + $0x1] sm:$0xff]
        %v626 = vld [vmem:[%s463 + $0x9] sm:$0xff]
        %v627 = vld [vmem:[%s463 + $0x19] sm:$0xff]
        %v628 = vld [vmem:[%s463 + $0x21] sm:$0xff]
        %v629 = vld [vmem:[%s463 + $0x31] sm:$0xff]
        %v630 = vld [vmem:[%s463 + $0x39] sm:$0xff]
        %v631 = vld [vmem:[%s463 + $0x49] sm:$0xff]
        %v632 = vld [vmem:[%s463 + $0x51] sm:$0xff]
        %v633 = vld [vmem:[%s463 + $0x61] sm:$0xff]
        %v634 = vld [vmem:[%s463 + $0x69] sm:$0xff]
        %v635 = vld [vmem:[%s463 + $0x79] sm:$0xff]
        %v636 = vld [vmem:[%s463 + $0x81] sm:$0xff]
        %v637 = vld [vmem:[%s463 + $0x91] sm:$0xff]
        %v638 = vld [vmem:[%s463 + $0x99] sm:$0xff]
        %v639 = vld [vmem:[%s463 + $0xa9] sm:$0xff]
        %v640 = vld [vmem:[%s463 + $0xb1] sm:$0xff]
        %v641 = vld [vmem:[%s463 + $0xc1] sm:$0xff]
        %v642 = vld [vmem:[%s463 + $0xc9] sm:$0xff]
        %v643 = vld [vmem:[%s463 + $0xd9] sm:$0xff]
        %v644 = vld [vmem:[%s463 + $0xe1] sm:$0xff]
        %v645 = vld [vmem:[%s463 + $0xf1] sm:$0xff]
        %v646 = vld [vmem:[%s463 + $0xf9] sm:$0xff]
        %v647 = vld [vmem:[%s463 + $0x109] sm:$0xff]
        %v648 = vld [vmem:[%s463 + $0x111] sm:$0xff]
        %v649 = vld [vmem:[%s463 + $0x121] sm:$0xff]
        %v650 = vld [vmem:[%s463 + $0x129] sm:$0xff]
        %v651 = vld [vmem:[%s463 + $0x139] sm:$0xff]
        %v652 = vld [vmem:[%s463 + $0x141] sm:$0xff]
        %v653 = vld [vmem:[%s463 + $0x151] sm:$0xff]
        %v654 = vld [vmem:[%s463 + $0x159] sm:$0xff]
        %v655 = vld [vmem:[%s463 + $0x169] sm:$0xff]
        %v656 = vld [vmem:[%s463 + $0x171] sm:$0xff]
        %v657 = vld [vmem:[%s463 + $0x2] sm:$0xff]
        %v658 = vld [vmem:[%s463 + $0xa] sm:$0xff]
        %v659 = vld [vmem:[%s463 + $0x1a] sm:$0xff]
        %v660 = vld [vmem:[%s463 + $0x22] sm:$0xff]
        %v661 = vld [vmem:[%s463 + $0x32] sm:$0xff]
        %v662 = vld [vmem:[%s463 + $0x3a] sm:$0xff]
        %v663 = vld [vmem:[%s463 + $0x4a] sm:$0xff]
        %v664 = vld [vmem:[%s463 + $0x52] sm:$0xff]
        %v665 = vld [vmem:[%s463 + $0x62] sm:$0xff]
        %v666 = vld [vmem:[%s463 + $0x6a] sm:$0xff]
        %v667 = vld [vmem:[%s463 + $0x7a] sm:$0xff]
        %v668 = vld [vmem:[%s463 + $0x82] sm:$0xff]
        %v669 = vld [vmem:[%s463 + $0x92] sm:$0xff]
        %v670 = vld [vmem:[%s463 + $0x9a] sm:$0xff]
        %v671 = vld [vmem:[%s463 + $0xaa] sm:$0xff]
        %v672 = vld [vmem:[%s463 + $0xb2] sm:$0xff]
        %v673 = vld [vmem:[%s463 + $0xc2] sm:$0xff]
        %v674 = vld [vmem:[%s463 + $0xca] sm:$0xff]
        %v675 = vld [vmem:[%s463 + $0xda] sm:$0xff]
        %v676 = vld [vmem:[%s463 + $0xe2] sm:$0xff]
        %v677 = vld [vmem:[%s463 + $0xf2] sm:$0xff]
        %v678 = vld [vmem:[%s463 + $0xfa] sm:$0xff]
        %v679 = vld [vmem:[%s463 + $0x10a] sm:$0xff]
        %v680 = vld [vmem:[%s463 + $0x112] sm:$0xff]
        %v681 = vld [vmem:[%s463 + $0x122] sm:$0xff]
        %v682 = vld [vmem:[%s463 + $0x12a] sm:$0xff]
        %v683 = vld [vmem:[%s463 + $0x13a] sm:$0xff]
        %v684 = vld [vmem:[%s463 + $0x142] sm:$0xff]
        %v685 = vld [vmem:[%s463 + $0x152] sm:$0xff]
        %v686 = vld [vmem:[%s463 + $0x15a] sm:$0xff]
        %v687 = vld [vmem:[%s463 + $0x16a] sm:$0xff]
        %v688 = vld [vmem:[%s463 + $0x172] sm:$0xff]
        %s689 = scalar_lea.vmem [#allocation2], 48
        %v690 = vld [vmem:[%s689] sm:$0xff]
        %v691 = vld [vmem:[%s689 + $0x8] sm:$0xff]
        %v692 = vld [vmem:[%s689 + $0x18] sm:$0xff]
        %v693 = vld [vmem:[%s689 + $0x20] sm:$0xff]
        %v694 = vld [vmem:[%s689 + $0x30] sm:$0xff]
        %v695 = vld [vmem:[%s689 + $0x38] sm:$0xff]
        %v696 = vld [vmem:[%s689 + $0x48] sm:$0xff]
        %v697 = vld [vmem:[%s689 + $0x50] sm:$0xff]
        %v698 = vld [vmem:[%s689 + $0x60] sm:$0xff]
        %v699 = vld [vmem:[%s689 + $0x68] sm:$0xff]
        %v700 = vld [vmem:[%s689 + $0x78] sm:$0xff]
        %v701 = vld [vmem:[%s689 + $0x80] sm:$0xff]
        %v702 = vld [vmem:[%s689 + $0x90] sm:$0xff]
        %v703 = vld [vmem:[%s689 + $0x98] sm:$0xff]
        %v704 = vld [vmem:[%s689 + $0xa8] sm:$0xff]
        %v705 = vld [vmem:[%s689 + $0xb0] sm:$0xff]
        %v706 = vld [vmem:[%s689 + $0xc0] sm:$0xff]
        %v707 = vld [vmem:[%s689 + $0xc8] sm:$0xff]
        %v708 = vld [vmem:[%s689 + $0xd8] sm:$0xff]
        %v709 = vld [vmem:[%s689 + $0xe0] sm:$0xff]
        %v710 = vld [vmem:[%s689 + $0xf0] sm:$0xff]
        %v711 = vld [vmem:[%s689 + $0xf8] sm:$0xff]
        %v712 = vld [vmem:[%s689 + $0x108] sm:$0xff]
        %v713 = vld [vmem:[%s689 + $0x110] sm:$0xff]
        %v714 = vld [vmem:[%s689 + $0x120] sm:$0xff]
        %v715 = vld [vmem:[%s689 + $0x128] sm:$0xff]
        %v716 = vld [vmem:[%s689 + $0x138] sm:$0xff]
        %v717 = vld [vmem:[%s689 + $0x140] sm:$0xff]
        %v718 = vld [vmem:[%s689 + $0x150] sm:$0xff]
        %v719 = vld [vmem:[%s689 + $0x158] sm:$0xff]
        %v720 = vld [vmem:[%s689 + $0x168] sm:$0xff]
        %v721 = vld [vmem:[%s689 + $0x170] sm:$0xff]
        %v722 = vld [vmem:[%s689 + $0x1] sm:$0xff]
        %v723 = vld [vmem:[%s689 + $0x9] sm:$0xff]
        %v724 = vld [vmem:[%s689 + $0x19] sm:$0xff]
        %v725 = vld [vmem:[%s689 + $0x21] sm:$0xff]
        %v726 = vld [vmem:[%s689 + $0x31] sm:$0xff]
        %v727 = vld [vmem:[%s689 + $0x39] sm:$0xff]
        %v728 = vld [vmem:[%s689 + $0x49] sm:$0xff]
        %v729 = vld [vmem:[%s689 + $0x51] sm:$0xff]
        %v730 = vld [vmem:[%s689 + $0x61] sm:$0xff]
        %v731 = vld [vmem:[%s689 + $0x69] sm:$0xff]
        %v732 = vld [vmem:[%s689 + $0x79] sm:$0xff]
        %v733 = vld [vmem:[%s689 + $0x81] sm:$0xff]
        %v734 = vld [vmem:[%s689 + $0x91] sm:$0xff]
        %v735 = vld [vmem:[%s689 + $0x99] sm:$0xff]
        %v736 = vld [vmem:[%s689 + $0xa9] sm:$0xff]
        %v737 = vld [vmem:[%s689 + $0xb1] sm:$0xff]
        %v738 = vld [vmem:[%s689 + $0xc1] sm:$0xff]
        %v739 = vld [vmem:[%s689 + $0xc9] sm:$0xff]
        %v740 = vld [vmem:[%s689 + $0xd9] sm:$0xff]
        %v741 = vld [vmem:[%s689 + $0xe1] sm:$0xff]
        %v742 = vld [vmem:[%s689 + $0xf1] sm:$0xff]
        %v743 = vld [vmem:[%s689 + $0xf9] sm:$0xff]
        %v744 = vld [vmem:[%s689 + $0x109] sm:$0xff]
        %v745 = vld [vmem:[%s689 + $0x111] sm:$0xff]
        %v746 = vld [vmem:[%s689 + $0x121] sm:$0xff]
        %v747 = vld [vmem:[%s689 + $0x129] sm:$0xff]
        %v748 = vld [vmem:[%s689 + $0x139] sm:$0xff]
        %v749 = vld [vmem:[%s689 + $0x141] sm:$0xff]
        %v750 = vld [vmem:[%s689 + $0x151] sm:$0xff]
        %v751 = vld [vmem:[%s689 + $0x159] sm:$0xff]
        %v752 = vld [vmem:[%s689 + $0x169] sm:$0xff]
        %v753 = vld [vmem:[%s689 + $0x171] sm:$0xff]
        %v754 = vld [vmem:[%s689 + $0x2] sm:$0xff]
        %v755 = vld [vmem:[%s689 + $0xa] sm:$0xff]
        %v756 = vld [vmem:[%s689 + $0x1a] sm:$0xff]
        %v757 = vld [vmem:[%s689 + $0x22] sm:$0xff]
        %v758 = vld [vmem:[%s689 + $0x32] sm:$0xff]
        %v759 = vld [vmem:[%s689 + $0x3a] sm:$0xff]
        %v760 = vld [vmem:[%s689 + $0x4a] sm:$0xff]
        %v761 = vld [vmem:[%s689 + $0x52] sm:$0xff]
        %v762 = vld [vmem:[%s689 + $0x62] sm:$0xff]
        %v763 = vld [vmem:[%s689 + $0x6a] sm:$0xff]
        %v764 = vld [vmem:[%s689 + $0x7a] sm:$0xff]
        %v765 = vld [vmem:[%s689 + $0x82] sm:$0xff]
        %v766 = vld [vmem:[%s689 + $0x92] sm:$0xff]
        %v767 = vld [vmem:[%s689 + $0x9a] sm:$0xff]
        %v768 = vld [vmem:[%s689 + $0xaa] sm:$0xff]
        %v769 = vld [vmem:[%s689 + $0xb2] sm:$0xff]
        %v770 = vld [vmem:[%s689 + $0xc2] sm:$0xff]
        %v771 = vld [vmem:[%s689 + $0xca] sm:$0xff]
        %v772 = vld [vmem:[%s689 + $0xda] sm:$0xff]
        %v773 = vld [vmem:[%s689 + $0xe2] sm:$0xff]
        %v774 = vld [vmem:[%s689 + $0xf2] sm:$0xff]
        %v775 = vld [vmem:[%s689 + $0xfa] sm:$0xff]
        %v776 = vld [vmem:[%s689 + $0x10a] sm:$0xff]
        %v777 = vld [vmem:[%s689 + $0x112] sm:$0xff]
        %v778 = vld [vmem:[%s689 + $0x122] sm:$0xff]
        %v779 = vld [vmem:[%s689 + $0x12a] sm:$0xff]
        %v780 = vld [vmem:[%s689 + $0x13a] sm:$0xff]
        %v781 = vld [vmem:[%s689 + $0x142] sm:$0xff]
        %v782 = vld [vmem:[%s689 + $0x152] sm:$0xff]
        %v783 = vld [vmem:[%s689 + $0x15a] sm:$0xff]
        %v784 = vld [vmem:[%s689 + $0x16a] sm:$0xff]
        %v785 = vld [vmem:[%s689 + $0x172] sm:$0xff]
        %818 = vrot.lane.b32.xlu0 %v529, 16
        %v819 = vpop.permute.xlu0 %818
        %820 = vrot.lane.b32.xlu0 %v530, 16
        %v821 = vpop.permute.xlu0 %820
        %822 = vrot.lane.b32.xlu0 %v531, 16
        %v823 = vpop.permute.xlu0 %822
        %824 = vrot.lane.b32.xlu0 %v532, 16
        %v825 = vpop.permute.xlu0 %824
        %826 = vrot.lane.b32.xlu0 %v533, 16
        %v827 = vpop.permute.xlu0 %826
        %828 = vrot.lane.b32.xlu0 %v534, 16
        %v829 = vpop.permute.xlu0 %828
        %830 = vrot.lane.b32.xlu0 %v535, 16
        %v831 = vpop.permute.xlu0 %830
        %832 = vrot.lane.b32.xlu0 %v536, 16
        %v833 = vpop.permute.xlu0 %832
        %834 = vrot.lane.b32.xlu0 %v537, 16
        %v835 = vpop.permute.xlu0 %834
        %836 = vrot.lane.b32.xlu0 %v538, 16
        %v837 = vpop.permute.xlu0 %836
        %838 = vrot.lane.b32.xlu0 %v539, 16
        %v839 = vpop.permute.xlu0 %838
        %840 = vrot.lane.b32.xlu0 %v540, 16
        %v841 = vpop.permute.xlu0 %840
        %842 = vrot.lane.b32.xlu0 %v541, 16
        %v843 = vpop.permute.xlu0 %842
        %844 = vrot.lane.b32.xlu0 %v542, 16
        %v845 = vpop.permute.xlu0 %844
        %846 = vrot.lane.b32.xlu0 %v543, 16
        %v847 = vpop.permute.xlu0 %846
        %848 = vrot.lane.b32.xlu0 %v544, 16
        %v849 = vpop.permute.xlu0 %848
        %850 = vrot.lane.b32.xlu0 %v545, 16
        %v851 = vpop.permute.xlu0 %850
        %852 = vrot.lane.b32.xlu0 %v546, 16
        %v853 = vpop.permute.xlu0 %852
        %854 = vrot.lane.b32.xlu0 %v547, 16
        %v855 = vpop.permute.xlu0 %854
        %856 = vrot.lane.b32.xlu0 %v548, 16
        %v857 = vpop.permute.xlu0 %856
        %858 = vrot.lane.b32.xlu0 %v549, 16
        %v859 = vpop.permute.xlu0 %858
        %860 = vrot.lane.b32.xlu0 %v550, 16
        %v861 = vpop.permute.xlu0 %860
        %862 = vrot.lane.b32.xlu0 %v551, 16
        %v863 = vpop.permute.xlu0 %862
        %864 = vrot.lane.b32.xlu0 %v552, 16
        %v865 = vpop.permute.xlu0 %864
        %866 = vrot.lane.b32.xlu0 %v553, 16
        %v867 = vpop.permute.xlu0 %866
        %868 = vrot.lane.b32.xlu0 %v554, 16
        %v869 = vpop.permute.xlu0 %868
        %870 = vrot.lane.b32.xlu0 %v555, 16
        %v871 = vpop.permute.xlu0 %870
        %872 = vrot.lane.b32.xlu0 %v556, 16
        %v873 = vpop.permute.xlu0 %872
        %874 = vrot.lane.b32.xlu0 %v557, 16
        %v875 = vpop.permute.xlu0 %874
        %876 = vrot.lane.b32.xlu0 %v558, 16
        %v877 = vpop.permute.xlu0 %876
        %878 = vrot.lane.b32.xlu0 %v559, 16
        %v879 = vpop.permute.xlu0 %878
        %880 = vrot.lane.b32.xlu0 %v560, 16
        %v881 = vpop.permute.xlu0 %880
        %946 = vrot.lane.b32.xlu0 %v561, 32
        %v947 = vpop.permute.xlu0 %946
        %948 = vrot.lane.b32.xlu0 %v562, 32
        %v949 = vpop.permute.xlu0 %948
        %950 = vrot.lane.b32.xlu0 %v563, 32
        %v951 = vpop.permute.xlu0 %950
        %952 = vrot.lane.b32.xlu0 %v564, 32
        %v953 = vpop.permute.xlu0 %952
        %954 = vrot.lane.b32.xlu0 %v565, 32
        %v955 = vpop.permute.xlu0 %954
        %956 = vrot.lane.b32.xlu0 %v566, 32
        %v957 = vpop.permute.xlu0 %956
        %958 = vrot.lane.b32.xlu0 %v567, 32
        %v959 = vpop.permute.xlu0 %958
        %960 = vrot.lane.b32.xlu0 %v568, 32
        %v961 = vpop.permute.xlu0 %960
        %962 = vrot.lane.b32.xlu0 %v569, 32
        %v963 = vpop.permute.xlu0 %962
        %964 = vrot.lane.b32.xlu0 %v570, 32
        %v965 = vpop.permute.xlu0 %964
        %966 = vrot.lane.b32.xlu0 %v571, 32
        %v967 = vpop.permute.xlu0 %966
        %968 = vrot.lane.b32.xlu0 %v572, 32
        %v969 = vpop.permute.xlu0 %968
        %970 = vrot.lane.b32.xlu0 %v573, 32
        %v971 = vpop.permute.xlu0 %970
        %972 = vrot.lane.b32.xlu0 %v574, 32
        %v973 = vpop.permute.xlu0 %972
        %974 = vrot.lane.b32.xlu0 %v575, 32
        %v975 = vpop.permute.xlu0 %974
        %976 = vrot.lane.b32.xlu0 %v576, 32
        %v977 = vpop.permute.xlu0 %976
        %978 = vrot.lane.b32.xlu0 %v577, 32
        %v979 = vpop.permute.xlu0 %978
        %980 = vrot.lane.b32.xlu0 %v578, 32
        %v981 = vpop.permute.xlu0 %980
        %982 = vrot.lane.b32.xlu0 %v579, 32
        %v983 = vpop.permute.xlu0 %982
        %984 = vrot.lane.b32.xlu0 %v580, 32
        %v985 = vpop.permute.xlu0 %984
        %986 = vrot.lane.b32.xlu0 %v581, 32
        %v987 = vpop.permute.xlu0 %986
        %988 = vrot.lane.b32.xlu0 %v582, 32
        %v989 = vpop.permute.xlu0 %988
        %990 = vrot.lane.b32.xlu0 %v583, 32
        %v991 = vpop.permute.xlu0 %990
        %992 = vrot.lane.b32.xlu0 %v584, 32
        %v993 = vpop.permute.xlu0 %992
        %994 = vrot.lane.b32.xlu0 %v585, 32
        %v995 = vpop.permute.xlu0 %994
        %996 = vrot.lane.b32.xlu0 %v586, 32
        %v997 = vpop.permute.xlu0 %996
        %998 = vrot.lane.b32.xlu0 %v587, 32
        %v999 = vpop.permute.xlu0 %998
        %1000 = vrot.lane.b32.xlu0 %v588, 32
        %v1001 = vpop.permute.xlu0 %1000
        %1002 = vrot.lane.b32.xlu0 %v589, 32
        %v1003 = vpop.permute.xlu0 %1002
        %1004 = vrot.lane.b32.xlu0 %v590, 32
        %v1005 = vpop.permute.xlu0 %1004
        %1006 = vrot.lane.b32.xlu0 %v591, 32
        %v1007 = vpop.permute.xlu0 %1006
        %1008 = vrot.lane.b32.xlu0 %v592, 32
        %v1009 = vpop.permute.xlu0 %1008
        %1074 = vrot.lane.b32.xlu0 %v593, 48
        %v1075 = vpop.permute.xlu0 %1074
        %1076 = vrot.lane.b32.xlu0 %v594, 48
        %v1077 = vpop.permute.xlu0 %1076
        %1078 = vrot.lane.b32.xlu0 %v595, 48
        %v1079 = vpop.permute.xlu0 %1078
        %1080 = vrot.lane.b32.xlu0 %v596, 48
        %v1081 = vpop.permute.xlu0 %1080
        %1082 = vrot.lane.b32.xlu0 %v597, 48
        %v1083 = vpop.permute.xlu0 %1082
        %1084 = vrot.lane.b32.xlu0 %v598, 48
        %v1085 = vpop.permute.xlu0 %1084
        %1086 = vrot.lane.b32.xlu0 %v599, 48
        %v1087 = vpop.permute.xlu0 %1086
        %1088 = vrot.lane.b32.xlu0 %v600, 48
        %v1089 = vpop.permute.xlu0 %1088
        %1090 = vrot.lane.b32.xlu0 %v601, 48
        %v1091 = vpop.permute.xlu0 %1090
        %1092 = vrot.lane.b32.xlu0 %v602, 48
        %v1093 = vpop.permute.xlu0 %1092
        %1094 = vrot.lane.b32.xlu0 %v603, 48
        %v1095 = vpop.permute.xlu0 %1094
        %1096 = vrot.lane.b32.xlu0 %v604, 48
        %v1097 = vpop.permute.xlu0 %1096
        %1098 = vrot.lane.b32.xlu0 %v605, 48
        %v1099 = vpop.permute.xlu0 %1098
        %1100 = vrot.lane.b32.xlu0 %v606, 48
        %v1101 = vpop.permute.xlu0 %1100
        %1102 = vrot.lane.b32.xlu0 %v607, 48
        %v1103 = vpop.permute.xlu0 %1102
        %1104 = vrot.lane.b32.xlu0 %v608, 48
        %v1105 = vpop.permute.xlu0 %1104
        %1106 = vrot.lane.b32.xlu0 %v609, 48
        %v1107 = vpop.permute.xlu0 %1106
        %1108 = vrot.lane.b32.xlu0 %v610, 48
        %v1109 = vpop.permute.xlu0 %1108
        %1110 = vrot.lane.b32.xlu0 %v611, 48
        %v1111 = vpop.permute.xlu0 %1110
        %1112 = vrot.lane.b32.xlu0 %v612, 48
        %v1113 = vpop.permute.xlu0 %1112
        %1114 = vrot.lane.b32.xlu0 %v613, 48
        %v1115 = vpop.permute.xlu0 %1114
        %1116 = vrot.lane.b32.xlu0 %v614, 48
        %v1117 = vpop.permute.xlu0 %1116
        %1118 = vrot.lane.b32.xlu0 %v615, 48
        %v1119 = vpop.permute.xlu0 %1118
        %1120 = vrot.lane.b32.xlu0 %v616, 48
        %v1121 = vpop.permute.xlu0 %1120
        %1122 = vrot.lane.b32.xlu0 %v617, 48
        %v1123 = vpop.permute.xlu0 %1122
        %1124 = vrot.lane.b32.xlu0 %v618, 48
        %v1125 = vpop.permute.xlu0 %1124
        %1126 = vrot.lane.b32.xlu0 %v619, 48
        %v1127 = vpop.permute.xlu0 %1126
        %1128 = vrot.lane.b32.xlu0 %v620, 48
        %v1129 = vpop.permute.xlu0 %1128
        %1130 = vrot.lane.b32.xlu0 %v621, 48
        %v1131 = vpop.permute.xlu0 %1130
        %1132 = vrot.lane.b32.xlu0 %v622, 48
        %v1133 = vpop.permute.xlu0 %1132
        %1134 = vrot.lane.b32.xlu0 %v623, 48
        %v1135 = vpop.permute.xlu0 %1134
        %1136 = vrot.lane.b32.xlu0 %v624, 48
        %v1137 = vpop.permute.xlu0 %1136
        %1202 = vrot.lane.b32.xlu0 %v625, 64
        %v1203 = vpop.permute.xlu0 %1202
        %1204 = vrot.lane.b32.xlu0 %v626, 64
        %v1205 = vpop.permute.xlu0 %1204
        %1206 = vrot.lane.b32.xlu0 %v627, 64
        %v1207 = vpop.permute.xlu0 %1206
        %1208 = vrot.lane.b32.xlu0 %v628, 64
        %v1209 = vpop.permute.xlu0 %1208
        %1210 = vrot.lane.b32.xlu0 %v629, 64
        %v1211 = vpop.permute.xlu0 %1210
        %1212 = vrot.lane.b32.xlu0 %v630, 64
        %v1213 = vpop.permute.xlu0 %1212
        %1214 = vrot.lane.b32.xlu0 %v631, 64
        %v1215 = vpop.permute.xlu0 %1214
        %1216 = vrot.lane.b32.xlu0 %v632, 64
        %v1217 = vpop.permute.xlu0 %1216
        %1218 = vrot.lane.b32.xlu0 %v633, 64
        %v1219 = vpop.permute.xlu0 %1218
        %1220 = vrot.lane.b32.xlu0 %v634, 64
        %v1221 = vpop.permute.xlu0 %1220
        %1222 = vrot.lane.b32.xlu0 %v635, 64
        %v1223 = vpop.permute.xlu0 %1222
        %1224 = vrot.lane.b32.xlu0 %v636, 64
        %v1225 = vpop.permute.xlu0 %1224
        %1226 = vrot.lane.b32.xlu0 %v637, 64
        %v1227 = vpop.permute.xlu0 %1226
        %1228 = vrot.lane.b32.xlu0 %v638, 64
        %v1229 = vpop.permute.xlu0 %1228
        %1230 = vrot.lane.b32.xlu0 %v639, 64
        %v1231 = vpop.permute.xlu0 %1230
        %1232 = vrot.lane.b32.xlu0 %v640, 64
        %v1233 = vpop.permute.xlu0 %1232
        %1234 = vrot.lane.b32.xlu0 %v641, 64
        %v1235 = vpop.permute.xlu0 %1234
        %1236 = vrot.lane.b32.xlu0 %v642, 64
        %v1237 = vpop.permute.xlu0 %1236
        %1238 = vrot.lane.b32.xlu0 %v643, 64
        %v1239 = vpop.permute.xlu0 %1238
        %1240 = vrot.lane.b32.xlu0 %v644, 64
        %v1241 = vpop.permute.xlu0 %1240
        %1242 = vrot.lane.b32.xlu0 %v645, 64
        %v1243 = vpop.permute.xlu0 %1242
        %1244 = vrot.lane.b32.xlu0 %v646, 64
        %v1245 = vpop.permute.xlu0 %1244
        %1246 = vrot.lane.b32.xlu0 %v647, 64
        %v1247 = vpop.permute.xlu0 %1246
        %1248 = vrot.lane.b32.xlu0 %v648, 64
        %v1249 = vpop.permute.xlu0 %1248
        %1250 = vrot.lane.b32.xlu0 %v649, 64
        %v1251 = vpop.permute.xlu0 %1250
        %1252 = vrot.lane.b32.xlu0 %v650, 64
        %v1253 = vpop.permute.xlu0 %1252
        %1254 = vrot.lane.b32.xlu0 %v651, 64
        %v1255 = vpop.permute.xlu0 %1254
        %1256 = vrot.lane.b32.xlu0 %v652, 64
        %v1257 = vpop.permute.xlu0 %1256
        %1258 = vrot.lane.b32.xlu0 %v653, 64
        %v1259 = vpop.permute.xlu0 %1258
        %1260 = vrot.lane.b32.xlu0 %v654, 64
        %v1261 = vpop.permute.xlu0 %1260
        %1262 = vrot.lane.b32.xlu0 %v655, 64
        %v1263 = vpop.permute.xlu0 %1262
        %1264 = vrot.lane.b32.xlu0 %v656, 64
        %v1265 = vpop.permute.xlu0 %1264
        %1330 = vrot.lane.b32.xlu0 %v657, 80
        %v1331 = vpop.permute.xlu0 %1330
        %1332 = vrot.lane.b32.xlu0 %v658, 80
        %v1333 = vpop.permute.xlu0 %1332
        %1334 = vrot.lane.b32.xlu0 %v659, 80
        %v1335 = vpop.permute.xlu0 %1334
        %1336 = vrot.lane.b32.xlu0 %v660, 80
        %v1337 = vpop.permute.xlu0 %1336
        %1338 = vrot.lane.b32.xlu0 %v661, 80
        %v1339 = vpop.permute.xlu0 %1338
        %1340 = vrot.lane.b32.xlu0 %v662, 80
        %v1341 = vpop.permute.xlu0 %1340
        %1342 = vrot.lane.b32.xlu0 %v663, 80
        %v1343 = vpop.permute.xlu0 %1342
        %1344 = vrot.lane.b32.xlu0 %v664, 80
        %v1345 = vpop.permute.xlu0 %1344
        %1346 = vrot.lane.b32.xlu0 %v665, 80
        %v1347 = vpop.permute.xlu0 %1346
        %1348 = vrot.lane.b32.xlu0 %v666, 80
        %v1349 = vpop.permute.xlu0 %1348
        %1350 = vrot.lane.b32.xlu0 %v667, 80
        %v1351 = vpop.permute.xlu0 %1350
        %1352 = vrot.lane.b32.xlu0 %v668, 80
        %v1353 = vpop.permute.xlu0 %1352
        %1354 = vrot.lane.b32.xlu0 %v669, 80
        %v1355 = vpop.permute.xlu0 %1354
        %1356 = vrot.lane.b32.xlu0 %v670, 80
        %v1357 = vpop.permute.xlu0 %1356
        %1358 = vrot.lane.b32.xlu0 %v671, 80
        %v1359 = vpop.permute.xlu0 %1358
        %1360 = vrot.lane.b32.xlu0 %v672, 80
        %v1361 = vpop.permute.xlu0 %1360
        %1362 = vrot.lane.b32.xlu0 %v673, 80
        %v1363 = vpop.permute.xlu0 %1362
        %1364 = vrot.lane.b32.xlu0 %v674, 80
        %v1365 = vpop.permute.xlu0 %1364
        %1366 = vrot.lane.b32.xlu0 %v675, 80
        %v1367 = vpop.permute.xlu0 %1366
        %1368 = vrot.lane.b32.xlu0 %v676, 80
        %v1369 = vpop.permute.xlu0 %1368
        %1370 = vrot.lane.b32.xlu0 %v677, 80
        %v1371 = vpop.permute.xlu0 %1370
        %1372 = vrot.lane.b32.xlu0 %v678, 80
        %v1373 = vpop.permute.xlu0 %1372
        %1374 = vrot.lane.b32.xlu0 %v679, 80
        %v1375 = vpop.permute.xlu0 %1374
        %1376 = vrot.lane.b32.xlu0 %v680, 80
        %v1377 = vpop.permute.xlu0 %1376
        %1378 = vrot.lane.b32.xlu0 %v681, 80
        %v1379 = vpop.permute.xlu0 %1378
        %1380 = vrot.lane.b32.xlu0 %v682, 80
        %v1381 = vpop.permute.xlu0 %1380
        %1382 = vrot.lane.b32.xlu0 %v683, 80
        %v1383 = vpop.permute.xlu0 %1382
        %1384 = vrot.lane.b32.xlu0 %v684, 80
        %v1385 = vpop.permute.xlu0 %1384
        %1386 = vrot.lane.b32.xlu0 %v685, 80
        %v1387 = vpop.permute.xlu0 %1386
        %1388 = vrot.lane.b32.xlu0 %v686, 80
        %v1389 = vpop.permute.xlu0 %1388
        %1390 = vrot.lane.b32.xlu0 %v687, 80
        %v1391 = vpop.permute.xlu0 %1390
        %1392 = vrot.lane.b32.xlu0 %v688, 80
        %v1393 = vpop.permute.xlu0 %1392
        %1458 = vrot.lane.b32.xlu0 %v690, 96
        %v1459 = vpop.permute.xlu0 %1458
        %1460 = vrot.lane.b32.xlu0 %v691, 96
        %v1461 = vpop.permute.xlu0 %1460
        %1462 = vrot.lane.b32.xlu0 %v692, 96
        %v1463 = vpop.permute.xlu0 %1462
        %1464 = vrot.lane.b32.xlu0 %v693, 96
        %v1465 = vpop.permute.xlu0 %1464
        %1466 = vrot.lane.b32.xlu0 %v694, 96
        %v1467 = vpop.permute.xlu0 %1466
        %1468 = vrot.lane.b32.xlu0 %v695, 96
        %v1469 = vpop.permute.xlu0 %1468
        %1470 = vrot.lane.b32.xlu0 %v696, 96
        %v1471 = vpop.permute.xlu0 %1470
        %1472 = vrot.lane.b32.xlu0 %v697, 96
        %v1473 = vpop.permute.xlu0 %1472
        %1474 = vrot.lane.b32.xlu0 %v698, 96
        %v1475 = vpop.permute.xlu0 %1474
        %1476 = vrot.lane.b32.xlu0 %v699, 96
        %v1477 = vpop.permute.xlu0 %1476
        %1478 = vrot.lane.b32.xlu0 %v700, 96
        %v1479 = vpop.permute.xlu0 %1478
        %1480 = vrot.lane.b32.xlu0 %v701, 96
        %v1481 = vpop.permute.xlu0 %1480
        %1482 = vrot.lane.b32.xlu0 %v702, 96
        %v1483 = vpop.permute.xlu0 %1482
        %1484 = vrot.lane.b32.xlu0 %v703, 96
        %v1485 = vpop.permute.xlu0 %1484
        %1486 = vrot.lane.b32.xlu0 %v704, 96
        %v1487 = vpop.permute.xlu0 %1486
        %1488 = vrot.lane.b32.xlu0 %v705, 96
        %v1489 = vpop.permute.xlu0 %1488
        %1490 = vrot.lane.b32.xlu0 %v706, 96
        %v1491 = vpop.permute.xlu0 %1490
        %1492 = vrot.lane.b32.xlu0 %v707, 96
        %v1493 = vpop.permute.xlu0 %1492
        %1494 = vrot.lane.b32.xlu0 %v708, 96
        %v1495 = vpop.permute.xlu0 %1494
        %1496 = vrot.lane.b32.xlu0 %v709, 96
        %v1497 = vpop.permute.xlu0 %1496
        %1498 = vrot.lane.b32.xlu0 %v710, 96
        %v1499 = vpop.permute.xlu0 %1498
        %1500 = vrot.lane.b32.xlu0 %v711, 96
        %v1501 = vpop.permute.xlu0 %1500
        %1502 = vrot.lane.b32.xlu0 %v712, 96
        %v1503 = vpop.permute.xlu0 %1502
        %1504 = vrot.lane.b32.xlu0 %v713, 96
        %v1505 = vpop.permute.xlu0 %1504
        %1506 = vrot.lane.b32.xlu0 %v714, 96
        %v1507 = vpop.permute.xlu0 %1506
        %1508 = vrot.lane.b32.xlu0 %v715, 96
        %v1509 = vpop.permute.xlu0 %1508
        %1510 = vrot.lane.b32.xlu0 %v716, 96
        %v1511 = vpop.permute.xlu0 %1510
        %1512 = vrot.lane.b32.xlu0 %v717, 96
        %v1513 = vpop.permute.xlu0 %1512
        %1514 = vrot.lane.b32.xlu0 %v718, 96
        %v1515 = vpop.permute.xlu0 %1514
        %1516 = vrot.lane.b32.xlu0 %v719, 96
        %v1517 = vpop.permute.xlu0 %1516
        %1518 = vrot.lane.b32.xlu0 %v720, 96
        %v1519 = vpop.permute.xlu0 %1518
        %1520 = vrot.lane.b32.xlu0 %v721, 96
        %v1521 = vpop.permute.xlu0 %1520
        %1586 = vrot.lane.b32.xlu0 %v722, 112
        %v1587 = vpop.permute.xlu0 %1586
        %1588 = vrot.lane.b32.xlu0 %v723, 112
        %v1589 = vpop.permute.xlu0 %1588
        %1590 = vrot.lane.b32.xlu0 %v724, 112
        %v1591 = vpop.permute.xlu0 %1590
        %1592 = vrot.lane.b32.xlu0 %v725, 112
        %v1593 = vpop.permute.xlu0 %1592
        %1594 = vrot.lane.b32.xlu0 %v726, 112
        %v1595 = vpop.permute.xlu0 %1594
        %1596 = vrot.lane.b32.xlu0 %v727, 112
        %v1597 = vpop.permute.xlu0 %1596
        %1598 = vrot.lane.b32.xlu0 %v728, 112
        %v1599 = vpop.permute.xlu0 %1598
        %1600 = vrot.lane.b32.xlu0 %v729, 112
        %v1601 = vpop.permute.xlu0 %1600
        %1602 = vrot.lane.b32.xlu0 %v730, 112
        %v1603 = vpop.permute.xlu0 %1602
        %1604 = vrot.lane.b32.xlu0 %v731, 112
        %v1605 = vpop.permute.xlu0 %1604
        %1606 = vrot.lane.b32.xlu0 %v732, 112
        %v1607 = vpop.permute.xlu0 %1606
        %1608 = vrot.lane.b32.xlu0 %v733, 112
        %v1609 = vpop.permute.xlu0 %1608
        %1610 = vrot.lane.b32.xlu0 %v734, 112
        %v1611 = vpop.permute.xlu0 %1610
        %1612 = vrot.lane.b32.xlu0 %v735, 112
        %v1613 = vpop.permute.xlu0 %1612
        %1614 = vrot.lane.b32.xlu0 %v736, 112
        %v1615 = vpop.permute.xlu0 %1614
        %1616 = vrot.lane.b32.xlu0 %v737, 112
        %v1617 = vpop.permute.xlu0 %1616
        %1618 = vrot.lane.b32.xlu0 %v738, 112
        %v1619 = vpop.permute.xlu0 %1618
        %1620 = vrot.lane.b32.xlu0 %v739, 112
        %v1621 = vpop.permute.xlu0 %1620
        %1622 = vrot.lane.b32.xlu0 %v740, 112
        %v1623 = vpop.permute.xlu0 %1622
        %1624 = vrot.lane.b32.xlu0 %v741, 112
        %v1625 = vpop.permute.xlu0 %1624
        %1626 = vrot.lane.b32.xlu0 %v742, 112
        %v1627 = vpop.permute.xlu0 %1626
        %1628 = vrot.lane.b32.xlu0 %v743, 112
        %v1629 = vpop.permute.xlu0 %1628
        %1630 = vrot.lane.b32.xlu0 %v744, 112
        %v1631 = vpop.permute.xlu0 %1630
        %1632 = vrot.lane.b32.xlu0 %v745, 112
        %v1633 = vpop.permute.xlu0 %1632
        %1634 = vrot.lane.b32.xlu0 %v746, 112
        %v1635 = vpop.permute.xlu0 %1634
        %1636 = vrot.lane.b32.xlu0 %v747, 112
        %v1637 = vpop.permute.xlu0 %1636
        %1638 = vrot.lane.b32.xlu0 %v748, 112
        %v1639 = vpop.permute.xlu0 %1638
        %1640 = vrot.lane.b32.xlu0 %v749, 112
        %v1641 = vpop.permute.xlu0 %1640
        %1642 = vrot.lane.b32.xlu0 %v750, 112
        %v1643 = vpop.permute.xlu0 %1642
        %1644 = vrot.lane.b32.xlu0 %v751, 112
        %v1645 = vpop.permute.xlu0 %1644
        %1646 = vrot.lane.b32.xlu0 %v752, 112
        %v1647 = vpop.permute.xlu0 %1646
        %1648 = vrot.lane.b32.xlu0 %v753, 112
        %v1649 = vpop.permute.xlu0 %1648
        %v1682 = vsel %vm464, %v497, %v819
        %v1683 = vsel %vm464, %v498, %v821
        %v1684 = vsel %vm464, %v499, %v823
        %v1685 = vsel %vm464, %v500, %v825
        %v1686 = vsel %vm464, %v501, %v827
        %v1687 = vsel %vm464, %v502, %v829
        %v1688 = vsel %vm464, %v503, %v831
        %v1689 = vsel %vm464, %v504, %v833
        %v1690 = vsel %vm464, %v505, %v835
        %v1691 = vsel %vm464, %v506, %v837
        %v1692 = vsel %vm464, %v507, %v839
        %v1693 = vsel %vm464, %v508, %v841
        %v1694 = vsel %vm464, %v509, %v843
        %v1695 = vsel %vm464, %v510, %v845
        %v1696 = vsel %vm464, %v511, %v847
        %v1697 = vsel %vm464, %v512, %v849
        %v1698 = vsel %vm464, %v513, %v851
        %v1699 = vsel %vm464, %v514, %v853
        %v1700 = vsel %vm464, %v515, %v855
        %v1701 = vsel %vm464, %v516, %v857
        %v1702 = vsel %vm464, %v517, %v859
        %v1703 = vsel %vm464, %v518, %v861
        %v1704 = vsel %vm464, %v519, %v863
        %v1705 = vsel %vm464, %v520, %v865
        %v1706 = vsel %vm464, %v521, %v867
        %v1707 = vsel %vm464, %v522, %v869
        %v1708 = vsel %vm464, %v523, %v871
        %v1709 = vsel %vm464, %v524, %v873
        %v1710 = vsel %vm464, %v525, %v875
        %v1711 = vsel %vm464, %v526, %v877
        %v1712 = vsel %vm464, %v527, %v879
        %v1713 = vsel %vm464, %v528, %v881
        %vm1714 = vcmask 261120
        %v1715 = vsel %vm1714, %v1682, %v947
        %v1716 = vsel %vm1714, %v1683, %v949
        %v1717 = vsel %vm1714, %v1684, %v951
        %v1718 = vsel %vm1714, %v1685, %v953
        %v1719 = vsel %vm1714, %v1686, %v955
        %v1720 = vsel %vm1714, %v1687, %v957
        %v1721 = vsel %vm1714, %v1688, %v959
        %v1722 = vsel %vm1714, %v1689, %v961
        %v1723 = vsel %vm1714, %v1690, %v963
        %v1724 = vsel %vm1714, %v1691, %v965
        %v1725 = vsel %vm1714, %v1692, %v967
        %v1726 = vsel %vm1714, %v1693, %v969
        %v1727 = vsel %vm1714, %v1694, %v971
        %v1728 = vsel %vm1714, %v1695, %v973
        %v1729 = vsel %vm1714, %v1696, %v975
        %v1730 = vsel %vm1714, %v1697, %v977
        %v1731 = vsel %vm1714, %v1698, %v979
        %v1732 = vsel %vm1714, %v1699, %v981
        %v1733 = vsel %vm1714, %v1700, %v983
        %v1734 = vsel %vm1714, %v1701, %v985
        %v1735 = vsel %vm1714, %v1702, %v987
        %v1736 = vsel %vm1714, %v1703, %v989
        %v1737 = vsel %vm1714, %v1704, %v991
        %v1738 = vsel %vm1714, %v1705, %v993
        %v1739 = vsel %vm1714, %v1706, %v995
        %v1740 = vsel %vm1714, %v1707, %v997
        %v1741 = vsel %vm1714, %v1708, %v999
        %v1742 = vsel %vm1714, %v1709, %v1001
        %v1743 = vsel %vm1714, %v1710, %v1003
        %v1744 = vsel %vm1714, %v1711, %v1005
        %v1745 = vsel %vm1714, %v1712, %v1007
        %v1746 = vsel %vm1714, %v1713, %v1009
        %v1747 = vsel %vm385, %v1715, %v1075
        %v1748 = vsel %vm385, %v1716, %v1077
        %v1749 = vsel %vm385, %v1717, %v1079
        %v1750 = vsel %vm385, %v1718, %v1081
        %v1751 = vsel %vm385, %v1719, %v1083
        %v1752 = vsel %vm385, %v1720, %v1085
        %v1753 = vsel %vm385, %v1721, %v1087
        %v1754 = vsel %vm385, %v1722, %v1089
        %v1755 = vsel %vm385, %v1723, %v1091
        %v1756 = vsel %vm385, %v1724, %v1093
        %v1757 = vsel %vm385, %v1725, %v1095
        %v1758 = vsel %vm385, %v1726, %v1097
        %v1759 = vsel %vm385, %v1727, %v1099
        %v1760 = vsel %vm385, %v1728, %v1101
        %v1761 = vsel %vm385, %v1729, %v1103
        %v1762 = vsel %vm385, %v1730, %v1105
        %v1763 = vsel %vm385, %v1731, %v1107
        %v1764 = vsel %vm385, %v1732, %v1109
        %v1765 = vsel %vm385, %v1733, %v1111
        %v1766 = vsel %vm385, %v1734, %v1113
        %v1767 = vsel %vm385, %v1735, %v1115
        %v1768 = vsel %vm385, %v1736, %v1117
        %v1769 = vsel %vm385, %v1737, %v1119
        %v1770 = vsel %vm385, %v1738, %v1121
        %v1771 = vsel %vm385, %v1739, %v1123
        %v1772 = vsel %vm385, %v1740, %v1125
        %v1773 = vsel %vm385, %v1741, %v1127
        %v1774 = vsel %vm385, %v1742, %v1129
        %v1775 = vsel %vm385, %v1743, %v1131
        %v1776 = vsel %vm385, %v1744, %v1133
        %v1777 = vsel %vm385, %v1745, %v1135
        %v1778 = vsel %vm385, %v1746, %v1137
        %vm1779 = vcmask 523264
        %v1780 = vsel %vm1779, %v1747, %v1203
        %v1781 = vsel %vm1779, %v1748, %v1205
        %v1782 = vsel %vm1779, %v1749, %v1207
        %v1783 = vsel %vm1779, %v1750, %v1209
        %v1784 = vsel %vm1779, %v1751, %v1211
        %v1785 = vsel %vm1779, %v1752, %v1213
        %v1786 = vsel %vm1779, %v1753, %v1215
        %v1787 = vsel %vm1779, %v1754, %v1217
        %v1788 = vsel %vm1779, %v1755, %v1219
        %v1789 = vsel %vm1779, %v1756, %v1221
        %v1790 = vsel %vm1779, %v1757, %v1223
        %v1791 = vsel %vm1779, %v1758, %v1225
        %v1792 = vsel %vm1779, %v1759, %v1227
        %v1793 = vsel %vm1779, %v1760, %v1229
        %v1794 = vsel %vm1779, %v1761, %v1231
        %v1795 = vsel %vm1779, %v1762, %v1233
        %v1796 = vsel %vm1779, %v1763, %v1235
        %v1797 = vsel %vm1779, %v1764, %v1237
        %v1798 = vsel %vm1779, %v1765, %v1239
        %v1799 = vsel %vm1779, %v1766, %v1241
        %v1800 = vsel %vm1779, %v1767, %v1243
        %v1801 = vsel %vm1779, %v1768, %v1245
        %v1802 = vsel %vm1779, %v1769, %v1247
        %v1803 = vsel %vm1779, %v1770, %v1249
        %v1804 = vsel %vm1779, %v1771, %v1251
        %v1805 = vsel %vm1779, %v1772, %v1253
        %v1806 = vsel %vm1779, %v1773, %v1255
        %v1807 = vsel %vm1779, %v1774, %v1257
        %v1808 = vsel %vm1779, %v1775, %v1259
        %v1809 = vsel %vm1779, %v1776, %v1261
        %v1810 = vsel %vm1779, %v1777, %v1263
        %v1811 = vsel %vm1779, %v1778, %v1265
        %vm1812 = vcmask 654336
        %v1813 = vsel %vm1812, %v1780, %v1331
        %v1814 = vsel %vm1812, %v1781, %v1333
        %v1815 = vsel %vm1812, %v1782, %v1335
        %v1816 = vsel %vm1812, %v1783, %v1337
        %v1817 = vsel %vm1812, %v1784, %v1339
        %v1818 = vsel %vm1812, %v1785, %v1341
        %v1819 = vsel %vm1812, %v1786, %v1343
        %v1820 = vsel %vm1812, %v1787, %v1345
        %v1821 = vsel %vm1812, %v1788, %v1347
        %v1822 = vsel %vm1812, %v1789, %v1349
        %v1823 = vsel %vm1812, %v1790, %v1351
        %v1824 = vsel %vm1812, %v1791, %v1353
        %v1825 = vsel %vm1812, %v1792, %v1355
        %v1826 = vsel %vm1812, %v1793, %v1357
        %v1827 = vsel %vm1812, %v1794, %v1359
        %v1828 = vsel %vm1812, %v1795, %v1361
        %v1829 = vsel %vm1812, %v1796, %v1363
        %v1830 = vsel %vm1812, %v1797, %v1365
        %v1831 = vsel %vm1812, %v1798, %v1367
        %v1832 = vsel %vm1812, %v1799, %v1369
        %v1833 = vsel %vm1812, %v1800, %v1371
        %v1834 = vsel %vm1812, %v1801, %v1373
        %v1835 = vsel %vm1812, %v1802, %v1375
        %v1836 = vsel %vm1812, %v1803, %v1377
        %v1837 = vsel %vm1812, %v1804, %v1379
        %v1838 = vsel %vm1812, %v1805, %v1381
        %v1839 = vsel %vm1812, %v1806, %v1383
        %v1840 = vsel %vm1812, %v1807, %v1385
        %v1841 = vsel %vm1812, %v1808, %v1387
        %v1842 = vsel %vm1812, %v1809, %v1389
        %v1843 = vsel %vm1812, %v1810, %v1391
        %v1844 = vsel %vm1812, %v1811, %v1393
        %vm1845 = vcmask 785408
        %v1846 = vsel %vm1845, %v1813, %v1459
        %v1847 = vsel %vm1845, %v1814, %v1461
        %v1848 = vsel %vm1845, %v1815, %v1463
        %v1849 = vsel %vm1845, %v1816, %v1465
        %v1850 = vsel %vm1845, %v1817, %v1467
        %v1851 = vsel %vm1845, %v1818, %v1469
        %v1852 = vsel %vm1845, %v1819, %v1471
        %v1853 = vsel %vm1845, %v1820, %v1473
        %v1854 = vsel %vm1845, %v1821, %v1475
        %v1855 = vsel %vm1845, %v1822, %v1477
        %v1856 = vsel %vm1845, %v1823, %v1479
        %v1857 = vsel %vm1845, %v1824, %v1481
        %v1858 = vsel %vm1845, %v1825, %v1483
        %v1859 = vsel %vm1845, %v1826, %v1485
        %v1860 = vsel %vm1845, %v1827, %v1487
        %v1861 = vsel %vm1845, %v1828, %v1489
        %v1862 = vsel %vm1845, %v1829, %v1491
        %v1863 = vsel %vm1845, %v1830, %v1493
        %v1864 = vsel %vm1845, %v1831, %v1495
        %v1865 = vsel %vm1845, %v1832, %v1497
        %v1866 = vsel %vm1845, %v1833, %v1499
        %v1867 = vsel %vm1845, %v1834, %v1501
        %v1868 = vsel %vm1845, %v1835, %v1503
        %v1869 = vsel %vm1845, %v1836, %v1505
        %v1870 = vsel %vm1845, %v1837, %v1507
        %v1871 = vsel %vm1845, %v1838, %v1509
        %v1872 = vsel %vm1845, %v1839, %v1511
        %v1873 = vsel %vm1845, %v1840, %v1513
        %v1874 = vsel %vm1845, %v1841, %v1515
        %v1875 = vsel %vm1845, %v1842, %v1517
        %v1876 = vsel %vm1845, %v1843, %v1519
        %v1877 = vsel %vm1845, %v1844, %v1521
        %vm1878 = vcmask 916480
        %v1879 = vsel %vm1878, %v1846, %v1587
        %v1880 = vsel %vm1878, %v1847, %v1589
        %v1881 = vsel %vm1878, %v1848, %v1591
        %v1882 = vsel %vm1878, %v1849, %v1593
        %v1883 = vsel %vm1878, %v1850, %v1595
        %v1884 = vsel %vm1878, %v1851, %v1597
        %v1885 = vsel %vm1878, %v1852, %v1599
        %v1886 = vsel %vm1878, %v1853, %v1601
        %v1887 = vsel %vm1878, %v1854, %v1603
        %v1888 = vsel %vm1878, %v1855, %v1605
        %v1889 = vsel %vm1878, %v1856, %v1607
        %v1890 = vsel %vm1878, %v1857, %v1609
        %v1891 = vsel %vm1878, %v1858, %v1611
        %v1892 = vsel %vm1878, %v1859, %v1613
        %v1893 = vsel %vm1878, %v1860, %v1615
        %v1894 = vsel %vm1878, %v1861, %v1617
        %v1895 = vsel %vm1878, %v1862, %v1619
        %v1896 = vsel %vm1878, %v1863, %v1621
        %v1897 = vsel %vm1878, %v1864, %v1623
        %v1898 = vsel %vm1878, %v1865, %v1625
        %v1899 = vsel %vm1878, %v1866, %v1627
        %v1900 = vsel %vm1878, %v1867, %v1629
        %v1901 = vsel %vm1878, %v1868, %v1631
        %v1902 = vsel %vm1878, %v1869, %v1633
        %v1903 = vsel %vm1878, %v1870, %v1635
        %v1904 = vsel %vm1878, %v1871, %v1637
        %v1905 = vsel %vm1878, %v1872, %v1639
        %v1906 = vsel %vm1878, %v1873, %v1641
        %v1907 = vsel %vm1878, %v1874, %v1643
        %v1908 = vsel %vm1878, %v1875, %v1645
        %v1909 = vsel %vm1878, %v1876, %v1647
        %v1910 = vsel %vm1878, %v1877, %v1649
        %v1911 = vld [vmem:[%s1] sm:$0xff]
        %v1912 = vld [vmem:[%s1 + $0x8] sm:$0xff]
        %v1913 = vld [vmem:[%s1 + $0x10] sm:$0xff]
        %v1914 = vld [vmem:[%s1 + $0x18] sm:$0xff]
        %v1915 = vld [vmem:[%s1 + $0x20] sm:$0xff]
        %v1916 = vld [vmem:[%s1 + $0x28] sm:$0xff]
        %v1917 = vld [vmem:[%s1 + $0x30] sm:$0xff]
        %v1918 = vld [vmem:[%s1 + $0x38] sm:$0xff]
        %v1919 = vld [vmem:[%s1 + $0x40] sm:$0xff]
        %v1920 = vld [vmem:[%s1 + $0x48] sm:$0xff]
        %v1921 = vld [vmem:[%s1 + $0x50] sm:$0xff]
        %v1922 = vld [vmem:[%s1 + $0x58] sm:$0xff]
        %v1923 = vld [vmem:[%s1 + $0x60] sm:$0xff]
        %v1924 = vld [vmem:[%s1 + $0x68] sm:$0xff]
        %v1925 = vld [vmem:[%s1 + $0x70] sm:$0xff]
        %v1926 = vld [vmem:[%s1 + $0x78] sm:$0xff]
        %v1927 = vld [vmem:[%s1 + $0x80] sm:$0xff]
        %v1928 = vld [vmem:[%s1 + $0x88] sm:$0xff]
        %v1929 = vld [vmem:[%s2] sm:$0x1]
        %v1931 = vperm.slane %v1929, 0
        %v1934 = vsel %vm464, %v754, 0
        %v1937 = vsel %vm464, %v755, 0
        %v1940 = vsel %vm464, %v756, 0
        %v1943 = vsel %vm464, %v757, 0
        %v1946 = vsel %vm464, %v758, 0
        %v1949 = vsel %vm464, %v759, 0
        %v1952 = vsel %vm464, %v760, 0
        %v1955 = vsel %vm464, %v761, 0
        %v1958 = vsel %vm464, %v762, 0
        %v1961 = vsel %vm464, %v763, 0
        %v1964 = vsel %vm464, %v764, 0
        %v1967 = vsel %vm464, %v765, 0
        %v1970 = vsel %vm464, %v766, 0
        %v1973 = vsel %vm464, %v767, 0
        %v1976 = vsel %vm464, %v768, 0
        %v1979 = vsel %vm464, %v769, 0
        %v1982 = vsel %vm464, %v770, 0
        %v1985 = vsel %vm464, %v771, 0
        %v1988 = vsel %vm464, %v772, 0
        %v1991 = vsel %vm464, %v773, 0
        %v1994 = vsel %vm464, %v774, 0
        %v1997 = vsel %vm464, %v775, 0
        %v2000 = vsel %vm464, %v776, 0
        %v2003 = vsel %vm464, %v777, 0
        %v2006 = vsel %vm464, %v778, 0
        %v2009 = vsel %vm464, %v779, 0
        %v2012 = vsel %vm464, %v780, 0
        %v2015 = vsel %vm464, %v781, 0
        %v2018 = vsel %vm464, %v782, 0
        %v2021 = vsel %vm464, %v783, 0
        %v2024 = vsel %vm464, %v784, 0
        %v2027 = vsel %vm464, %v785, 0
        %2029 = vmatpush.msra.mxu0 %v1926
        %2030 = vmatpush.msra.mxu0 %v1925
        %2031 = vmatpush.msra.mxu0 %v1924
        %2032 = vmatpush.msra.mxu0 %v1923
        %2033 = vmatpush.msra.mxu0 %v1922
        %2034 = vmatpush.msra.mxu0 %v1921
        %2035 = vmatpush.msra.mxu0 %v1920
        %2036 = vmatpush.msra.mxu0 %v1919
        %2037 = vmatpush.msra.mxu0 %v1918
        %2038 = vmatpush.msra.mxu0 %v1917
        %2039 = vmatpush.msra.mxu0 %v1916
        %2040 = vmatpush.msra.mxu0 %v1915
        %2041 = vmatpush.msra.mxu0 %v1914
        %2042 = vmatpush.msra.mxu0 %v1913
        %2043 = vmatpush.msra.mxu0 %v1912
        %2044 = vmatpush.msra.mxu0 %v1911
        %2045 = vmatmul.f32.gmra.mxu0 %v1879
        %v2046 = vpop.f32.mrf.mxu0
        %v2047 = vadd.f32 %v1931, %v2046
        %2048 = vmatmul.f32.gmra.mxu0 %v1880
        %v2049 = vpop.f32.mrf.mxu0
        %v2050 = vadd.f32 %v1931, %v2049
        %2051 = vmatmul.f32.gmra.mxu0 %v1881
        %v2052 = vpop.f32.mrf.mxu0
        %v2053 = vadd.f32 %v1931, %v2052
        %2054 = vmatmul.f32.gmra.mxu0 %v1882
        %v2055 = vpop.f32.mrf.mxu0
        %v2056 = vadd.f32 %v1931, %v2055
        %2057 = vmatmul.f32.gmra.mxu0 %v1883
        %v2058 = vpop.f32.mrf.mxu0
        %v2059 = vadd.f32 %v1931, %v2058
        %2060 = vmatmul.f32.gmra.mxu0 %v1884
        %v2061 = vpop.f32.mrf.mxu0
        %v2062 = vadd.f32 %v1931, %v2061
        %2063 = vmatmul.f32.gmra.mxu0 %v1885
        %v2064 = vpop.f32.mrf.mxu0
        %v2065 = vadd.f32 %v1931, %v2064
        %2066 = vmatmul.f32.gmra.mxu0 %v1886
        %v2067 = vpop.f32.mrf.mxu0
        %v2068 = vadd.f32 %v1931, %v2067
        %2069 = vmatmul.f32.gmra.mxu0 %v1887
        %v2070 = vpop.f32.mrf.mxu0
        %v2071 = vadd.f32 %v1931, %v2070
        %2072 = vmatmul.f32.gmra.mxu0 %v1888
        %v2073 = vpop.f32.mrf.mxu0
        %v2074 = vadd.f32 %v1931, %v2073
        %2075 = vmatmul.f32.gmra.mxu0 %v1889
        %v2076 = vpop.f32.mrf.mxu0
        %v2077 = vadd.f32 %v1931, %v2076
        %2078 = vmatmul.f32.gmra.mxu0 %v1890
        %v2079 = vpop.f32.mrf.mxu0
        %v2080 = vadd.f32 %v1931, %v2079
        %2081 = vmatmul.f32.gmra.mxu0 %v1891
        %v2082 = vpop.f32.mrf.mxu0
        %v2083 = vadd.f32 %v1931, %v2082
        %2084 = vmatmul.f32.gmra.mxu0 %v1892
        %v2085 = vpop.f32.mrf.mxu0
        %v2086 = vadd.f32 %v1931, %v2085
        %2087 = vmatmul.f32.gmra.mxu0 %v1893
        %v2088 = vpop.f32.mrf.mxu0
        %v2089 = vadd.f32 %v1931, %v2088
        %2090 = vmatmul.f32.gmra.mxu0 %v1894
        %v2091 = vpop.f32.mrf.mxu0
        %v2092 = vadd.f32 %v1931, %v2091
        %2093 = vmatmul.f32.gmra.mxu0 %v1895
        %v2094 = vpop.f32.mrf.mxu0
        %v2095 = vadd.f32 %v1931, %v2094
        %2096 = vmatmul.f32.gmra.mxu0 %v1896
        %v2097 = vpop.f32.mrf.mxu0
        %v2098 = vadd.f32 %v1931, %v2097
        %2099 = vmatmul.f32.gmra.mxu0 %v1897
        %v2100 = vpop.f32.mrf.mxu0
        %v2101 = vadd.f32 %v1931, %v2100
        %2102 = vmatmul.f32.gmra.mxu0 %v1898
        %v2103 = vpop.f32.mrf.mxu0
        %v2104 = vadd.f32 %v1931, %v2103
        %2105 = vmatmul.f32.gmra.mxu0 %v1899
        %v2106 = vpop.f32.mrf.mxu0
        %v2107 = vadd.f32 %v1931, %v2106
        %2108 = vmatmul.f32.gmra.mxu0 %v1900
        %v2109 = vpop.f32.mrf.mxu0
        %v2110 = vadd.f32 %v1931, %v2109
        %2111 = vmatmul.f32.gmra.mxu0 %v1901
        %v2112 = vpop.f32.mrf.mxu0
        %v2113 = vadd.f32 %v1931, %v2112
        %2114 = vmatmul.f32.gmra.mxu0 %v1902
        %v2115 = vpop.f32.mrf.mxu0
        %v2116 = vadd.f32 %v1931, %v2115
        %2117 = vmatmul.f32.gmra.mxu0 %v1903
        %v2118 = vpop.f32.mrf.mxu0
        %v2119 = vadd.f32 %v1931, %v2118
        %2120 = vmatmul.f32.gmra.mxu0 %v1904
        %v2121 = vpop.f32.mrf.mxu0
        %v2122 = vadd.f32 %v1931, %v2121
        %2123 = vmatmul.f32.gmra.mxu0 %v1905
        %v2124 = vpop.f32.mrf.mxu0
        %v2125 = vadd.f32 %v1931, %v2124
        %2126 = vmatmul.f32.gmra.mxu0 %v1906
        %v2127 = vpop.f32.mrf.mxu0
        %v2128 = vadd.f32 %v1931, %v2127
        %2129 = vmatmul.f32.gmra.mxu0 %v1907
        %v2130 = vpop.f32.mrf.mxu0
        %v2131 = vadd.f32 %v1931, %v2130
        %2132 = vmatmul.f32.gmra.mxu0 %v1908
        %v2133 = vpop.f32.mrf.mxu0
        %v2134 = vadd.f32 %v1931, %v2133
        %2135 = vmatmul.f32.gmra.mxu0 %v1909
        %v2136 = vpop.f32.mrf.mxu0
        %v2137 = vadd.f32 %v1931, %v2136
        %2138 = vmatmul.f32.gmra.mxu0 %v1910
        %v2139 = vpop.f32.mrf.mxu0
        %v2140 = vadd.f32 %v1931, %v2139
        %2141 = vdwg.mxu0
        %2142 = vmatpush.msra.mxu0 0.0
        %2143 = vmatpush.msra.mxu0 0.0
        %2144 = vmatpush.msra.mxu0 0.0
        %2145 = vmatpush.msra.mxu0 0.0
        %2146 = vmatpush.msra.mxu0 0.0
        %2147 = vmatpush.msra.mxu0 0.0
        %2148 = vmatpush.msra.mxu0 0.0
        %2149 = vmatpush.msra.mxu0 0.0
        %2150 = vmatpush.msra.mxu0 0.0
        %2151 = vmatpush.msra.mxu0 0.0
        %2152 = vmatpush.msra.mxu0 0.0
        %2153 = vmatpush.msra.mxu0 0.0
        %2154 = vmatpush.msra.mxu0 0.0
        %2155 = vmatpush.msra.mxu0 0.0
        %2156 = vmatpush.msra.mxu0 %v1928
        %2157 = vmatpush.msra.mxu0 %v1927
        %2158 = vmatmul.f32.gmra.mxu0 %v1934
        %v2159 = vpop.f32.mrf.mxu0
        %v2160 = vadd.f32 %v2047, %v2159
        %2161 = vmatmul.f32.gmra.mxu0 %v1937
        %v2162 = vpop.f32.mrf.mxu0
        %v2163 = vadd.f32 %v2050, %v2162
        %2164 = vmatmul.f32.gmra.mxu0 %v1940
        %v2165 = vpop.f32.mrf.mxu0
        %v2166 = vadd.f32 %v2053, %v2165
        %2167 = vmatmul.f32.gmra.mxu0 %v1943
        %v2168 = vpop.f32.mrf.mxu0
        %v2169 = vadd.f32 %v2056, %v2168
        %2170 = vmatmul.f32.gmra.mxu0 %v1946
        %v2171 = vpop.f32.mrf.mxu0
        %v2172 = vadd.f32 %v2059, %v2171
        %2173 = vmatmul.f32.gmra.mxu0 %v1949
        %v2174 = vpop.f32.mrf.mxu0
        %v2175 = vadd.f32 %v2062, %v2174
        %2176 = vmatmul.f32.gmra.mxu0 %v1952
        %v2177 = vpop.f32.mrf.mxu0
        %v2178 = vadd.f32 %v2065, %v2177
        %2179 = vmatmul.f32.gmra.mxu0 %v1955
        %v2180 = vpop.f32.mrf.mxu0
        %v2181 = vadd.f32 %v2068, %v2180
        %2182 = vmatmul.f32.gmra.mxu0 %v1958
        %v2183 = vpop.f32.mrf.mxu0
        %v2184 = vadd.f32 %v2071, %v2183
        %2185 = vmatmul.f32.gmra.mxu0 %v1961
        %v2186 = vpop.f32.mrf.mxu0
        %v2187 = vadd.f32 %v2074, %v2186
        %2188 = vmatmul.f32.gmra.mxu0 %v1964
        %v2189 = vpop.f32.mrf.mxu0
        %v2190 = vadd.f32 %v2077, %v2189
        %2191 = vmatmul.f32.gmra.mxu0 %v1967
        %v2192 = vpop.f32.mrf.mxu0
        %v2193 = vadd.f32 %v2080, %v2192
        %2194 = vmatmul.f32.gmra.mxu0 %v1970
        %v2195 = vpop.f32.mrf.mxu0
        %v2196 = vadd.f32 %v2083, %v2195
        %2197 = vmatmul.f32.gmra.mxu0 %v1973
        %v2198 = vpop.f32.mrf.mxu0
        %v2199 = vadd.f32 %v2086, %v2198
        %2200 = vmatmul.f32.gmra.mxu0 %v1976
        %v2201 = vpop.f32.mrf.mxu0
        %v2202 = vadd.f32 %v2089, %v2201
        %2203 = vmatmul.f32.gmra.mxu0 %v1979
        %v2204 = vpop.f32.mrf.mxu0
        %v2205 = vadd.f32 %v2092, %v2204
        %2206 = vmatmul.f32.gmra.mxu0 %v1982
        %v2207 = vpop.f32.mrf.mxu0
        %v2208 = vadd.f32 %v2095, %v2207
        %2209 = vmatmul.f32.gmra.mxu0 %v1985
        %v2210 = vpop.f32.mrf.mxu0
        %v2211 = vadd.f32 %v2098, %v2210
        %2212 = vmatmul.f32.gmra.mxu0 %v1988
        %v2213 = vpop.f32.mrf.mxu0
        %v2214 = vadd.f32 %v2101, %v2213
        %2215 = vmatmul.f32.gmra.mxu0 %v1991
        %v2216 = vpop.f32.mrf.mxu0
        %v2217 = vadd.f32 %v2104, %v2216
        %2218 = vmatmul.f32.gmra.mxu0 %v1994
        %v2219 = vpop.f32.mrf.mxu0
        %v2220 = vadd.f32 %v2107, %v2219
        %2221 = vmatmul.f32.gmra.mxu0 %v1997
        %v2222 = vpop.f32.mrf.mxu0
        %v2223 = vadd.f32 %v2110, %v2222
        %2224 = vmatmul.f32.gmra.mxu0 %v2000
        %v2225 = vpop.f32.mrf.mxu0
        %v2226 = vadd.f32 %v2113, %v2225
        %2227 = vmatmul.f32.gmra.mxu0 %v2003
        %v2228 = vpop.f32.mrf.mxu0
        %v2229 = vadd.f32 %v2116, %v2228
        %2230 = vmatmul.f32.gmra.mxu0 %v2006
        %v2231 = vpop.f32.mrf.mxu0
        %v2232 = vadd.f32 %v2119, %v2231
        %2233 = vmatmul.f32.gmra.mxu0 %v2009
        %v2234 = vpop.f32.mrf.mxu0
        %v2235 = vadd.f32 %v2122, %v2234
        %2236 = vmatmul.f32.gmra.mxu0 %v2012
        %v2237 = vpop.f32.mrf.mxu0
        %v2238 = vadd.f32 %v2125, %v2237
        %2239 = vmatmul.f32.gmra.mxu0 %v2015
        %v2240 = vpop.f32.mrf.mxu0
        %v2241 = vadd.f32 %v2128, %v2240
        %2242 = vmatmul.f32.gmra.mxu0 %v2018
        %v2243 = vpop.f32.mrf.mxu0
        %v2244 = vadd.f32 %v2131, %v2243
        %2245 = vmatmul.f32.gmra.mxu0 %v2021
        %v2246 = vpop.f32.mrf.mxu0
        %v2247 = vadd.f32 %v2134, %v2246
        %2248 = vmatmul.f32.gmra.mxu0 %v2024
        %v2249 = vpop.f32.mrf.mxu0
        %v2250 = vadd.f32 %v2137, %v2249
        %2251 = vmatmul.f32.gmra.mxu0 %v2027
        %v2252 = vpop.f32.mrf.mxu0
        %v2253 = vadd.f32 %v2140, %v2252
        %2254 = vdwg.mxu0
        %v2255 = vmul.f32 %v2160, 0.2
        %v2256 = vmul.f32 %v2163, 0.2
        %v2257 = vmul.f32 %v2166, 0.2
        %v2258 = vmul.f32 %v2169, 0.2
        %v2259 = vmul.f32 %v2172, 0.2
        %v2260 = vmul.f32 %v2175, 0.2
        %v2261 = vmul.f32 %v2178, 0.2
        %v2262 = vmul.f32 %v2181, 0.2
        %v2263 = vmul.f32 %v2184, 0.2
        %v2264 = vmul.f32 %v2187, 0.2
        %v2265 = vmul.f32 %v2190, 0.2
        %v2266 = vmul.f32 %v2193, 0.2
        %v2267 = vmul.f32 %v2196, 0.2
        %v2268 = vmul.f32 %v2199, 0.2
        %v2269 = vmul.f32 %v2202, 0.2
        %v2270 = vmul.f32 %v2205, 0.2
        %v2271 = vmul.f32 %v2208, 0.2
        %v2272 = vmul.f32 %v2211, 0.2
        %v2273 = vmul.f32 %v2214, 0.2
        %v2274 = vmul.f32 %v2217, 0.2
        %v2275 = vmul.f32 %v2220, 0.2
        %v2276 = vmul.f32 %v2223, 0.2
        %v2277 = vmul.f32 %v2226, 0.2
        %v2278 = vmul.f32 %v2229, 0.2
        %v2279 = vmul.f32 %v2232, 0.2
        %v2280 = vmul.f32 %v2235, 0.2
        %v2281 = vmul.f32 %v2238, 0.2
        %v2282 = vmul.f32 %v2241, 0.2
        %v2283 = vmul.f32 %v2244, 0.2
        %v2284 = vmul.f32 %v2247, 0.2
        %v2285 = vmul.f32 %v2250, 0.2
        %v2286 = vmul.f32 %v2253, 0.2
        %v2287 = vmax.f32 %v2160, %v2255
        %v2288 = vmax.f32 %v2163, %v2256
        %v2289 = vmax.f32 %v2166, %v2257
        %v2290 = vmax.f32 %v2169, %v2258
        %v2291 = vmax.f32 %v2172, %v2259
        %v2292 = vmax.f32 %v2175, %v2260
        %v2293 = vmax.f32 %v2178, %v2261
        %v2294 = vmax.f32 %v2181, %v2262
        %v2295 = vmax.f32 %v2184, %v2263
        %v2296 = vmax.f32 %v2187, %v2264
        %v2297 = vmax.f32 %v2190, %v2265
        %v2298 = vmax.f32 %v2193, %v2266
        %v2299 = vmax.f32 %v2196, %v2267
        %v2300 = vmax.f32 %v2199, %v2268
        %v2301 = vmax.f32 %v2202, %v2269
        %v2302 = vmax.f32 %v2205, %v2270
        %v2303 = vmax.f32 %v2208, %v2271
        %v2304 = vmax.f32 %v2211, %v2272
        %v2305 = vmax.f32 %v2214, %v2273
        %v2306 = vmax.f32 %v2217, %v2274
        %v2307 = vmax.f32 %v2220, %v2275
        %v2308 = vmax.f32 %v2223, %v2276
        %v2309 = vmax.f32 %v2226, %v2277
        %v2310 = vmax.f32 %v2229, %v2278
        %v2311 = vmax.f32 %v2232, %v2279
        %v2312 = vmax.f32 %v2235, %v2280
        %v2313 = vmax.f32 %v2238, %v2281
        %v2314 = vmax.f32 %v2241, %v2282
        %v2315 = vmax.f32 %v2244, %v2283
        %v2316 = vmax.f32 %v2247, %v2284
        %v2317 = vmax.f32 %v2250, %v2285
        %v2318 = vmax.f32 %v2253, %v2286
        %2351 = vrot.lane.b32.xlu0 %v2287, 16
        %v2352 = vpop.permute.xlu0 %2351
        %2353 = vrot.lane.b32.xlu0 %v2288, 16
        %v2354 = vpop.permute.xlu0 %2353
        %2355 = vrot.lane.b32.xlu0 %v2289, 16
        %v2356 = vpop.permute.xlu0 %2355
        %2357 = vrot.lane.b32.xlu0 %v2290, 16
        %v2358 = vpop.permute.xlu0 %2357
        %2359 = vrot.lane.b32.xlu0 %v2291, 16
        %v2360 = vpop.permute.xlu0 %2359
        %2361 = vrot.lane.b32.xlu0 %v2292, 16
        %v2362 = vpop.permute.xlu0 %2361
        %2363 = vrot.lane.b32.xlu0 %v2293, 16
        %v2364 = vpop.permute.xlu0 %2363
        %2365 = vrot.lane.b32.xlu0 %v2294, 16
        %v2366 = vpop.permute.xlu0 %2365
        %2367 = vrot.lane.b32.xlu0 %v2295, 16
        %v2368 = vpop.permute.xlu0 %2367
        %2369 = vrot.lane.b32.xlu0 %v2296, 16
        %v2370 = vpop.permute.xlu0 %2369
        %2371 = vrot.lane.b32.xlu0 %v2297, 16
        %v2372 = vpop.permute.xlu0 %2371
        %2373 = vrot.lane.b32.xlu0 %v2298, 16
        %v2374 = vpop.permute.xlu0 %2373
        %2375 = vrot.lane.b32.xlu0 %v2299, 16
        %v2376 = vpop.permute.xlu0 %2375
        %2377 = vrot.lane.b32.xlu0 %v2300, 16
        %v2378 = vpop.permute.xlu0 %2377
        %2379 = vrot.lane.b32.xlu0 %v2301, 16
        %v2380 = vpop.permute.xlu0 %2379
        %2381 = vrot.lane.b32.xlu0 %v2302, 16
        %v2382 = vpop.permute.xlu0 %2381
        %2383 = vrot.lane.b32.xlu0 %v2303, 16
        %v2384 = vpop.permute.xlu0 %2383
        %2385 = vrot.lane.b32.xlu0 %v2304, 16
        %v2386 = vpop.permute.xlu0 %2385
        %2387 = vrot.lane.b32.xlu0 %v2305, 16
        %v2388 = vpop.permute.xlu0 %2387
        %2389 = vrot.lane.b32.xlu0 %v2306, 16
        %v2390 = vpop.permute.xlu0 %2389
        %2391 = vrot.lane.b32.xlu0 %v2307, 16
        %v2392 = vpop.permute.xlu0 %2391
        %2393 = vrot.lane.b32.xlu0 %v2308, 16
        %v2394 = vpop.permute.xlu0 %2393
        %2395 = vrot.lane.b32.xlu0 %v2309, 16
        %v2396 = vpop.permute.xlu0 %2395
        %2397 = vrot.lane.b32.xlu0 %v2310, 16
        %v2398 = vpop.permute.xlu0 %2397
        %2399 = vrot.lane.b32.xlu0 %v2311, 16
        %v2400 = vpop.permute.xlu0 %2399
        %2401 = vrot.lane.b32.xlu0 %v2312, 16
        %v2402 = vpop.permute.xlu0 %2401
        %2403 = vrot.lane.b32.xlu0 %v2313, 16
        %v2404 = vpop.permute.xlu0 %2403
        %2405 = vrot.lane.b32.xlu0 %v2314, 16
        %v2406 = vpop.permute.xlu0 %2405
        %2407 = vrot.lane.b32.xlu0 %v2315, 16
        %v2408 = vpop.permute.xlu0 %2407
        %2409 = vrot.lane.b32.xlu0 %v2316, 16
        %v2410 = vpop.permute.xlu0 %2409
        %2411 = vrot.lane.b32.xlu0 %v2317, 16
        %v2412 = vpop.permute.xlu0 %2411
        %2413 = vrot.lane.b32.xlu0 %v2318, 16
        %v2414 = vpop.permute.xlu0 %2413
        %vm2447 = vcmask 195712
        %2448 = vst.msk [vmem:[%s463 + $0x1] sm:$0xff] %vm2447, %v2352
        %2449 = vst.msk [vmem:[%s463 + $0x9] sm:$0xff] %vm2447, %v2354
        %2450 = vst.msk [vmem:[%s463 + $0x19] sm:$0xff] %vm2447, %v2356
        %2451 = vst.msk [vmem:[%s463 + $0x21] sm:$0xff] %vm2447, %v2358
        %2452 = vst.msk [vmem:[%s463 + $0x31] sm:$0xff] %vm2447, %v2360
        %2453 = vst.msk [vmem:[%s463 + $0x39] sm:$0xff] %vm2447, %v2362
        %2454 = vst.msk [vmem:[%s463 + $0x49] sm:$0xff] %vm2447, %v2364
        %2455 = vst.msk [vmem:[%s463 + $0x51] sm:$0xff] %vm2447, %v2366
        %2456 = vst.msk [vmem:[%s463 + $0x61] sm:$0xff] %vm2447, %v2368
        %2457 = vst.msk [vmem:[%s463 + $0x69] sm:$0xff] %vm2447, %v2370
        %2458 = vst.msk [vmem:[%s463 + $0x79] sm:$0xff] %vm2447, %v2372
        %2459 = vst.msk [vmem:[%s463 + $0x81] sm:$0xff] %vm2447, %v2374
        %2460 = vst.msk [vmem:[%s463 + $0x91] sm:$0xff] %vm2447, %v2376
        %2461 = vst.msk [vmem:[%s463 + $0x99] sm:$0xff] %vm2447, %v2378
        %2462 = vst.msk [vmem:[%s463 + $0xa9] sm:$0xff] %vm2447, %v2380
        %2463 = vst.msk [vmem:[%s463 + $0xb1] sm:$0xff] %vm2447, %v2382
        %2464 = vst.msk [vmem:[%s463 + $0xc1] sm:$0xff] %vm2447, %v2384
        %2465 = vst.msk [vmem:[%s463 + $0xc9] sm:$0xff] %vm2447, %v2386
        %2466 = vst.msk [vmem:[%s463 + $0xd9] sm:$0xff] %vm2447, %v2388
        %2467 = vst.msk [vmem:[%s463 + $0xe1] sm:$0xff] %vm2447, %v2390
        %2468 = vst.msk [vmem:[%s463 + $0xf1] sm:$0xff] %vm2447, %v2392
        %2469 = vst.msk [vmem:[%s463 + $0xf9] sm:$0xff] %vm2447, %v2394
        %2470 = vst.msk [vmem:[%s463 + $0x109] sm:$0xff] %vm2447, %v2396
        %2471 = vst.msk [vmem:[%s463 + $0x111] sm:$0xff] %vm2447, %v2398
        %2472 = vst.msk [vmem:[%s463 + $0x121] sm:$0xff] %vm2447, %v2400
        %2473 = vst.msk [vmem:[%s463 + $0x129] sm:$0xff] %vm2447, %v2402
        %2474 = vst.msk [vmem:[%s463 + $0x139] sm:$0xff] %vm2447, %v2404
        %2475 = vst.msk [vmem:[%s463 + $0x141] sm:$0xff] %vm2447, %v2406
        %2476 = vst.msk [vmem:[%s463 + $0x151] sm:$0xff] %vm2447, %v2408
        %2477 = vst.msk [vmem:[%s463 + $0x159] sm:$0xff] %vm2447, %v2410
        %2478 = vst.msk [vmem:[%s463 + $0x169] sm:$0xff] %vm2447, %v2412
        %2479 = vst.msk [vmem:[%s463 + $0x171] sm:$0xff] %vm2447, %v2414
        %v2480 = vld [vmem:[#allocation2] sm:$0xff]
        %v2481 = vld [vmem:[#allocation2 + $0x8] sm:$0xff]
        %v2482 = vld [vmem:[#allocation2 + $0x18] sm:$0xff]
        %v2483 = vld [vmem:[#allocation2 + $0x20] sm:$0xff]
        %v2484 = vld [vmem:[#allocation2 + $0x30] sm:$0xff]
        %v2485 = vld [vmem:[#allocation2 + $0x38] sm:$0xff]
        %v2486 = vld [vmem:[#allocation2 + $0x48] sm:$0xff]
        %v2487 = vld [vmem:[#allocation2 + $0x50] sm:$0xff]
        %v2488 = vld [vmem:[#allocation2 + $0x60] sm:$0xff]
        %v2489 = vld [vmem:[#allocation2 + $0x68] sm:$0xff]
        %v2490 = vld [vmem:[#allocation2 + $0x78] sm:$0xff]
        %v2491 = vld [vmem:[#allocation2 + $0x80] sm:$0xff]
        %v2492 = vld [vmem:[#allocation2 + $0x90] sm:$0xff]
        %v2493 = vld [vmem:[#allocation2 + $0x98] sm:$0xff]
        %v2494 = vld [vmem:[#allocation2 + $0xa8] sm:$0xff]
        %v2495 = vld [vmem:[#allocation2 + $0xb0] sm:$0xff]
        %v2496 = vld [vmem:[#allocation2 + $0xc0] sm:$0xff]
        %v2497 = vld [vmem:[#allocation2 + $0xc8] sm:$0xff]
        %v2498 = vld [vmem:[#allocation2 + $0xd8] sm:$0xff]
        %v2499 = vld [vmem:[#allocation2 + $0xe0] sm:$0xff]
        %v2500 = vld [vmem:[#allocation2 + $0xf0] sm:$0xff]
        %v2501 = vld [vmem:[#allocation2 + $0xf8] sm:$0xff]
        %v2502 = vld [vmem:[#allocation2 + $0x108] sm:$0xff]
        %v2503 = vld [vmem:[#allocation2 + $0x110] sm:$0xff]
        %v2504 = vld [vmem:[#allocation2 + $0x120] sm:$0xff]
        %v2505 = vld [vmem:[#allocation2 + $0x128] sm:$0xff]
        %v2506 = vld [vmem:[#allocation2 + $0x138] sm:$0xff]
        %v2507 = vld [vmem:[#allocation2 + $0x140] sm:$0xff]
        %v2508 = vld [vmem:[#allocation2 + $0x150] sm:$0xff]
        %v2509 = vld [vmem:[#allocation2 + $0x158] sm:$0xff]
        %v2510 = vld [vmem:[#allocation2 + $0x168] sm:$0xff]
        %v2511 = vld [vmem:[#allocation2 + $0x170] sm:$0xff]
        %v2512 = vld [vmem:[#allocation2 + $0x1] sm:$0xff]
        %v2513 = vld [vmem:[#allocation2 + $0x9] sm:$0xff]
        %v2514 = vld [vmem:[#allocation2 + $0x19] sm:$0xff]
        %v2515 = vld [vmem:[#allocation2 + $0x21] sm:$0xff]
        %v2516 = vld [vmem:[#allocation2 + $0x31] sm:$0xff]
        %v2517 = vld [vmem:[#allocation2 + $0x39] sm:$0xff]
        %v2518 = vld [vmem:[#allocation2 + $0x49] sm:$0xff]
        %v2519 = vld [vmem:[#allocation2 + $0x51] sm:$0xff]
        %v2520 = vld [vmem:[#allocation2 + $0x61] sm:$0xff]
        %v2521 = vld [vmem:[#allocation2 + $0x69] sm:$0xff]
        %v2522 = vld [vmem:[#allocation2 + $0x79] sm:$0xff]
        %v2523 = vld [vmem:[#allocation2 + $0x81] sm:$0xff]
        %v2524 = vld [vmem:[#allocation2 + $0x91] sm:$0xff]
        %v2525 = vld [vmem:[#allocation2 + $0x99] sm:$0xff]
        %v2526 = vld [vmem:[#allocation2 + $0xa9] sm:$0xff]
        %v2527 = vld [vmem:[#allocation2 + $0xb1] sm:$0xff]
        %v2528 = vld [vmem:[#allocation2 + $0xc1] sm:$0xff]
        %v2529 = vld [vmem:[#allocation2 + $0xc9] sm:$0xff]
        %v2530 = vld [vmem:[#allocation2 + $0xd9] sm:$0xff]
        %v2531 = vld [vmem:[#allocation2 + $0xe1] sm:$0xff]
        %v2532 = vld [vmem:[#allocation2 + $0xf1] sm:$0xff]
        %v2533 = vld [vmem:[#allocation2 + $0xf9] sm:$0xff]
        %v2534 = vld [vmem:[#allocation2 + $0x109] sm:$0xff]
        %v2535 = vld [vmem:[#allocation2 + $0x111] sm:$0xff]
        %v2536 = vld [vmem:[#allocation2 + $0x121] sm:$0xff]
        %v2537 = vld [vmem:[#allocation2 + $0x129] sm:$0xff]
        %v2538 = vld [vmem:[#allocation2 + $0x139] sm:$0xff]
        %v2539 = vld [vmem:[#allocation2 + $0x141] sm:$0xff]
        %v2540 = vld [vmem:[#allocation2 + $0x151] sm:$0xff]
        %v2541 = vld [vmem:[#allocation2 + $0x159] sm:$0xff]
        %v2542 = vld [vmem:[#allocation2 + $0x169] sm:$0xff]
        %v2543 = vld [vmem:[#allocation2 + $0x171] sm:$0xff]
        %v2544 = vld [vmem:[#allocation2 + $0x2] sm:$0xff]
        %v2545 = vld [vmem:[#allocation2 + $0xa] sm:$0xff]
        %v2546 = vld [vmem:[#allocation2 + $0x1a] sm:$0xff]
        %v2547 = vld [vmem:[#allocation2 + $0x22] sm:$0xff]
        %v2548 = vld [vmem:[#allocation2 + $0x32] sm:$0xff]
        %v2549 = vld [vmem:[#allocation2 + $0x3a] sm:$0xff]
        %v2550 = vld [vmem:[#allocation2 + $0x4a] sm:$0xff]
        %v2551 = vld [vmem:[#allocation2 + $0x52] sm:$0xff]
        %v2552 = vld [vmem:[#allocation2 + $0x62] sm:$0xff]
        %v2553 = vld [vmem:[#allocation2 + $0x6a] sm:$0xff]
        %v2554 = vld [vmem:[#allocation2 + $0x7a] sm:$0xff]
        %v2555 = vld [vmem:[#allocation2 + $0x82] sm:$0xff]
        %v2556 = vld [vmem:[#allocation2 + $0x92] sm:$0xff]
        %v2557 = vld [vmem:[#allocation2 + $0x9a] sm:$0xff]
        %v2558 = vld [vmem:[#allocation2 + $0xaa] sm:$0xff]
        %v2559 = vld [vmem:[#allocation2 + $0xb2] sm:$0xff]
        %v2560 = vld [vmem:[#allocation2 + $0xc2] sm:$0xff]
        %v2561 = vld [vmem:[#allocation2 + $0xca] sm:$0xff]
        %v2562 = vld [vmem:[#allocation2 + $0xda] sm:$0xff]
        %v2563 = vld [vmem:[#allocation2 + $0xe2] sm:$0xff]
        %v2564 = vld [vmem:[#allocation2 + $0xf2] sm:$0xff]
        %v2565 = vld [vmem:[#allocation2 + $0xfa] sm:$0xff]
        %v2566 = vld [vmem:[#allocation2 + $0x10a] sm:$0xff]
        %v2567 = vld [vmem:[#allocation2 + $0x112] sm:$0xff]
        %v2568 = vld [vmem:[#allocation2 + $0x122] sm:$0xff]
        %v2569 = vld [vmem:[#allocation2 + $0x12a] sm:$0xff]
        %v2570 = vld [vmem:[#allocation2 + $0x13a] sm:$0xff]
        %v2571 = vld [vmem:[#allocation2 + $0x142] sm:$0xff]
        %v2572 = vld [vmem:[#allocation2 + $0x152] sm:$0xff]
        %v2573 = vld [vmem:[#allocation2 + $0x15a] sm:$0xff]
        %v2574 = vld [vmem:[#allocation2 + $0x16a] sm:$0xff]
        %v2575 = vld [vmem:[#allocation2 + $0x172] sm:$0xff]
        %v2576 = vld [vmem:[%s463] sm:$0xff]
        %v2577 = vld [vmem:[%s463 + $0x8] sm:$0xff]
        %v2578 = vld [vmem:[%s463 + $0x18] sm:$0xff]
        %v2579 = vld [vmem:[%s463 + $0x20] sm:$0xff]
        %v2580 = vld [vmem:[%s463 + $0x30] sm:$0xff]
        %v2581 = vld [vmem:[%s463 + $0x38] sm:$0xff]
        %v2582 = vld [vmem:[%s463 + $0x48] sm:$0xff]
        %v2583 = vld [vmem:[%s463 + $0x50] sm:$0xff]
        %v2584 = vld [vmem:[%s463 + $0x60] sm:$0xff]
        %v2585 = vld [vmem:[%s463 + $0x68] sm:$0xff]
        %v2586 = vld [vmem:[%s463 + $0x78] sm:$0xff]
        %v2587 = vld [vmem:[%s463 + $0x80] sm:$0xff]
        %v2588 = vld [vmem:[%s463 + $0x90] sm:$0xff]
        %v2589 = vld [vmem:[%s463 + $0x98] sm:$0xff]
        %v2590 = vld [vmem:[%s463 + $0xa8] sm:$0xff]
        %v2591 = vld [vmem:[%s463 + $0xb0] sm:$0xff]
        %v2592 = vld [vmem:[%s463 + $0xc0] sm:$0xff]
        %v2593 = vld [vmem:[%s463 + $0xc8] sm:$0xff]
        %v2594 = vld [vmem:[%s463 + $0xd8] sm:$0xff]
        %v2595 = vld [vmem:[%s463 + $0xe0] sm:$0xff]
        %v2596 = vld [vmem:[%s463 + $0xf0] sm:$0xff]
        %v2597 = vld [vmem:[%s463 + $0xf8] sm:$0xff]
        %v2598 = vld [vmem:[%s463 + $0x108] sm:$0xff]
        %v2599 = vld [vmem:[%s463 + $0x110] sm:$0xff]
        %v2600 = vld [vmem:[%s463 + $0x120] sm:$0xff]
        %v2601 = vld [vmem:[%s463 + $0x128] sm:$0xff]
        %v2602 = vld [vmem:[%s463 + $0x138] sm:$0xff]
        %v2603 = vld [vmem:[%s463 + $0x140] sm:$0xff]
        %v2604 = vld [vmem:[%s463 + $0x150] sm:$0xff]
        %v2605 = vld [vmem:[%s463 + $0x158] sm:$0xff]
        %v2606 = vld [vmem:[%s463 + $0x168] sm:$0xff]
        %v2607 = vld [vmem:[%s463 + $0x170] sm:$0xff]
        %v2608 = vld [vmem:[%s463 + $0x1] sm:$0xff]
        %v2609 = vld [vmem:[%s463 + $0x9] sm:$0xff]
        %v2610 = vld [vmem:[%s463 + $0x19] sm:$0xff]
        %v2611 = vld [vmem:[%s463 + $0x21] sm:$0xff]
        %v2612 = vld [vmem:[%s463 + $0x31] sm:$0xff]
        %v2613 = vld [vmem:[%s463 + $0x39] sm:$0xff]
        %v2614 = vld [vmem:[%s463 + $0x49] sm:$0xff]
        %v2615 = vld [vmem:[%s463 + $0x51] sm:$0xff]
        %v2616 = vld [vmem:[%s463 + $0x61] sm:$0xff]
        %v2617 = vld [vmem:[%s463 + $0x69] sm:$0xff]
        %v2618 = vld [vmem:[%s463 + $0x79] sm:$0xff]
        %v2619 = vld [vmem:[%s463 + $0x81] sm:$0xff]
        %v2620 = vld [vmem:[%s463 + $0x91] sm:$0xff]
        %v2621 = vld [vmem:[%s463 + $0x99] sm:$0xff]
        %v2622 = vld [vmem:[%s463 + $0xa9] sm:$0xff]
        %v2623 = vld [vmem:[%s463 + $0xb1] sm:$0xff]
        %v2624 = vld [vmem:[%s463 + $0xc1] sm:$0xff]
        %v2625 = vld [vmem:[%s463 + $0xc9] sm:$0xff]
        %v2626 = vld [vmem:[%s463 + $0xd9] sm:$0xff]
        %v2627 = vld [vmem:[%s463 + $0xe1] sm:$0xff]
        %v2628 = vld [vmem:[%s463 + $0xf1] sm:$0xff]
        %v2629 = vld [vmem:[%s463 + $0xf9] sm:$0xff]
        %v2630 = vld [vmem:[%s463 + $0x109] sm:$0xff]
        %v2631 = vld [vmem:[%s463 + $0x111] sm:$0xff]
        %v2632 = vld [vmem:[%s463 + $0x121] sm:$0xff]
        %v2633 = vld [vmem:[%s463 + $0x129] sm:$0xff]
        %v2634 = vld [vmem:[%s463 + $0x139] sm:$0xff]
        %v2635 = vld [vmem:[%s463 + $0x141] sm:$0xff]
        %v2636 = vld [vmem:[%s463 + $0x151] sm:$0xff]
        %v2637 = vld [vmem:[%s463 + $0x159] sm:$0xff]
        %v2638 = vld [vmem:[%s463 + $0x169] sm:$0xff]
        %v2639 = vld [vmem:[%s463 + $0x171] sm:$0xff]
        %v2640 = vld [vmem:[%s463 + $0x2] sm:$0xff]
        %v2641 = vld [vmem:[%s463 + $0xa] sm:$0xff]
        %v2642 = vld [vmem:[%s463 + $0x1a] sm:$0xff]
        %v2643 = vld [vmem:[%s463 + $0x22] sm:$0xff]
        %v2644 = vld [vmem:[%s463 + $0x32] sm:$0xff]
        %v2645 = vld [vmem:[%s463 + $0x3a] sm:$0xff]
        %v2646 = vld [vmem:[%s463 + $0x4a] sm:$0xff]
        %v2647 = vld [vmem:[%s463 + $0x52] sm:$0xff]
        %v2648 = vld [vmem:[%s463 + $0x62] sm:$0xff]
        %v2649 = vld [vmem:[%s463 + $0x6a] sm:$0xff]
        %v2650 = vld [vmem:[%s463 + $0x7a] sm:$0xff]
        %v2651 = vld [vmem:[%s463 + $0x82] sm:$0xff]
        %v2652 = vld [vmem:[%s463 + $0x92] sm:$0xff]
        %v2653 = vld [vmem:[%s463 + $0x9a] sm:$0xff]
        %v2654 = vld [vmem:[%s463 + $0xaa] sm:$0xff]
        %v2655 = vld [vmem:[%s463 + $0xb2] sm:$0xff]
        %v2656 = vld [vmem:[%s463 + $0xc2] sm:$0xff]
        %v2657 = vld [vmem:[%s463 + $0xca] sm:$0xff]
        %v2658 = vld [vmem:[%s463 + $0xda] sm:$0xff]
        %v2659 = vld [vmem:[%s463 + $0xe2] sm:$0xff]
        %v2660 = vld [vmem:[%s463 + $0xf2] sm:$0xff]
        %v2661 = vld [vmem:[%s463 + $0xfa] sm:$0xff]
        %v2662 = vld [vmem:[%s463 + $0x10a] sm:$0xff]
        %v2663 = vld [vmem:[%s463 + $0x112] sm:$0xff]
        %v2664 = vld [vmem:[%s463 + $0x122] sm:$0xff]
        %v2665 = vld [vmem:[%s463 + $0x12a] sm:$0xff]
        %v2666 = vld [vmem:[%s463 + $0x13a] sm:$0xff]
        %v2667 = vld [vmem:[%s463 + $0x142] sm:$0xff]
        %v2668 = vld [vmem:[%s463 + $0x152] sm:$0xff]
        %v2669 = vld [vmem:[%s463 + $0x15a] sm:$0xff]
        %v2670 = vld [vmem:[%s463 + $0x16a] sm:$0xff]
        %v2671 = vld [vmem:[%s463 + $0x172] sm:$0xff]
        %v2672 = vld [vmem:[%s689] sm:$0xff]
        %v2673 = vld [vmem:[%s689 + $0x8] sm:$0xff]
        %v2674 = vld [vmem:[%s689 + $0x18] sm:$0xff]
        %v2675 = vld [vmem:[%s689 + $0x20] sm:$0xff]
        %v2676 = vld [vmem:[%s689 + $0x30] sm:$0xff]
        %v2677 = vld [vmem:[%s689 + $0x38] sm:$0xff]
        %v2678 = vld [vmem:[%s689 + $0x48] sm:$0xff]
        %v2679 = vld [vmem:[%s689 + $0x50] sm:$0xff]
        %v2680 = vld [vmem:[%s689 + $0x60] sm:$0xff]
        %v2681 = vld [vmem:[%s689 + $0x68] sm:$0xff]
        %v2682 = vld [vmem:[%s689 + $0x78] sm:$0xff]
        %v2683 = vld [vmem:[%s689 + $0x80] sm:$0xff]
        %v2684 = vld [vmem:[%s689 + $0x90] sm:$0xff]
        %v2685 = vld [vmem:[%s689 + $0x98] sm:$0xff]
        %v2686 = vld [vmem:[%s689 + $0xa8] sm:$0xff]
        %v2687 = vld [vmem:[%s689 + $0xb0] sm:$0xff]
        %v2688 = vld [vmem:[%s689 + $0xc0] sm:$0xff]
        %v2689 = vld [vmem:[%s689 + $0xc8] sm:$0xff]
        %v2690 = vld [vmem:[%s689 + $0xd8] sm:$0xff]
        %v2691 = vld [vmem:[%s689 + $0xe0] sm:$0xff]
        %v2692 = vld [vmem:[%s689 + $0xf0] sm:$0xff]
        %v2693 = vld [vmem:[%s689 + $0xf8] sm:$0xff]
        %v2694 = vld [vmem:[%s689 + $0x108] sm:$0xff]
        %v2695 = vld [vmem:[%s689 + $0x110] sm:$0xff]
        %v2696 = vld [vmem:[%s689 + $0x120] sm:$0xff]
        %v2697 = vld [vmem:[%s689 + $0x128] sm:$0xff]
        %v2698 = vld [vmem:[%s689 + $0x138] sm:$0xff]
        %v2699 = vld [vmem:[%s689 + $0x140] sm:$0xff]
        %v2700 = vld [vmem:[%s689 + $0x150] sm:$0xff]
        %v2701 = vld [vmem:[%s689 + $0x158] sm:$0xff]
        %v2702 = vld [vmem:[%s689 + $0x168] sm:$0xff]
        %v2703 = vld [vmem:[%s689 + $0x170] sm:$0xff]
        %v2704 = vld [vmem:[%s689 + $0x1] sm:$0xff]
        %v2705 = vld [vmem:[%s689 + $0x9] sm:$0xff]
        %v2706 = vld [vmem:[%s689 + $0x19] sm:$0xff]
        %v2707 = vld [vmem:[%s689 + $0x21] sm:$0xff]
        %v2708 = vld [vmem:[%s689 + $0x31] sm:$0xff]
        %v2709 = vld [vmem:[%s689 + $0x39] sm:$0xff]
        %v2710 = vld [vmem:[%s689 + $0x49] sm:$0xff]
        %v2711 = vld [vmem:[%s689 + $0x51] sm:$0xff]
        %v2712 = vld [vmem:[%s689 + $0x61] sm:$0xff]
        %v2713 = vld [vmem:[%s689 + $0x69] sm:$0xff]
        %v2714 = vld [vmem:[%s689 + $0x79] sm:$0xff]
        %v2715 = vld [vmem:[%s689 + $0x81] sm:$0xff]
        %v2716 = vld [vmem:[%s689 + $0x91] sm:$0xff]
        %v2717 = vld [vmem:[%s689 + $0x99] sm:$0xff]
        %v2718 = vld [vmem:[%s689 + $0xa9] sm:$0xff]
        %v2719 = vld [vmem:[%s689 + $0xb1] sm:$0xff]
        %v2720 = vld [vmem:[%s689 + $0xc1] sm:$0xff]
        %v2721 = vld [vmem:[%s689 + $0xc9] sm:$0xff]
        %v2722 = vld [vmem:[%s689 + $0xd9] sm:$0xff]
        %v2723 = vld [vmem:[%s689 + $0xe1] sm:$0xff]
        %v2724 = vld [vmem:[%s689 + $0xf1] sm:$0xff]
        %v2725 = vld [vmem:[%s689 + $0xf9] sm:$0xff]
        %v2726 = vld [vmem:[%s689 + $0x109] sm:$0xff]
        %v2727 = vld [vmem:[%s689 + $0x111] sm:$0xff]
        %v2728 = vld [vmem:[%s689 + $0x121] sm:$0xff]
        %v2729 = vld [vmem:[%s689 + $0x129] sm:$0xff]
        %v2730 = vld [vmem:[%s689 + $0x139] sm:$0xff]
        %v2731 = vld [vmem:[%s689 + $0x141] sm:$0xff]
        %v2732 = vld [vmem:[%s689 + $0x151] sm:$0xff]
        %v2733 = vld [vmem:[%s689 + $0x159] sm:$0xff]
        %v2734 = vld [vmem:[%s689 + $0x169] sm:$0xff]
        %v2735 = vld [vmem:[%s689 + $0x171] sm:$0xff]
        %v2736 = vld [vmem:[%s689 + $0x2] sm:$0xff]
        %v2737 = vld [vmem:[%s689 + $0xa] sm:$0xff]
        %v2738 = vld [vmem:[%s689 + $0x1a] sm:$0xff]
        %v2739 = vld [vmem:[%s689 + $0x22] sm:$0xff]
        %v2740 = vld [vmem:[%s689 + $0x32] sm:$0xff]
        %v2741 = vld [vmem:[%s689 + $0x3a] sm:$0xff]
        %v2742 = vld [vmem:[%s689 + $0x4a] sm:$0xff]
        %v2743 = vld [vmem:[%s689 + $0x52] sm:$0xff]
        %v2744 = vld [vmem:[%s689 + $0x62] sm:$0xff]
        %v2745 = vld [vmem:[%s689 + $0x6a] sm:$0xff]
        %v2746 = vld [vmem:[%s689 + $0x7a] sm:$0xff]
        %v2747 = vld [vmem:[%s689 + $0x82] sm:$0xff]
        %v2748 = vld [vmem:[%s689 + $0x92] sm:$0xff]
        %v2749 = vld [vmem:[%s689 + $0x9a] sm:$0xff]
        %v2750 = vld [vmem:[%s689 + $0xaa] sm:$0xff]
        %v2751 = vld [vmem:[%s689 + $0xb2] sm:$0xff]
        %v2752 = vld [vmem:[%s689 + $0xc2] sm:$0xff]
        %v2753 = vld [vmem:[%s689 + $0xca] sm:$0xff]
        %v2754 = vld [vmem:[%s689 + $0xda] sm:$0xff]
        %v2755 = vld [vmem:[%s689 + $0xe2] sm:$0xff]
        %v2756 = vld [vmem:[%s689 + $0xf2] sm:$0xff]
        %v2757 = vld [vmem:[%s689 + $0xfa] sm:$0xff]
        %v2758 = vld [vmem:[%s689 + $0x10a] sm:$0xff]
        %v2759 = vld [vmem:[%s689 + $0x112] sm:$0xff]
        %v2760 = vld [vmem:[%s689 + $0x122] sm:$0xff]
        %v2761 = vld [vmem:[%s689 + $0x12a] sm:$0xff]
        %v2762 = vld [vmem:[%s689 + $0x13a] sm:$0xff]
        %v2763 = vld [vmem:[%s689 + $0x142] sm:$0xff]
        %v2764 = vld [vmem:[%s689 + $0x152] sm:$0xff]
        %v2765 = vld [vmem:[%s689 + $0x15a] sm:$0xff]
        %v2766 = vld [vmem:[%s689 + $0x16a] sm:$0xff]
        %v2767 = vld [vmem:[%s689 + $0x172] sm:$0xff]
        %2800 = vrot.lane.b32.xlu0 %v2512, 24
        %v2801 = vpop.permute.xlu0 %2800
        %2802 = vrot.lane.b32.xlu0 %v2513, 24
        %v2803 = vpop.permute.xlu0 %2802
        %2804 = vrot.lane.b32.xlu0 %v2514, 24
        %v2805 = vpop.permute.xlu0 %2804
        %2806 = vrot.lane.b32.xlu0 %v2515, 24
        %v2807 = vpop.permute.xlu0 %2806
        %2808 = vrot.lane.b32.xlu0 %v2516, 24
        %v2809 = vpop.permute.xlu0 %2808
        %2810 = vrot.lane.b32.xlu0 %v2517, 24
        %v2811 = vpop.permute.xlu0 %2810
        %2812 = vrot.lane.b32.xlu0 %v2518, 24
        %v2813 = vpop.permute.xlu0 %2812
        %2814 = vrot.lane.b32.xlu0 %v2519, 24
        %v2815 = vpop.permute.xlu0 %2814
        %2816 = vrot.lane.b32.xlu0 %v2520, 24
        %v2817 = vpop.permute.xlu0 %2816
        %2818 = vrot.lane.b32.xlu0 %v2521, 24
        %v2819 = vpop.permute.xlu0 %2818
        %2820 = vrot.lane.b32.xlu0 %v2522, 24
        %v2821 = vpop.permute.xlu0 %2820
        %2822 = vrot.lane.b32.xlu0 %v2523, 24
        %v2823 = vpop.permute.xlu0 %2822
        %2824 = vrot.lane.b32.xlu0 %v2524, 24
        %v2825 = vpop.permute.xlu0 %2824
        %2826 = vrot.lane.b32.xlu0 %v2525, 24
        %v2827 = vpop.permute.xlu0 %2826
        %2828 = vrot.lane.b32.xlu0 %v2526, 24
        %v2829 = vpop.permute.xlu0 %2828
        %2830 = vrot.lane.b32.xlu0 %v2527, 24
        %v2831 = vpop.permute.xlu0 %2830
        %2832 = vrot.lane.b32.xlu0 %v2528, 24
        %v2833 = vpop.permute.xlu0 %2832
        %2834 = vrot.lane.b32.xlu0 %v2529, 24
        %v2835 = vpop.permute.xlu0 %2834
        %2836 = vrot.lane.b32.xlu0 %v2530, 24
        %v2837 = vpop.permute.xlu0 %2836
        %2838 = vrot.lane.b32.xlu0 %v2531, 24
        %v2839 = vpop.permute.xlu0 %2838
        %2840 = vrot.lane.b32.xlu0 %v2532, 24
        %v2841 = vpop.permute.xlu0 %2840
        %2842 = vrot.lane.b32.xlu0 %v2533, 24
        %v2843 = vpop.permute.xlu0 %2842
        %2844 = vrot.lane.b32.xlu0 %v2534, 24
        %v2845 = vpop.permute.xlu0 %2844
        %2846 = vrot.lane.b32.xlu0 %v2535, 24
        %v2847 = vpop.permute.xlu0 %2846
        %2848 = vrot.lane.b32.xlu0 %v2536, 24
        %v2849 = vpop.permute.xlu0 %2848
        %2850 = vrot.lane.b32.xlu0 %v2537, 24
        %v2851 = vpop.permute.xlu0 %2850
        %2852 = vrot.lane.b32.xlu0 %v2538, 24
        %v2853 = vpop.permute.xlu0 %2852
        %2854 = vrot.lane.b32.xlu0 %v2539, 24
        %v2855 = vpop.permute.xlu0 %2854
        %2856 = vrot.lane.b32.xlu0 %v2540, 24
        %v2857 = vpop.permute.xlu0 %2856
        %2858 = vrot.lane.b32.xlu0 %v2541, 24
        %v2859 = vpop.permute.xlu0 %2858
        %2860 = vrot.lane.b32.xlu0 %v2542, 24
        %v2861 = vpop.permute.xlu0 %2860
        %2862 = vrot.lane.b32.xlu0 %v2543, 24
        %v2863 = vpop.permute.xlu0 %2862
        %2928 = vrot.lane.b32.xlu0 %v2544, 48
        %v2929 = vpop.permute.xlu0 %2928
        %2930 = vrot.lane.b32.xlu0 %v2545, 48
        %v2931 = vpop.permute.xlu0 %2930
        %2932 = vrot.lane.b32.xlu0 %v2546, 48
        %v2933 = vpop.permute.xlu0 %2932
        %2934 = vrot.lane.b32.xlu0 %v2547, 48
        %v2935 = vpop.permute.xlu0 %2934
        %2936 = vrot.lane.b32.xlu0 %v2548, 48
        %v2937 = vpop.permute.xlu0 %2936
        %2938 = vrot.lane.b32.xlu0 %v2549, 48
        %v2939 = vpop.permute.xlu0 %2938
        %2940 = vrot.lane.b32.xlu0 %v2550, 48
        %v2941 = vpop.permute.xlu0 %2940
        %2942 = vrot.lane.b32.xlu0 %v2551, 48
        %v2943 = vpop.permute.xlu0 %2942
        %2944 = vrot.lane.b32.xlu0 %v2552, 48
        %v2945 = vpop.permute.xlu0 %2944
        %2946 = vrot.lane.b32.xlu0 %v2553, 48
        %v2947 = vpop.permute.xlu0 %2946
        %2948 = vrot.lane.b32.xlu0 %v2554, 48
        %v2949 = vpop.permute.xlu0 %2948
        %2950 = vrot.lane.b32.xlu0 %v2555, 48
        %v2951 = vpop.permute.xlu0 %2950
        %2952 = vrot.lane.b32.xlu0 %v2556, 48
        %v2953 = vpop.permute.xlu0 %2952
        %2954 = vrot.lane.b32.xlu0 %v2557, 48
        %v2955 = vpop.permute.xlu0 %2954
        %2956 = vrot.lane.b32.xlu0 %v2558, 48
        %v2957 = vpop.permute.xlu0 %2956
        %2958 = vrot.lane.b32.xlu0 %v2559, 48
        %v2959 = vpop.permute.xlu0 %2958
        %2960 = vrot.lane.b32.xlu0 %v2560, 48
        %v2961 = vpop.permute.xlu0 %2960
        %2962 = vrot.lane.b32.xlu0 %v2561, 48
        %v2963 = vpop.permute.xlu0 %2962
        %2964 = vrot.lane.b32.xlu0 %v2562, 48
        %v2965 = vpop.permute.xlu0 %2964
        %2966 = vrot.lane.b32.xlu0 %v2563, 48
        %v2967 = vpop.permute.xlu0 %2966
        %2968 = vrot.lane.b32.xlu0 %v2564, 48
        %v2969 = vpop.permute.xlu0 %2968
        %2970 = vrot.lane.b32.xlu0 %v2565, 48
        %v2971 = vpop.permute.xlu0 %2970
        %2972 = vrot.lane.b32.xlu0 %v2566, 48
        %v2973 = vpop.permute.xlu0 %2972
        %2974 = vrot.lane.b32.xlu0 %v2567, 48
        %v2975 = vpop.permute.xlu0 %2974
        %2976 = vrot.lane.b32.xlu0 %v2568, 48
        %v2977 = vpop.permute.xlu0 %2976
        %2978 = vrot.lane.b32.xlu0 %v2569, 48
        %v2979 = vpop.permute.xlu0 %2978
        %2980 = vrot.lane.b32.xlu0 %v2570, 48
        %v2981 = vpop.permute.xlu0 %2980
        %2982 = vrot.lane.b32.xlu0 %v2571, 48
        %v2983 = vpop.permute.xlu0 %2982
        %2984 = vrot.lane.b32.xlu0 %v2572, 48
        %v2985 = vpop.permute.xlu0 %2984
        %2986 = vrot.lane.b32.xlu0 %v2573, 48
        %v2987 = vpop.permute.xlu0 %2986
        %2988 = vrot.lane.b32.xlu0 %v2574, 48
        %v2989 = vpop.permute.xlu0 %2988
        %2990 = vrot.lane.b32.xlu0 %v2575, 48
        %v2991 = vpop.permute.xlu0 %2990
        %3056 = vrot.lane.b32.xlu0 %v2576, 72
        %v3057 = vpop.permute.xlu0 %3056
        %3058 = vrot.lane.b32.xlu0 %v2577, 72
        %v3059 = vpop.permute.xlu0 %3058
        %3060 = vrot.lane.b32.xlu0 %v2578, 72
        %v3061 = vpop.permute.xlu0 %3060
        %3062 = vrot.lane.b32.xlu0 %v2579, 72
        %v3063 = vpop.permute.xlu0 %3062
        %3064 = vrot.lane.b32.xlu0 %v2580, 72
        %v3065 = vpop.permute.xlu0 %3064
        %3066 = vrot.lane.b32.xlu0 %v2581, 72
        %v3067 = vpop.permute.xlu0 %3066
        %3068 = vrot.lane.b32.xlu0 %v2582, 72
        %v3069 = vpop.permute.xlu0 %3068
        %3070 = vrot.lane.b32.xlu0 %v2583, 72
        %v3071 = vpop.permute.xlu0 %3070
        %3072 = vrot.lane.b32.xlu0 %v2584, 72
        %v3073 = vpop.permute.xlu0 %3072
        %3074 = vrot.lane.b32.xlu0 %v2585, 72
        %v3075 = vpop.permute.xlu0 %3074
        %3076 = vrot.lane.b32.xlu0 %v2586, 72
        %v3077 = vpop.permute.xlu0 %3076
        %3078 = vrot.lane.b32.xlu0 %v2587, 72
        %v3079 = vpop.permute.xlu0 %3078
        %3080 = vrot.lane.b32.xlu0 %v2588, 72
        %v3081 = vpop.permute.xlu0 %3080
        %3082 = vrot.lane.b32.xlu0 %v2589, 72
        %v3083 = vpop.permute.xlu0 %3082
        %3084 = vrot.lane.b32.xlu0 %v2590, 72
        %v3085 = vpop.permute.xlu0 %3084
        %3086 = vrot.lane.b32.xlu0 %v2591, 72
        %v3087 = vpop.permute.xlu0 %3086
        %3088 = vrot.lane.b32.xlu0 %v2592, 72
        %v3089 = vpop.permute.xlu0 %3088
        %3090 = vrot.lane.b32.xlu0 %v2593, 72
        %v3091 = vpop.permute.xlu0 %3090
        %3092 = vrot.lane.b32.xlu0 %v2594, 72
        %v3093 = vpop.permute.xlu0 %3092
        %3094 = vrot.lane.b32.xlu0 %v2595, 72
        %v3095 = vpop.permute.xlu0 %3094
        %3096 = vrot.lane.b32.xlu0 %v2596, 72
        %v3097 = vpop.permute.xlu0 %3096
        %3098 = vrot.lane.b32.xlu0 %v2597, 72
        %v3099 = vpop.permute.xlu0 %3098
        %3100 = vrot.lane.b32.xlu0 %v2598, 72
        %v3101 = vpop.permute.xlu0 %3100
        %3102 = vrot.lane.b32.xlu0 %v2599, 72
        %v3103 = vpop.permute.xlu0 %3102
        %3104 = vrot.lane.b32.xlu0 %v2600, 72
        %v3105 = vpop.permute.xlu0 %3104
        %3106 = vrot.lane.b32.xlu0 %v2601, 72
        %v3107 = vpop.permute.xlu0 %3106
        %3108 = vrot.lane.b32.xlu0 %v2602, 72
        %v3109 = vpop.permute.xlu0 %3108
        %3110 = vrot.lane.b32.xlu0 %v2603, 72
        %v3111 = vpop.permute.xlu0 %3110
        %3112 = vrot.lane.b32.xlu0 %v2604, 72
        %v3113 = vpop.permute.xlu0 %3112
        %3114 = vrot.lane.b32.xlu0 %v2605, 72
        %v3115 = vpop.permute.xlu0 %3114
        %3116 = vrot.lane.b32.xlu0 %v2606, 72
        %v3117 = vpop.permute.xlu0 %3116
        %3118 = vrot.lane.b32.xlu0 %v2607, 72
        %v3119 = vpop.permute.xlu0 %3118
        %3184 = vrot.lane.b32.xlu0 %v2608, 96
        %v3185 = vpop.permute.xlu0 %3184
        %3186 = vrot.lane.b32.xlu0 %v2609, 96
        %v3187 = vpop.permute.xlu0 %3186
        %3188 = vrot.lane.b32.xlu0 %v2610, 96
        %v3189 = vpop.permute.xlu0 %3188
        %3190 = vrot.lane.b32.xlu0 %v2611, 96
        %v3191 = vpop.permute.xlu0 %3190
        %3192 = vrot.lane.b32.xlu0 %v2612, 96
        %v3193 = vpop.permute.xlu0 %3192
        %3194 = vrot.lane.b32.xlu0 %v2613, 96
        %v3195 = vpop.permute.xlu0 %3194
        %3196 = vrot.lane.b32.xlu0 %v2614, 96
        %v3197 = vpop.permute.xlu0 %3196
        %3198 = vrot.lane.b32.xlu0 %v2615, 96
        %v3199 = vpop.permute.xlu0 %3198
        %3200 = vrot.lane.b32.xlu0 %v2616, 96
        %v3201 = vpop.permute.xlu0 %3200
        %3202 = vrot.lane.b32.xlu0 %v2617, 96
        %v3203 = vpop.permute.xlu0 %3202
        %3204 = vrot.lane.b32.xlu0 %v2618, 96
        %v3205 = vpop.permute.xlu0 %3204
        %3206 = vrot.lane.b32.xlu0 %v2619, 96
        %v3207 = vpop.permute.xlu0 %3206
        %3208 = vrot.lane.b32.xlu0 %v2620, 96
        %v3209 = vpop.permute.xlu0 %3208
        %3210 = vrot.lane.b32.xlu0 %v2621, 96
        %v3211 = vpop.permute.xlu0 %3210
        %3212 = vrot.lane.b32.xlu0 %v2622, 96
        %v3213 = vpop.permute.xlu0 %3212
        %3214 = vrot.lane.b32.xlu0 %v2623, 96
        %v3215 = vpop.permute.xlu0 %3214
        %3216 = vrot.lane.b32.xlu0 %v2624, 96
        %v3217 = vpop.permute.xlu0 %3216
        %3218 = vrot.lane.b32.xlu0 %v2625, 96
        %v3219 = vpop.permute.xlu0 %3218
        %3220 = vrot.lane.b32.xlu0 %v2626, 96
        %v3221 = vpop.permute.xlu0 %3220
        %3222 = vrot.lane.b32.xlu0 %v2627, 96
        %v3223 = vpop.permute.xlu0 %3222
        %3224 = vrot.lane.b32.xlu0 %v2628, 96
        %v3225 = vpop.permute.xlu0 %3224
        %3226 = vrot.lane.b32.xlu0 %v2629, 96
        %v3227 = vpop.permute.xlu0 %3226
        %3228 = vrot.lane.b32.xlu0 %v2630, 96
        %v3229 = vpop.permute.xlu0 %3228
        %3230 = vrot.lane.b32.xlu0 %v2631, 96
        %v3231 = vpop.permute.xlu0 %3230
        %3232 = vrot.lane.b32.xlu0 %v2632, 96
        %v3233 = vpop.permute.xlu0 %3232
        %3234 = vrot.lane.b32.xlu0 %v2633, 96
        %v3235 = vpop.permute.xlu0 %3234
        %3236 = vrot.lane.b32.xlu0 %v2634, 96
        %v3237 = vpop.permute.xlu0 %3236
        %3238 = vrot.lane.b32.xlu0 %v2635, 96
        %v3239 = vpop.permute.xlu0 %3238
        %3240 = vrot.lane.b32.xlu0 %v2636, 96
        %v3241 = vpop.permute.xlu0 %3240
        %3242 = vrot.lane.b32.xlu0 %v2637, 96
        %v3243 = vpop.permute.xlu0 %3242
        %3244 = vrot.lane.b32.xlu0 %v2638, 96
        %v3245 = vpop.permute.xlu0 %3244
        %3246 = vrot.lane.b32.xlu0 %v2639, 96
        %v3247 = vpop.permute.xlu0 %3246
        %3312 = vrot.lane.b32.xlu0 %v2640, 120
        %v3313 = vpop.permute.xlu0 %3312
        %3314 = vrot.lane.b32.xlu0 %v2641, 120
        %v3315 = vpop.permute.xlu0 %3314
        %3316 = vrot.lane.b32.xlu0 %v2642, 120
        %v3317 = vpop.permute.xlu0 %3316
        %3318 = vrot.lane.b32.xlu0 %v2643, 120
        %v3319 = vpop.permute.xlu0 %3318
        %3320 = vrot.lane.b32.xlu0 %v2644, 120
        %v3321 = vpop.permute.xlu0 %3320
        %3322 = vrot.lane.b32.xlu0 %v2645, 120
        %v3323 = vpop.permute.xlu0 %3322
        %3324 = vrot.lane.b32.xlu0 %v2646, 120
        %v3325 = vpop.permute.xlu0 %3324
        %3326 = vrot.lane.b32.xlu0 %v2647, 120
        %v3327 = vpop.permute.xlu0 %3326
        %3328 = vrot.lane.b32.xlu0 %v2648, 120
        %v3329 = vpop.permute.xlu0 %3328
        %3330 = vrot.lane.b32.xlu0 %v2649, 120
        %v3331 = vpop.permute.xlu0 %3330
        %3332 = vrot.lane.b32.xlu0 %v2650, 120
        %v3333 = vpop.permute.xlu0 %3332
        %3334 = vrot.lane.b32.xlu0 %v2651, 120
        %v3335 = vpop.permute.xlu0 %3334
        %3336 = vrot.lane.b32.xlu0 %v2652, 120
        %v3337 = vpop.permute.xlu0 %3336
        %3338 = vrot.lane.b32.xlu0 %v2653, 120
        %v3339 = vpop.permute.xlu0 %3338
        %3340 = vrot.lane.b32.xlu0 %v2654, 120
        %v3341 = vpop.permute.xlu0 %3340
        %3342 = vrot.lane.b32.xlu0 %v2655, 120
        %v3343 = vpop.permute.xlu0 %3342
        %3344 = vrot.lane.b32.xlu0 %v2656, 120
        %v3345 = vpop.permute.xlu0 %3344
        %3346 = vrot.lane.b32.xlu0 %v2657, 120
        %v3347 = vpop.permute.xlu0 %3346
        %3348 = vrot.lane.b32.xlu0 %v2658, 120
        %v3349 = vpop.permute.xlu0 %3348
        %3350 = vrot.lane.b32.xlu0 %v2659, 120
        %v3351 = vpop.permute.xlu0 %3350
        %3352 = vrot.lane.b32.xlu0 %v2660, 120
        %v3353 = vpop.permute.xlu0 %3352
        %3354 = vrot.lane.b32.xlu0 %v2661, 120
        %v3355 = vpop.permute.xlu0 %3354
        %3356 = vrot.lane.b32.xlu0 %v2662, 120
        %v3357 = vpop.permute.xlu0 %3356
        %3358 = vrot.lane.b32.xlu0 %v2663, 120
        %v3359 = vpop.permute.xlu0 %3358
        %3360 = vrot.lane.b32.xlu0 %v2664, 120
        %v3361 = vpop.permute.xlu0 %3360
        %3362 = vrot.lane.b32.xlu0 %v2665, 120
        %v3363 = vpop.permute.xlu0 %3362
        %3364 = vrot.lane.b32.xlu0 %v2666, 120
        %v3365 = vpop.permute.xlu0 %3364
        %3366 = vrot.lane.b32.xlu0 %v2667, 120
        %v3367 = vpop.permute.xlu0 %3366
        %3368 = vrot.lane.b32.xlu0 %v2668, 120
        %v3369 = vpop.permute.xlu0 %3368
        %3370 = vrot.lane.b32.xlu0 %v2669, 120
        %v3371 = vpop.permute.xlu0 %3370
        %3372 = vrot.lane.b32.xlu0 %v2670, 120
        %v3373 = vpop.permute.xlu0 %3372
        %3374 = vrot.lane.b32.xlu0 %v2671, 120
        %v3375 = vpop.permute.xlu0 %3374
        %3440 = vrot.lane.b32.xlu0 %v2672, 16
        %v3441 = vpop.permute.xlu0 %3440
        %3442 = vrot.lane.b32.xlu0 %v2673, 16
        %v3443 = vpop.permute.xlu0 %3442
        %3444 = vrot.lane.b32.xlu0 %v2674, 16
        %v3445 = vpop.permute.xlu0 %3444
        %3446 = vrot.lane.b32.xlu0 %v2675, 16
        %v3447 = vpop.permute.xlu0 %3446
        %3448 = vrot.lane.b32.xlu0 %v2676, 16
        %v3449 = vpop.permute.xlu0 %3448
        %3450 = vrot.lane.b32.xlu0 %v2677, 16
        %v3451 = vpop.permute.xlu0 %3450
        %3452 = vrot.lane.b32.xlu0 %v2678, 16
        %v3453 = vpop.permute.xlu0 %3452
        %3454 = vrot.lane.b32.xlu0 %v2679, 16
        %v3455 = vpop.permute.xlu0 %3454
        %3456 = vrot.lane.b32.xlu0 %v2680, 16
        %v3457 = vpop.permute.xlu0 %3456
        %3458 = vrot.lane.b32.xlu0 %v2681, 16
        %v3459 = vpop.permute.xlu0 %3458
        %3460 = vrot.lane.b32.xlu0 %v2682, 16
        %v3461 = vpop.permute.xlu0 %3460
        %3462 = vrot.lane.b32.xlu0 %v2683, 16
        %v3463 = vpop.permute.xlu0 %3462
        %3464 = vrot.lane.b32.xlu0 %v2684, 16
        %v3465 = vpop.permute.xlu0 %3464
        %3466 = vrot.lane.b32.xlu0 %v2685, 16
        %v3467 = vpop.permute.xlu0 %3466
        %3468 = vrot.lane.b32.xlu0 %v2686, 16
        %v3469 = vpop.permute.xlu0 %3468
        %3470 = vrot.lane.b32.xlu0 %v2687, 16
        %v3471 = vpop.permute.xlu0 %3470
        %3472 = vrot.lane.b32.xlu0 %v2688, 16
        %v3473 = vpop.permute.xlu0 %3472
        %3474 = vrot.lane.b32.xlu0 %v2689, 16
        %v3475 = vpop.permute.xlu0 %3474
        %3476 = vrot.lane.b32.xlu0 %v2690, 16
        %v3477 = vpop.permute.xlu0 %3476
        %3478 = vrot.lane.b32.xlu0 %v2691, 16
        %v3479 = vpop.permute.xlu0 %3478
        %3480 = vrot.lane.b32.xlu0 %v2692, 16
        %v3481 = vpop.permute.xlu0 %3480
        %3482 = vrot.lane.b32.xlu0 %v2693, 16
        %v3483 = vpop.permute.xlu0 %3482
        %3484 = vrot.lane.b32.xlu0 %v2694, 16
        %v3485 = vpop.permute.xlu0 %3484
        %3486 = vrot.lane.b32.xlu0 %v2695, 16
        %v3487 = vpop.permute.xlu0 %3486
        %3488 = vrot.lane.b32.xlu0 %v2696, 16
        %v3489 = vpop.permute.xlu0 %3488
        %3490 = vrot.lane.b32.xlu0 %v2697, 16
        %v3491 = vpop.permute.xlu0 %3490
        %3492 = vrot.lane.b32.xlu0 %v2698, 16
        %v3493 = vpop.permute.xlu0 %3492
        %3494 = vrot.lane.b32.xlu0 %v2699, 16
        %v3495 = vpop.permute.xlu0 %3494
        %3496 = vrot.lane.b32.xlu0 %v2700, 16
        %v3497 = vpop.permute.xlu0 %3496
        %3498 = vrot.lane.b32.xlu0 %v2701, 16
        %v3499 = vpop.permute.xlu0 %3498
        %3500 = vrot.lane.b32.xlu0 %v2702, 16
        %v3501 = vpop.permute.xlu0 %3500
        %3502 = vrot.lane.b32.xlu0 %v2703, 16
        %v3503 = vpop.permute.xlu0 %3502
        %3568 = vrot.lane.b32.xlu0 %v2704, 40
        %v3569 = vpop.permute.xlu0 %3568
        %3570 = vrot.lane.b32.xlu0 %v2705, 40
        %v3571 = vpop.permute.xlu0 %3570
        %3572 = vrot.lane.b32.xlu0 %v2706, 40
        %v3573 = vpop.permute.xlu0 %3572
        %3574 = vrot.lane.b32.xlu0 %v2707, 40
        %v3575 = vpop.permute.xlu0 %3574
        %3576 = vrot.lane.b32.xlu0 %v2708, 40
        %v3577 = vpop.permute.xlu0 %3576
        %3578 = vrot.lane.b32.xlu0 %v2709, 40
        %v3579 = vpop.permute.xlu0 %3578
        %3580 = vrot.lane.b32.xlu0 %v2710, 40
        %v3581 = vpop.permute.xlu0 %3580
        %3582 = vrot.lane.b32.xlu0 %v2711, 40
        %v3583 = vpop.permute.xlu0 %3582
        %3584 = vrot.lane.b32.xlu0 %v2712, 40
        %v3585 = vpop.permute.xlu0 %3584
        %3586 = vrot.lane.b32.xlu0 %v2713, 40
        %v3587 = vpop.permute.xlu0 %3586
        %3588 = vrot.lane.b32.xlu0 %v2714, 40
        %v3589 = vpop.permute.xlu0 %3588
        %3590 = vrot.lane.b32.xlu0 %v2715, 40
        %v3591 = vpop.permute.xlu0 %3590
        %3592 = vrot.lane.b32.xlu0 %v2716, 40
        %v3593 = vpop.permute.xlu0 %3592
        %3594 = vrot.lane.b32.xlu0 %v2717, 40
        %v3595 = vpop.permute.xlu0 %3594
        %3596 = vrot.lane.b32.xlu0 %v2718, 40
        %v3597 = vpop.permute.xlu0 %3596
        %3598 = vrot.lane.b32.xlu0 %v2719, 40
        %v3599 = vpop.permute.xlu0 %3598
        %3600 = vrot.lane.b32.xlu0 %v2720, 40
        %v3601 = vpop.permute.xlu0 %3600
        %3602 = vrot.lane.b32.xlu0 %v2721, 40
        %v3603 = vpop.permute.xlu0 %3602
        %3604 = vrot.lane.b32.xlu0 %v2722, 40
        %v3605 = vpop.permute.xlu0 %3604
        %3606 = vrot.lane.b32.xlu0 %v2723, 40
        %v3607 = vpop.permute.xlu0 %3606
        %3608 = vrot.lane.b32.xlu0 %v2724, 40
        %v3609 = vpop.permute.xlu0 %3608
        %3610 = vrot.lane.b32.xlu0 %v2725, 40
        %v3611 = vpop.permute.xlu0 %3610
        %3612 = vrot.lane.b32.xlu0 %v2726, 40
        %v3613 = vpop.permute.xlu0 %3612
        %3614 = vrot.lane.b32.xlu0 %v2727, 40
        %v3615 = vpop.permute.xlu0 %3614
        %3616 = vrot.lane.b32.xlu0 %v2728, 40
        %v3617 = vpop.permute.xlu0 %3616
        %3618 = vrot.lane.b32.xlu0 %v2729, 40
        %v3619 = vpop.permute.xlu0 %3618
        %3620 = vrot.lane.b32.xlu0 %v2730, 40
        %v3621 = vpop.permute.xlu0 %3620
        %3622 = vrot.lane.b32.xlu0 %v2731, 40
        %v3623 = vpop.permute.xlu0 %3622
        %3624 = vrot.lane.b32.xlu0 %v2732, 40
        %v3625 = vpop.permute.xlu0 %3624
        %3626 = vrot.lane.b32.xlu0 %v2733, 40
        %v3627 = vpop.permute.xlu0 %3626
        %3628 = vrot.lane.b32.xlu0 %v2734, 40
        %v3629 = vpop.permute.xlu0 %3628
        %3630 = vrot.lane.b32.xlu0 %v2735, 40
        %v3631 = vpop.permute.xlu0 %3630
        %3696 = vrot.lane.b32.xlu0 %v2736, 64
        %v3697 = vpop.permute.xlu0 %3696
        %3698 = vrot.lane.b32.xlu0 %v2737, 64
        %v3699 = vpop.permute.xlu0 %3698
        %3700 = vrot.lane.b32.xlu0 %v2738, 64
        %v3701 = vpop.permute.xlu0 %3700
        %3702 = vrot.lane.b32.xlu0 %v2739, 64
        %v3703 = vpop.permute.xlu0 %3702
        %3704 = vrot.lane.b32.xlu0 %v2740, 64
        %v3705 = vpop.permute.xlu0 %3704
        %3706 = vrot.lane.b32.xlu0 %v2741, 64
        %v3707 = vpop.permute.xlu0 %3706
        %3708 = vrot.lane.b32.xlu0 %v2742, 64
        %v3709 = vpop.permute.xlu0 %3708
        %3710 = vrot.lane.b32.xlu0 %v2743, 64
        %v3711 = vpop.permute.xlu0 %3710
        %3712 = vrot.lane.b32.xlu0 %v2744, 64
        %v3713 = vpop.permute.xlu0 %3712
        %3714 = vrot.lane.b32.xlu0 %v2745, 64
        %v3715 = vpop.permute.xlu0 %3714
        %3716 = vrot.lane.b32.xlu0 %v2746, 64
        %v3717 = vpop.permute.xlu0 %3716
        %3718 = vrot.lane.b32.xlu0 %v2747, 64
        %v3719 = vpop.permute.xlu0 %3718
        %3720 = vrot.lane.b32.xlu0 %v2748, 64
        %v3721 = vpop.permute.xlu0 %3720
        %3722 = vrot.lane.b32.xlu0 %v2749, 64
        %v3723 = vpop.permute.xlu0 %3722
        %3724 = vrot.lane.b32.xlu0 %v2750, 64
        %v3725 = vpop.permute.xlu0 %3724
        %3726 = vrot.lane.b32.xlu0 %v2751, 64
        %v3727 = vpop.permute.xlu0 %3726
        %3728 = vrot.lane.b32.xlu0 %v2752, 64
        %v3729 = vpop.permute.xlu0 %3728
        %3730 = vrot.lane.b32.xlu0 %v2753, 64
        %v3731 = vpop.permute.xlu0 %3730
        %3732 = vrot.lane.b32.xlu0 %v2754, 64
        %v3733 = vpop.permute.xlu0 %3732
        %3734 = vrot.lane.b32.xlu0 %v2755, 64
        %v3735 = vpop.permute.xlu0 %3734
        %3736 = vrot.lane.b32.xlu0 %v2756, 64
        %v3737 = vpop.permute.xlu0 %3736
        %3738 = vrot.lane.b32.xlu0 %v2757, 64
        %v3739 = vpop.permute.xlu0 %3738
        %3740 = vrot.lane.b32.xlu0 %v2758, 64
        %v3741 = vpop.permute.xlu0 %3740
        %3742 = vrot.lane.b32.xlu0 %v2759, 64
        %v3743 = vpop.permute.xlu0 %3742
        %3744 = vrot.lane.b32.xlu0 %v2760, 64
        %v3745 = vpop.permute.xlu0 %3744
        %3746 = vrot.lane.b32.xlu0 %v2761, 64
        %v3747 = vpop.permute.xlu0 %3746
        %3748 = vrot.lane.b32.xlu0 %v2762, 64
        %v3749 = vpop.permute.xlu0 %3748
        %3750 = vrot.lane.b32.xlu0 %v2763, 64
        %v3751 = vpop.permute.xlu0 %3750
        %3752 = vrot.lane.b32.xlu0 %v2764, 64
        %v3753 = vpop.permute.xlu0 %3752
        %3754 = vrot.lane.b32.xlu0 %v2765, 64
        %v3755 = vpop.permute.xlu0 %3754
        %3756 = vrot.lane.b32.xlu0 %v2766, 64
        %v3757 = vpop.permute.xlu0 %3756
        %3758 = vrot.lane.b32.xlu0 %v2767, 64
        %v3759 = vpop.permute.xlu0 %3758
        %vm3792 = vcmask 195584
        %v3793 = vsel %vm3792, %v2480, %v2801
        %v3794 = vsel %vm3792, %v2481, %v2803
        %v3795 = vsel %vm3792, %v2482, %v2805
        %v3796 = vsel %vm3792, %v2483, %v2807
        %v3797 = vsel %vm3792, %v2484, %v2809
        %v3798 = vsel %vm3792, %v2485, %v2811
        %v3799 = vsel %vm3792, %v2486, %v2813
        %v3800 = vsel %vm3792, %v2487, %v2815
        %v3801 = vsel %vm3792, %v2488, %v2817
        %v3802 = vsel %vm3792, %v2489, %v2819
        %v3803 = vsel %vm3792, %v2490, %v2821
        %v3804 = vsel %vm3792, %v2491, %v2823
        %v3805 = vsel %vm3792, %v2492, %v2825
        %v3806 = vsel %vm3792, %v2493, %v2827
        %v3807 = vsel %vm3792, %v2494, %v2829
        %v3808 = vsel %vm3792, %v2495, %v2831
        %v3809 = vsel %vm3792, %v2496, %v2833
        %v3810 = vsel %vm3792, %v2497, %v2835
        %v3811 = vsel %vm3792, %v2498, %v2837
        %v3812 = vsel %vm3792, %v2499, %v2839
        %v3813 = vsel %vm3792, %v2500, %v2841
        %v3814 = vsel %vm3792, %v2501, %v2843
        %v3815 = vsel %vm3792, %v2502, %v2845
        %v3816 = vsel %vm3792, %v2503, %v2847
        %v3817 = vsel %vm3792, %v2504, %v2849
        %v3818 = vsel %vm3792, %v2505, %v2851
        %v3819 = vsel %vm3792, %v2506, %v2853
        %v3820 = vsel %vm3792, %v2507, %v2855
        %v3821 = vsel %vm3792, %v2508, %v2857
        %v3822 = vsel %vm3792, %v2509, %v2859
        %v3823 = vsel %vm3792, %v2510, %v2861
        %v3824 = vsel %vm3792, %v2511, %v2863
        %v3825 = vsel %vm385, %v3793, %v2929
        %v3826 = vsel %vm385, %v3794, %v2931
        %v3827 = vsel %vm385, %v3795, %v2933
        %v3828 = vsel %vm385, %v3796, %v2935
        %v3829 = vsel %vm385, %v3797, %v2937
        %v3830 = vsel %vm385, %v3798, %v2939
        %v3831 = vsel %vm385, %v3799, %v2941
        %v3832 = vsel %vm385, %v3800, %v2943
        %v3833 = vsel %vm385, %v3801, %v2945
        %v3834 = vsel %vm385, %v3802, %v2947
        %v3835 = vsel %vm385, %v3803, %v2949
        %v3836 = vsel %vm385, %v3804, %v2951
        %v3837 = vsel %vm385, %v3805, %v2953
        %v3838 = vsel %vm385, %v3806, %v2955
        %v3839 = vsel %vm385, %v3807, %v2957
        %v3840 = vsel %vm385, %v3808, %v2959
        %v3841 = vsel %vm385, %v3809, %v2961
        %v3842 = vsel %vm385, %v3810, %v2963
        %v3843 = vsel %vm385, %v3811, %v2965
        %v3844 = vsel %vm385, %v3812, %v2967
        %v3845 = vsel %vm385, %v3813, %v2969
        %v3846 = vsel %vm385, %v3814, %v2971
        %v3847 = vsel %vm385, %v3815, %v2973
        %v3848 = vsel %vm385, %v3816, %v2975
        %v3849 = vsel %vm385, %v3817, %v2977
        %v3850 = vsel %vm385, %v3818, %v2979
        %v3851 = vsel %vm385, %v3819, %v2981
        %v3852 = vsel %vm385, %v3820, %v2983
        %v3853 = vsel %vm385, %v3821, %v2985
        %v3854 = vsel %vm385, %v3822, %v2987
        %v3855 = vsel %vm385, %v3823, %v2989
        %v3856 = vsel %vm385, %v3824, %v2991
        %vm3857 = vcmask 588800
        %v3858 = vsel %vm3857, %v3825, %v3057
        %v3859 = vsel %vm3857, %v3826, %v3059
        %v3860 = vsel %vm3857, %v3827, %v3061
        %v3861 = vsel %vm3857, %v3828, %v3063
        %v3862 = vsel %vm3857, %v3829, %v3065
        %v3863 = vsel %vm3857, %v3830, %v3067
        %v3864 = vsel %vm3857, %v3831, %v3069
        %v3865 = vsel %vm3857, %v3832, %v3071
        %v3866 = vsel %vm3857, %v3833, %v3073
        %v3867 = vsel %vm3857, %v3834, %v3075
        %v3868 = vsel %vm3857, %v3835, %v3077
        %v3869 = vsel %vm3857, %v3836, %v3079
        %v3870 = vsel %vm3857, %v3837, %v3081
        %v3871 = vsel %vm3857, %v3838, %v3083
        %v3872 = vsel %vm3857, %v3839, %v3085
        %v3873 = vsel %vm3857, %v3840, %v3087
        %v3874 = vsel %vm3857, %v3841, %v3089
        %v3875 = vsel %vm3857, %v3842, %v3091
        %v3876 = vsel %vm3857, %v3843, %v3093
        %v3877 = vsel %vm3857, %v3844, %v3095
        %v3878 = vsel %vm3857, %v3845, %v3097
        %v3879 = vsel %vm3857, %v3846, %v3099
        %v3880 = vsel %vm3857, %v3847, %v3101
        %v3881 = vsel %vm3857, %v3848, %v3103
        %v3882 = vsel %vm3857, %v3849, %v3105
        %v3883 = vsel %vm3857, %v3850, %v3107
        %v3884 = vsel %vm3857, %v3851, %v3109
        %v3885 = vsel %vm3857, %v3852, %v3111
        %v3886 = vsel %vm3857, %v3853, %v3113
        %v3887 = vsel %vm3857, %v3854, %v3115
        %v3888 = vsel %vm3857, %v3855, %v3117
        %v3889 = vsel %vm3857, %v3856, %v3119
        %v3890 = vsel %vm1845, %v3858, %v3185
        %v3891 = vsel %vm1845, %v3859, %v3187
        %v3892 = vsel %vm1845, %v3860, %v3189
        %v3893 = vsel %vm1845, %v3861, %v3191
        %v3894 = vsel %vm1845, %v3862, %v3193
        %v3895 = vsel %vm1845, %v3863, %v3195
        %v3896 = vsel %vm1845, %v3864, %v3197
        %v3897 = vsel %vm1845, %v3865, %v3199
        %v3898 = vsel %vm1845, %v3866, %v3201
        %v3899 = vsel %vm1845, %v3867, %v3203
        %v3900 = vsel %vm1845, %v3868, %v3205
        %v3901 = vsel %vm1845, %v3869, %v3207
        %v3902 = vsel %vm1845, %v3870, %v3209
        %v3903 = vsel %vm1845, %v3871, %v3211
        %v3904 = vsel %vm1845, %v3872, %v3213
        %v3905 = vsel %vm1845, %v3873, %v3215
        %v3906 = vsel %vm1845, %v3874, %v3217
        %v3907 = vsel %vm1845, %v3875, %v3219
        %v3908 = vsel %vm1845, %v3876, %v3221
        %v3909 = vsel %vm1845, %v3877, %v3223
        %v3910 = vsel %vm1845, %v3878, %v3225
        %v3911 = vsel %vm1845, %v3879, %v3227
        %v3912 = vsel %vm1845, %v3880, %v3229
        %v3913 = vsel %vm1845, %v3881, %v3231
        %v3914 = vsel %vm1845, %v3882, %v3233
        %v3915 = vsel %vm1845, %v3883, %v3235
        %v3916 = vsel %vm1845, %v3884, %v3237
        %v3917 = vsel %vm1845, %v3885, %v3239
        %v3918 = vsel %vm1845, %v3886, %v3241
        %v3919 = vsel %vm1845, %v3887, %v3243
        %v3920 = vsel %vm1845, %v3888, %v3245
        %v3921 = vsel %vm1845, %v3889, %v3247
        %vm3922 = vcmask 982016
        %v3923 = vsel %vm3922, %v3890, %v3313
        %v3924 = vsel %vm3922, %v3891, %v3315
        %v3925 = vsel %vm3922, %v3892, %v3317
        %v3926 = vsel %vm3922, %v3893, %v3319
        %v3927 = vsel %vm3922, %v3894, %v3321
        %v3928 = vsel %vm3922, %v3895, %v3323
        %v3929 = vsel %vm3922, %v3896, %v3325
        %v3930 = vsel %vm3922, %v3897, %v3327
        %v3931 = vsel %vm3922, %v3898, %v3329
        %v3932 = vsel %vm3922, %v3899, %v3331
        %v3933 = vsel %vm3922, %v3900, %v3333
        %v3934 = vsel %vm3922, %v3901, %v3335
        %v3935 = vsel %vm3922, %v3902, %v3337
        %v3936 = vsel %vm3922, %v3903, %v3339
        %v3937 = vsel %vm3922, %v3904, %v3341
        %v3938 = vsel %vm3922, %v3905, %v3343
        %v3939 = vsel %vm3922, %v3906, %v3345
        %v3940 = vsel %vm3922, %v3907, %v3347
        %v3941 = vsel %vm3922, %v3908, %v3349
        %v3942 = vsel %vm3922, %v3909, %v3351
        %v3943 = vsel %vm3922, %v3910, %v3353
        %v3944 = vsel %vm3922, %v3911, %v3355
        %v3945 = vsel %vm3922, %v3912, %v3357
        %v3946 = vsel %vm3922, %v3913, %v3359
        %v3947 = vsel %vm3922, %v3914, %v3361
        %v3948 = vsel %vm3922, %v3915, %v3363
        %v3949 = vsel %vm3922, %v3916, %v3365
        %v3950 = vsel %vm3922, %v3917, %v3367
        %v3951 = vsel %vm3922, %v3918, %v3369
        %v3952 = vsel %vm3922, %v3919, %v3371
        %v3953 = vsel %vm3922, %v3920, %v3373
        %v3954 = vsel %vm3922, %v3921, %v3375
        %v3955 = vsel %vm464, %v3313, %v3441
        %v3956 = vsel %vm464, %v3315, %v3443
        %v3957 = vsel %vm464, %v3317, %v3445
        %v3958 = vsel %vm464, %v3319, %v3447
        %v3959 = vsel %vm464, %v3321, %v3449
        %v3960 = vsel %vm464, %v3323, %v3451
        %v3961 = vsel %vm464, %v3325, %v3453
        %v3962 = vsel %vm464, %v3327, %v3455
        %v3963 = vsel %vm464, %v3329, %v3457
        %v3964 = vsel %vm464, %v3331, %v3459
        %v3965 = vsel %vm464, %v3333, %v3461
        %v3966 = vsel %vm464, %v3335, %v3463
        %v3967 = vsel %vm464, %v3337, %v3465
        %v3968 = vsel %vm464, %v3339, %v3467
        %v3969 = vsel %vm464, %v3341, %v3469
        %v3970 = vsel %vm464, %v3343, %v3471
        %v3971 = vsel %vm464, %v3345, %v3473
        %v3972 = vsel %vm464, %v3347, %v3475
        %v3973 = vsel %vm464, %v3349, %v3477
        %v3974 = vsel %vm464, %v3351, %v3479
        %v3975 = vsel %vm464, %v3353, %v3481
        %v3976 = vsel %vm464, %v3355, %v3483
        %v3977 = vsel %vm464, %v3357, %v3485
        %v3978 = vsel %vm464, %v3359, %v3487
        %v3979 = vsel %vm464, %v3361, %v3489
        %v3980 = vsel %vm464, %v3363, %v3491
        %v3981 = vsel %vm464, %v3365, %v3493
        %v3982 = vsel %vm464, %v3367, %v3495
        %v3983 = vsel %vm464, %v3369, %v3497
        %v3984 = vsel %vm464, %v3371, %v3499
        %v3985 = vsel %vm464, %v3373, %v3501
        %v3986 = vsel %vm464, %v3375, %v3503
        %vm3987 = vcmask 326656
        %v3988 = vsel %vm3987, %v3955, %v3569
        %v3989 = vsel %vm3987, %v3956, %v3571
        %v3990 = vsel %vm3987, %v3957, %v3573
        %v3991 = vsel %vm3987, %v3958, %v3575
        %v3992 = vsel %vm3987, %v3959, %v3577
        %v3993 = vsel %vm3987, %v3960, %v3579
        %v3994 = vsel %vm3987, %v3961, %v3581
        %v3995 = vsel %vm3987, %v3962, %v3583
        %v3996 = vsel %vm3987, %v3963, %v3585
        %v3997 = vsel %vm3987, %v3964, %v3587
        %v3998 = vsel %vm3987, %v3965, %v3589
        %v3999 = vsel %vm3987, %v3966, %v3591
        %v4000 = vsel %vm3987, %v3967, %v3593
        %v4001 = vsel %vm3987, %v3968, %v3595
        %v4002 = vsel %vm3987, %v3969, %v3597
        %v4003 = vsel %vm3987, %v3970, %v3599
        %v4004 = vsel %vm3987, %v3971, %v3601
        %v4005 = vsel %vm3987, %v3972, %v3603
        %v4006 = vsel %vm3987, %v3973, %v3605
        %v4007 = vsel %vm3987, %v3974, %v3607
        %v4008 = vsel %vm3987, %v3975, %v3609
        %v4009 = vsel %vm3987, %v3976, %v3611
        %v4010 = vsel %vm3987, %v3977, %v3613
        %v4011 = vsel %vm3987, %v3978, %v3615
        %v4012 = vsel %vm3987, %v3979, %v3617
        %v4013 = vsel %vm3987, %v3980, %v3619
        %v4014 = vsel %vm3987, %v3981, %v3621
        %v4015 = vsel %vm3987, %v3982, %v3623
        %v4016 = vsel %vm3987, %v3983, %v3625
        %v4017 = vsel %vm3987, %v3984, %v3627
        %v4018 = vsel %vm3987, %v3985, %v3629
        %v4019 = vsel %vm3987, %v3986, %v3631
        %v4020 = vsel %vm1779, %v3988, %v3697
        %v4021 = vsel %vm1779, %v3989, %v3699
        %v4022 = vsel %vm1779, %v3990, %v3701
        %v4023 = vsel %vm1779, %v3991, %v3703
        %v4024 = vsel %vm1779, %v3992, %v3705
        %v4025 = vsel %vm1779, %v3993, %v3707
        %v4026 = vsel %vm1779, %v3994, %v3709
        %v4027 = vsel %vm1779, %v3995, %v3711
        %v4028 = vsel %vm1779, %v3996, %v3713
        %v4029 = vsel %vm1779, %v3997, %v3715
        %v4030 = vsel %vm1779, %v3998, %v3717
        %v4031 = vsel %vm1779, %v3999, %v3719
        %v4032 = vsel %vm1779, %v4000, %v3721
        %v4033 = vsel %vm1779, %v4001, %v3723
        %v4034 = vsel %vm1779, %v4002, %v3725
        %v4035 = vsel %vm1779, %v4003, %v3727
        %v4036 = vsel %vm1779, %v4004, %v3729
        %v4037 = vsel %vm1779, %v4005, %v3731
        %v4038 = vsel %vm1779, %v4006, %v3733
        %v4039 = vsel %vm1779, %v4007, %v3735
        %v4040 = vsel %vm1779, %v4008, %v3737
        %v4041 = vsel %vm1779, %v4009, %v3739
        %v4042 = vsel %vm1779, %v4010, %v3741
        %v4043 = vsel %vm1779, %v4011, %v3743
        %v4044 = vsel %vm1779, %v4012, %v3745
        %v4045 = vsel %vm1779, %v4013, %v3747
        %v4046 = vsel %vm1779, %v4014, %v3749
        %v4047 = vsel %vm1779, %v4015, %v3751
        %v4048 = vsel %vm1779, %v4016, %v3753
        %v4049 = vsel %vm1779, %v4017, %v3755
        %v4050 = vsel %vm1779, %v4018, %v3757
        %v4051 = vsel %vm1779, %v4019, %v3759
        %v4052 = vld [vmem:[%s3] sm:$0xff]
        %v4053 = vld [vmem:[%s3 + $0x8] sm:$0xff]
        %v4054 = vld [vmem:[%s3 + $0x10] sm:$0xff]
        %v4055 = vld [vmem:[%s3 + $0x18] sm:$0xff]
        %v4056 = vld [vmem:[%s3 + $0x20] sm:$0xff]
        %v4057 = vld [vmem:[%s3 + $0x28] sm:$0xff]
        %v4058 = vld [vmem:[%s3 + $0x30] sm:$0xff]
        %v4059 = vld [vmem:[%s3 + $0x38] sm:$0xff]
        %v4060 = vld [vmem:[%s3 + $0x40] sm:$0xff]
        %v4061 = vld [vmem:[%s3 + $0x48] sm:$0xff]
        %v4062 = vld [vmem:[%s3 + $0x50] sm:$0xff]
        %v4063 = vld [vmem:[%s3 + $0x58] sm:$0xff]
        %v4064 = vld [vmem:[%s3 + $0x60] sm:$0xff]
        %v4065 = vld [vmem:[%s3 + $0x68] sm:$0xff]
        %v4066 = vld [vmem:[%s3 + $0x70] sm:$0xff]
        %v4067 = vld [vmem:[%s3 + $0x78] sm:$0xff]
        %v4068 = vld [vmem:[%s3 + $0x80] sm:$0xff]
        %v4069 = vld [vmem:[%s3 + $0x88] sm:$0xff]
        %v4070 = vld [vmem:[%s3 + $0x90] sm:$0xff]
        %v4071 = vld [vmem:[%s3 + $0x98] sm:$0xff]
        %v4072 = vld [vmem:[%s3 + $0xa0] sm:$0xff]
        %v4073 = vld [vmem:[%s3 + $0xa8] sm:$0xff]
        %v4074 = vld [vmem:[%s3 + $0xb0] sm:$0xff]
        %v4075 = vld [vmem:[%s3 + $0xb8] sm:$0xff]
        %v4076 = vld [vmem:[%s3 + $0xc0] sm:$0xff]
        %v4077 = vld [vmem:[%s3 + $0xc8] sm:$0xff]
        %v4078 = vld [vmem:[%s3 + $0xd0] sm:$0xff]
        %v4079 = vld [vmem:[%s4] sm:$0x1]
        %v4081 = vperm.slane %v4079, 0
        %vm4083 = vcmask 719872
        %v4085 = vsel %vm4083, %v4020, 0
        %v4088 = vsel %vm4083, %v4021, 0
        %v4091 = vsel %vm4083, %v4022, 0
        %v4094 = vsel %vm4083, %v4023, 0
        %v4097 = vsel %vm4083, %v4024, 0
        %v4100 = vsel %vm4083, %v4025, 0
        %v4103 = vsel %vm4083, %v4026, 0
        %v4106 = vsel %vm4083, %v4027, 0
        %v4109 = vsel %vm4083, %v4028, 0
        %v4112 = vsel %vm4083, %v4029, 0
        %v4115 = vsel %vm4083, %v4030, 0
        %v4118 = vsel %vm4083, %v4031, 0
        %v4121 = vsel %vm4083, %v4032, 0
        %v4124 = vsel %vm4083, %v4033, 0
        %v4127 = vsel %vm4083, %v4034, 0
        %v4130 = vsel %vm4083, %v4035, 0
        %v4133 = vsel %vm4083, %v4036, 0
        %v4136 = vsel %vm4083, %v4037, 0
        %v4139 = vsel %vm4083, %v4038, 0
        %v4142 = vsel %vm4083, %v4039, 0
        %v4145 = vsel %vm4083, %v4040, 0
        %v4148 = vsel %vm4083, %v4041, 0
        %v4151 = vsel %vm4083, %v4042, 0
        %v4154 = vsel %vm4083, %v4043, 0
        %v4157 = vsel %vm4083, %v4044, 0
        %v4160 = vsel %vm4083, %v4045, 0
        %v4163 = vsel %vm4083, %v4046, 0
        %v4166 = vsel %vm4083, %v4047, 0
        %v4169 = vsel %vm4083, %v4048, 0
        %v4172 = vsel %vm4083, %v4049, 0
        %v4175 = vsel %vm4083, %v4050, 0
        %v4178 = vsel %vm4083, %v4051, 0
        %4180 = vmatpush.msra.mxu0 %v4067
        %4181 = vmatpush.msra.mxu0 %v4066
        %4182 = vmatpush.msra.mxu0 %v4065
        %4183 = vmatpush.msra.mxu0 %v4064
        %4184 = vmatpush.msra.mxu0 %v4063
        %4185 = vmatpush.msra.mxu0 %v4062
        %4186 = vmatpush.msra.mxu0 %v4061
        %4187 = vmatpush.msra.mxu0 %v4060
        %4188 = vmatpush.msra.mxu0 %v4059
        %4189 = vmatpush.msra.mxu0 %v4058
        %4190 = vmatpush.msra.mxu0 %v4057
        %4191 = vmatpush.msra.mxu0 %v4056
        %4192 = vmatpush.msra.mxu0 %v4055
        %4193 = vmatpush.msra.mxu0 %v4054
        %4194 = vmatpush.msra.mxu0 %v4053
        %4195 = vmatpush.msra.mxu0 %v4052
        %4196 = vmatmul.f32.gmra.mxu0 %v3923
        %v4197 = vpop.f32.mrf.mxu0
        %v4198 = vadd.f32 %v4081, %v4197
        %4199 = vmatmul.f32.gmra.mxu0 %v3924
        %v4200 = vpop.f32.mrf.mxu0
        %v4201 = vadd.f32 %v4081, %v4200
        %4202 = vmatmul.f32.gmra.mxu0 %v3925
        %v4203 = vpop.f32.mrf.mxu0
        %v4204 = vadd.f32 %v4081, %v4203
        %4205 = vmatmul.f32.gmra.mxu0 %v3926
        %v4206 = vpop.f32.mrf.mxu0
        %v4207 = vadd.f32 %v4081, %v4206
        %4208 = vmatmul.f32.gmra.mxu0 %v3927
        %v4209 = vpop.f32.mrf.mxu0
        %v4210 = vadd.f32 %v4081, %v4209
        %4211 = vmatmul.f32.gmra.mxu0 %v3928
        %v4212 = vpop.f32.mrf.mxu0
        %v4213 = vadd.f32 %v4081, %v4212
        %4214 = vmatmul.f32.gmra.mxu0 %v3929
        %v4215 = vpop.f32.mrf.mxu0
        %v4216 = vadd.f32 %v4081, %v4215
        %4217 = vmatmul.f32.gmra.mxu0 %v3930
        %v4218 = vpop.f32.mrf.mxu0
        %v4219 = vadd.f32 %v4081, %v4218
        %4220 = vmatmul.f32.gmra.mxu0 %v3931
        %v4221 = vpop.f32.mrf.mxu0
        %v4222 = vadd.f32 %v4081, %v4221
        %4223 = vmatmul.f32.gmra.mxu0 %v3932
        %v4224 = vpop.f32.mrf.mxu0
        %v4225 = vadd.f32 %v4081, %v4224
        %4226 = vmatmul.f32.gmra.mxu0 %v3933
        %v4227 = vpop.f32.mrf.mxu0
        %v4228 = vadd.f32 %v4081, %v4227
        %4229 = vmatmul.f32.gmra.mxu0 %v3934
        %v4230 = vpop.f32.mrf.mxu0
        %v4231 = vadd.f32 %v4081, %v4230
        %4232 = vmatmul.f32.gmra.mxu0 %v3935
        %v4233 = vpop.f32.mrf.mxu0
        %v4234 = vadd.f32 %v4081, %v4233
        %4235 = vmatmul.f32.gmra.mxu0 %v3936
        %v4236 = vpop.f32.mrf.mxu0
        %v4237 = vadd.f32 %v4081, %v4236
        %4238 = vmatmul.f32.gmra.mxu0 %v3937
        %v4239 = vpop.f32.mrf.mxu0
        %v4240 = vadd.f32 %v4081, %v4239
        %4241 = vmatmul.f32.gmra.mxu0 %v3938
        %v4242 = vpop.f32.mrf.mxu0
        %v4243 = vadd.f32 %v4081, %v4242
        %4244 = vmatmul.f32.gmra.mxu0 %v3939
        %v4245 = vpop.f32.mrf.mxu0
        %v4246 = vadd.f32 %v4081, %v4245
        %4247 = vmatmul.f32.gmra.mxu0 %v3940
        %v4248 = vpop.f32.mrf.mxu0
        %v4249 = vadd.f32 %v4081, %v4248
        %4250 = vmatmul.f32.gmra.mxu0 %v3941
        %v4251 = vpop.f32.mrf.mxu0
        %v4252 = vadd.f32 %v4081, %v4251
        %4253 = vmatmul.f32.gmra.mxu0 %v3942
        %v4254 = vpop.f32.mrf.mxu0
        %v4255 = vadd.f32 %v4081, %v4254
        %4256 = vmatmul.f32.gmra.mxu0 %v3943
        %v4257 = vpop.f32.mrf.mxu0
        %v4258 = vadd.f32 %v4081, %v4257
        %4259 = vmatmul.f32.gmra.mxu0 %v3944
        %v4260 = vpop.f32.mrf.mxu0
        %v4261 = vadd.f32 %v4081, %v4260
        %4262 = vmatmul.f32.gmra.mxu0 %v3945
        %v4263 = vpop.f32.mrf.mxu0
        %v4264 = vadd.f32 %v4081, %v4263
        %4265 = vmatmul.f32.gmra.mxu0 %v3946
        %v4266 = vpop.f32.mrf.mxu0
        %v4267 = vadd.f32 %v4081, %v4266
        %4268 = vmatmul.f32.gmra.mxu0 %v3947
        %v4269 = vpop.f32.mrf.mxu0
        %v4270 = vadd.f32 %v4081, %v4269
        %4271 = vmatmul.f32.gmra.mxu0 %v3948
        %v4272 = vpop.f32.mrf.mxu0
        %v4273 = vadd.f32 %v4081, %v4272
        %4274 = vmatmul.f32.gmra.mxu0 %v3949
        %v4275 = vpop.f32.mrf.mxu0
        %v4276 = vadd.f32 %v4081, %v4275
        %4277 = vmatmul.f32.gmra.mxu0 %v3950
        %v4278 = vpop.f32.mrf.mxu0
        %v4279 = vadd.f32 %v4081, %v4278
        %4280 = vmatmul.f32.gmra.mxu0 %v3951
        %v4281 = vpop.f32.mrf.mxu0
        %v4282 = vadd.f32 %v4081, %v4281
        %4283 = vmatmul.f32.gmra.mxu0 %v3952
        %v4284 = vpop.f32.mrf.mxu0
        %v4285 = vadd.f32 %v4081, %v4284
        %4286 = vmatmul.f32.gmra.mxu0 %v3953
        %v4287 = vpop.f32.mrf.mxu0
        %v4288 = vadd.f32 %v4081, %v4287
        %4289 = vmatmul.f32.gmra.mxu0 %v3954
        %v4290 = vpop.f32.mrf.mxu0
        %v4291 = vadd.f32 %v4081, %v4290
        %4292 = vdwg.mxu0
        %4293 = vmatpush.msra.mxu0 0.0
        %4294 = vmatpush.msra.mxu0 0.0
        %4295 = vmatpush.msra.mxu0 0.0
        %4296 = vmatpush.msra.mxu0 0.0
        %4297 = vmatpush.msra.mxu0 0.0
        %4298 = vmatpush.msra.mxu0 %v4078
        %4299 = vmatpush.msra.mxu0 %v4077
        %4300 = vmatpush.msra.mxu0 %v4076
        %4301 = vmatpush.msra.mxu0 %v4075
        %4302 = vmatpush.msra.mxu0 %v4074
        %4303 = vmatpush.msra.mxu0 %v4073
        %4304 = vmatpush.msra.mxu0 %v4072
        %4305 = vmatpush.msra.mxu0 %v4071
        %4306 = vmatpush.msra.mxu0 %v4070
        %4307 = vmatpush.msra.mxu0 %v4069
        %4308 = vmatpush.msra.mxu0 %v4068
        %4309 = vmatmul.f32.gmra.mxu0 %v4085
        %v4310 = vpop.f32.mrf.mxu0
        %v4311 = vadd.f32 %v4198, %v4310
        %4312 = vmatmul.f32.gmra.mxu0 %v4088
        %v4313 = vpop.f32.mrf.mxu0
        %v4314 = vadd.f32 %v4201, %v4313
        %4315 = vmatmul.f32.gmra.mxu0 %v4091
        %v4316 = vpop.f32.mrf.mxu0
        %v4317 = vadd.f32 %v4204, %v4316
        %4318 = vmatmul.f32.gmra.mxu0 %v4094
        %v4319 = vpop.f32.mrf.mxu0
        %v4320 = vadd.f32 %v4207, %v4319
        %4321 = vmatmul.f32.gmra.mxu0 %v4097
        %v4322 = vpop.f32.mrf.mxu0
        %v4323 = vadd.f32 %v4210, %v4322
        %4324 = vmatmul.f32.gmra.mxu0 %v4100
        %v4325 = vpop.f32.mrf.mxu0
        %v4326 = vadd.f32 %v4213, %v4325
        %4327 = vmatmul.f32.gmra.mxu0 %v4103
        %v4328 = vpop.f32.mrf.mxu0
        %v4329 = vadd.f32 %v4216, %v4328
        %4330 = vmatmul.f32.gmra.mxu0 %v4106
        %v4331 = vpop.f32.mrf.mxu0
        %v4332 = vadd.f32 %v4219, %v4331
        %4333 = vmatmul.f32.gmra.mxu0 %v4109
        %v4334 = vpop.f32.mrf.mxu0
        %v4335 = vadd.f32 %v4222, %v4334
        %4336 = vmatmul.f32.gmra.mxu0 %v4112
        %v4337 = vpop.f32.mrf.mxu0
        %v4338 = vadd.f32 %v4225, %v4337
        %4339 = vmatmul.f32.gmra.mxu0 %v4115
        %v4340 = vpop.f32.mrf.mxu0
        %v4341 = vadd.f32 %v4228, %v4340
        %4342 = vmatmul.f32.gmra.mxu0 %v4118
        %v4343 = vpop.f32.mrf.mxu0
        %v4344 = vadd.f32 %v4231, %v4343
        %4345 = vmatmul.f32.gmra.mxu0 %v4121
        %v4346 = vpop.f32.mrf.mxu0
        %v4347 = vadd.f32 %v4234, %v4346
        %4348 = vmatmul.f32.gmra.mxu0 %v4124
        %v4349 = vpop.f32.mrf.mxu0
        %v4350 = vadd.f32 %v4237, %v4349
        %4351 = vmatmul.f32.gmra.mxu0 %v4127
        %v4352 = vpop.f32.mrf.mxu0
        %v4353 = vadd.f32 %v4240, %v4352
        %4354 = vmatmul.f32.gmra.mxu0 %v4130
        %v4355 = vpop.f32.mrf.mxu0
        %v4356 = vadd.f32 %v4243, %v4355
        %4357 = vmatmul.f32.gmra.mxu0 %v4133
        %v4358 = vpop.f32.mrf.mxu0
        %v4359 = vadd.f32 %v4246, %v4358
        %4360 = vmatmul.f32.gmra.mxu0 %v4136
        %v4361 = vpop.f32.mrf.mxu0
        %v4362 = vadd.f32 %v4249, %v4361
        %4363 = vmatmul.f32.gmra.mxu0 %v4139
        %v4364 = vpop.f32.mrf.mxu0
        %v4365 = vadd.f32 %v4252, %v4364
        %4366 = vmatmul.f32.gmra.mxu0 %v4142
        %v4367 = vpop.f32.mrf.mxu0
        %v4368 = vadd.f32 %v4255, %v4367
        %4369 = vmatmul.f32.gmra.mxu0 %v4145
        %v4370 = vpop.f32.mrf.mxu0
        %v4371 = vadd.f32 %v4258, %v4370
        %4372 = vmatmul.f32.gmra.mxu0 %v4148
        %v4373 = vpop.f32.mrf.mxu0
        %v4374 = vadd.f32 %v4261, %v4373
        %4375 = vmatmul.f32.gmra.mxu0 %v4151
        %v4376 = vpop.f32.mrf.mxu0
        %v4377 = vadd.f32 %v4264, %v4376
        %4378 = vmatmul.f32.gmra.mxu0 %v4154
        %v4379 = vpop.f32.mrf.mxu0
        %v4380 = vadd.f32 %v4267, %v4379
        %4381 = vmatmul.f32.gmra.mxu0 %v4157
        %v4382 = vpop.f32.mrf.mxu0
        %v4383 = vadd.f32 %v4270, %v4382
        %4384 = vmatmul.f32.gmra.mxu0 %v4160
        %v4385 = vpop.f32.mrf.mxu0
        %v4386 = vadd.f32 %v4273, %v4385
        %4387 = vmatmul.f32.gmra.mxu0 %v4163
        %v4388 = vpop.f32.mrf.mxu0
        %v4389 = vadd.f32 %v4276, %v4388
        %4390 = vmatmul.f32.gmra.mxu0 %v4166
        %v4391 = vpop.f32.mrf.mxu0
        %v4392 = vadd.f32 %v4279, %v4391
        %4393 = vmatmul.f32.gmra.mxu0 %v4169
        %v4394 = vpop.f32.mrf.mxu0
        %v4395 = vadd.f32 %v4282, %v4394
        %4396 = vmatmul.f32.gmra.mxu0 %v4172
        %v4397 = vpop.f32.mrf.mxu0
        %v4398 = vadd.f32 %v4285, %v4397
        %4399 = vmatmul.f32.gmra.mxu0 %v4175
        %v4400 = vpop.f32.mrf.mxu0
        %v4401 = vadd.f32 %v4288, %v4400
        %4402 = vmatmul.f32.gmra.mxu0 %v4178
        %v4403 = vpop.f32.mrf.mxu0
        %v4404 = vadd.f32 %v4291, %v4403
        %4405 = vdwg.mxu0
        %v4406 = vmul.f32 %v4311, 0.2
        %v4407 = vmul.f32 %v4314, 0.2
        %v4408 = vmul.f32 %v4317, 0.2
        %v4409 = vmul.f32 %v4320, 0.2
        %v4410 = vmul.f32 %v4323, 0.2
        %v4411 = vmul.f32 %v4326, 0.2
        %v4412 = vmul.f32 %v4329, 0.2
        %v4413 = vmul.f32 %v4332, 0.2
        %v4414 = vmul.f32 %v4335, 0.2
        %v4415 = vmul.f32 %v4338, 0.2
        %v4416 = vmul.f32 %v4341, 0.2
        %v4417 = vmul.f32 %v4344, 0.2
        %v4418 = vmul.f32 %v4347, 0.2
        %v4419 = vmul.f32 %v4350, 0.2
        %v4420 = vmul.f32 %v4353, 0.2
        %v4421 = vmul.f32 %v4356, 0.2
        %v4422 = vmul.f32 %v4359, 0.2
        %v4423 = vmul.f32 %v4362, 0.2
        %v4424 = vmul.f32 %v4365, 0.2
        %v4425 = vmul.f32 %v4368, 0.2
        %v4426 = vmul.f32 %v4371, 0.2
        %v4427 = vmul.f32 %v4374, 0.2
        %v4428 = vmul.f32 %v4377, 0.2
        %v4429 = vmul.f32 %v4380, 0.2
        %v4430 = vmul.f32 %v4383, 0.2
        %v4431 = vmul.f32 %v4386, 0.2
        %v4432 = vmul.f32 %v4389, 0.2
        %v4433 = vmul.f32 %v4392, 0.2
        %v4434 = vmul.f32 %v4395, 0.2
        %v4435 = vmul.f32 %v4398, 0.2
        %v4436 = vmul.f32 %v4401, 0.2
        %v4437 = vmul.f32 %v4404, 0.2
        %v4438 = vmax.f32 %v4311, %v4406
        %v4439 = vmax.f32 %v4314, %v4407
        %v4440 = vmax.f32 %v4317, %v4408
        %v4441 = vmax.f32 %v4320, %v4409
        %v4442 = vmax.f32 %v4323, %v4410
        %v4443 = vmax.f32 %v4326, %v4411
        %v4444 = vmax.f32 %v4329, %v4412
        %v4445 = vmax.f32 %v4332, %v4413
        %v4446 = vmax.f32 %v4335, %v4414
        %v4447 = vmax.f32 %v4338, %v4415
        %v4448 = vmax.f32 %v4341, %v4416
        %v4449 = vmax.f32 %v4344, %v4417
        %v4450 = vmax.f32 %v4347, %v4418
        %v4451 = vmax.f32 %v4350, %v4419
        %v4452 = vmax.f32 %v4353, %v4420
        %v4453 = vmax.f32 %v4356, %v4421
        %v4454 = vmax.f32 %v4359, %v4422
        %v4455 = vmax.f32 %v4362, %v4423
        %v4456 = vmax.f32 %v4365, %v4424
        %v4457 = vmax.f32 %v4368, %v4425
        %v4458 = vmax.f32 %v4371, %v4426
        %v4459 = vmax.f32 %v4374, %v4427
        %v4460 = vmax.f32 %v4377, %v4428
        %v4461 = vmax.f32 %v4380, %v4429
        %v4462 = vmax.f32 %v4383, %v4430
        %v4463 = vmax.f32 %v4386, %v4431
        %v4464 = vmax.f32 %v4389, %v4432
        %v4465 = vmax.f32 %v4392, %v4433
        %v4466 = vmax.f32 %v4395, %v4434
        %v4467 = vmax.f32 %v4398, %v4435
        %v4468 = vmax.f32 %v4401, %v4436
        %v4469 = vmax.f32 %v4404, %v4437
        %4502 = vrot.lane.b32.xlu0 %v4438, 24
        %v4503 = vpop.permute.xlu0 %4502
        %4504 = vrot.lane.b32.xlu0 %v4439, 24
        %v4505 = vpop.permute.xlu0 %4504
        %4506 = vrot.lane.b32.xlu0 %v4440, 24
        %v4507 = vpop.permute.xlu0 %4506
        %4508 = vrot.lane.b32.xlu0 %v4441, 24
        %v4509 = vpop.permute.xlu0 %4508
        %4510 = vrot.lane.b32.xlu0 %v4442, 24
        %v4511 = vpop.permute.xlu0 %4510
        %4512 = vrot.lane.b32.xlu0 %v4443, 24
        %v4513 = vpop.permute.xlu0 %4512
        %4514 = vrot.lane.b32.xlu0 %v4444, 24
        %v4515 = vpop.permute.xlu0 %4514
        %4516 = vrot.lane.b32.xlu0 %v4445, 24
        %v4517 = vpop.permute.xlu0 %4516
        %4518 = vrot.lane.b32.xlu0 %v4446, 24
        %v4519 = vpop.permute.xlu0 %4518
        %4520 = vrot.lane.b32.xlu0 %v4447, 24
        %v4521 = vpop.permute.xlu0 %4520
        %4522 = vrot.lane.b32.xlu0 %v4448, 24
        %v4523 = vpop.permute.xlu0 %4522
        %4524 = vrot.lane.b32.xlu0 %v4449, 24
        %v4525 = vpop.permute.xlu0 %4524
        %4526 = vrot.lane.b32.xlu0 %v4450, 24
        %v4527 = vpop.permute.xlu0 %4526
        %4528 = vrot.lane.b32.xlu0 %v4451, 24
        %v4529 = vpop.permute.xlu0 %4528
        %4530 = vrot.lane.b32.xlu0 %v4452, 24
        %v4531 = vpop.permute.xlu0 %4530
        %4532 = vrot.lane.b32.xlu0 %v4453, 24
        %v4533 = vpop.permute.xlu0 %4532
        %4534 = vrot.lane.b32.xlu0 %v4454, 24
        %v4535 = vpop.permute.xlu0 %4534
        %4536 = vrot.lane.b32.xlu0 %v4455, 24
        %v4537 = vpop.permute.xlu0 %4536
        %4538 = vrot.lane.b32.xlu0 %v4456, 24
        %v4539 = vpop.permute.xlu0 %4538
        %4540 = vrot.lane.b32.xlu0 %v4457, 24
        %v4541 = vpop.permute.xlu0 %4540
        %4542 = vrot.lane.b32.xlu0 %v4458, 24
        %v4543 = vpop.permute.xlu0 %4542
        %4544 = vrot.lane.b32.xlu0 %v4459, 24
        %v4545 = vpop.permute.xlu0 %4544
        %4546 = vrot.lane.b32.xlu0 %v4460, 24
        %v4547 = vpop.permute.xlu0 %4546
        %4548 = vrot.lane.b32.xlu0 %v4461, 24
        %v4549 = vpop.permute.xlu0 %4548
        %4550 = vrot.lane.b32.xlu0 %v4462, 24
        %v4551 = vpop.permute.xlu0 %4550
        %4552 = vrot.lane.b32.xlu0 %v4463, 24
        %v4553 = vpop.permute.xlu0 %4552
        %4554 = vrot.lane.b32.xlu0 %v4464, 24
        %v4555 = vpop.permute.xlu0 %4554
        %4556 = vrot.lane.b32.xlu0 %v4465, 24
        %v4557 = vpop.permute.xlu0 %4556
        %4558 = vrot.lane.b32.xlu0 %v4466, 24
        %v4559 = vpop.permute.xlu0 %4558
        %4560 = vrot.lane.b32.xlu0 %v4467, 24
        %v4561 = vpop.permute.xlu0 %4560
        %4562 = vrot.lane.b32.xlu0 %v4468, 24
        %v4563 = vpop.permute.xlu0 %4562
        %4564 = vrot.lane.b32.xlu0 %v4469, 24
        %v4565 = vpop.permute.xlu0 %4564
        %vm4598 = vcmask 261312
        %4599 = vst.msk [vmem:[%s463 + $0x1] sm:$0xff] %vm4598, %v4503
        %4600 = vst.msk [vmem:[%s463 + $0x9] sm:$0xff] %vm4598, %v4505
        %4601 = vst.msk [vmem:[%s463 + $0x19] sm:$0xff] %vm4598, %v4507
        %4602 = vst.msk [vmem:[%s463 + $0x21] sm:$0xff] %vm4598, %v4509
        %4603 = vst.msk [vmem:[%s463 + $0x31] sm:$0xff] %vm4598, %v4511
        %4604 = vst.msk [vmem:[%s463 + $0x39] sm:$0xff] %vm4598, %v4513
        %4605 = vst.msk [vmem:[%s463 + $0x49] sm:$0xff] %vm4598, %v4515
        %4606 = vst.msk [vmem:[%s463 + $0x51] sm:$0xff] %vm4598, %v4517
        %4607 = vst.msk [vmem:[%s463 + $0x61] sm:$0xff] %vm4598, %v4519
        %4608 = vst.msk [vmem:[%s463 + $0x69] sm:$0xff] %vm4598, %v4521
        %4609 = vst.msk [vmem:[%s463 + $0x79] sm:$0xff] %vm4598, %v4523
        %4610 = vst.msk [vmem:[%s463 + $0x81] sm:$0xff] %vm4598, %v4525
        %4611 = vst.msk [vmem:[%s463 + $0x91] sm:$0xff] %vm4598, %v4527
        %4612 = vst.msk [vmem:[%s463 + $0x99] sm:$0xff] %vm4598, %v4529
        %4613 = vst.msk [vmem:[%s463 + $0xa9] sm:$0xff] %vm4598, %v4531
        %4614 = vst.msk [vmem:[%s463 + $0xb1] sm:$0xff] %vm4598, %v4533
        %4615 = vst.msk [vmem:[%s463 + $0xc1] sm:$0xff] %vm4598, %v4535
        %4616 = vst.msk [vmem:[%s463 + $0xc9] sm:$0xff] %vm4598, %v4537
        %4617 = vst.msk [vmem:[%s463 + $0xd9] sm:$0xff] %vm4598, %v4539
        %4618 = vst.msk [vmem:[%s463 + $0xe1] sm:$0xff] %vm4598, %v4541
        %4619 = vst.msk [vmem:[%s463 + $0xf1] sm:$0xff] %vm4598, %v4543
        %4620 = vst.msk [vmem:[%s463 + $0xf9] sm:$0xff] %vm4598, %v4545
        %4621 = vst.msk [vmem:[%s463 + $0x109] sm:$0xff] %vm4598, %v4547
        %4622 = vst.msk [vmem:[%s463 + $0x111] sm:$0xff] %vm4598, %v4549
        %4623 = vst.msk [vmem:[%s463 + $0x121] sm:$0xff] %vm4598, %v4551
        %4624 = vst.msk [vmem:[%s463 + $0x129] sm:$0xff] %vm4598, %v4553
        %4625 = vst.msk [vmem:[%s463 + $0x139] sm:$0xff] %vm4598, %v4555
        %4626 = vst.msk [vmem:[%s463 + $0x141] sm:$0xff] %vm4598, %v4557
        %4627 = vst.msk [vmem:[%s463 + $0x151] sm:$0xff] %vm4598, %v4559
        %4628 = vst.msk [vmem:[%s463 + $0x159] sm:$0xff] %vm4598, %v4561
        %4629 = vst.msk [vmem:[%s463 + $0x169] sm:$0xff] %vm4598, %v4563
        %4630 = vst.msk [vmem:[%s463 + $0x171] sm:$0xff] %vm4598, %v4565
        %v4631 = vld [vmem:[#allocation2] sm:$0xff]
        %v4632 = vld [vmem:[#allocation2 + $0x8] sm:$0xff]
        %v4633 = vld [vmem:[#allocation2 + $0x18] sm:$0xff]
        %v4634 = vld [vmem:[#allocation2 + $0x20] sm:$0xff]
        %v4635 = vld [vmem:[#allocation2 + $0x30] sm:$0xff]
        %v4636 = vld [vmem:[#allocation2 + $0x38] sm:$0xff]
        %v4637 = vld [vmem:[#allocation2 + $0x48] sm:$0xff]
        %v4638 = vld [vmem:[#allocation2 + $0x50] sm:$0xff]
        %v4639 = vld [vmem:[#allocation2 + $0x60] sm:$0xff]
        %v4640 = vld [vmem:[#allocation2 + $0x68] sm:$0xff]
        %v4641 = vld [vmem:[#allocation2 + $0x78] sm:$0xff]
        %v4642 = vld [vmem:[#allocation2 + $0x80] sm:$0xff]
        %v4643 = vld [vmem:[#allocation2 + $0x90] sm:$0xff]
        %v4644 = vld [vmem:[#allocation2 + $0x98] sm:$0xff]
        %v4645 = vld [vmem:[#allocation2 + $0xa8] sm:$0xff]
        %v4646 = vld [vmem:[#allocation2 + $0xb0] sm:$0xff]
        %v4647 = vld [vmem:[#allocation2 + $0xc0] sm:$0xff]
        %v4648 = vld [vmem:[#allocation2 + $0xc8] sm:$0xff]
        %v4649 = vld [vmem:[#allocation2 + $0xd8] sm:$0xff]
        %v4650 = vld [vmem:[#allocation2 + $0xe0] sm:$0xff]
        %v4651 = vld [vmem:[#allocation2 + $0xf0] sm:$0xff]
        %v4652 = vld [vmem:[#allocation2 + $0xf8] sm:$0xff]
        %v4653 = vld [vmem:[#allocation2 + $0x108] sm:$0xff]
        %v4654 = vld [vmem:[#allocation2 + $0x110] sm:$0xff]
        %v4655 = vld [vmem:[#allocation2 + $0x120] sm:$0xff]
        %v4656 = vld [vmem:[#allocation2 + $0x128] sm:$0xff]
        %v4657 = vld [vmem:[#allocation2 + $0x138] sm:$0xff]
        %v4658 = vld [vmem:[#allocation2 + $0x140] sm:$0xff]
        %v4659 = vld [vmem:[#allocation2 + $0x150] sm:$0xff]
        %v4660 = vld [vmem:[#allocation2 + $0x158] sm:$0xff]
        %v4661 = vld [vmem:[#allocation2 + $0x168] sm:$0xff]
        %v4662 = vld [vmem:[#allocation2 + $0x170] sm:$0xff]
        %v4663 = vld [vmem:[#allocation2 + $0x1] sm:$0xff]
        %v4664 = vld [vmem:[#allocation2 + $0x9] sm:$0xff]
        %v4665 = vld [vmem:[#allocation2 + $0x19] sm:$0xff]
        %v4666 = vld [vmem:[#allocation2 + $0x21] sm:$0xff]
        %v4667 = vld [vmem:[#allocation2 + $0x31] sm:$0xff]
        %v4668 = vld [vmem:[#allocation2 + $0x39] sm:$0xff]
        %v4669 = vld [vmem:[#allocation2 + $0x49] sm:$0xff]
        %v4670 = vld [vmem:[#allocation2 + $0x51] sm:$0xff]
        %v4671 = vld [vmem:[#allocation2 + $0x61] sm:$0xff]
        %v4672 = vld [vmem:[#allocation2 + $0x69] sm:$0xff]
        %v4673 = vld [vmem:[#allocation2 + $0x79] sm:$0xff]
        %v4674 = vld [vmem:[#allocation2 + $0x81] sm:$0xff]
        %v4675 = vld [vmem:[#allocation2 + $0x91] sm:$0xff]
        %v4676 = vld [vmem:[#allocation2 + $0x99] sm:$0xff]
        %v4677 = vld [vmem:[#allocation2 + $0xa9] sm:$0xff]
        %v4678 = vld [vmem:[#allocation2 + $0xb1] sm:$0xff]
        %v4679 = vld [vmem:[#allocation2 + $0xc1] sm:$0xff]
        %v4680 = vld [vmem:[#allocation2 + $0xc9] sm:$0xff]
        %v4681 = vld [vmem:[#allocation2 + $0xd9] sm:$0xff]
        %v4682 = vld [vmem:[#allocation2 + $0xe1] sm:$0xff]
        %v4683 = vld [vmem:[#allocation2 + $0xf1] sm:$0xff]
        %v4684 = vld [vmem:[#allocation2 + $0xf9] sm:$0xff]
        %v4685 = vld [vmem:[#allocation2 + $0x109] sm:$0xff]
        %v4686 = vld [vmem:[#allocation2 + $0x111] sm:$0xff]
        %v4687 = vld [vmem:[#allocation2 + $0x121] sm:$0xff]
        %v4688 = vld [vmem:[#allocation2 + $0x129] sm:$0xff]
        %v4689 = vld [vmem:[#allocation2 + $0x139] sm:$0xff]
        %v4690 = vld [vmem:[#allocation2 + $0x141] sm:$0xff]
        %v4691 = vld [vmem:[#allocation2 + $0x151] sm:$0xff]
        %v4692 = vld [vmem:[#allocation2 + $0x159] sm:$0xff]
        %v4693 = vld [vmem:[#allocation2 + $0x169] sm:$0xff]
        %v4694 = vld [vmem:[#allocation2 + $0x171] sm:$0xff]
        %v4695 = vld [vmem:[#allocation2 + $0x2] sm:$0xff]
        %v4696 = vld [vmem:[#allocation2 + $0xa] sm:$0xff]
        %v4697 = vld [vmem:[#allocation2 + $0x1a] sm:$0xff]
        %v4698 = vld [vmem:[#allocation2 + $0x22] sm:$0xff]
        %v4699 = vld [vmem:[#allocation2 + $0x32] sm:$0xff]
        %v4700 = vld [vmem:[#allocation2 + $0x3a] sm:$0xff]
        %v4701 = vld [vmem:[#allocation2 + $0x4a] sm:$0xff]
        %v4702 = vld [vmem:[#allocation2 + $0x52] sm:$0xff]
        %v4703 = vld [vmem:[#allocation2 + $0x62] sm:$0xff]
        %v4704 = vld [vmem:[#allocation2 + $0x6a] sm:$0xff]
        %v4705 = vld [vmem:[#allocation2 + $0x7a] sm:$0xff]
        %v4706 = vld [vmem:[#allocation2 + $0x82] sm:$0xff]
        %v4707 = vld [vmem:[#allocation2 + $0x92] sm:$0xff]
        %v4708 = vld [vmem:[#allocation2 + $0x9a] sm:$0xff]
        %v4709 = vld [vmem:[#allocation2 + $0xaa] sm:$0xff]
        %v4710 = vld [vmem:[#allocation2 + $0xb2] sm:$0xff]
        %v4711 = vld [vmem:[#allocation2 + $0xc2] sm:$0xff]
        %v4712 = vld [vmem:[#allocation2 + $0xca] sm:$0xff]
        %v4713 = vld [vmem:[#allocation2 + $0xda] sm:$0xff]
        %v4714 = vld [vmem:[#allocation2 + $0xe2] sm:$0xff]
        %v4715 = vld [vmem:[#allocation2 + $0xf2] sm:$0xff]
        %v4716 = vld [vmem:[#allocation2 + $0xfa] sm:$0xff]
        %v4717 = vld [vmem:[#allocation2 + $0x10a] sm:$0xff]
        %v4718 = vld [vmem:[#allocation2 + $0x112] sm:$0xff]
        %v4719 = vld [vmem:[#allocation2 + $0x122] sm:$0xff]
        %v4720 = vld [vmem:[#allocation2 + $0x12a] sm:$0xff]
        %v4721 = vld [vmem:[#allocation2 + $0x13a] sm:$0xff]
        %v4722 = vld [vmem:[#allocation2 + $0x142] sm:$0xff]
        %v4723 = vld [vmem:[#allocation2 + $0x152] sm:$0xff]
        %v4724 = vld [vmem:[#allocation2 + $0x15a] sm:$0xff]
        %v4725 = vld [vmem:[#allocation2 + $0x16a] sm:$0xff]
        %v4726 = vld [vmem:[#allocation2 + $0x172] sm:$0xff]
        %v4727 = vld [vmem:[%s463] sm:$0xff]
        %v4728 = vld [vmem:[%s463 + $0x8] sm:$0xff]
        %v4729 = vld [vmem:[%s463 + $0x18] sm:$0xff]
        %v4730 = vld [vmem:[%s463 + $0x20] sm:$0xff]
        %v4731 = vld [vmem:[%s463 + $0x30] sm:$0xff]
        %v4732 = vld [vmem:[%s463 + $0x38] sm:$0xff]
        %v4733 = vld [vmem:[%s463 + $0x48] sm:$0xff]
        %v4734 = vld [vmem:[%s463 + $0x50] sm:$0xff]
        %v4735 = vld [vmem:[%s463 + $0x60] sm:$0xff]
        %v4736 = vld [vmem:[%s463 + $0x68] sm:$0xff]
        %v4737 = vld [vmem:[%s463 + $0x78] sm:$0xff]
        %v4738 = vld [vmem:[%s463 + $0x80] sm:$0xff]
        %v4739 = vld [vmem:[%s463 + $0x90] sm:$0xff]
        %v4740 = vld [vmem:[%s463 + $0x98] sm:$0xff]
        %v4741 = vld [vmem:[%s463 + $0xa8] sm:$0xff]
        %v4742 = vld [vmem:[%s463 + $0xb0] sm:$0xff]
        %v4743 = vld [vmem:[%s463 + $0xc0] sm:$0xff]
        %v4744 = vld [vmem:[%s463 + $0xc8] sm:$0xff]
        %v4745 = vld [vmem:[%s463 + $0xd8] sm:$0xff]
        %v4746 = vld [vmem:[%s463 + $0xe0] sm:$0xff]
        %v4747 = vld [vmem:[%s463 + $0xf0] sm:$0xff]
        %v4748 = vld [vmem:[%s463 + $0xf8] sm:$0xff]
        %v4749 = vld [vmem:[%s463 + $0x108] sm:$0xff]
        %v4750 = vld [vmem:[%s463 + $0x110] sm:$0xff]
        %v4751 = vld [vmem:[%s463 + $0x120] sm:$0xff]
        %v4752 = vld [vmem:[%s463 + $0x128] sm:$0xff]
        %v4753 = vld [vmem:[%s463 + $0x138] sm:$0xff]
        %v4754 = vld [vmem:[%s463 + $0x140] sm:$0xff]
        %v4755 = vld [vmem:[%s463 + $0x150] sm:$0xff]
        %v4756 = vld [vmem:[%s463 + $0x158] sm:$0xff]
        %v4757 = vld [vmem:[%s463 + $0x168] sm:$0xff]
        %v4758 = vld [vmem:[%s463 + $0x170] sm:$0xff]
        %v4759 = vld [vmem:[%s463 + $0x1] sm:$0xff]
        %v4760 = vld [vmem:[%s463 + $0x9] sm:$0xff]
        %v4761 = vld [vmem:[%s463 + $0x19] sm:$0xff]
        %v4762 = vld [vmem:[%s463 + $0x21] sm:$0xff]
        %v4763 = vld [vmem:[%s463 + $0x31] sm:$0xff]
        %v4764 = vld [vmem:[%s463 + $0x39] sm:$0xff]
        %v4765 = vld [vmem:[%s463 + $0x49] sm:$0xff]
        %v4766 = vld [vmem:[%s463 + $0x51] sm:$0xff]
        %v4767 = vld [vmem:[%s463 + $0x61] sm:$0xff]
        %v4768 = vld [vmem:[%s463 + $0x69] sm:$0xff]
        %v4769 = vld [vmem:[%s463 + $0x79] sm:$0xff]
        %v4770 = vld [vmem:[%s463 + $0x81] sm:$0xff]
        %v4771 = vld [vmem:[%s463 + $0x91] sm:$0xff]
        %v4772 = vld [vmem:[%s463 + $0x99] sm:$0xff]
        %v4773 = vld [vmem:[%s463 + $0xa9] sm:$0xff]
        %v4774 = vld [vmem:[%s463 + $0xb1] sm:$0xff]
        %v4775 = vld [vmem:[%s463 + $0xc1] sm:$0xff]
        %v4776 = vld [vmem:[%s463 + $0xc9] sm:$0xff]
        %v4777 = vld [vmem:[%s463 + $0xd9] sm:$0xff]
        %v4778 = vld [vmem:[%s463 + $0xe1] sm:$0xff]
        %v4779 = vld [vmem:[%s463 + $0xf1] sm:$0xff]
        %v4780 = vld [vmem:[%s463 + $0xf9] sm:$0xff]
        %v4781 = vld [vmem:[%s463 + $0x109] sm:$0xff]
        %v4782 = vld [vmem:[%s463 + $0x111] sm:$0xff]
        %v4783 = vld [vmem:[%s463 + $0x121] sm:$0xff]
        %v4784 = vld [vmem:[%s463 + $0x129] sm:$0xff]
        %v4785 = vld [vmem:[%s463 + $0x139] sm:$0xff]
        %v4786 = vld [vmem:[%s463 + $0x141] sm:$0xff]
        %v4787 = vld [vmem:[%s463 + $0x151] sm:$0xff]
        %v4788 = vld [vmem:[%s463 + $0x159] sm:$0xff]
        %v4789 = vld [vmem:[%s463 + $0x169] sm:$0xff]
        %v4790 = vld [vmem:[%s463 + $0x171] sm:$0xff]
        %v4791 = vld [vmem:[%s463 + $0x2] sm:$0xff]
        %v4792 = vld [vmem:[%s463 + $0xa] sm:$0xff]
        %v4793 = vld [vmem:[%s463 + $0x1a] sm:$0xff]
        %v4794 = vld [vmem:[%s463 + $0x22] sm:$0xff]
        %v4795 = vld [vmem:[%s463 + $0x32] sm:$0xff]
        %v4796 = vld [vmem:[%s463 + $0x3a] sm:$0xff]
        %v4797 = vld [vmem:[%s463 + $0x4a] sm:$0xff]
        %v4798 = vld [vmem:[%s463 + $0x52] sm:$0xff]
        %v4799 = vld [vmem:[%s463 + $0x62] sm:$0xff]
        %v4800 = vld [vmem:[%s463 + $0x6a] sm:$0xff]
        %v4801 = vld [vmem:[%s463 + $0x7a] sm:$0xff]
        %v4802 = vld [vmem:[%s463 + $0x82] sm:$0xff]
        %v4803 = vld [vmem:[%s463 + $0x92] sm:$0xff]
        %v4804 = vld [vmem:[%s463 + $0x9a] sm:$0xff]
        %v4805 = vld [vmem:[%s463 + $0xaa] sm:$0xff]
        %v4806 = vld [vmem:[%s463 + $0xb2] sm:$0xff]
        %v4807 = vld [vmem:[%s463 + $0xc2] sm:$0xff]
        %v4808 = vld [vmem:[%s463 + $0xca] sm:$0xff]
        %v4809 = vld [vmem:[%s463 + $0xda] sm:$0xff]
        %v4810 = vld [vmem:[%s463 + $0xe2] sm:$0xff]
        %v4811 = vld [vmem:[%s463 + $0xf2] sm:$0xff]
        %v4812 = vld [vmem:[%s463 + $0xfa] sm:$0xff]
        %v4813 = vld [vmem:[%s463 + $0x10a] sm:$0xff]
        %v4814 = vld [vmem:[%s463 + $0x112] sm:$0xff]
        %v4815 = vld [vmem:[%s463 + $0x122] sm:$0xff]
        %v4816 = vld [vmem:[%s463 + $0x12a] sm:$0xff]
        %v4817 = vld [vmem:[%s463 + $0x13a] sm:$0xff]
        %v4818 = vld [vmem:[%s463 + $0x142] sm:$0xff]
        %v4819 = vld [vmem:[%s463 + $0x152] sm:$0xff]
        %v4820 = vld [vmem:[%s463 + $0x15a] sm:$0xff]
        %v4821 = vld [vmem:[%s463 + $0x16a] sm:$0xff]
        %v4822 = vld [vmem:[%s463 + $0x172] sm:$0xff]
        %v4823 = vld [vmem:[%s689] sm:$0xff]
        %v4824 = vld [vmem:[%s689 + $0x8] sm:$0xff]
        %v4825 = vld [vmem:[%s689 + $0x18] sm:$0xff]
        %v4826 = vld [vmem:[%s689 + $0x20] sm:$0xff]
        %v4827 = vld [vmem:[%s689 + $0x30] sm:$0xff]
        %v4828 = vld [vmem:[%s689 + $0x38] sm:$0xff]
        %v4829 = vld [vmem:[%s689 + $0x48] sm:$0xff]
        %v4830 = vld [vmem:[%s689 + $0x50] sm:$0xff]
        %v4831 = vld [vmem:[%s689 + $0x60] sm:$0xff]
        %v4832 = vld [vmem:[%s689 + $0x68] sm:$0xff]
        %v4833 = vld [vmem:[%s689 + $0x78] sm:$0xff]
        %v4834 = vld [vmem:[%s689 + $0x80] sm:$0xff]
        %v4835 = vld [vmem:[%s689 + $0x90] sm:$0xff]
        %v4836 = vld [vmem:[%s689 + $0x98] sm:$0xff]
        %v4837 = vld [vmem:[%s689 + $0xa8] sm:$0xff]
        %v4838 = vld [vmem:[%s689 + $0xb0] sm:$0xff]
        %v4839 = vld [vmem:[%s689 + $0xc0] sm:$0xff]
        %v4840 = vld [vmem:[%s689 + $0xc8] sm:$0xff]
        %v4841 = vld [vmem:[%s689 + $0xd8] sm:$0xff]
        %v4842 = vld [vmem:[%s689 + $0xe0] sm:$0xff]
        %v4843 = vld [vmem:[%s689 + $0xf0] sm:$0xff]
        %v4844 = vld [vmem:[%s689 + $0xf8] sm:$0xff]
        %v4845 = vld [vmem:[%s689 + $0x108] sm:$0xff]
        %v4846 = vld [vmem:[%s689 + $0x110] sm:$0xff]
        %v4847 = vld [vmem:[%s689 + $0x120] sm:$0xff]
        %v4848 = vld [vmem:[%s689 + $0x128] sm:$0xff]
        %v4849 = vld [vmem:[%s689 + $0x138] sm:$0xff]
        %v4850 = vld [vmem:[%s689 + $0x140] sm:$0xff]
        %v4851 = vld [vmem:[%s689 + $0x150] sm:$0xff]
        %v4852 = vld [vmem:[%s689 + $0x158] sm:$0xff]
        %v4853 = vld [vmem:[%s689 + $0x168] sm:$0xff]
        %v4854 = vld [vmem:[%s689 + $0x170] sm:$0xff]
        %v4855 = vld [vmem:[%s689 + $0x1] sm:$0xff]
        %v4856 = vld [vmem:[%s689 + $0x9] sm:$0xff]
        %v4857 = vld [vmem:[%s689 + $0x19] sm:$0xff]
        %v4858 = vld [vmem:[%s689 + $0x21] sm:$0xff]
        %v4859 = vld [vmem:[%s689 + $0x31] sm:$0xff]
        %v4860 = vld [vmem:[%s689 + $0x39] sm:$0xff]
        %v4861 = vld [vmem:[%s689 + $0x49] sm:$0xff]
        %v4862 = vld [vmem:[%s689 + $0x51] sm:$0xff]
        %v4863 = vld [vmem:[%s689 + $0x61] sm:$0xff]
        %v4864 = vld [vmem:[%s689 + $0x69] sm:$0xff]
        %v4865 = vld [vmem:[%s689 + $0x79] sm:$0xff]
        %v4866 = vld [vmem:[%s689 + $0x81] sm:$0xff]
        %v4867 = vld [vmem:[%s689 + $0x91] sm:$0xff]
        %v4868 = vld [vmem:[%s689 + $0x99] sm:$0xff]
        %v4869 = vld [vmem:[%s689 + $0xa9] sm:$0xff]
        %v4870 = vld [vmem:[%s689 + $0xb1] sm:$0xff]
        %v4871 = vld [vmem:[%s689 + $0xc1] sm:$0xff]
        %v4872 = vld [vmem:[%s689 + $0xc9] sm:$0xff]
        %v4873 = vld [vmem:[%s689 + $0xd9] sm:$0xff]
        %v4874 = vld [vmem:[%s689 + $0xe1] sm:$0xff]
        %v4875 = vld [vmem:[%s689 + $0xf1] sm:$0xff]
        %v4876 = vld [vmem:[%s689 + $0xf9] sm:$0xff]
        %v4877 = vld [vmem:[%s689 + $0x109] sm:$0xff]
        %v4878 = vld [vmem:[%s689 + $0x111] sm:$0xff]
        %v4879 = vld [vmem:[%s689 + $0x121] sm:$0xff]
        %v4880 = vld [vmem:[%s689 + $0x129] sm:$0xff]
        %v4881 = vld [vmem:[%s689 + $0x139] sm:$0xff]
        %v4882 = vld [vmem:[%s689 + $0x141] sm:$0xff]
        %v4883 = vld [vmem:[%s689 + $0x151] sm:$0xff]
        %v4884 = vld [vmem:[%s689 + $0x159] sm:$0xff]
        %v4885 = vld [vmem:[%s689 + $0x169] sm:$0xff]
        %v4886 = vld [vmem:[%s689 + $0x171] sm:$0xff]
        %v4887 = vld [vmem:[%s689 + $0x2] sm:$0xff]
        %v4888 = vld [vmem:[%s689 + $0xa] sm:$0xff]
        %v4889 = vld [vmem:[%s689 + $0x1a] sm:$0xff]
        %v4890 = vld [vmem:[%s689 + $0x22] sm:$0xff]
        %v4891 = vld [vmem:[%s689 + $0x32] sm:$0xff]
        %v4892 = vld [vmem:[%s689 + $0x3a] sm:$0xff]
        %v4893 = vld [vmem:[%s689 + $0x4a] sm:$0xff]
        %v4894 = vld [vmem:[%s689 + $0x52] sm:$0xff]
        %v4895 = vld [vmem:[%s689 + $0x62] sm:$0xff]
        %v4896 = vld [vmem:[%s689 + $0x6a] sm:$0xff]
        %v4897 = vld [vmem:[%s689 + $0x7a] sm:$0xff]
        %v4898 = vld [vmem:[%s689 + $0x82] sm:$0xff]
        %v4899 = vld [vmem:[%s689 + $0x92] sm:$0xff]
        %v4900 = vld [vmem:[%s689 + $0x9a] sm:$0xff]
        %v4901 = vld [vmem:[%s689 + $0xaa] sm:$0xff]
        %v4902 = vld [vmem:[%s689 + $0xb2] sm:$0xff]
        %v4903 = vld [vmem:[%s689 + $0xc2] sm:$0xff]
        %v4904 = vld [vmem:[%s689 + $0xca] sm:$0xff]
        %v4905 = vld [vmem:[%s689 + $0xda] sm:$0xff]
        %v4906 = vld [vmem:[%s689 + $0xe2] sm:$0xff]
        %v4907 = vld [vmem:[%s689 + $0xf2] sm:$0xff]
        %v4908 = vld [vmem:[%s689 + $0xfa] sm:$0xff]
        %v4909 = vld [vmem:[%s689 + $0x10a] sm:$0xff]
        %v4910 = vld [vmem:[%s689 + $0x112] sm:$0xff]
        %v4911 = vld [vmem:[%s689 + $0x122] sm:$0xff]
        %v4912 = vld [vmem:[%s689 + $0x12a] sm:$0xff]
        %v4913 = vld [vmem:[%s689 + $0x13a] sm:$0xff]
        %v4914 = vld [vmem:[%s689 + $0x142] sm:$0xff]
        %v4915 = vld [vmem:[%s689 + $0x152] sm:$0xff]
        %v4916 = vld [vmem:[%s689 + $0x15a] sm:$0xff]
        %v4917 = vld [vmem:[%s689 + $0x16a] sm:$0xff]
        %v4918 = vld [vmem:[%s689 + $0x172] sm:$0xff]
        %4951 = vrot.lane.b32.xlu0 %v4663, 32
        %v4952 = vpop.permute.xlu0 %4951
        %4953 = vrot.lane.b32.xlu0 %v4664, 32
        %v4954 = vpop.permute.xlu0 %4953
        %4955 = vrot.lane.b32.xlu0 %v4665, 32
        %v4956 = vpop.permute.xlu0 %4955
        %4957 = vrot.lane.b32.xlu0 %v4666, 32
        %v4958 = vpop.permute.xlu0 %4957
        %4959 = vrot.lane.b32.xlu0 %v4667, 32
        %v4960 = vpop.permute.xlu0 %4959
        %4961 = vrot.lane.b32.xlu0 %v4668, 32
        %v4962 = vpop.permute.xlu0 %4961
        %4963 = vrot.lane.b32.xlu0 %v4669, 32
        %v4964 = vpop.permute.xlu0 %4963
        %4965 = vrot.lane.b32.xlu0 %v4670, 32
        %v4966 = vpop.permute.xlu0 %4965
        %4967 = vrot.lane.b32.xlu0 %v4671, 32
        %v4968 = vpop.permute.xlu0 %4967
        %4969 = vrot.lane.b32.xlu0 %v4672, 32
        %v4970 = vpop.permute.xlu0 %4969
        %4971 = vrot.lane.b32.xlu0 %v4673, 32
        %v4972 = vpop.permute.xlu0 %4971
        %4973 = vrot.lane.b32.xlu0 %v4674, 32
        %v4974 = vpop.permute.xlu0 %4973
        %4975 = vrot.lane.b32.xlu0 %v4675, 32
        %v4976 = vpop.permute.xlu0 %4975
        %4977 = vrot.lane.b32.xlu0 %v4676, 32
        %v4978 = vpop.permute.xlu0 %4977
        %4979 = vrot.lane.b32.xlu0 %v4677, 32
        %v4980 = vpop.permute.xlu0 %4979
        %4981 = vrot.lane.b32.xlu0 %v4678, 32
        %v4982 = vpop.permute.xlu0 %4981
        %4983 = vrot.lane.b32.xlu0 %v4679, 32
        %v4984 = vpop.permute.xlu0 %4983
        %4985 = vrot.lane.b32.xlu0 %v4680, 32
        %v4986 = vpop.permute.xlu0 %4985
        %4987 = vrot.lane.b32.xlu0 %v4681, 32
        %v4988 = vpop.permute.xlu0 %4987
        %4989 = vrot.lane.b32.xlu0 %v4682, 32
        %v4990 = vpop.permute.xlu0 %4989
        %4991 = vrot.lane.b32.xlu0 %v4683, 32
        %v4992 = vpop.permute.xlu0 %4991
        %4993 = vrot.lane.b32.xlu0 %v4684, 32
        %v4994 = vpop.permute.xlu0 %4993
        %4995 = vrot.lane.b32.xlu0 %v4685, 32
        %v4996 = vpop.permute.xlu0 %4995
        %4997 = vrot.lane.b32.xlu0 %v4686, 32
        %v4998 = vpop.permute.xlu0 %4997
        %4999 = vrot.lane.b32.xlu0 %v4687, 32
        %v5000 = vpop.permute.xlu0 %4999
        %5001 = vrot.lane.b32.xlu0 %v4688, 32
        %v5002 = vpop.permute.xlu0 %5001
        %5003 = vrot.lane.b32.xlu0 %v4689, 32
        %v5004 = vpop.permute.xlu0 %5003
        %5005 = vrot.lane.b32.xlu0 %v4690, 32
        %v5006 = vpop.permute.xlu0 %5005
        %5007 = vrot.lane.b32.xlu0 %v4691, 32
        %v5008 = vpop.permute.xlu0 %5007
        %5009 = vrot.lane.b32.xlu0 %v4692, 32
        %v5010 = vpop.permute.xlu0 %5009
        %5011 = vrot.lane.b32.xlu0 %v4693, 32
        %v5012 = vpop.permute.xlu0 %5011
        %5013 = vrot.lane.b32.xlu0 %v4694, 32
        %v5014 = vpop.permute.xlu0 %5013
        %5079 = vrot.lane.b32.xlu0 %v4695, 64
        %v5080 = vpop.permute.xlu0 %5079
        %5081 = vrot.lane.b32.xlu0 %v4696, 64
        %v5082 = vpop.permute.xlu0 %5081
        %5083 = vrot.lane.b32.xlu0 %v4697, 64
        %v5084 = vpop.permute.xlu0 %5083
        %5085 = vrot.lane.b32.xlu0 %v4698, 64
        %v5086 = vpop.permute.xlu0 %5085
        %5087 = vrot.lane.b32.xlu0 %v4699, 64
        %v5088 = vpop.permute.xlu0 %5087
        %5089 = vrot.lane.b32.xlu0 %v4700, 64
        %v5090 = vpop.permute.xlu0 %5089
        %5091 = vrot.lane.b32.xlu0 %v4701, 64
        %v5092 = vpop.permute.xlu0 %5091
        %5093 = vrot.lane.b32.xlu0 %v4702, 64
        %v5094 = vpop.permute.xlu0 %5093
        %5095 = vrot.lane.b32.xlu0 %v4703, 64
        %v5096 = vpop.permute.xlu0 %5095
        %5097 = vrot.lane.b32.xlu0 %v4704, 64
        %v5098 = vpop.permute.xlu0 %5097
        %5099 = vrot.lane.b32.xlu0 %v4705, 64
        %v5100 = vpop.permute.xlu0 %5099
        %5101 = vrot.lane.b32.xlu0 %v4706, 64
        %v5102 = vpop.permute.xlu0 %5101
        %5103 = vrot.lane.b32.xlu0 %v4707, 64
        %v5104 = vpop.permute.xlu0 %5103
        %5105 = vrot.lane.b32.xlu0 %v4708, 64
        %v5106 = vpop.permute.xlu0 %5105
        %5107 = vrot.lane.b32.xlu0 %v4709, 64
        %v5108 = vpop.permute.xlu0 %5107
        %5109 = vrot.lane.b32.xlu0 %v4710, 64
        %v5110 = vpop.permute.xlu0 %5109
        %5111 = vrot.lane.b32.xlu0 %v4711, 64
        %v5112 = vpop.permute.xlu0 %5111
        %5113 = vrot.lane.b32.xlu0 %v4712, 64
        %v5114 = vpop.permute.xlu0 %5113
        %5115 = vrot.lane.b32.xlu0 %v4713, 64
        %v5116 = vpop.permute.xlu0 %5115
        %5117 = vrot.lane.b32.xlu0 %v4714, 64
        %v5118 = vpop.permute.xlu0 %5117
        %5119 = vrot.lane.b32.xlu0 %v4715, 64
        %v5120 = vpop.permute.xlu0 %5119
        %5121 = vrot.lane.b32.xlu0 %v4716, 64
        %v5122 = vpop.permute.xlu0 %5121
        %5123 = vrot.lane.b32.xlu0 %v4717, 64
        %v5124 = vpop.permute.xlu0 %5123
        %5125 = vrot.lane.b32.xlu0 %v4718, 64
        %v5126 = vpop.permute.xlu0 %5125
        %5127 = vrot.lane.b32.xlu0 %v4719, 64
        %v5128 = vpop.permute.xlu0 %5127
        %5129 = vrot.lane.b32.xlu0 %v4720, 64
        %v5130 = vpop.permute.xlu0 %5129
        %5131 = vrot.lane.b32.xlu0 %v4721, 64
        %v5132 = vpop.permute.xlu0 %5131
        %5133 = vrot.lane.b32.xlu0 %v4722, 64
        %v5134 = vpop.permute.xlu0 %5133
        %5135 = vrot.lane.b32.xlu0 %v4723, 64
        %v5136 = vpop.permute.xlu0 %5135
        %5137 = vrot.lane.b32.xlu0 %v4724, 64
        %v5138 = vpop.permute.xlu0 %5137
        %5139 = vrot.lane.b32.xlu0 %v4725, 64
        %v5140 = vpop.permute.xlu0 %5139
        %5141 = vrot.lane.b32.xlu0 %v4726, 64
        %v5142 = vpop.permute.xlu0 %5141
        %5207 = vrot.lane.b32.xlu0 %v4727, 96
        %v5208 = vpop.permute.xlu0 %5207
        %5209 = vrot.lane.b32.xlu0 %v4728, 96
        %v5210 = vpop.permute.xlu0 %5209
        %5211 = vrot.lane.b32.xlu0 %v4729, 96
        %v5212 = vpop.permute.xlu0 %5211
        %5213 = vrot.lane.b32.xlu0 %v4730, 96
        %v5214 = vpop.permute.xlu0 %5213
        %5215 = vrot.lane.b32.xlu0 %v4731, 96
        %v5216 = vpop.permute.xlu0 %5215
        %5217 = vrot.lane.b32.xlu0 %v4732, 96
        %v5218 = vpop.permute.xlu0 %5217
        %5219 = vrot.lane.b32.xlu0 %v4733, 96
        %v5220 = vpop.permute.xlu0 %5219
        %5221 = vrot.lane.b32.xlu0 %v4734, 96
        %v5222 = vpop.permute.xlu0 %5221
        %5223 = vrot.lane.b32.xlu0 %v4735, 96
        %v5224 = vpop.permute.xlu0 %5223
        %5225 = vrot.lane.b32.xlu0 %v4736, 96
        %v5226 = vpop.permute.xlu0 %5225
        %5227 = vrot.lane.b32.xlu0 %v4737, 96
        %v5228 = vpop.permute.xlu0 %5227
        %5229 = vrot.lane.b32.xlu0 %v4738, 96
        %v5230 = vpop.permute.xlu0 %5229
        %5231 = vrot.lane.b32.xlu0 %v4739, 96
        %v5232 = vpop.permute.xlu0 %5231
        %5233 = vrot.lane.b32.xlu0 %v4740, 96
        %v5234 = vpop.permute.xlu0 %5233
        %5235 = vrot.lane.b32.xlu0 %v4741, 96
        %v5236 = vpop.permute.xlu0 %5235
        %5237 = vrot.lane.b32.xlu0 %v4742, 96
        %v5238 = vpop.permute.xlu0 %5237
        %5239 = vrot.lane.b32.xlu0 %v4743, 96
        %v5240 = vpop.permute.xlu0 %5239
        %5241 = vrot.lane.b32.xlu0 %v4744, 96
        %v5242 = vpop.permute.xlu0 %5241
        %5243 = vrot.lane.b32.xlu0 %v4745, 96
        %v5244 = vpop.permute.xlu0 %5243
        %5245 = vrot.lane.b32.xlu0 %v4746, 96
        %v5246 = vpop.permute.xlu0 %5245
        %5247 = vrot.lane.b32.xlu0 %v4747, 96
        %v5248 = vpop.permute.xlu0 %5247
        %5249 = vrot.lane.b32.xlu0 %v4748, 96
        %v5250 = vpop.permute.xlu0 %5249
        %5251 = vrot.lane.b32.xlu0 %v4749, 96
        %v5252 = vpop.permute.xlu0 %5251
        %5253 = vrot.lane.b32.xlu0 %v4750, 96
        %v5254 = vpop.permute.xlu0 %5253
        %5255 = vrot.lane.b32.xlu0 %v4751, 96
        %v5256 = vpop.permute.xlu0 %5255
        %5257 = vrot.lane.b32.xlu0 %v4752, 96
        %v5258 = vpop.permute.xlu0 %5257
        %5259 = vrot.lane.b32.xlu0 %v4753, 96
        %v5260 = vpop.permute.xlu0 %5259
        %5261 = vrot.lane.b32.xlu0 %v4754, 96
        %v5262 = vpop.permute.xlu0 %5261
        %5263 = vrot.lane.b32.xlu0 %v4755, 96
        %v5264 = vpop.permute.xlu0 %5263
        %5265 = vrot.lane.b32.xlu0 %v4756, 96
        %v5266 = vpop.permute.xlu0 %5265
        %5267 = vrot.lane.b32.xlu0 %v4757, 96
        %v5268 = vpop.permute.xlu0 %5267
        %5269 = vrot.lane.b32.xlu0 %v4758, 96
        %v5270 = vpop.permute.xlu0 %5269
        %5335 = vrot.lane.b32.xlu0 %v4791, 32
        %v5336 = vpop.permute.xlu0 %5335
        %5337 = vrot.lane.b32.xlu0 %v4792, 32
        %v5338 = vpop.permute.xlu0 %5337
        %5339 = vrot.lane.b32.xlu0 %v4793, 32
        %v5340 = vpop.permute.xlu0 %5339
        %5341 = vrot.lane.b32.xlu0 %v4794, 32
        %v5342 = vpop.permute.xlu0 %5341
        %5343 = vrot.lane.b32.xlu0 %v4795, 32
        %v5344 = vpop.permute.xlu0 %5343
        %5345 = vrot.lane.b32.xlu0 %v4796, 32
        %v5346 = vpop.permute.xlu0 %5345
        %5347 = vrot.lane.b32.xlu0 %v4797, 32
        %v5348 = vpop.permute.xlu0 %5347
        %5349 = vrot.lane.b32.xlu0 %v4798, 32
        %v5350 = vpop.permute.xlu0 %5349
        %5351 = vrot.lane.b32.xlu0 %v4799, 32
        %v5352 = vpop.permute.xlu0 %5351
        %5353 = vrot.lane.b32.xlu0 %v4800, 32
        %v5354 = vpop.permute.xlu0 %5353
        %5355 = vrot.lane.b32.xlu0 %v4801, 32
        %v5356 = vpop.permute.xlu0 %5355
        %5357 = vrot.lane.b32.xlu0 %v4802, 32
        %v5358 = vpop.permute.xlu0 %5357
        %5359 = vrot.lane.b32.xlu0 %v4803, 32
        %v5360 = vpop.permute.xlu0 %5359
        %5361 = vrot.lane.b32.xlu0 %v4804, 32
        %v5362 = vpop.permute.xlu0 %5361
        %5363 = vrot.lane.b32.xlu0 %v4805, 32
        %v5364 = vpop.permute.xlu0 %5363
        %5365 = vrot.lane.b32.xlu0 %v4806, 32
        %v5366 = vpop.permute.xlu0 %5365
        %5367 = vrot.lane.b32.xlu0 %v4807, 32
        %v5368 = vpop.permute.xlu0 %5367
        %5369 = vrot.lane.b32.xlu0 %v4808, 32
        %v5370 = vpop.permute.xlu0 %5369
        %5371 = vrot.lane.b32.xlu0 %v4809, 32
        %v5372 = vpop.permute.xlu0 %5371
        %5373 = vrot.lane.b32.xlu0 %v4810, 32
        %v5374 = vpop.permute.xlu0 %5373
        %5375 = vrot.lane.b32.xlu0 %v4811, 32
        %v5376 = vpop.permute.xlu0 %5375
        %5377 = vrot.lane.b32.xlu0 %v4812, 32
        %v5378 = vpop.permute.xlu0 %5377
        %5379 = vrot.lane.b32.xlu0 %v4813, 32
        %v5380 = vpop.permute.xlu0 %5379
        %5381 = vrot.lane.b32.xlu0 %v4814, 32
        %v5382 = vpop.permute.xlu0 %5381
        %5383 = vrot.lane.b32.xlu0 %v4815, 32
        %v5384 = vpop.permute.xlu0 %5383
        %5385 = vrot.lane.b32.xlu0 %v4816, 32
        %v5386 = vpop.permute.xlu0 %5385
        %5387 = vrot.lane.b32.xlu0 %v4817, 32
        %v5388 = vpop.permute.xlu0 %5387
        %5389 = vrot.lane.b32.xlu0 %v4818, 32
        %v5390 = vpop.permute.xlu0 %5389
        %5391 = vrot.lane.b32.xlu0 %v4819, 32
        %v5392 = vpop.permute.xlu0 %5391
        %5393 = vrot.lane.b32.xlu0 %v4820, 32
        %v5394 = vpop.permute.xlu0 %5393
        %5395 = vrot.lane.b32.xlu0 %v4821, 32
        %v5396 = vpop.permute.xlu0 %5395
        %5397 = vrot.lane.b32.xlu0 %v4822, 32
        %v5398 = vpop.permute.xlu0 %5397
        %5463 = vrot.lane.b32.xlu0 %v4823, 64
        %v5464 = vpop.permute.xlu0 %5463
        %5465 = vrot.lane.b32.xlu0 %v4824, 64
        %v5466 = vpop.permute.xlu0 %5465
        %5467 = vrot.lane.b32.xlu0 %v4825, 64
        %v5468 = vpop.permute.xlu0 %5467
        %5469 = vrot.lane.b32.xlu0 %v4826, 64
        %v5470 = vpop.permute.xlu0 %5469
        %5471 = vrot.lane.b32.xlu0 %v4827, 64
        %v5472 = vpop.permute.xlu0 %5471
        %5473 = vrot.lane.b32.xlu0 %v4828, 64
        %v5474 = vpop.permute.xlu0 %5473
        %5475 = vrot.lane.b32.xlu0 %v4829, 64
        %v5476 = vpop.permute.xlu0 %5475
        %5477 = vrot.lane.b32.xlu0 %v4830, 64
        %v5478 = vpop.permute.xlu0 %5477
        %5479 = vrot.lane.b32.xlu0 %v4831, 64
        %v5480 = vpop.permute.xlu0 %5479
        %5481 = vrot.lane.b32.xlu0 %v4832, 64
        %v5482 = vpop.permute.xlu0 %5481
        %5483 = vrot.lane.b32.xlu0 %v4833, 64
        %v5484 = vpop.permute.xlu0 %5483
        %5485 = vrot.lane.b32.xlu0 %v4834, 64
        %v5486 = vpop.permute.xlu0 %5485
        %5487 = vrot.lane.b32.xlu0 %v4835, 64
        %v5488 = vpop.permute.xlu0 %5487
        %5489 = vrot.lane.b32.xlu0 %v4836, 64
        %v5490 = vpop.permute.xlu0 %5489
        %5491 = vrot.lane.b32.xlu0 %v4837, 64
        %v5492 = vpop.permute.xlu0 %5491
        %5493 = vrot.lane.b32.xlu0 %v4838, 64
        %v5494 = vpop.permute.xlu0 %5493
        %5495 = vrot.lane.b32.xlu0 %v4839, 64
        %v5496 = vpop.permute.xlu0 %5495
        %5497 = vrot.lane.b32.xlu0 %v4840, 64
        %v5498 = vpop.permute.xlu0 %5497
        %5499 = vrot.lane.b32.xlu0 %v4841, 64
        %v5500 = vpop.permute.xlu0 %5499
        %5501 = vrot.lane.b32.xlu0 %v4842, 64
        %v5502 = vpop.permute.xlu0 %5501
        %5503 = vrot.lane.b32.xlu0 %v4843, 64
        %v5504 = vpop.permute.xlu0 %5503
        %5505 = vrot.lane.b32.xlu0 %v4844, 64
        %v5506 = vpop.permute.xlu0 %5505
        %5507 = vrot.lane.b32.xlu0 %v4845, 64
        %v5508 = vpop.permute.xlu0 %5507
        %5509 = vrot.lane.b32.xlu0 %v4846, 64
        %v5510 = vpop.permute.xlu0 %5509
        %5511 = vrot.lane.b32.xlu0 %v4847, 64
        %v5512 = vpop.permute.xlu0 %5511
        %5513 = vrot.lane.b32.xlu0 %v4848, 64
        %v5514 = vpop.permute.xlu0 %5513
        %5515 = vrot.lane.b32.xlu0 %v4849, 64
        %v5516 = vpop.permute.xlu0 %5515
        %5517 = vrot.lane.b32.xlu0 %v4850, 64
        %v5518 = vpop.permute.xlu0 %5517
        %5519 = vrot.lane.b32.xlu0 %v4851, 64
        %v5520 = vpop.permute.xlu0 %5519
        %5521 = vrot.lane.b32.xlu0 %v4852, 64
        %v5522 = vpop.permute.xlu0 %5521
        %5523 = vrot.lane.b32.xlu0 %v4853, 64
        %v5524 = vpop.permute.xlu0 %5523
        %5525 = vrot.lane.b32.xlu0 %v4854, 64
        %v5526 = vpop.permute.xlu0 %5525
        %5591 = vrot.lane.b32.xlu0 %v4855, 96
        %v5592 = vpop.permute.xlu0 %5591
        %5593 = vrot.lane.b32.xlu0 %v4856, 96
        %v5594 = vpop.permute.xlu0 %5593
        %5595 = vrot.lane.b32.xlu0 %v4857, 96
        %v5596 = vpop.permute.xlu0 %5595
        %5597 = vrot.lane.b32.xlu0 %v4858, 96
        %v5598 = vpop.permute.xlu0 %5597
        %5599 = vrot.lane.b32.xlu0 %v4859, 96
        %v5600 = vpop.permute.xlu0 %5599
        %5601 = vrot.lane.b32.xlu0 %v4860, 96
        %v5602 = vpop.permute.xlu0 %5601
        %5603 = vrot.lane.b32.xlu0 %v4861, 96
        %v5604 = vpop.permute.xlu0 %5603
        %5605 = vrot.lane.b32.xlu0 %v4862, 96
        %v5606 = vpop.permute.xlu0 %5605
        %5607 = vrot.lane.b32.xlu0 %v4863, 96
        %v5608 = vpop.permute.xlu0 %5607
        %5609 = vrot.lane.b32.xlu0 %v4864, 96
        %v5610 = vpop.permute.xlu0 %5609
        %5611 = vrot.lane.b32.xlu0 %v4865, 96
        %v5612 = vpop.permute.xlu0 %5611
        %5613 = vrot.lane.b32.xlu0 %v4866, 96
        %v5614 = vpop.permute.xlu0 %5613
        %5615 = vrot.lane.b32.xlu0 %v4867, 96
        %v5616 = vpop.permute.xlu0 %5615
        %5617 = vrot.lane.b32.xlu0 %v4868, 96
        %v5618 = vpop.permute.xlu0 %5617
        %5619 = vrot.lane.b32.xlu0 %v4869, 96
        %v5620 = vpop.permute.xlu0 %5619
        %5621 = vrot.lane.b32.xlu0 %v4870, 96
        %v5622 = vpop.permute.xlu0 %5621
        %5623 = vrot.lane.b32.xlu0 %v4871, 96
        %v5624 = vpop.permute.xlu0 %5623
        %5625 = vrot.lane.b32.xlu0 %v4872, 96
        %v5626 = vpop.permute.xlu0 %5625
        %5627 = vrot.lane.b32.xlu0 %v4873, 96
        %v5628 = vpop.permute.xlu0 %5627
        %5629 = vrot.lane.b32.xlu0 %v4874, 96
        %v5630 = vpop.permute.xlu0 %5629
        %5631 = vrot.lane.b32.xlu0 %v4875, 96
        %v5632 = vpop.permute.xlu0 %5631
        %5633 = vrot.lane.b32.xlu0 %v4876, 96
        %v5634 = vpop.permute.xlu0 %5633
        %5635 = vrot.lane.b32.xlu0 %v4877, 96
        %v5636 = vpop.permute.xlu0 %5635
        %5637 = vrot.lane.b32.xlu0 %v4878, 96
        %v5638 = vpop.permute.xlu0 %5637
        %5639 = vrot.lane.b32.xlu0 %v4879, 96
        %v5640 = vpop.permute.xlu0 %5639
        %5641 = vrot.lane.b32.xlu0 %v4880, 96
        %v5642 = vpop.permute.xlu0 %5641
        %5643 = vrot.lane.b32.xlu0 %v4881, 96
        %v5644 = vpop.permute.xlu0 %5643
        %5645 = vrot.lane.b32.xlu0 %v4882, 96
        %v5646 = vpop.permute.xlu0 %5645
        %5647 = vrot.lane.b32.xlu0 %v4883, 96
        %v5648 = vpop.permute.xlu0 %5647
        %5649 = vrot.lane.b32.xlu0 %v4884, 96
        %v5650 = vpop.permute.xlu0 %5649
        %5651 = vrot.lane.b32.xlu0 %v4885, 96
        %v5652 = vpop.permute.xlu0 %5651
        %5653 = vrot.lane.b32.xlu0 %v4886, 96
        %v5654 = vpop.permute.xlu0 %5653
        %v5687 = vsel %vm1714, %v4631, %v4952
        %v5688 = vsel %vm1714, %v4632, %v4954
        %v5689 = vsel %vm1714, %v4633, %v4956
        %v5690 = vsel %vm1714, %v4634, %v4958
        %v5691 = vsel %vm1714, %v4635, %v4960
        %v5692 = vsel %vm1714, %v4636, %v4962
        %v5693 = vsel %vm1714, %v4637, %v4964
        %v5694 = vsel %vm1714, %v4638, %v4966
        %v5695 = vsel %vm1714, %v4639, %v4968
        %v5696 = vsel %vm1714, %v4640, %v4970
        %v5697 = vsel %vm1714, %v4641, %v4972
        %v5698 = vsel %vm1714, %v4642, %v4974
        %v5699 = vsel %vm1714, %v4643, %v4976
        %v5700 = vsel %vm1714, %v4644, %v4978
        %v5701 = vsel %vm1714, %v4645, %v4980
        %v5702 = vsel %vm1714, %v4646, %v4982
        %v5703 = vsel %vm1714, %v4647, %v4984
        %v5704 = vsel %vm1714, %v4648, %v4986
        %v5705 = vsel %vm1714, %v4649, %v4988
        %v5706 = vsel %vm1714, %v4650, %v4990
        %v5707 = vsel %vm1714, %v4651, %v4992
        %v5708 = vsel %vm1714, %v4652, %v4994
        %v5709 = vsel %vm1714, %v4653, %v4996
        %v5710 = vsel %vm1714, %v4654, %v4998
        %v5711 = vsel %vm1714, %v4655, %v5000
        %v5712 = vsel %vm1714, %v4656, %v5002
        %v5713 = vsel %vm1714, %v4657, %v5004
        %v5714 = vsel %vm1714, %v4658, %v5006
        %v5715 = vsel %vm1714, %v4659, %v5008
        %v5716 = vsel %vm1714, %v4660, %v5010
        %v5717 = vsel %vm1714, %v4661, %v5012
        %v5718 = vsel %vm1714, %v4662, %v5014
        %v5719 = vsel %vm1779, %v5687, %v5080
        %v5720 = vsel %vm1779, %v5688, %v5082
        %v5721 = vsel %vm1779, %v5689, %v5084
        %v5722 = vsel %vm1779, %v5690, %v5086
        %v5723 = vsel %vm1779, %v5691, %v5088
        %v5724 = vsel %vm1779, %v5692, %v5090
        %v5725 = vsel %vm1779, %v5693, %v5092
        %v5726 = vsel %vm1779, %v5694, %v5094
        %v5727 = vsel %vm1779, %v5695, %v5096
        %v5728 = vsel %vm1779, %v5696, %v5098
        %v5729 = vsel %vm1779, %v5697, %v5100
        %v5730 = vsel %vm1779, %v5698, %v5102
        %v5731 = vsel %vm1779, %v5699, %v5104
        %v5732 = vsel %vm1779, %v5700, %v5106
        %v5733 = vsel %vm1779, %v5701, %v5108
        %v5734 = vsel %vm1779, %v5702, %v5110
        %v5735 = vsel %vm1779, %v5703, %v5112
        %v5736 = vsel %vm1779, %v5704, %v5114
        %v5737 = vsel %vm1779, %v5705, %v5116
        %v5738 = vsel %vm1779, %v5706, %v5118
        %v5739 = vsel %vm1779, %v5707, %v5120
        %v5740 = vsel %vm1779, %v5708, %v5122
        %v5741 = vsel %vm1779, %v5709, %v5124
        %v5742 = vsel %vm1779, %v5710, %v5126
        %v5743 = vsel %vm1779, %v5711, %v5128
        %v5744 = vsel %vm1779, %v5712, %v5130
        %v5745 = vsel %vm1779, %v5713, %v5132
        %v5746 = vsel %vm1779, %v5714, %v5134
        %v5747 = vsel %vm1779, %v5715, %v5136
        %v5748 = vsel %vm1779, %v5716, %v5138
        %v5749 = vsel %vm1779, %v5717, %v5140
        %v5750 = vsel %vm1779, %v5718, %v5142
        %v5751 = vsel %vm1845, %v5719, %v5208
        %v5752 = vsel %vm1845, %v5720, %v5210
        %v5753 = vsel %vm1845, %v5721, %v5212
        %v5754 = vsel %vm1845, %v5722, %v5214
        %v5755 = vsel %vm1845, %v5723, %v5216
        %v5756 = vsel %vm1845, %v5724, %v5218
        %v5757 = vsel %vm1845, %v5725, %v5220
        %v5758 = vsel %vm1845, %v5726, %v5222
        %v5759 = vsel %vm1845, %v5727, %v5224
        %v5760 = vsel %vm1845, %v5728, %v5226
        %v5761 = vsel %vm1845, %v5729, %v5228
        %v5762 = vsel %vm1845, %v5730, %v5230
        %v5763 = vsel %vm1845, %v5731, %v5232
        %v5764 = vsel %vm1845, %v5732, %v5234
        %v5765 = vsel %vm1845, %v5733, %v5236
        %v5766 = vsel %vm1845, %v5734, %v5238
        %v5767 = vsel %vm1845, %v5735, %v5240
        %v5768 = vsel %vm1845, %v5736, %v5242
        %v5769 = vsel %vm1845, %v5737, %v5244
        %v5770 = vsel %vm1845, %v5738, %v5246
        %v5771 = vsel %vm1845, %v5739, %v5248
        %v5772 = vsel %vm1845, %v5740, %v5250
        %v5773 = vsel %vm1845, %v5741, %v5252
        %v5774 = vsel %vm1845, %v5742, %v5254
        %v5775 = vsel %vm1845, %v5743, %v5256
        %v5776 = vsel %vm1845, %v5744, %v5258
        %v5777 = vsel %vm1845, %v5745, %v5260
        %v5778 = vsel %vm1845, %v5746, %v5262
        %v5779 = vsel %vm1845, %v5747, %v5264
        %v5780 = vsel %vm1845, %v5748, %v5266
        %v5781 = vsel %vm1845, %v5749, %v5268
        %v5782 = vsel %vm1845, %v5750, %v5270
        %v5783 = vsel %vm1714, %v4759, %v5336
        %v5784 = vsel %vm1714, %v4760, %v5338
        %v5785 = vsel %vm1714, %v4761, %v5340
        %v5786 = vsel %vm1714, %v4762, %v5342
        %v5787 = vsel %vm1714, %v4763, %v5344
        %v5788 = vsel %vm1714, %v4764, %v5346
        %v5789 = vsel %vm1714, %v4765, %v5348
        %v5790 = vsel %vm1714, %v4766, %v5350
        %v5791 = vsel %vm1714, %v4767, %v5352
        %v5792 = vsel %vm1714, %v4768, %v5354
        %v5793 = vsel %vm1714, %v4769, %v5356
        %v5794 = vsel %vm1714, %v4770, %v5358
        %v5795 = vsel %vm1714, %v4771, %v5360
        %v5796 = vsel %vm1714, %v4772, %v5362
        %v5797 = vsel %vm1714, %v4773, %v5364
        %v5798 = vsel %vm1714, %v4774, %v5366
        %v5799 = vsel %vm1714, %v4775, %v5368
        %v5800 = vsel %vm1714, %v4776, %v5370
        %v5801 = vsel %vm1714, %v4777, %v5372
        %v5802 = vsel %vm1714, %v4778, %v5374
        %v5803 = vsel %vm1714, %v4779, %v5376
        %v5804 = vsel %vm1714, %v4780, %v5378
        %v5805 = vsel %vm1714, %v4781, %v5380
        %v5806 = vsel %vm1714, %v4782, %v5382
        %v5807 = vsel %vm1714, %v4783, %v5384
        %v5808 = vsel %vm1714, %v4784, %v5386
        %v5809 = vsel %vm1714, %v4785, %v5388
        %v5810 = vsel %vm1714, %v4786, %v5390
        %v5811 = vsel %vm1714, %v4787, %v5392
        %v5812 = vsel %vm1714, %v4788, %v5394
        %v5813 = vsel %vm1714, %v4789, %v5396
        %v5814 = vsel %vm1714, %v4790, %v5398
        %v5815 = vsel %vm1779, %v5783, %v5464
        %v5816 = vsel %vm1779, %v5784, %v5466
        %v5817 = vsel %vm1779, %v5785, %v5468
        %v5818 = vsel %vm1779, %v5786, %v5470
        %v5819 = vsel %vm1779, %v5787, %v5472
        %v5820 = vsel %vm1779, %v5788, %v5474
        %v5821 = vsel %vm1779, %v5789, %v5476
        %v5822 = vsel %vm1779, %v5790, %v5478
        %v5823 = vsel %vm1779, %v5791, %v5480
        %v5824 = vsel %vm1779, %v5792, %v5482
        %v5825 = vsel %vm1779, %v5793, %v5484
        %v5826 = vsel %vm1779, %v5794, %v5486
        %v5827 = vsel %vm1779, %v5795, %v5488
        %v5828 = vsel %vm1779, %v5796, %v5490
        %v5829 = vsel %vm1779, %v5797, %v5492
        %v5830 = vsel %vm1779, %v5798, %v5494
        %v5831 = vsel %vm1779, %v5799, %v5496
        %v5832 = vsel %vm1779, %v5800, %v5498
        %v5833 = vsel %vm1779, %v5801, %v5500
        %v5834 = vsel %vm1779, %v5802, %v5502
        %v5835 = vsel %vm1779, %v5803, %v5504
        %v5836 = vsel %vm1779, %v5804, %v5506
        %v5837 = vsel %vm1779, %v5805, %v5508
        %v5838 = vsel %vm1779, %v5806, %v5510
        %v5839 = vsel %vm1779, %v5807, %v5512
        %v5840 = vsel %vm1779, %v5808, %v5514
        %v5841 = vsel %vm1779, %v5809, %v5516
        %v5842 = vsel %vm1779, %v5810, %v5518
        %v5843 = vsel %vm1779, %v5811, %v5520
        %v5844 = vsel %vm1779, %v5812, %v5522
        %v5845 = vsel %vm1779, %v5813, %v5524
        %v5846 = vsel %vm1779, %v5814, %v5526
        %v5847 = vsel %vm1845, %v5815, %v5592
        %v5848 = vsel %vm1845, %v5816, %v5594
        %v5849 = vsel %vm1845, %v5817, %v5596
        %v5850 = vsel %vm1845, %v5818, %v5598
        %v5851 = vsel %vm1845, %v5819, %v5600
        %v5852 = vsel %vm1845, %v5820, %v5602
        %v5853 = vsel %vm1845, %v5821, %v5604
        %v5854 = vsel %vm1845, %v5822, %v5606
        %v5855 = vsel %vm1845, %v5823, %v5608
        %v5856 = vsel %vm1845, %v5824, %v5610
        %v5857 = vsel %vm1845, %v5825, %v5612
        %v5858 = vsel %vm1845, %v5826, %v5614
        %v5859 = vsel %vm1845, %v5827, %v5616
        %v5860 = vsel %vm1845, %v5828, %v5618
        %v5861 = vsel %vm1845, %v5829, %v5620
        %v5862 = vsel %vm1845, %v5830, %v5622
        %v5863 = vsel %vm1845, %v5831, %v5624
        %v5864 = vsel %vm1845, %v5832, %v5626
        %v5865 = vsel %vm1845, %v5833, %v5628
        %v5866 = vsel %vm1845, %v5834, %v5630
        %v5867 = vsel %vm1845, %v5835, %v5632
        %v5868 = vsel %vm1845, %v5836, %v5634
        %v5869 = vsel %vm1845, %v5837, %v5636
        %v5870 = vsel %vm1845, %v5838, %v5638
        %v5871 = vsel %vm1845, %v5839, %v5640
        %v5872 = vsel %vm1845, %v5840, %v5642
        %v5873 = vsel %vm1845, %v5841, %v5644
        %v5874 = vsel %vm1845, %v5842, %v5646
        %v5875 = vsel %vm1845, %v5843, %v5648
        %v5876 = vsel %vm1845, %v5844, %v5650
        %v5877 = vsel %vm1845, %v5845, %v5652
        %v5878 = vsel %vm1845, %v5846, %v5654
        %v5879 = vld [vmem:[%s5] sm:$0xff]
        %v5880 = vld [vmem:[%s5 + $0x8] sm:$0xff]
        %v5881 = vld [vmem:[%s5 + $0x10] sm:$0xff]
        %v5882 = vld [vmem:[%s5 + $0x18] sm:$0xff]
        %v5883 = vld [vmem:[%s5 + $0x20] sm:$0xff]
        %v5884 = vld [vmem:[%s5 + $0x28] sm:$0xff]
        %v5885 = vld [vmem:[%s5 + $0x30] sm:$0xff]
        %v5886 = vld [vmem:[%s5 + $0x38] sm:$0xff]
        %v5887 = vld [vmem:[%s5 + $0x40] sm:$0xff]
        %v5888 = vld [vmem:[%s5 + $0x48] sm:$0xff]
        %v5889 = vld [vmem:[%s5 + $0x50] sm:$0xff]
        %v5890 = vld [vmem:[%s5 + $0x58] sm:$0xff]
        %v5891 = vld [vmem:[%s5 + $0x60] sm:$0xff]
        %v5892 = vld [vmem:[%s5 + $0x68] sm:$0xff]
        %v5893 = vld [vmem:[%s5 + $0x70] sm:$0xff]
        %v5894 = vld [vmem:[%s5 + $0x78] sm:$0xff]
        %v5895 = vld [vmem:[%s5 + $0x80] sm:$0xff]
        %v5896 = vld [vmem:[%s5 + $0x88] sm:$0xff]
        %v5897 = vld [vmem:[%s5 + $0x90] sm:$0xff]
        %v5898 = vld [vmem:[%s5 + $0x98] sm:$0xff]
        %v5899 = vld [vmem:[%s5 + $0xa0] sm:$0xff]
        %v5900 = vld [vmem:[%s5 + $0xa8] sm:$0xff]
        %v5901 = vld [vmem:[%s5 + $0xb0] sm:$0xff]
        %v5902 = vld [vmem:[%s5 + $0xb8] sm:$0xff]
        %v5903 = vld [vmem:[%s5 + $0xc0] sm:$0xff]
        %v5904 = vld [vmem:[%s5 + $0xc8] sm:$0xff]
        %v5905 = vld [vmem:[%s5 + $0xd0] sm:$0xff]
        %v5906 = vld [vmem:[%s5 + $0xd8] sm:$0xff]
        %v5907 = vld [vmem:[%s5 + $0xe0] sm:$0xff]
        %v5908 = vld [vmem:[%s5 + $0xe8] sm:$0xff]
        %v5909 = vld [vmem:[%s5 + $0xf0] sm:$0xff]
        %v5910 = vld [vmem:[%s5 + $0xf8] sm:$0xff]
        %v5911 = vld [vmem:[%s5 + $0x100] sm:$0xff]
        %v5912 = vld [vmem:[%s5 + $0x108] sm:$0xff]
        %v5913 = vld [vmem:[%s5 + $0x110] sm:$0xff]
        %v5914 = vld [vmem:[%s5 + $0x118] sm:$0xff]
        %v5915 = vld [vmem:[%s6] sm:$0x1]
        %v5917 = vperm.slane %v5915, 0
        %v5920 = vsel %vm1714, %v4887, 0
        %v5923 = vsel %vm1714, %v4888, 0
        %v5926 = vsel %vm1714, %v4889, 0
        %v5929 = vsel %vm1714, %v4890, 0
        %v5932 = vsel %vm1714, %v4891, 0
        %v5935 = vsel %vm1714, %v4892, 0
        %v5938 = vsel %vm1714, %v4893, 0
        %v5941 = vsel %vm1714, %v4894, 0
        %v5944 = vsel %vm1714, %v4895, 0
        %v5947 = vsel %vm1714, %v4896, 0
        %v5950 = vsel %vm1714, %v4897, 0
        %v5953 = vsel %vm1714, %v4898, 0
        %v5956 = vsel %vm1714, %v4899, 0
        %v5959 = vsel %vm1714, %v4900, 0
        %v5962 = vsel %vm1714, %v4901, 0
        %v5965 = vsel %vm1714, %v4902, 0
        %v5968 = vsel %vm1714, %v4903, 0
        %v5971 = vsel %vm1714, %v4904, 0
        %v5974 = vsel %vm1714, %v4905, 0
        %v5977 = vsel %vm1714, %v4906, 0
        %v5980 = vsel %vm1714, %v4907, 0
        %v5983 = vsel %vm1714, %v4908, 0
        %v5986 = vsel %vm1714, %v4909, 0
        %v5989 = vsel %vm1714, %v4910, 0
        %v5992 = vsel %vm1714, %v4911, 0
        %v5995 = vsel %vm1714, %v4912, 0
        %v5998 = vsel %vm1714, %v4913, 0
        %v6001 = vsel %vm1714, %v4914, 0
        %v6004 = vsel %vm1714, %v4915, 0
        %v6007 = vsel %vm1714, %v4916, 0
        %v6010 = vsel %vm1714, %v4917, 0
        %v6013 = vsel %vm1714, %v4918, 0
        %6015 = vmatpush.msra.mxu0 %v5894
        %6016 = vmatpush.msra.mxu0 %v5893
        %6017 = vmatpush.msra.mxu0 %v5892
        %6018 = vmatpush.msra.mxu0 %v5891
        %6019 = vmatpush.msra.mxu0 %v5890
        %6020 = vmatpush.msra.mxu0 %v5889
        %6021 = vmatpush.msra.mxu0 %v5888
        %6022 = vmatpush.msra.mxu0 %v5887
        %6023 = vmatpush.msra.mxu0 %v5886
        %6024 = vmatpush.msra.mxu0 %v5885
        %6025 = vmatpush.msra.mxu0 %v5884
        %6026 = vmatpush.msra.mxu0 %v5883
        %6027 = vmatpush.msra.mxu0 %v5882
        %6028 = vmatpush.msra.mxu0 %v5881
        %6029 = vmatpush.msra.mxu0 %v5880
        %6030 = vmatpush.msra.mxu0 %v5879
        %6031 = vmatmul.f32.gmra.mxu0 %v5751
        %v6032 = vpop.f32.mrf.mxu0
        %v6033 = vadd.f32 %v5917, %v6032
        %6034 = vmatmul.f32.gmra.mxu0 %v5752
        %v6035 = vpop.f32.mrf.mxu0
        %v6036 = vadd.f32 %v5917, %v6035
        %6037 = vmatmul.f32.gmra.mxu0 %v5753
        %v6038 = vpop.f32.mrf.mxu0
        %v6039 = vadd.f32 %v5917, %v6038
        %6040 = vmatmul.f32.gmra.mxu0 %v5754
        %v6041 = vpop.f32.mrf.mxu0
        %v6042 = vadd.f32 %v5917, %v6041
        %6043 = vmatmul.f32.gmra.mxu0 %v5755
        %v6044 = vpop.f32.mrf.mxu0
        %v6045 = vadd.f32 %v5917, %v6044
        %6046 = vmatmul.f32.gmra.mxu0 %v5756
        %v6047 = vpop.f32.mrf.mxu0
        %v6048 = vadd.f32 %v5917, %v6047
        %6049 = vmatmul.f32.gmra.mxu0 %v5757
        %v6050 = vpop.f32.mrf.mxu0
        %v6051 = vadd.f32 %v5917, %v6050
        %6052 = vmatmul.f32.gmra.mxu0 %v5758
        %v6053 = vpop.f32.mrf.mxu0
        %v6054 = vadd.f32 %v5917, %v6053
        %6055 = vmatmul.f32.gmra.mxu0 %v5759
        %v6056 = vpop.f32.mrf.mxu0
        %v6057 = vadd.f32 %v5917, %v6056
        %6058 = vmatmul.f32.gmra.mxu0 %v5760
        %v6059 = vpop.f32.mrf.mxu0
        %v6060 = vadd.f32 %v5917, %v6059
        %6061 = vmatmul.f32.gmra.mxu0 %v5761
        %v6062 = vpop.f32.mrf.mxu0
        %v6063 = vadd.f32 %v5917, %v6062
        %6064 = vmatmul.f32.gmra.mxu0 %v5762
        %v6065 = vpop.f32.mrf.mxu0
        %v6066 = vadd.f32 %v5917, %v6065
        %6067 = vmatmul.f32.gmra.mxu0 %v5763
        %v6068 = vpop.f32.mrf.mxu0
        %v6069 = vadd.f32 %v5917, %v6068
        %6070 = vmatmul.f32.gmra.mxu0 %v5764
        %v6071 = vpop.f32.mrf.mxu0
        %v6072 = vadd.f32 %v5917, %v6071
        %6073 = vmatmul.f32.gmra.mxu0 %v5765
        %v6074 = vpop.f32.mrf.mxu0
        %v6075 = vadd.f32 %v5917, %v6074
        %6076 = vmatmul.f32.gmra.mxu0 %v5766
        %v6077 = vpop.f32.mrf.mxu0
        %v6078 = vadd.f32 %v5917, %v6077
        %6079 = vmatmul.f32.gmra.mxu0 %v5767
        %v6080 = vpop.f32.mrf.mxu0
        %v6081 = vadd.f32 %v5917, %v6080
        %6082 = vmatmul.f32.gmra.mxu0 %v5768
        %v6083 = vpop.f32.mrf.mxu0
        %v6084 = vadd.f32 %v5917, %v6083
        %6085 = vmatmul.f32.gmra.mxu0 %v5769
        %v6086 = vpop.f32.mrf.mxu0
        %v6087 = vadd.f32 %v5917, %v6086
        %6088 = vmatmul.f32.gmra.mxu0 %v5770
        %v6089 = vpop.f32.mrf.mxu0
        %v6090 = vadd.f32 %v5917, %v6089
        %6091 = vmatmul.f32.gmra.mxu0 %v5771
        %v6092 = vpop.f32.mrf.mxu0
        %v6093 = vadd.f32 %v5917, %v6092
        %6094 = vmatmul.f32.gmra.mxu0 %v5772
        %v6095 = vpop.f32.mrf.mxu0
        %v6096 = vadd.f32 %v5917, %v6095
        %6097 = vmatmul.f32.gmra.mxu0 %v5773
        %v6098 = vpop.f32.mrf.mxu0
        %v6099 = vadd.f32 %v5917, %v6098
        %6100 = vmatmul.f32.gmra.mxu0 %v5774
        %v6101 = vpop.f32.mrf.mxu0
        %v6102 = vadd.f32 %v5917, %v6101
        %6103 = vmatmul.f32.gmra.mxu0 %v5775
        %v6104 = vpop.f32.mrf.mxu0
        %v6105 = vadd.f32 %v5917, %v6104
        %6106 = vmatmul.f32.gmra.mxu0 %v5776
        %v6107 = vpop.f32.mrf.mxu0
        %v6108 = vadd.f32 %v5917, %v6107
        %6109 = vmatmul.f32.gmra.mxu0 %v5777
        %v6110 = vpop.f32.mrf.mxu0
        %v6111 = vadd.f32 %v5917, %v6110
        %6112 = vmatmul.f32.gmra.mxu0 %v5778
        %v6113 = vpop.f32.mrf.mxu0
        %v6114 = vadd.f32 %v5917, %v6113
        %6115 = vmatmul.f32.gmra.mxu0 %v5779
        %v6116 = vpop.f32.mrf.mxu0
        %v6117 = vadd.f32 %v5917, %v6116
        %6118 = vmatmul.f32.gmra.mxu0 %v5780
        %v6119 = vpop.f32.mrf.mxu0
        %v6120 = vadd.f32 %v5917, %v6119
        %6121 = vmatmul.f32.gmra.mxu0 %v5781
        %v6122 = vpop.f32.mrf.mxu0
        %v6123 = vadd.f32 %v5917, %v6122
        %6124 = vmatmul.f32.gmra.mxu0 %v5782
        %v6125 = vpop.f32.mrf.mxu0
        %v6126 = vadd.f32 %v5917, %v6125
        %6127 = vdwg.mxu0
        %6128 = vmatpush.msra.mxu0 %v5910
        %6129 = vmatpush.msra.mxu0 %v5909
        %6130 = vmatpush.msra.mxu0 %v5908
        %6131 = vmatpush.msra.mxu0 %v5907
        %6132 = vmatpush.msra.mxu0 %v5906
        %6133 = vmatpush.msra.mxu0 %v5905
        %6134 = vmatpush.msra.mxu0 %v5904
        %6135 = vmatpush.msra.mxu0 %v5903
        %6136 = vmatpush.msra.mxu0 %v5902
        %6137 = vmatpush.msra.mxu0 %v5901
        %6138 = vmatpush.msra.mxu0 %v5900
        %6139 = vmatpush.msra.mxu0 %v5899
        %6140 = vmatpush.msra.mxu0 %v5898
        %6141 = vmatpush.msra.mxu0 %v5897
        %6142 = vmatpush.msra.mxu0 %v5896
        %6143 = vmatpush.msra.mxu0 %v5895
        %6144 = vmatmul.f32.gmra.mxu0 %v5847
        %v6145 = vpop.f32.mrf.mxu0
        %v6146 = vadd.f32 %v6033, %v6145
        %6147 = vmatmul.f32.gmra.mxu0 %v5848
        %v6148 = vpop.f32.mrf.mxu0
        %v6149 = vadd.f32 %v6036, %v6148
        %6150 = vmatmul.f32.gmra.mxu0 %v5849
        %v6151 = vpop.f32.mrf.mxu0
        %v6152 = vadd.f32 %v6039, %v6151
        %6153 = vmatmul.f32.gmra.mxu0 %v5850
        %v6154 = vpop.f32.mrf.mxu0
        %v6155 = vadd.f32 %v6042, %v6154
        %6156 = vmatmul.f32.gmra.mxu0 %v5851
        %v6157 = vpop.f32.mrf.mxu0
        %v6158 = vadd.f32 %v6045, %v6157
        %6159 = vmatmul.f32.gmra.mxu0 %v5852
        %v6160 = vpop.f32.mrf.mxu0
        %v6161 = vadd.f32 %v6048, %v6160
        %6162 = vmatmul.f32.gmra.mxu0 %v5853
        %v6163 = vpop.f32.mrf.mxu0
        %v6164 = vadd.f32 %v6051, %v6163
        %6165 = vmatmul.f32.gmra.mxu0 %v5854
        %v6166 = vpop.f32.mrf.mxu0
        %v6167 = vadd.f32 %v6054, %v6166
        %6168 = vmatmul.f32.gmra.mxu0 %v5855
        %v6169 = vpop.f32.mrf.mxu0
        %v6170 = vadd.f32 %v6057, %v6169
        %6171 = vmatmul.f32.gmra.mxu0 %v5856
        %v6172 = vpop.f32.mrf.mxu0
        %v6173 = vadd.f32 %v6060, %v6172
        %6174 = vmatmul.f32.gmra.mxu0 %v5857
        %v6175 = vpop.f32.mrf.mxu0
        %v6176 = vadd.f32 %v6063, %v6175
        %6177 = vmatmul.f32.gmra.mxu0 %v5858
        %v6178 = vpop.f32.mrf.mxu0
        %v6179 = vadd.f32 %v6066, %v6178
        %6180 = vmatmul.f32.gmra.mxu0 %v5859
        %v6181 = vpop.f32.mrf.mxu0
        %v6182 = vadd.f32 %v6069, %v6181
        %6183 = vmatmul.f32.gmra.mxu0 %v5860
        %v6184 = vpop.f32.mrf.mxu0
        %v6185 = vadd.f32 %v6072, %v6184
        %6186 = vmatmul.f32.gmra.mxu0 %v5861
        %v6187 = vpop.f32.mrf.mxu0
        %v6188 = vadd.f32 %v6075, %v6187
        %6189 = vmatmul.f32.gmra.mxu0 %v5862
        %v6190 = vpop.f32.mrf.mxu0
        %v6191 = vadd.f32 %v6078, %v6190
        %6192 = vmatmul.f32.gmra.mxu0 %v5863
        %v6193 = vpop.f32.mrf.mxu0
        %v6194 = vadd.f32 %v6081, %v6193
        %6195 = vmatmul.f32.gmra.mxu0 %v5864
        %v6196 = vpop.f32.mrf.mxu0
        %v6197 = vadd.f32 %v6084, %v6196
        %6198 = vmatmul.f32.gmra.mxu0 %v5865
        %v6199 = vpop.f32.mrf.mxu0
        %v6200 = vadd.f32 %v6087, %v6199
        %6201 = vmatmul.f32.gmra.mxu0 %v5866
        %v6202 = vpop.f32.mrf.mxu0
        %v6203 = vadd.f32 %v6090, %v6202
        %6204 = vmatmul.f32.gmra.mxu0 %v5867
        %v6205 = vpop.f32.mrf.mxu0
        %v6206 = vadd.f32 %v6093, %v6205
        %6207 = vmatmul.f32.gmra.mxu0 %v5868
        %v6208 = vpop.f32.mrf.mxu0
        %v6209 = vadd.f32 %v6096, %v6208
        %6210 = vmatmul.f32.gmra.mxu0 %v5869
        %v6211 = vpop.f32.mrf.mxu0
        %v6212 = vadd.f32 %v6099, %v6211
        %6213 = vmatmul.f32.gmra.mxu0 %v5870
        %v6214 = vpop.f32.mrf.mxu0
        %v6215 = vadd.f32 %v6102, %v6214
        %6216 = vmatmul.f32.gmra.mxu0 %v5871
        %v6217 = vpop.f32.mrf.mxu0
        %v6218 = vadd.f32 %v6105, %v6217
        %6219 = vmatmul.f32.gmra.mxu0 %v5872
        %v6220 = vpop.f32.mrf.mxu0
        %v6221 = vadd.f32 %v6108, %v6220
        %6222 = vmatmul.f32.gmra.mxu0 %v5873
        %v6223 = vpop.f32.mrf.mxu0
        %v6224 = vadd.f32 %v6111, %v6223
        %6225 = vmatmul.f32.gmra.mxu0 %v5874
        %v6226 = vpop.f32.mrf.mxu0
        %v6227 = vadd.f32 %v6114, %v6226
        %6228 = vmatmul.f32.gmra.mxu0 %v5875
        %v6229 = vpop.f32.mrf.mxu0
        %v6230 = vadd.f32 %v6117, %v6229
        %6231 = vmatmul.f32.gmra.mxu0 %v5876
        %v6232 = vpop.f32.mrf.mxu0
        %v6233 = vadd.f32 %v6120, %v6232
        %6234 = vmatmul.f32.gmra.mxu0 %v5877
        %v6235 = vpop.f32.mrf.mxu0
        %v6236 = vadd.f32 %v6123, %v6235
        %6237 = vmatmul.f32.gmra.mxu0 %v5878
        %v6238 = vpop.f32.mrf.mxu0
        %v6239 = vadd.f32 %v6126, %v6238
        %6240 = vdwg.mxu0
        %6241 = vmatpush.msra.mxu0 0.0
        %6242 = vmatpush.msra.mxu0 0.0
        %6243 = vmatpush.msra.mxu0 0.0
        %6244 = vmatpush.msra.mxu0 0.0
        %6245 = vmatpush.msra.mxu0 0.0
        %6246 = vmatpush.msra.mxu0 0.0
        %6247 = vmatpush.msra.mxu0 0.0
        %6248 = vmatpush.msra.mxu0 0.0
        %6249 = vmatpush.msra.mxu0 0.0
        %6250 = vmatpush.msra.mxu0 0.0
        %6251 = vmatpush.msra.mxu0 0.0
        %6252 = vmatpush.msra.mxu0 0.0
        %6253 = vmatpush.msra.mxu0 %v5914
        %6254 = vmatpush.msra.mxu0 %v5913
        %6255 = vmatpush.msra.mxu0 %v5912
        %6256 = vmatpush.msra.mxu0 %v5911
        %6257 = vmatmul.f32.gmra.mxu0 %v5920
        %v6258 = vpop.f32.mrf.mxu0
        %v6259 = vadd.f32 %v6146, %v6258
        %6260 = vmatmul.f32.gmra.mxu0 %v5923
        %v6261 = vpop.f32.mrf.mxu0
        %v6262 = vadd.f32 %v6149, %v6261
        %6263 = vmatmul.f32.gmra.mxu0 %v5926
        %v6264 = vpop.f32.mrf.mxu0
        %v6265 = vadd.f32 %v6152, %v6264
        %6266 = vmatmul.f32.gmra.mxu0 %v5929
        %v6267 = vpop.f32.mrf.mxu0
        %v6268 = vadd.f32 %v6155, %v6267
        %6269 = vmatmul.f32.gmra.mxu0 %v5932
        %v6270 = vpop.f32.mrf.mxu0
        %v6271 = vadd.f32 %v6158, %v6270
        %6272 = vmatmul.f32.gmra.mxu0 %v5935
        %v6273 = vpop.f32.mrf.mxu0
        %v6274 = vadd.f32 %v6161, %v6273
        %6275 = vmatmul.f32.gmra.mxu0 %v5938
        %v6276 = vpop.f32.mrf.mxu0
        %v6277 = vadd.f32 %v6164, %v6276
        %6278 = vmatmul.f32.gmra.mxu0 %v5941
        %v6279 = vpop.f32.mrf.mxu0
        %v6280 = vadd.f32 %v6167, %v6279
        %6281 = vmatmul.f32.gmra.mxu0 %v5944
        %v6282 = vpop.f32.mrf.mxu0
        %v6283 = vadd.f32 %v6170, %v6282
        %6284 = vmatmul.f32.gmra.mxu0 %v5947
        %v6285 = vpop.f32.mrf.mxu0
        %v6286 = vadd.f32 %v6173, %v6285
        %6287 = vmatmul.f32.gmra.mxu0 %v5950
        %v6288 = vpop.f32.mrf.mxu0
        %v6289 = vadd.f32 %v6176, %v6288
        %6290 = vmatmul.f32.gmra.mxu0 %v5953
        %v6291 = vpop.f32.mrf.mxu0
        %v6292 = vadd.f32 %v6179, %v6291
        %6293 = vmatmul.f32.gmra.mxu0 %v5956
        %v6294 = vpop.f32.mrf.mxu0
        %v6295 = vadd.f32 %v6182, %v6294
        %6296 = vmatmul.f32.gmra.mxu0 %v5959
        %v6297 = vpop.f32.mrf.mxu0
        %v6298 = vadd.f32 %v6185, %v6297
        %6299 = vmatmul.f32.gmra.mxu0 %v5962
        %v6300 = vpop.f32.mrf.mxu0
        %v6301 = vadd.f32 %v6188, %v6300
        %6302 = vmatmul.f32.gmra.mxu0 %v5965
        %v6303 = vpop.f32.mrf.mxu0
        %v6304 = vadd.f32 %v6191, %v6303
        %6305 = vmatmul.f32.gmra.mxu0 %v5968
        %v6306 = vpop.f32.mrf.mxu0
        %v6307 = vadd.f32 %v6194, %v6306
        %6308 = vmatmul.f32.gmra.mxu0 %v5971
        %v6309 = vpop.f32.mrf.mxu0
        %v6310 = vadd.f32 %v6197, %v6309
        %6311 = vmatmul.f32.gmra.mxu0 %v5974
        %v6312 = vpop.f32.mrf.mxu0
        %v6313 = vadd.f32 %v6200, %v6312
        %6314 = vmatmul.f32.gmra.mxu0 %v5977
        %v6315 = vpop.f32.mrf.mxu0
        %v6316 = vadd.f32 %v6203, %v6315
        %6317 = vmatmul.f32.gmra.mxu0 %v5980
        %v6318 = vpop.f32.mrf.mxu0
        %v6319 = vadd.f32 %v6206, %v6318
        %6320 = vmatmul.f32.gmra.mxu0 %v5983
        %v6321 = vpop.f32.mrf.mxu0
        %v6322 = vadd.f32 %v6209, %v6321
        %6323 = vmatmul.f32.gmra.mxu0 %v5986
        %v6324 = vpop.f32.mrf.mxu0
        %v6325 = vadd.f32 %v6212, %v6324
        %6326 = vmatmul.f32.gmra.mxu0 %v5989
        %v6327 = vpop.f32.mrf.mxu0
        %v6328 = vadd.f32 %v6215, %v6327
        %6329 = vmatmul.f32.gmra.mxu0 %v5992
        %v6330 = vpop.f32.mrf.mxu0
        %v6331 = vadd.f32 %v6218, %v6330
        %6332 = vmatmul.f32.gmra.mxu0 %v5995
        %v6333 = vpop.f32.mrf.mxu0
        %v6334 = vadd.f32 %v6221, %v6333
        %6335 = vmatmul.f32.gmra.mxu0 %v5998
        %v6336 = vpop.f32.mrf.mxu0
        %v6337 = vadd.f32 %v6224, %v6336
        %6338 = vmatmul.f32.gmra.mxu0 %v6001
        %v6339 = vpop.f32.mrf.mxu0
        %v6340 = vadd.f32 %v6227, %v6339
        %6341 = vmatmul.f32.gmra.mxu0 %v6004
        %v6342 = vpop.f32.mrf.mxu0
        %v6343 = vadd.f32 %v6230, %v6342
        %6344 = vmatmul.f32.gmra.mxu0 %v6007
        %v6345 = vpop.f32.mrf.mxu0
        %v6346 = vadd.f32 %v6233, %v6345
        %6347 = vmatmul.f32.gmra.mxu0 %v6010
        %v6348 = vpop.f32.mrf.mxu0
        %v6349 = vadd.f32 %v6236, %v6348
        %6350 = vmatmul.f32.gmra.mxu0 %v6013
        %v6351 = vpop.f32.mrf.mxu0
        %v6352 = vadd.f32 %v6239, %v6351
        %6353 = vdwg.mxu0
        %v6354 = vmul.f32 %v6259, 0.2
        %v6355 = vmul.f32 %v6262, 0.2
        %v6356 = vmul.f32 %v6265, 0.2
        %v6357 = vmul.f32 %v6268, 0.2
        %v6358 = vmul.f32 %v6271, 0.2
        %v6359 = vmul.f32 %v6274, 0.2
        %v6360 = vmul.f32 %v6277, 0.2
        %v6361 = vmul.f32 %v6280, 0.2
        %v6362 = vmul.f32 %v6283, 0.2
        %v6363 = vmul.f32 %v6286, 0.2
        %v6364 = vmul.f32 %v6289, 0.2
        %v6365 = vmul.f32 %v6292, 0.2
        %v6366 = vmul.f32 %v6295, 0.2
        %v6367 = vmul.f32 %v6298, 0.2
        %v6368 = vmul.f32 %v6301, 0.2
        %v6369 = vmul.f32 %v6304, 0.2
        %v6370 = vmul.f32 %v6307, 0.2
        %v6371 = vmul.f32 %v6310, 0.2
        %v6372 = vmul.f32 %v6313, 0.2
        %v6373 = vmul.f32 %v6316, 0.2
        %v6374 = vmul.f32 %v6319, 0.2
        %v6375 = vmul.f32 %v6322, 0.2
        %v6376 = vmul.f32 %v6325, 0.2
        %v6377 = vmul.f32 %v6328, 0.2
        %v6378 = vmul.f32 %v6331, 0.2
        %v6379 = vmul.f32 %v6334, 0.2
        %v6380 = vmul.f32 %v6337, 0.2
        %v6381 = vmul.f32 %v6340, 0.2
        %v6382 = vmul.f32 %v6343, 0.2
        %v6383 = vmul.f32 %v6346, 0.2
        %v6384 = vmul.f32 %v6349, 0.2
        %v6385 = vmul.f32 %v6352, 0.2
        %v6386 = vmax.f32 %v6259, %v6354
        %v6387 = vmax.f32 %v6262, %v6355
        %v6388 = vmax.f32 %v6265, %v6356
        %v6389 = vmax.f32 %v6268, %v6357
        %v6390 = vmax.f32 %v6271, %v6358
        %v6391 = vmax.f32 %v6274, %v6359
        %v6392 = vmax.f32 %v6277, %v6360
        %v6393 = vmax.f32 %v6280, %v6361
        %v6394 = vmax.f32 %v6283, %v6362
        %v6395 = vmax.f32 %v6286, %v6363
        %v6396 = vmax.f32 %v6289, %v6364
        %v6397 = vmax.f32 %v6292, %v6365
        %v6398 = vmax.f32 %v6295, %v6366
        %v6399 = vmax.f32 %v6298, %v6367
        %v6400 = vmax.f32 %v6301, %v6368
        %v6401 = vmax.f32 %v6304, %v6369
        %v6402 = vmax.f32 %v6307, %v6370
        %v6403 = vmax.f32 %v6310, %v6371
        %v6404 = vmax.f32 %v6313, %v6372
        %v6405 = vmax.f32 %v6316, %v6373
        %v6406 = vmax.f32 %v6319, %v6374
        %v6407 = vmax.f32 %v6322, %v6375
        %v6408 = vmax.f32 %v6325, %v6376
        %v6409 = vmax.f32 %v6328, %v6377
        %v6410 = vmax.f32 %v6331, %v6378
        %v6411 = vmax.f32 %v6334, %v6379
        %v6412 = vmax.f32 %v6337, %v6380
        %v6413 = vmax.f32 %v6340, %v6381
        %v6414 = vmax.f32 %v6343, %v6382
        %v6415 = vmax.f32 %v6346, %v6383
        %v6416 = vmax.f32 %v6349, %v6384
        %v6417 = vmax.f32 %v6352, %v6385
        %6450 = vrot.lane.b32.xlu0 %v6386, 32
        %v6451 = vpop.permute.xlu0 %6450
        %6452 = vrot.lane.b32.xlu0 %v6387, 32
        %v6453 = vpop.permute.xlu0 %6452
        %6454 = vrot.lane.b32.xlu0 %v6388, 32
        %v6455 = vpop.permute.xlu0 %6454
        %6456 = vrot.lane.b32.xlu0 %v6389, 32
        %v6457 = vpop.permute.xlu0 %6456
        %6458 = vrot.lane.b32.xlu0 %v6390, 32
        %v6459 = vpop.permute.xlu0 %6458
        %6460 = vrot.lane.b32.xlu0 %v6391, 32
        %v6461 = vpop.permute.xlu0 %6460
        %6462 = vrot.lane.b32.xlu0 %v6392, 32
        %v6463 = vpop.permute.xlu0 %6462
        %6464 = vrot.lane.b32.xlu0 %v6393, 32
        %v6465 = vpop.permute.xlu0 %6464
        %6466 = vrot.lane.b32.xlu0 %v6394, 32
        %v6467 = vpop.permute.xlu0 %6466
        %6468 = vrot.lane.b32.xlu0 %v6395, 32
        %v6469 = vpop.permute.xlu0 %6468
        %6470 = vrot.lane.b32.xlu0 %v6396, 32
        %v6471 = vpop.permute.xlu0 %6470
        %6472 = vrot.lane.b32.xlu0 %v6397, 32
        %v6473 = vpop.permute.xlu0 %6472
        %6474 = vrot.lane.b32.xlu0 %v6398, 32
        %v6475 = vpop.permute.xlu0 %6474
        %6476 = vrot.lane.b32.xlu0 %v6399, 32
        %v6477 = vpop.permute.xlu0 %6476
        %6478 = vrot.lane.b32.xlu0 %v6400, 32
        %v6479 = vpop.permute.xlu0 %6478
        %6480 = vrot.lane.b32.xlu0 %v6401, 32
        %v6481 = vpop.permute.xlu0 %6480
        %6482 = vrot.lane.b32.xlu0 %v6402, 32
        %v6483 = vpop.permute.xlu0 %6482
        %6484 = vrot.lane.b32.xlu0 %v6403, 32
        %v6485 = vpop.permute.xlu0 %6484
        %6486 = vrot.lane.b32.xlu0 %v6404, 32
        %v6487 = vpop.permute.xlu0 %6486
        %6488 = vrot.lane.b32.xlu0 %v6405, 32
        %v6489 = vpop.permute.xlu0 %6488
        %6490 = vrot.lane.b32.xlu0 %v6406, 32
        %v6491 = vpop.permute.xlu0 %6490
        %6492 = vrot.lane.b32.xlu0 %v6407, 32
        %v6493 = vpop.permute.xlu0 %6492
        %6494 = vrot.lane.b32.xlu0 %v6408, 32
        %v6495 = vpop.permute.xlu0 %6494
        %6496 = vrot.lane.b32.xlu0 %v6409, 32
        %v6497 = vpop.permute.xlu0 %6496
        %6498 = vrot.lane.b32.xlu0 %v6410, 32
        %v6499 = vpop.permute.xlu0 %6498
        %6500 = vrot.lane.b32.xlu0 %v6411, 32
        %v6501 = vpop.permute.xlu0 %6500
        %6502 = vrot.lane.b32.xlu0 %v6412, 32
        %v6503 = vpop.permute.xlu0 %6502
        %6504 = vrot.lane.b32.xlu0 %v6413, 32
        %v6505 = vpop.permute.xlu0 %6504
        %6506 = vrot.lane.b32.xlu0 %v6414, 32
        %v6507 = vpop.permute.xlu0 %6506
        %6508 = vrot.lane.b32.xlu0 %v6415, 32
        %v6509 = vpop.permute.xlu0 %6508
        %6510 = vrot.lane.b32.xlu0 %v6416, 32
        %v6511 = vpop.permute.xlu0 %6510
        %6512 = vrot.lane.b32.xlu0 %v6417, 32
        %v6513 = vpop.permute.xlu0 %6512
        %vm6546 = vcmask 326912
        %6547 = vst.msk [vmem:[%s463 + $0x1] sm:$0xff] %vm6546, %v6451
        %6548 = vst.msk [vmem:[%s463 + $0x9] sm:$0xff] %vm6546, %v6453
        %6549 = vst.msk [vmem:[%s463 + $0x19] sm:$0xff] %vm6546, %v6455
        %6550 = vst.msk [vmem:[%s463 + $0x21] sm:$0xff] %vm6546, %v6457
        %6551 = vst.msk [vmem:[%s463 + $0x31] sm:$0xff] %vm6546, %v6459
        %6552 = vst.msk [vmem:[%s463 + $0x39] sm:$0xff] %vm6546, %v6461
        %6553 = vst.msk [vmem:[%s463 + $0x49] sm:$0xff] %vm6546, %v6463
        %6554 = vst.msk [vmem:[%s463 + $0x51] sm:$0xff] %vm6546, %v6465
        %6555 = vst.msk [vmem:[%s463 + $0x61] sm:$0xff] %vm6546, %v6467
        %6556 = vst.msk [vmem:[%s463 + $0x69] sm:$0xff] %vm6546, %v6469
        %6557 = vst.msk [vmem:[%s463 + $0x79] sm:$0xff] %vm6546, %v6471
        %6558 = vst.msk [vmem:[%s463 + $0x81] sm:$0xff] %vm6546, %v6473
        %6559 = vst.msk [vmem:[%s463 + $0x91] sm:$0xff] %vm6546, %v6475
        %6560 = vst.msk [vmem:[%s463 + $0x99] sm:$0xff] %vm6546, %v6477
        %6561 = vst.msk [vmem:[%s463 + $0xa9] sm:$0xff] %vm6546, %v6479
        %6562 = vst.msk [vmem:[%s463 + $0xb1] sm:$0xff] %vm6546, %v6481
        %6563 = vst.msk [vmem:[%s463 + $0xc1] sm:$0xff] %vm6546, %v6483
        %6564 = vst.msk [vmem:[%s463 + $0xc9] sm:$0xff] %vm6546, %v6485
        %6565 = vst.msk [vmem:[%s463 + $0xd9] sm:$0xff] %vm6546, %v6487
        %6566 = vst.msk [vmem:[%s463 + $0xe1] sm:$0xff] %vm6546, %v6489
        %6567 = vst.msk [vmem:[%s463 + $0xf1] sm:$0xff] %vm6546, %v6491
        %6568 = vst.msk [vmem:[%s463 + $0xf9] sm:$0xff] %vm6546, %v6493
        %6569 = vst.msk [vmem:[%s463 + $0x109] sm:$0xff] %vm6546, %v6495
        %6570 = vst.msk [vmem:[%s463 + $0x111] sm:$0xff] %vm6546, %v6497
        %6571 = vst.msk [vmem:[%s463 + $0x121] sm:$0xff] %vm6546, %v6499
        %6572 = vst.msk [vmem:[%s463 + $0x129] sm:$0xff] %vm6546, %v6501
        %6573 = vst.msk [vmem:[%s463 + $0x139] sm:$0xff] %vm6546, %v6503
        %6574 = vst.msk [vmem:[%s463 + $0x141] sm:$0xff] %vm6546, %v6505
        %6575 = vst.msk [vmem:[%s463 + $0x151] sm:$0xff] %vm6546, %v6507
        %6576 = vst.msk [vmem:[%s463 + $0x159] sm:$0xff] %vm6546, %v6509
        %6577 = vst.msk [vmem:[%s463 + $0x169] sm:$0xff] %vm6546, %v6511
        %6578 = vst.msk [vmem:[%s463 + $0x171] sm:$0xff] %vm6546, %v6513
        %v6579 = vld [vmem:[#allocation2] sm:$0xff]
        %v6580 = vld [vmem:[#allocation2 + $0x8] sm:$0xff]
        %v6581 = vld [vmem:[#allocation2 + $0x18] sm:$0xff]
        %v6582 = vld [vmem:[#allocation2 + $0x20] sm:$0xff]
        %v6583 = vld [vmem:[#allocation2 + $0x30] sm:$0xff]
        %v6584 = vld [vmem:[#allocation2 + $0x38] sm:$0xff]
        %v6585 = vld [vmem:[#allocation2 + $0x48] sm:$0xff]
        %v6586 = vld [vmem:[#allocation2 + $0x50] sm:$0xff]
        %v6587 = vld [vmem:[#allocation2 + $0x60] sm:$0xff]
        %v6588 = vld [vmem:[#allocation2 + $0x68] sm:$0xff]
        %v6589 = vld [vmem:[#allocation2 + $0x78] sm:$0xff]
        %v6590 = vld [vmem:[#allocation2 + $0x80] sm:$0xff]
        %v6591 = vld [vmem:[#allocation2 + $0x90] sm:$0xff]
        %v6592 = vld [vmem:[#allocation2 + $0x98] sm:$0xff]
        %v6593 = vld [vmem:[#allocation2 + $0xa8] sm:$0xff]
        %v6594 = vld [vmem:[#allocation2 + $0xb0] sm:$0xff]
        %v6595 = vld [vmem:[#allocation2 + $0xc0] sm:$0xff]
        %v6596 = vld [vmem:[#allocation2 + $0xc8] sm:$0xff]
        %v6597 = vld [vmem:[#allocation2 + $0xd8] sm:$0xff]
        %v6598 = vld [vmem:[#allocation2 + $0xe0] sm:$0xff]
        %v6599 = vld [vmem:[#allocation2 + $0xf0] sm:$0xff]
        %v6600 = vld [vmem:[#allocation2 + $0xf8] sm:$0xff]
        %v6601 = vld [vmem:[#allocation2 + $0x108] sm:$0xff]
        %v6602 = vld [vmem:[#allocation2 + $0x110] sm:$0xff]
        %v6603 = vld [vmem:[#allocation2 + $0x120] sm:$0xff]
        %v6604 = vld [vmem:[#allocation2 + $0x128] sm:$0xff]
        %v6605 = vld [vmem:[#allocation2 + $0x138] sm:$0xff]
        %v6606 = vld [vmem:[#allocation2 + $0x140] sm:$0xff]
        %v6607 = vld [vmem:[#allocation2 + $0x150] sm:$0xff]
        %v6608 = vld [vmem:[#allocation2 + $0x158] sm:$0xff]
        %v6609 = vld [vmem:[#allocation2 + $0x168] sm:$0xff]
        %v6610 = vld [vmem:[#allocation2 + $0x170] sm:$0xff]
        %v6611 = vld [vmem:[#allocation2 + $0x1] sm:$0xff]
        %v6612 = vld [vmem:[#allocation2 + $0x9] sm:$0xff]
        %v6613 = vld [vmem:[#allocation2 + $0x19] sm:$0xff]
        %v6614 = vld [vmem:[#allocation2 + $0x21] sm:$0xff]
        %v6615 = vld [vmem:[#allocation2 + $0x31] sm:$0xff]
        %v6616 = vld [vmem:[#allocation2 + $0x39] sm:$0xff]
        %v6617 = vld [vmem:[#allocation2 + $0x49] sm:$0xff]
        %v6618 = vld [vmem:[#allocation2 + $0x51] sm:$0xff]
        %v6619 = vld [vmem:[#allocation2 + $0x61] sm:$0xff]
        %v6620 = vld [vmem:[#allocation2 + $0x69] sm:$0xff]
        %v6621 = vld [vmem:[#allocation2 + $0x79] sm:$0xff]
        %v6622 = vld [vmem:[#allocation2 + $0x81] sm:$0xff]
        %v6623 = vld [vmem:[#allocation2 + $0x91] sm:$0xff]
        %v6624 = vld [vmem:[#allocation2 + $0x99] sm:$0xff]
        %v6625 = vld [vmem:[#allocation2 + $0xa9] sm:$0xff]
        %v6626 = vld [vmem:[#allocation2 + $0xb1] sm:$0xff]
        %v6627 = vld [vmem:[#allocation2 + $0xc1] sm:$0xff]
        %v6628 = vld [vmem:[#allocation2 + $0xc9] sm:$0xff]
        %v6629 = vld [vmem:[#allocation2 + $0xd9] sm:$0xff]
        %v6630 = vld [vmem:[#allocation2 + $0xe1] sm:$0xff]
        %v6631 = vld [vmem:[#allocation2 + $0xf1] sm:$0xff]
        %v6632 = vld [vmem:[#allocation2 + $0xf9] sm:$0xff]
        %v6633 = vld [vmem:[#allocation2 + $0x109] sm:$0xff]
        %v6634 = vld [vmem:[#allocation2 + $0x111] sm:$0xff]
        %v6635 = vld [vmem:[#allocation2 + $0x121] sm:$0xff]
        %v6636 = vld [vmem:[#allocation2 + $0x129] sm:$0xff]
        %v6637 = vld [vmem:[#allocation2 + $0x139] sm:$0xff]
        %v6638 = vld [vmem:[#allocation2 + $0x141] sm:$0xff]
        %v6639 = vld [vmem:[#allocation2 + $0x151] sm:$0xff]
        %v6640 = vld [vmem:[#allocation2 + $0x159] sm:$0xff]
        %v6641 = vld [vmem:[#allocation2 + $0x169] sm:$0xff]
        %v6642 = vld [vmem:[#allocation2 + $0x171] sm:$0xff]
        %v6643 = vld [vmem:[#allocation2 + $0x2] sm:$0xff]
        %v6644 = vld [vmem:[#allocation2 + $0xa] sm:$0xff]
        %v6645 = vld [vmem:[#allocation2 + $0x1a] sm:$0xff]
        %v6646 = vld [vmem:[#allocation2 + $0x22] sm:$0xff]
        %v6647 = vld [vmem:[#allocation2 + $0x32] sm:$0xff]
        %v6648 = vld [vmem:[#allocation2 + $0x3a] sm:$0xff]
        %v6649 = vld [vmem:[#allocation2 + $0x4a] sm:$0xff]
        %v6650 = vld [vmem:[#allocation2 + $0x52] sm:$0xff]
        %v6651 = vld [vmem:[#allocation2 + $0x62] sm:$0xff]
        %v6652 = vld [vmem:[#allocation2 + $0x6a] sm:$0xff]
        %v6653 = vld [vmem:[#allocation2 + $0x7a] sm:$0xff]
        %v6654 = vld [vmem:[#allocation2 + $0x82] sm:$0xff]
        %v6655 = vld [vmem:[#allocation2 + $0x92] sm:$0xff]
        %v6656 = vld [vmem:[#allocation2 + $0x9a] sm:$0xff]
        %v6657 = vld [vmem:[#allocation2 + $0xaa] sm:$0xff]
        %v6658 = vld [vmem:[#allocation2 + $0xb2] sm:$0xff]
        %v6659 = vld [vmem:[#allocation2 + $0xc2] sm:$0xff]
        %v6660 = vld [vmem:[#allocation2 + $0xca] sm:$0xff]
        %v6661 = vld [vmem:[#allocation2 + $0xda] sm:$0xff]
        %v6662 = vld [vmem:[#allocation2 + $0xe2] sm:$0xff]
        %v6663 = vld [vmem:[#allocation2 + $0xf2] sm:$0xff]
        %v6664 = vld [vmem:[#allocation2 + $0xfa] sm:$0xff]
        %v6665 = vld [vmem:[#allocation2 + $0x10a] sm:$0xff]
        %v6666 = vld [vmem:[#allocation2 + $0x112] sm:$0xff]
        %v6667 = vld [vmem:[#allocation2 + $0x122] sm:$0xff]
        %v6668 = vld [vmem:[#allocation2 + $0x12a] sm:$0xff]
        %v6669 = vld [vmem:[#allocation2 + $0x13a] sm:$0xff]
        %v6670 = vld [vmem:[#allocation2 + $0x142] sm:$0xff]
        %v6671 = vld [vmem:[#allocation2 + $0x152] sm:$0xff]
        %v6672 = vld [vmem:[#allocation2 + $0x15a] sm:$0xff]
        %v6673 = vld [vmem:[#allocation2 + $0x16a] sm:$0xff]
        %v6674 = vld [vmem:[#allocation2 + $0x172] sm:$0xff]
        %v6675 = vld [vmem:[%s463] sm:$0xff]
        %v6676 = vld [vmem:[%s463 + $0x8] sm:$0xff]
        %v6677 = vld [vmem:[%s463 + $0x18] sm:$0xff]
        %v6678 = vld [vmem:[%s463 + $0x20] sm:$0xff]
        %v6679 = vld [vmem:[%s463 + $0x30] sm:$0xff]
        %v6680 = vld [vmem:[%s463 + $0x38] sm:$0xff]
        %v6681 = vld [vmem:[%s463 + $0x48] sm:$0xff]
        %v6682 = vld [vmem:[%s463 + $0x50] sm:$0xff]
        %v6683 = vld [vmem:[%s463 + $0x60] sm:$0xff]
        %v6684 = vld [vmem:[%s463 + $0x68] sm:$0xff]
        %v6685 = vld [vmem:[%s463 + $0x78] sm:$0xff]
        %v6686 = vld [vmem:[%s463 + $0x80] sm:$0xff]
        %v6687 = vld [vmem:[%s463 + $0x90] sm:$0xff]
        %v6688 = vld [vmem:[%s463 + $0x98] sm:$0xff]
        %v6689 = vld [vmem:[%s463 + $0xa8] sm:$0xff]
        %v6690 = vld [vmem:[%s463 + $0xb0] sm:$0xff]
        %v6691 = vld [vmem:[%s463 + $0xc0] sm:$0xff]
        %v6692 = vld [vmem:[%s463 + $0xc8] sm:$0xff]
        %v6693 = vld [vmem:[%s463 + $0xd8] sm:$0xff]
        %v6694 = vld [vmem:[%s463 + $0xe0] sm:$0xff]
        %v6695 = vld [vmem:[%s463 + $0xf0] sm:$0xff]
        %v6696 = vld [vmem:[%s463 + $0xf8] sm:$0xff]
        %v6697 = vld [vmem:[%s463 + $0x108] sm:$0xff]
        %v6698 = vld [vmem:[%s463 + $0x110] sm:$0xff]
        %v6699 = vld [vmem:[%s463 + $0x120] sm:$0xff]
        %v6700 = vld [vmem:[%s463 + $0x128] sm:$0xff]
        %v6701 = vld [vmem:[%s463 + $0x138] sm:$0xff]
        %v6702 = vld [vmem:[%s463 + $0x140] sm:$0xff]
        %v6703 = vld [vmem:[%s463 + $0x150] sm:$0xff]
        %v6704 = vld [vmem:[%s463 + $0x158] sm:$0xff]
        %v6705 = vld [vmem:[%s463 + $0x168] sm:$0xff]
        %v6706 = vld [vmem:[%s463 + $0x170] sm:$0xff]
        %v6707 = vld [vmem:[%s463 + $0x1] sm:$0xff]
        %v6708 = vld [vmem:[%s463 + $0x9] sm:$0xff]
        %v6709 = vld [vmem:[%s463 + $0x19] sm:$0xff]
        %v6710 = vld [vmem:[%s463 + $0x21] sm:$0xff]
        %v6711 = vld [vmem:[%s463 + $0x31] sm:$0xff]
        %v6712 = vld [vmem:[%s463 + $0x39] sm:$0xff]
        %v6713 = vld [vmem:[%s463 + $0x49] sm:$0xff]
        %v6714 = vld [vmem:[%s463 + $0x51] sm:$0xff]
        %v6715 = vld [vmem:[%s463 + $0x61] sm:$0xff]
        %v6716 = vld [vmem:[%s463 + $0x69] sm:$0xff]
        %v6717 = vld [vmem:[%s463 + $0x79] sm:$0xff]
        %v6718 = vld [vmem:[%s463 + $0x81] sm:$0xff]
        %v6719 = vld [vmem:[%s463 + $0x91] sm:$0xff]
        %v6720 = vld [vmem:[%s463 + $0x99] sm:$0xff]
        %v6721 = vld [vmem:[%s463 + $0xa9] sm:$0xff]
        %v6722 = vld [vmem:[%s463 + $0xb1] sm:$0xff]
        %v6723 = vld [vmem:[%s463 + $0xc1] sm:$0xff]
        %v6724 = vld [vmem:[%s463 + $0xc9] sm:$0xff]
        %v6725 = vld [vmem:[%s463 + $0xd9] sm:$0xff]
        %v6726 = vld [vmem:[%s463 + $0xe1] sm:$0xff]
        %v6727 = vld [vmem:[%s463 + $0xf1] sm:$0xff]
        %v6728 = vld [vmem:[%s463 + $0xf9] sm:$0xff]
        %v6729 = vld [vmem:[%s463 + $0x109] sm:$0xff]
        %v6730 = vld [vmem:[%s463 + $0x111] sm:$0xff]
        %v6731 = vld [vmem:[%s463 + $0x121] sm:$0xff]
        %v6732 = vld [vmem:[%s463 + $0x129] sm:$0xff]
        %v6733 = vld [vmem:[%s463 + $0x139] sm:$0xff]
        %v6734 = vld [vmem:[%s463 + $0x141] sm:$0xff]
        %v6735 = vld [vmem:[%s463 + $0x151] sm:$0xff]
        %v6736 = vld [vmem:[%s463 + $0x159] sm:$0xff]
        %v6737 = vld [vmem:[%s463 + $0x169] sm:$0xff]
        %v6738 = vld [vmem:[%s463 + $0x171] sm:$0xff]
        %v6739 = vld [vmem:[%s463 + $0x2] sm:$0xff]
        %v6740 = vld [vmem:[%s463 + $0xa] sm:$0xff]
        %v6741 = vld [vmem:[%s463 + $0x1a] sm:$0xff]
        %v6742 = vld [vmem:[%s463 + $0x22] sm:$0xff]
        %v6743 = vld [vmem:[%s463 + $0x32] sm:$0xff]
        %v6744 = vld [vmem:[%s463 + $0x3a] sm:$0xff]
        %v6745 = vld [vmem:[%s463 + $0x4a] sm:$0xff]
        %v6746 = vld [vmem:[%s463 + $0x52] sm:$0xff]
        %v6747 = vld [vmem:[%s463 + $0x62] sm:$0xff]
        %v6748 = vld [vmem:[%s463 + $0x6a] sm:$0xff]
        %v6749 = vld [vmem:[%s463 + $0x7a] sm:$0xff]
        %v6750 = vld [vmem:[%s463 + $0x82] sm:$0xff]
        %v6751 = vld [vmem:[%s463 + $0x92] sm:$0xff]
        %v6752 = vld [vmem:[%s463 + $0x9a] sm:$0xff]
        %v6753 = vld [vmem:[%s463 + $0xaa] sm:$0xff]
        %v6754 = vld [vmem:[%s463 + $0xb2] sm:$0xff]
        %v6755 = vld [vmem:[%s463 + $0xc2] sm:$0xff]
        %v6756 = vld [vmem:[%s463 + $0xca] sm:$0xff]
        %v6757 = vld [vmem:[%s463 + $0xda] sm:$0xff]
        %v6758 = vld [vmem:[%s463 + $0xe2] sm:$0xff]
        %v6759 = vld [vmem:[%s463 + $0xf2] sm:$0xff]
        %v6760 = vld [vmem:[%s463 + $0xfa] sm:$0xff]
        %v6761 = vld [vmem:[%s463 + $0x10a] sm:$0xff]
        %v6762 = vld [vmem:[%s463 + $0x112] sm:$0xff]
        %v6763 = vld [vmem:[%s463 + $0x122] sm:$0xff]
        %v6764 = vld [vmem:[%s463 + $0x12a] sm:$0xff]
        %v6765 = vld [vmem:[%s463 + $0x13a] sm:$0xff]
        %v6766 = vld [vmem:[%s463 + $0x142] sm:$0xff]
        %v6767 = vld [vmem:[%s463 + $0x152] sm:$0xff]
        %v6768 = vld [vmem:[%s463 + $0x15a] sm:$0xff]
        %v6769 = vld [vmem:[%s463 + $0x16a] sm:$0xff]
        %v6770 = vld [vmem:[%s463 + $0x172] sm:$0xff]
        %v6771 = vld [vmem:[%s689] sm:$0xff]
        %v6772 = vld [vmem:[%s689 + $0x8] sm:$0xff]
        %v6773 = vld [vmem:[%s689 + $0x18] sm:$0xff]
        %v6774 = vld [vmem:[%s689 + $0x20] sm:$0xff]
        %v6775 = vld [vmem:[%s689 + $0x30] sm:$0xff]
        %v6776 = vld [vmem:[%s689 + $0x38] sm:$0xff]
        %v6777 = vld [vmem:[%s689 + $0x48] sm:$0xff]
        %v6778 = vld [vmem:[%s689 + $0x50] sm:$0xff]
        %v6779 = vld [vmem:[%s689 + $0x60] sm:$0xff]
        %v6780 = vld [vmem:[%s689 + $0x68] sm:$0xff]
        %v6781 = vld [vmem:[%s689 + $0x78] sm:$0xff]
        %v6782 = vld [vmem:[%s689 + $0x80] sm:$0xff]
        %v6783 = vld [vmem:[%s689 + $0x90] sm:$0xff]
        %v6784 = vld [vmem:[%s689 + $0x98] sm:$0xff]
        %v6785 = vld [vmem:[%s689 + $0xa8] sm:$0xff]
        %v6786 = vld [vmem:[%s689 + $0xb0] sm:$0xff]
        %v6787 = vld [vmem:[%s689 + $0xc0] sm:$0xff]
        %v6788 = vld [vmem:[%s689 + $0xc8] sm:$0xff]
        %v6789 = vld [vmem:[%s689 + $0xd8] sm:$0xff]
        %v6790 = vld [vmem:[%s689 + $0xe0] sm:$0xff]
        %v6791 = vld [vmem:[%s689 + $0xf0] sm:$0xff]
        %v6792 = vld [vmem:[%s689 + $0xf8] sm:$0xff]
        %v6793 = vld [vmem:[%s689 + $0x108] sm:$0xff]
        %v6794 = vld [vmem:[%s689 + $0x110] sm:$0xff]
        %v6795 = vld [vmem:[%s689 + $0x120] sm:$0xff]
        %v6796 = vld [vmem:[%s689 + $0x128] sm:$0xff]
        %v6797 = vld [vmem:[%s689 + $0x138] sm:$0xff]
        %v6798 = vld [vmem:[%s689 + $0x140] sm:$0xff]
        %v6799 = vld [vmem:[%s689 + $0x150] sm:$0xff]
        %v6800 = vld [vmem:[%s689 + $0x158] sm:$0xff]
        %v6801 = vld [vmem:[%s689 + $0x168] sm:$0xff]
        %v6802 = vld [vmem:[%s689 + $0x170] sm:$0xff]
        %v6803 = vld [vmem:[%s689 + $0x1] sm:$0xff]
        %v6804 = vld [vmem:[%s689 + $0x9] sm:$0xff]
        %v6805 = vld [vmem:[%s689 + $0x19] sm:$0xff]
        %v6806 = vld [vmem:[%s689 + $0x21] sm:$0xff]
        %v6807 = vld [vmem:[%s689 + $0x31] sm:$0xff]
        %v6808 = vld [vmem:[%s689 + $0x39] sm:$0xff]
        %v6809 = vld [vmem:[%s689 + $0x49] sm:$0xff]
        %v6810 = vld [vmem:[%s689 + $0x51] sm:$0xff]
        %v6811 = vld [vmem:[%s689 + $0x61] sm:$0xff]
        %v6812 = vld [vmem:[%s689 + $0x69] sm:$0xff]
        %v6813 = vld [vmem:[%s689 + $0x79] sm:$0xff]
        %v6814 = vld [vmem:[%s689 + $0x81] sm:$0xff]
        %v6815 = vld [vmem:[%s689 + $0x91] sm:$0xff]
        %v6816 = vld [vmem:[%s689 + $0x99] sm:$0xff]
        %v6817 = vld [vmem:[%s689 + $0xa9] sm:$0xff]
        %v6818 = vld [vmem:[%s689 + $0xb1] sm:$0xff]
        %v6819 = vld [vmem:[%s689 + $0xc1] sm:$0xff]
        %v6820 = vld [vmem:[%s689 + $0xc9] sm:$0xff]
        %v6821 = vld [vmem:[%s689 + $0xd9] sm:$0xff]
        %v6822 = vld [vmem:[%s689 + $0xe1] sm:$0xff]
        %v6823 = vld [vmem:[%s689 + $0xf1] sm:$0xff]
        %v6824 = vld [vmem:[%s689 + $0xf9] sm:$0xff]
        %v6825 = vld [vmem:[%s689 + $0x109] sm:$0xff]
        %v6826 = vld [vmem:[%s689 + $0x111] sm:$0xff]
        %v6827 = vld [vmem:[%s689 + $0x121] sm:$0xff]
        %v6828 = vld [vmem:[%s689 + $0x129] sm:$0xff]
        %v6829 = vld [vmem:[%s689 + $0x139] sm:$0xff]
        %v6830 = vld [vmem:[%s689 + $0x141] sm:$0xff]
        %v6831 = vld [vmem:[%s689 + $0x151] sm:$0xff]
        %v6832 = vld [vmem:[%s689 + $0x159] sm:$0xff]
        %v6833 = vld [vmem:[%s689 + $0x169] sm:$0xff]
        %v6834 = vld [vmem:[%s689 + $0x171] sm:$0xff]
        %v6835 = vld [vmem:[%s689 + $0x2] sm:$0xff]
        %v6836 = vld [vmem:[%s689 + $0xa] sm:$0xff]
        %v6837 = vld [vmem:[%s689 + $0x1a] sm:$0xff]
        %v6838 = vld [vmem:[%s689 + $0x22] sm:$0xff]
        %v6839 = vld [vmem:[%s689 + $0x32] sm:$0xff]
        %v6840 = vld [vmem:[%s689 + $0x3a] sm:$0xff]
        %v6841 = vld [vmem:[%s689 + $0x4a] sm:$0xff]
        %v6842 = vld [vmem:[%s689 + $0x52] sm:$0xff]
        %v6843 = vld [vmem:[%s689 + $0x62] sm:$0xff]
        %v6844 = vld [vmem:[%s689 + $0x6a] sm:$0xff]
        %v6845 = vld [vmem:[%s689 + $0x7a] sm:$0xff]
        %v6846 = vld [vmem:[%s689 + $0x82] sm:$0xff]
        %v6847 = vld [vmem:[%s689 + $0x92] sm:$0xff]
        %v6848 = vld [vmem:[%s689 + $0x9a] sm:$0xff]
        %v6849 = vld [vmem:[%s689 + $0xaa] sm:$0xff]
        %v6850 = vld [vmem:[%s689 + $0xb2] sm:$0xff]
        %v6851 = vld [vmem:[%s689 + $0xc2] sm:$0xff]
        %v6852 = vld [vmem:[%s689 + $0xca] sm:$0xff]
        %v6853 = vld [vmem:[%s689 + $0xda] sm:$0xff]
        %v6854 = vld [vmem:[%s689 + $0xe2] sm:$0xff]
        %v6855 = vld [vmem:[%s689 + $0xf2] sm:$0xff]
        %v6856 = vld [vmem:[%s689 + $0xfa] sm:$0xff]
        %v6857 = vld [vmem:[%s689 + $0x10a] sm:$0xff]
        %v6858 = vld [vmem:[%s689 + $0x112] sm:$0xff]
        %v6859 = vld [vmem:[%s689 + $0x122] sm:$0xff]
        %v6860 = vld [vmem:[%s689 + $0x12a] sm:$0xff]
        %v6861 = vld [vmem:[%s689 + $0x13a] sm:$0xff]
        %v6862 = vld [vmem:[%s689 + $0x142] sm:$0xff]
        %v6863 = vld [vmem:[%s689 + $0x152] sm:$0xff]
        %v6864 = vld [vmem:[%s689 + $0x15a] sm:$0xff]
        %v6865 = vld [vmem:[%s689 + $0x16a] sm:$0xff]
        %v6866 = vld [vmem:[%s689 + $0x172] sm:$0xff]
        %6899 = vrot.lane.b32.xlu0 %v6611, 40
        %v6900 = vpop.permute.xlu0 %6899
        %6901 = vrot.lane.b32.xlu0 %v6612, 40
        %v6902 = vpop.permute.xlu0 %6901
        %6903 = vrot.lane.b32.xlu0 %v6613, 40
        %v6904 = vpop.permute.xlu0 %6903
        %6905 = vrot.lane.b32.xlu0 %v6614, 40
        %v6906 = vpop.permute.xlu0 %6905
        %6907 = vrot.lane.b32.xlu0 %v6615, 40
        %v6908 = vpop.permute.xlu0 %6907
        %6909 = vrot.lane.b32.xlu0 %v6616, 40
        %v6910 = vpop.permute.xlu0 %6909
        %6911 = vrot.lane.b32.xlu0 %v6617, 40
        %v6912 = vpop.permute.xlu0 %6911
        %6913 = vrot.lane.b32.xlu0 %v6618, 40
        %v6914 = vpop.permute.xlu0 %6913
        %6915 = vrot.lane.b32.xlu0 %v6619, 40
        %v6916 = vpop.permute.xlu0 %6915
        %6917 = vrot.lane.b32.xlu0 %v6620, 40
        %v6918 = vpop.permute.xlu0 %6917
        %6919 = vrot.lane.b32.xlu0 %v6621, 40
        %v6920 = vpop.permute.xlu0 %6919
        %6921 = vrot.lane.b32.xlu0 %v6622, 40
        %v6922 = vpop.permute.xlu0 %6921
        %6923 = vrot.lane.b32.xlu0 %v6623, 40
        %v6924 = vpop.permute.xlu0 %6923
        %6925 = vrot.lane.b32.xlu0 %v6624, 40
        %v6926 = vpop.permute.xlu0 %6925
        %6927 = vrot.lane.b32.xlu0 %v6625, 40
        %v6928 = vpop.permute.xlu0 %6927
        %6929 = vrot.lane.b32.xlu0 %v6626, 40
        %v6930 = vpop.permute.xlu0 %6929
        %6931 = vrot.lane.b32.xlu0 %v6627, 40
        %v6932 = vpop.permute.xlu0 %6931
        %6933 = vrot.lane.b32.xlu0 %v6628, 40
        %v6934 = vpop.permute.xlu0 %6933
        %6935 = vrot.lane.b32.xlu0 %v6629, 40
        %v6936 = vpop.permute.xlu0 %6935
        %6937 = vrot.lane.b32.xlu0 %v6630, 40
        %v6938 = vpop.permute.xlu0 %6937
        %6939 = vrot.lane.b32.xlu0 %v6631, 40
        %v6940 = vpop.permute.xlu0 %6939
        %6941 = vrot.lane.b32.xlu0 %v6632, 40
        %v6942 = vpop.permute.xlu0 %6941
        %6943 = vrot.lane.b32.xlu0 %v6633, 40
        %v6944 = vpop.permute.xlu0 %6943
        %6945 = vrot.lane.b32.xlu0 %v6634, 40
        %v6946 = vpop.permute.xlu0 %6945
        %6947 = vrot.lane.b32.xlu0 %v6635, 40
        %v6948 = vpop.permute.xlu0 %6947
        %6949 = vrot.lane.b32.xlu0 %v6636, 40
        %v6950 = vpop.permute.xlu0 %6949
        %6951 = vrot.lane.b32.xlu0 %v6637, 40
        %v6952 = vpop.permute.xlu0 %6951
        %6953 = vrot.lane.b32.xlu0 %v6638, 40
        %v6954 = vpop.permute.xlu0 %6953
        %6955 = vrot.lane.b32.xlu0 %v6639, 40
        %v6956 = vpop.permute.xlu0 %6955
        %6957 = vrot.lane.b32.xlu0 %v6640, 40
        %v6958 = vpop.permute.xlu0 %6957
        %6959 = vrot.lane.b32.xlu0 %v6641, 40
        %v6960 = vpop.permute.xlu0 %6959
        %6961 = vrot.lane.b32.xlu0 %v6642, 40
        %v6962 = vpop.permute.xlu0 %6961
        %7027 = vrot.lane.b32.xlu0 %v6643, 80
        %v7028 = vpop.permute.xlu0 %7027
        %7029 = vrot.lane.b32.xlu0 %v6644, 80
        %v7030 = vpop.permute.xlu0 %7029
        %7031 = vrot.lane.b32.xlu0 %v6645, 80
        %v7032 = vpop.permute.xlu0 %7031
        %7033 = vrot.lane.b32.xlu0 %v6646, 80
        %v7034 = vpop.permute.xlu0 %7033
        %7035 = vrot.lane.b32.xlu0 %v6647, 80
        %v7036 = vpop.permute.xlu0 %7035
        %7037 = vrot.lane.b32.xlu0 %v6648, 80
        %v7038 = vpop.permute.xlu0 %7037
        %7039 = vrot.lane.b32.xlu0 %v6649, 80
        %v7040 = vpop.permute.xlu0 %7039
        %7041 = vrot.lane.b32.xlu0 %v6650, 80
        %v7042 = vpop.permute.xlu0 %7041
        %7043 = vrot.lane.b32.xlu0 %v6651, 80
        %v7044 = vpop.permute.xlu0 %7043
        %7045 = vrot.lane.b32.xlu0 %v6652, 80
        %v7046 = vpop.permute.xlu0 %7045
        %7047 = vrot.lane.b32.xlu0 %v6653, 80
        %v7048 = vpop.permute.xlu0 %7047
        %7049 = vrot.lane.b32.xlu0 %v6654, 80
        %v7050 = vpop.permute.xlu0 %7049
        %7051 = vrot.lane.b32.xlu0 %v6655, 80
        %v7052 = vpop.permute.xlu0 %7051
        %7053 = vrot.lane.b32.xlu0 %v6656, 80
        %v7054 = vpop.permute.xlu0 %7053
        %7055 = vrot.lane.b32.xlu0 %v6657, 80
        %v7056 = vpop.permute.xlu0 %7055
        %7057 = vrot.lane.b32.xlu0 %v6658, 80
        %v7058 = vpop.permute.xlu0 %7057
        %7059 = vrot.lane.b32.xlu0 %v6659, 80
        %v7060 = vpop.permute.xlu0 %7059
        %7061 = vrot.lane.b32.xlu0 %v6660, 80
        %v7062 = vpop.permute.xlu0 %7061
        %7063 = vrot.lane.b32.xlu0 %v6661, 80
        %v7064 = vpop.permute.xlu0 %7063
        %7065 = vrot.lane.b32.xlu0 %v6662, 80
        %v7066 = vpop.permute.xlu0 %7065
        %7067 = vrot.lane.b32.xlu0 %v6663, 80
        %v7068 = vpop.permute.xlu0 %7067
        %7069 = vrot.lane.b32.xlu0 %v6664, 80
        %v7070 = vpop.permute.xlu0 %7069
        %7071 = vrot.lane.b32.xlu0 %v6665, 80
        %v7072 = vpop.permute.xlu0 %7071
        %7073 = vrot.lane.b32.xlu0 %v6666, 80
        %v7074 = vpop.permute.xlu0 %7073
        %7075 = vrot.lane.b32.xlu0 %v6667, 80
        %v7076 = vpop.permute.xlu0 %7075
        %7077 = vrot.lane.b32.xlu0 %v6668, 80
        %v7078 = vpop.permute.xlu0 %7077
        %7079 = vrot.lane.b32.xlu0 %v6669, 80
        %v7080 = vpop.permute.xlu0 %7079
        %7081 = vrot.lane.b32.xlu0 %v6670, 80
        %v7082 = vpop.permute.xlu0 %7081
        %7083 = vrot.lane.b32.xlu0 %v6671, 80
        %v7084 = vpop.permute.xlu0 %7083
        %7085 = vrot.lane.b32.xlu0 %v6672, 80
        %v7086 = vpop.permute.xlu0 %7085
        %7087 = vrot.lane.b32.xlu0 %v6673, 80
        %v7088 = vpop.permute.xlu0 %7087
        %7089 = vrot.lane.b32.xlu0 %v6674, 80
        %v7090 = vpop.permute.xlu0 %7089
        %7155 = vrot.lane.b32.xlu0 %v6675, 120
        %v7156 = vpop.permute.xlu0 %7155
        %7157 = vrot.lane.b32.xlu0 %v6676, 120
        %v7158 = vpop.permute.xlu0 %7157
        %7159 = vrot.lane.b32.xlu0 %v6677, 120
        %v7160 = vpop.permute.xlu0 %7159
        %7161 = vrot.lane.b32.xlu0 %v6678, 120
        %v7162 = vpop.permute.xlu0 %7161
        %7163 = vrot.lane.b32.xlu0 %v6679, 120
        %v7164 = vpop.permute.xlu0 %7163
        %7165 = vrot.lane.b32.xlu0 %v6680, 120
        %v7166 = vpop.permute.xlu0 %7165
        %7167 = vrot.lane.b32.xlu0 %v6681, 120
        %v7168 = vpop.permute.xlu0 %7167
        %7169 = vrot.lane.b32.xlu0 %v6682, 120
        %v7170 = vpop.permute.xlu0 %7169
        %7171 = vrot.lane.b32.xlu0 %v6683, 120
        %v7172 = vpop.permute.xlu0 %7171
        %7173 = vrot.lane.b32.xlu0 %v6684, 120
        %v7174 = vpop.permute.xlu0 %7173
        %7175 = vrot.lane.b32.xlu0 %v6685, 120
        %v7176 = vpop.permute.xlu0 %7175
        %7177 = vrot.lane.b32.xlu0 %v6686, 120
        %v7178 = vpop.permute.xlu0 %7177
        %7179 = vrot.lane.b32.xlu0 %v6687, 120
        %v7180 = vpop.permute.xlu0 %7179
        %7181 = vrot.lane.b32.xlu0 %v6688, 120
        %v7182 = vpop.permute.xlu0 %7181
        %7183 = vrot.lane.b32.xlu0 %v6689, 120
        %v7184 = vpop.permute.xlu0 %7183
        %7185 = vrot.lane.b32.xlu0 %v6690, 120
        %v7186 = vpop.permute.xlu0 %7185
        %7187 = vrot.lane.b32.xlu0 %v6691, 120
        %v7188 = vpop.permute.xlu0 %7187
        %7189 = vrot.lane.b32.xlu0 %v6692, 120
        %v7190 = vpop.permute.xlu0 %7189
        %7191 = vrot.lane.b32.xlu0 %v6693, 120
        %v7192 = vpop.permute.xlu0 %7191
        %7193 = vrot.lane.b32.xlu0 %v6694, 120
        %v7194 = vpop.permute.xlu0 %7193
        %7195 = vrot.lane.b32.xlu0 %v6695, 120
        %v7196 = vpop.permute.xlu0 %7195
        %7197 = vrot.lane.b32.xlu0 %v6696, 120
        %v7198 = vpop.permute.xlu0 %7197
        %7199 = vrot.lane.b32.xlu0 %v6697, 120
        %v7200 = vpop.permute.xlu0 %7199
        %7201 = vrot.lane.b32.xlu0 %v6698, 120
        %v7202 = vpop.permute.xlu0 %7201
        %7203 = vrot.lane.b32.xlu0 %v6699, 120
        %v7204 = vpop.permute.xlu0 %7203
        %7205 = vrot.lane.b32.xlu0 %v6700, 120
        %v7206 = vpop.permute.xlu0 %7205
        %7207 = vrot.lane.b32.xlu0 %v6701, 120
        %v7208 = vpop.permute.xlu0 %7207
        %7209 = vrot.lane.b32.xlu0 %v6702, 120
        %v7210 = vpop.permute.xlu0 %7209
        %7211 = vrot.lane.b32.xlu0 %v6703, 120
        %v7212 = vpop.permute.xlu0 %7211
        %7213 = vrot.lane.b32.xlu0 %v6704, 120
        %v7214 = vpop.permute.xlu0 %7213
        %7215 = vrot.lane.b32.xlu0 %v6705, 120
        %v7216 = vpop.permute.xlu0 %7215
        %7217 = vrot.lane.b32.xlu0 %v6706, 120
        %v7218 = vpop.permute.xlu0 %7217
        %7283 = vrot.lane.b32.xlu0 %v6707, 32
        %v7284 = vpop.permute.xlu0 %7283
        %7285 = vrot.lane.b32.xlu0 %v6708, 32
        %v7286 = vpop.permute.xlu0 %7285
        %7287 = vrot.lane.b32.xlu0 %v6709, 32
        %v7288 = vpop.permute.xlu0 %7287
        %7289 = vrot.lane.b32.xlu0 %v6710, 32
        %v7290 = vpop.permute.xlu0 %7289
        %7291 = vrot.lane.b32.xlu0 %v6711, 32
        %v7292 = vpop.permute.xlu0 %7291
        %7293 = vrot.lane.b32.xlu0 %v6712, 32
        %v7294 = vpop.permute.xlu0 %7293
        %7295 = vrot.lane.b32.xlu0 %v6713, 32
        %v7296 = vpop.permute.xlu0 %7295
        %7297 = vrot.lane.b32.xlu0 %v6714, 32
        %v7298 = vpop.permute.xlu0 %7297
        %7299 = vrot.lane.b32.xlu0 %v6715, 32
        %v7300 = vpop.permute.xlu0 %7299
        %7301 = vrot.lane.b32.xlu0 %v6716, 32
        %v7302 = vpop.permute.xlu0 %7301
        %7303 = vrot.lane.b32.xlu0 %v6717, 32
        %v7304 = vpop.permute.xlu0 %7303
        %7305 = vrot.lane.b32.xlu0 %v6718, 32
        %v7306 = vpop.permute.xlu0 %7305
        %7307 = vrot.lane.b32.xlu0 %v6719, 32
        %v7308 = vpop.permute.xlu0 %7307
        %7309 = vrot.lane.b32.xlu0 %v6720, 32
        %v7310 = vpop.permute.xlu0 %7309
        %7311 = vrot.lane.b32.xlu0 %v6721, 32
        %v7312 = vpop.permute.xlu0 %7311
        %7313 = vrot.lane.b32.xlu0 %v6722, 32
        %v7314 = vpop.permute.xlu0 %7313
        %7315 = vrot.lane.b32.xlu0 %v6723, 32
        %v7316 = vpop.permute.xlu0 %7315
        %7317 = vrot.lane.b32.xlu0 %v6724, 32
        %v7318 = vpop.permute.xlu0 %7317
        %7319 = vrot.lane.b32.xlu0 %v6725, 32
        %v7320 = vpop.permute.xlu0 %7319
        %7321 = vrot.lane.b32.xlu0 %v6726, 32
        %v7322 = vpop.permute.xlu0 %7321
        %7323 = vrot.lane.b32.xlu0 %v6727, 32
        %v7324 = vpop.permute.xlu0 %7323
        %7325 = vrot.lane.b32.xlu0 %v6728, 32
        %v7326 = vpop.permute.xlu0 %7325
        %7327 = vrot.lane.b32.xlu0 %v6729, 32
        %v7328 = vpop.permute.xlu0 %7327
        %7329 = vrot.lane.b32.xlu0 %v6730, 32
        %v7330 = vpop.permute.xlu0 %7329
        %7331 = vrot.lane.b32.xlu0 %v6731, 32
        %v7332 = vpop.permute.xlu0 %7331
        %7333 = vrot.lane.b32.xlu0 %v6732, 32
        %v7334 = vpop.permute.xlu0 %7333
        %7335 = vrot.lane.b32.xlu0 %v6733, 32
        %v7336 = vpop.permute.xlu0 %7335
        %7337 = vrot.lane.b32.xlu0 %v6734, 32
        %v7338 = vpop.permute.xlu0 %7337
        %7339 = vrot.lane.b32.xlu0 %v6735, 32
        %v7340 = vpop.permute.xlu0 %7339
        %7341 = vrot.lane.b32.xlu0 %v6736, 32
        %v7342 = vpop.permute.xlu0 %7341
        %7343 = vrot.lane.b32.xlu0 %v6737, 32
        %v7344 = vpop.permute.xlu0 %7343
        %7345 = vrot.lane.b32.xlu0 %v6738, 32
        %v7346 = vpop.permute.xlu0 %7345
        %7411 = vrot.lane.b32.xlu0 %v6739, 72
        %v7412 = vpop.permute.xlu0 %7411
        %7413 = vrot.lane.b32.xlu0 %v6740, 72
        %v7414 = vpop.permute.xlu0 %7413
        %7415 = vrot.lane.b32.xlu0 %v6741, 72
        %v7416 = vpop.permute.xlu0 %7415
        %7417 = vrot.lane.b32.xlu0 %v6742, 72
        %v7418 = vpop.permute.xlu0 %7417
        %7419 = vrot.lane.b32.xlu0 %v6743, 72
        %v7420 = vpop.permute.xlu0 %7419
        %7421 = vrot.lane.b32.xlu0 %v6744, 72
        %v7422 = vpop.permute.xlu0 %7421
        %7423 = vrot.lane.b32.xlu0 %v6745, 72
        %v7424 = vpop.permute.xlu0 %7423
        %7425 = vrot.lane.b32.xlu0 %v6746, 72
        %v7426 = vpop.permute.xlu0 %7425
        %7427 = vrot.lane.b32.xlu0 %v6747, 72
        %v7428 = vpop.permute.xlu0 %7427
        %7429 = vrot.lane.b32.xlu0 %v6748, 72
        %v7430 = vpop.permute.xlu0 %7429
        %7431 = vrot.lane.b32.xlu0 %v6749, 72
        %v7432 = vpop.permute.xlu0 %7431
        %7433 = vrot.lane.b32.xlu0 %v6750, 72
        %v7434 = vpop.permute.xlu0 %7433
        %7435 = vrot.lane.b32.xlu0 %v6751, 72
        %v7436 = vpop.permute.xlu0 %7435
        %7437 = vrot.lane.b32.xlu0 %v6752, 72
        %v7438 = vpop.permute.xlu0 %7437
        %7439 = vrot.lane.b32.xlu0 %v6753, 72
        %v7440 = vpop.permute.xlu0 %7439
        %7441 = vrot.lane.b32.xlu0 %v6754, 72
        %v7442 = vpop.permute.xlu0 %7441
        %7443 = vrot.lane.b32.xlu0 %v6755, 72
        %v7444 = vpop.permute.xlu0 %7443
        %7445 = vrot.lane.b32.xlu0 %v6756, 72
        %v7446 = vpop.permute.xlu0 %7445
        %7447 = vrot.lane.b32.xlu0 %v6757, 72
        %v7448 = vpop.permute.xlu0 %7447
        %7449 = vrot.lane.b32.xlu0 %v6758, 72
        %v7450 = vpop.permute.xlu0 %7449
        %7451 = vrot.lane.b32.xlu0 %v6759, 72
        %v7452 = vpop.permute.xlu0 %7451
        %7453 = vrot.lane.b32.xlu0 %v6760, 72
        %v7454 = vpop.permute.xlu0 %7453
        %7455 = vrot.lane.b32.xlu0 %v6761, 72
        %v7456 = vpop.permute.xlu0 %7455
        %7457 = vrot.lane.b32.xlu0 %v6762, 72
        %v7458 = vpop.permute.xlu0 %7457
        %7459 = vrot.lane.b32.xlu0 %v6763, 72
        %v7460 = vpop.permute.xlu0 %7459
        %7461 = vrot.lane.b32.xlu0 %v6764, 72
        %v7462 = vpop.permute.xlu0 %7461
        %7463 = vrot.lane.b32.xlu0 %v6765, 72
        %v7464 = vpop.permute.xlu0 %7463
        %7465 = vrot.lane.b32.xlu0 %v6766, 72
        %v7466 = vpop.permute.xlu0 %7465
        %7467 = vrot.lane.b32.xlu0 %v6767, 72
        %v7468 = vpop.permute.xlu0 %7467
        %7469 = vrot.lane.b32.xlu0 %v6768, 72
        %v7470 = vpop.permute.xlu0 %7469
        %7471 = vrot.lane.b32.xlu0 %v6769, 72
        %v7472 = vpop.permute.xlu0 %7471
        %7473 = vrot.lane.b32.xlu0 %v6770, 72
        %v7474 = vpop.permute.xlu0 %7473
        %7539 = vrot.lane.b32.xlu0 %v6771, 112
        %v7540 = vpop.permute.xlu0 %7539
        %7541 = vrot.lane.b32.xlu0 %v6772, 112
        %v7542 = vpop.permute.xlu0 %7541
        %7543 = vrot.lane.b32.xlu0 %v6773, 112
        %v7544 = vpop.permute.xlu0 %7543
        %7545 = vrot.lane.b32.xlu0 %v6774, 112
        %v7546 = vpop.permute.xlu0 %7545
        %7547 = vrot.lane.b32.xlu0 %v6775, 112
        %v7548 = vpop.permute.xlu0 %7547
        %7549 = vrot.lane.b32.xlu0 %v6776, 112
        %v7550 = vpop.permute.xlu0 %7549
        %7551 = vrot.lane.b32.xlu0 %v6777, 112
        %v7552 = vpop.permute.xlu0 %7551
        %7553 = vrot.lane.b32.xlu0 %v6778, 112
        %v7554 = vpop.permute.xlu0 %7553
        %7555 = vrot.lane.b32.xlu0 %v6779, 112
        %v7556 = vpop.permute.xlu0 %7555
        %7557 = vrot.lane.b32.xlu0 %v6780, 112
        %v7558 = vpop.permute.xlu0 %7557
        %7559 = vrot.lane.b32.xlu0 %v6781, 112
        %v7560 = vpop.permute.xlu0 %7559
        %7561 = vrot.lane.b32.xlu0 %v6782, 112
        %v7562 = vpop.permute.xlu0 %7561
        %7563 = vrot.lane.b32.xlu0 %v6783, 112
        %v7564 = vpop.permute.xlu0 %7563
        %7565 = vrot.lane.b32.xlu0 %v6784, 112
        %v7566 = vpop.permute.xlu0 %7565
        %7567 = vrot.lane.b32.xlu0 %v6785, 112
        %v7568 = vpop.permute.xlu0 %7567
        %7569 = vrot.lane.b32.xlu0 %v6786, 112
        %v7570 = vpop.permute.xlu0 %7569
        %7571 = vrot.lane.b32.xlu0 %v6787, 112
        %v7572 = vpop.permute.xlu0 %7571
        %7573 = vrot.lane.b32.xlu0 %v6788, 112
        %v7574 = vpop.permute.xlu0 %7573
        %7575 = vrot.lane.b32.xlu0 %v6789, 112
        %v7576 = vpop.permute.xlu0 %7575
        %7577 = vrot.lane.b32.xlu0 %v6790, 112
        %v7578 = vpop.permute.xlu0 %7577
        %7579 = vrot.lane.b32.xlu0 %v6791, 112
        %v7580 = vpop.permute.xlu0 %7579
        %7581 = vrot.lane.b32.xlu0 %v6792, 112
        %v7582 = vpop.permute.xlu0 %7581
        %7583 = vrot.lane.b32.xlu0 %v6793, 112
        %v7584 = vpop.permute.xlu0 %7583
        %7585 = vrot.lane.b32.xlu0 %v6794, 112
        %v7586 = vpop.permute.xlu0 %7585
        %7587 = vrot.lane.b32.xlu0 %v6795, 112
        %v7588 = vpop.permute.xlu0 %7587
        %7589 = vrot.lane.b32.xlu0 %v6796, 112
        %v7590 = vpop.permute.xlu0 %7589
        %7591 = vrot.lane.b32.xlu0 %v6797, 112
        %v7592 = vpop.permute.xlu0 %7591
        %7593 = vrot.lane.b32.xlu0 %v6798, 112
        %v7594 = vpop.permute.xlu0 %7593
        %7595 = vrot.lane.b32.xlu0 %v6799, 112
        %v7596 = vpop.permute.xlu0 %7595
        %7597 = vrot.lane.b32.xlu0 %v6800, 112
        %v7598 = vpop.permute.xlu0 %7597
        %7599 = vrot.lane.b32.xlu0 %v6801, 112
        %v7600 = vpop.permute.xlu0 %7599
        %7601 = vrot.lane.b32.xlu0 %v6802, 112
        %v7602 = vpop.permute.xlu0 %7601
        %7667 = vrot.lane.b32.xlu0 %v6803, 24
        %v7668 = vpop.permute.xlu0 %7667
        %7669 = vrot.lane.b32.xlu0 %v6804, 24
        %v7670 = vpop.permute.xlu0 %7669
        %7671 = vrot.lane.b32.xlu0 %v6805, 24
        %v7672 = vpop.permute.xlu0 %7671
        %7673 = vrot.lane.b32.xlu0 %v6806, 24
        %v7674 = vpop.permute.xlu0 %7673
        %7675 = vrot.lane.b32.xlu0 %v6807, 24
        %v7676 = vpop.permute.xlu0 %7675
        %7677 = vrot.lane.b32.xlu0 %v6808, 24
        %v7678 = vpop.permute.xlu0 %7677
        %7679 = vrot.lane.b32.xlu0 %v6809, 24
        %v7680 = vpop.permute.xlu0 %7679
        %7681 = vrot.lane.b32.xlu0 %v6810, 24
        %v7682 = vpop.permute.xlu0 %7681
        %7683 = vrot.lane.b32.xlu0 %v6811, 24
        %v7684 = vpop.permute.xlu0 %7683
        %7685 = vrot.lane.b32.xlu0 %v6812, 24
        %v7686 = vpop.permute.xlu0 %7685
        %7687 = vrot.lane.b32.xlu0 %v6813, 24
        %v7688 = vpop.permute.xlu0 %7687
        %7689 = vrot.lane.b32.xlu0 %v6814, 24
        %v7690 = vpop.permute.xlu0 %7689
        %7691 = vrot.lane.b32.xlu0 %v6815, 24
        %v7692 = vpop.permute.xlu0 %7691
        %7693 = vrot.lane.b32.xlu0 %v6816, 24
        %v7694 = vpop.permute.xlu0 %7693
        %7695 = vrot.lane.b32.xlu0 %v6817, 24
        %v7696 = vpop.permute.xlu0 %7695
        %7697 = vrot.lane.b32.xlu0 %v6818, 24
        %v7698 = vpop.permute.xlu0 %7697
        %7699 = vrot.lane.b32.xlu0 %v6819, 24
        %v7700 = vpop.permute.xlu0 %7699
        %7701 = vrot.lane.b32.xlu0 %v6820, 24
        %v7702 = vpop.permute.xlu0 %7701
        %7703 = vrot.lane.b32.xlu0 %v6821, 24
        %v7704 = vpop.permute.xlu0 %7703
        %7705 = vrot.lane.b32.xlu0 %v6822, 24
        %v7706 = vpop.permute.xlu0 %7705
        %7707 = vrot.lane.b32.xlu0 %v6823, 24
        %v7708 = vpop.permute.xlu0 %7707
        %7709 = vrot.lane.b32.xlu0 %v6824, 24
        %v7710 = vpop.permute.xlu0 %7709
        %7711 = vrot.lane.b32.xlu0 %v6825, 24
        %v7712 = vpop.permute.xlu0 %7711
        %7713 = vrot.lane.b32.xlu0 %v6826, 24
        %v7714 = vpop.permute.xlu0 %7713
        %7715 = vrot.lane.b32.xlu0 %v6827, 24
        %v7716 = vpop.permute.xlu0 %7715
        %7717 = vrot.lane.b32.xlu0 %v6828, 24
        %v7718 = vpop.permute.xlu0 %7717
        %7719 = vrot.lane.b32.xlu0 %v6829, 24
        %v7720 = vpop.permute.xlu0 %7719
        %7721 = vrot.lane.b32.xlu0 %v6830, 24
        %v7722 = vpop.permute.xlu0 %7721
        %7723 = vrot.lane.b32.xlu0 %v6831, 24
        %v7724 = vpop.permute.xlu0 %7723
        %7725 = vrot.lane.b32.xlu0 %v6832, 24
        %v7726 = vpop.permute.xlu0 %7725
        %7727 = vrot.lane.b32.xlu0 %v6833, 24
        %v7728 = vpop.permute.xlu0 %7727
        %7729 = vrot.lane.b32.xlu0 %v6834, 24
        %v7730 = vpop.permute.xlu0 %7729
        %7795 = vrot.lane.b32.xlu0 %v6835, 64
        %v7796 = vpop.permute.xlu0 %7795
        %7797 = vrot.lane.b32.xlu0 %v6836, 64
        %v7798 = vpop.permute.xlu0 %7797
        %7799 = vrot.lane.b32.xlu0 %v6837, 64
        %v7800 = vpop.permute.xlu0 %7799
        %7801 = vrot.lane.b32.xlu0 %v6838, 64
        %v7802 = vpop.permute.xlu0 %7801
        %7803 = vrot.lane.b32.xlu0 %v6839, 64
        %v7804 = vpop.permute.xlu0 %7803
        %7805 = vrot.lane.b32.xlu0 %v6840, 64
        %v7806 = vpop.permute.xlu0 %7805
        %7807 = vrot.lane.b32.xlu0 %v6841, 64
        %v7808 = vpop.permute.xlu0 %7807
        %7809 = vrot.lane.b32.xlu0 %v6842, 64
        %v7810 = vpop.permute.xlu0 %7809
        %7811 = vrot.lane.b32.xlu0 %v6843, 64
        %v7812 = vpop.permute.xlu0 %7811
        %7813 = vrot.lane.b32.xlu0 %v6844, 64
        %v7814 = vpop.permute.xlu0 %7813
        %7815 = vrot.lane.b32.xlu0 %v6845, 64
        %v7816 = vpop.permute.xlu0 %7815
        %7817 = vrot.lane.b32.xlu0 %v6846, 64
        %v7818 = vpop.permute.xlu0 %7817
        %7819 = vrot.lane.b32.xlu0 %v6847, 64
        %v7820 = vpop.permute.xlu0 %7819
        %7821 = vrot.lane.b32.xlu0 %v6848, 64
        %v7822 = vpop.permute.xlu0 %7821
        %7823 = vrot.lane.b32.xlu0 %v6849, 64
        %v7824 = vpop.permute.xlu0 %7823
        %7825 = vrot.lane.b32.xlu0 %v6850, 64
        %v7826 = vpop.permute.xlu0 %7825
        %7827 = vrot.lane.b32.xlu0 %v6851, 64
        %v7828 = vpop.permute.xlu0 %7827
        %7829 = vrot.lane.b32.xlu0 %v6852, 64
        %v7830 = vpop.permute.xlu0 %7829
        %7831 = vrot.lane.b32.xlu0 %v6853, 64
        %v7832 = vpop.permute.xlu0 %7831
        %7833 = vrot.lane.b32.xlu0 %v6854, 64
        %v7834 = vpop.permute.xlu0 %7833
        %7835 = vrot.lane.b32.xlu0 %v6855, 64
        %v7836 = vpop.permute.xlu0 %7835
        %7837 = vrot.lane.b32.xlu0 %v6856, 64
        %v7838 = vpop.permute.xlu0 %7837
        %7839 = vrot.lane.b32.xlu0 %v6857, 64
        %v7840 = vpop.permute.xlu0 %7839
        %7841 = vrot.lane.b32.xlu0 %v6858, 64
        %v7842 = vpop.permute.xlu0 %7841
        %7843 = vrot.lane.b32.xlu0 %v6859, 64
        %v7844 = vpop.permute.xlu0 %7843
        %7845 = vrot.lane.b32.xlu0 %v6860, 64
        %v7846 = vpop.permute.xlu0 %7845
        %7847 = vrot.lane.b32.xlu0 %v6861, 64
        %v7848 = vpop.permute.xlu0 %7847
        %7849 = vrot.lane.b32.xlu0 %v6862, 64
        %v7850 = vpop.permute.xlu0 %7849
        %7851 = vrot.lane.b32.xlu0 %v6863, 64
        %v7852 = vpop.permute.xlu0 %7851
        %7853 = vrot.lane.b32.xlu0 %v6864, 64
        %v7854 = vpop.permute.xlu0 %7853
        %7855 = vrot.lane.b32.xlu0 %v6865, 64
        %v7856 = vpop.permute.xlu0 %7855
        %7857 = vrot.lane.b32.xlu0 %v6866, 64
        %v7858 = vpop.permute.xlu0 %7857
        %v7891 = vsel %vm3987, %v6579, %v6900
        %v7892 = vsel %vm3987, %v6580, %v6902
        %v7893 = vsel %vm3987, %v6581, %v6904
        %v7894 = vsel %vm3987, %v6582, %v6906
        %v7895 = vsel %vm3987, %v6583, %v6908
        %v7896 = vsel %vm3987, %v6584, %v6910
        %v7897 = vsel %vm3987, %v6585, %v6912
        %v7898 = vsel %vm3987, %v6586, %v6914
        %v7899 = vsel %vm3987, %v6587, %v6916
        %v7900 = vsel %vm3987, %v6588, %v6918
        %v7901 = vsel %vm3987, %v6589, %v6920
        %v7902 = vsel %vm3987, %v6590, %v6922
        %v7903 = vsel %vm3987, %v6591, %v6924
        %v7904 = vsel %vm3987, %v6592, %v6926
        %v7905 = vsel %vm3987, %v6593, %v6928
        %v7906 = vsel %vm3987, %v6594, %v6930
        %v7907 = vsel %vm3987, %v6595, %v6932
        %v7908 = vsel %vm3987, %v6596, %v6934
        %v7909 = vsel %vm3987, %v6597, %v6936
        %v7910 = vsel %vm3987, %v6598, %v6938
        %v7911 = vsel %vm3987, %v6599, %v6940
        %v7912 = vsel %vm3987, %v6600, %v6942
        %v7913 = vsel %vm3987, %v6601, %v6944
        %v7914 = vsel %vm3987, %v6602, %v6946
        %v7915 = vsel %vm3987, %v6603, %v6948
        %v7916 = vsel %vm3987, %v6604, %v6950
        %v7917 = vsel %vm3987, %v6605, %v6952
        %v7918 = vsel %vm3987, %v6606, %v6954
        %v7919 = vsel %vm3987, %v6607, %v6956
        %v7920 = vsel %vm3987, %v6608, %v6958
        %v7921 = vsel %vm3987, %v6609, %v6960
        %v7922 = vsel %vm3987, %v6610, %v6962
        %v7923 = vsel %vm1812, %v7891, %v7028
        %v7924 = vsel %vm1812, %v7892, %v7030
        %v7925 = vsel %vm1812, %v7893, %v7032
        %v7926 = vsel %vm1812, %v7894, %v7034
        %v7927 = vsel %vm1812, %v7895, %v7036
        %v7928 = vsel %vm1812, %v7896, %v7038
        %v7929 = vsel %vm1812, %v7897, %v7040
        %v7930 = vsel %vm1812, %v7898, %v7042
        %v7931 = vsel %vm1812, %v7899, %v7044
        %v7932 = vsel %vm1812, %v7900, %v7046
        %v7933 = vsel %vm1812, %v7901, %v7048
        %v7934 = vsel %vm1812, %v7902, %v7050
        %v7935 = vsel %vm1812, %v7903, %v7052
        %v7936 = vsel %vm1812, %v7904, %v7054
        %v7937 = vsel %vm1812, %v7905, %v7056
        %v7938 = vsel %vm1812, %v7906, %v7058
        %v7939 = vsel %vm1812, %v7907, %v7060
        %v7940 = vsel %vm1812, %v7908, %v7062
        %v7941 = vsel %vm1812, %v7909, %v7064
        %v7942 = vsel %vm1812, %v7910, %v7066
        %v7943 = vsel %vm1812, %v7911, %v7068
        %v7944 = vsel %vm1812, %v7912, %v7070
        %v7945 = vsel %vm1812, %v7913, %v7072
        %v7946 = vsel %vm1812, %v7914, %v7074
        %v7947 = vsel %vm1812, %v7915, %v7076
        %v7948 = vsel %vm1812, %v7916, %v7078
        %v7949 = vsel %vm1812, %v7917, %v7080
        %v7950 = vsel %vm1812, %v7918, %v7082
        %v7951 = vsel %vm1812, %v7919, %v7084
        %v7952 = vsel %vm1812, %v7920, %v7086
        %v7953 = vsel %vm1812, %v7921, %v7088
        %v7954 = vsel %vm1812, %v7922, %v7090
        %v7955 = vsel %vm3922, %v7923, %v7156
        %v7956 = vsel %vm3922, %v7924, %v7158
        %v7957 = vsel %vm3922, %v7925, %v7160
        %v7958 = vsel %vm3922, %v7926, %v7162
        %v7959 = vsel %vm3922, %v7927, %v7164
        %v7960 = vsel %vm3922, %v7928, %v7166
        %v7961 = vsel %vm3922, %v7929, %v7168
        %v7962 = vsel %vm3922, %v7930, %v7170
        %v7963 = vsel %vm3922, %v7931, %v7172
        %v7964 = vsel %vm3922, %v7932, %v7174
        %v7965 = vsel %vm3922, %v7933, %v7176
        %v7966 = vsel %vm3922, %v7934, %v7178
        %v7967 = vsel %vm3922, %v7935, %v7180
        %v7968 = vsel %vm3922, %v7936, %v7182
        %v7969 = vsel %vm3922, %v7937, %v7184
        %v7970 = vsel %vm3922, %v7938, %v7186
        %v7971 = vsel %vm3922, %v7939, %v7188
        %v7972 = vsel %vm3922, %v7940, %v7190
        %v7973 = vsel %vm3922, %v7941, %v7192
        %v7974 = vsel %vm3922, %v7942, %v7194
        %v7975 = vsel %vm3922, %v7943, %v7196
        %v7976 = vsel %vm3922, %v7944, %v7198
        %v7977 = vsel %vm3922, %v7945, %v7200
        %v7978 = vsel %vm3922, %v7946, %v7202
        %v7979 = vsel %vm3922, %v7947, %v7204
        %v7980 = vsel %vm3922, %v7948, %v7206
        %v7981 = vsel %vm3922, %v7949, %v7208
        %v7982 = vsel %vm3922, %v7950, %v7210
        %v7983 = vsel %vm3922, %v7951, %v7212
        %v7984 = vsel %vm3922, %v7952, %v7214
        %v7985 = vsel %vm3922, %v7953, %v7216
        %v7986 = vsel %vm3922, %v7954, %v7218
        %v7987 = vsel %vm1714, %v7156, %v7284
        %v7988 = vsel %vm1714, %v7158, %v7286
        %v7989 = vsel %vm1714, %v7160, %v7288
        %v7990 = vsel %vm1714, %v7162, %v7290
        %v7991 = vsel %vm1714, %v7164, %v7292
        %v7992 = vsel %vm1714, %v7166, %v7294
        %v7993 = vsel %vm1714, %v7168, %v7296
        %v7994 = vsel %vm1714, %v7170, %v7298
        %v7995 = vsel %vm1714, %v7172, %v7300
        %v7996 = vsel %vm1714, %v7174, %v7302
        %v7997 = vsel %vm1714, %v7176, %v7304
        %v7998 = vsel %vm1714, %v7178, %v7306
        %v7999 = vsel %vm1714, %v7180, %v7308
        %v8000 = vsel %vm1714, %v7182, %v7310
        %v8001 = vsel %vm1714, %v7184, %v7312
        %v8002 = vsel %vm1714, %v7186, %v7314
        %v8003 = vsel %vm1714, %v7188, %v7316
        %v8004 = vsel %vm1714, %v7190, %v7318
        %v8005 = vsel %vm1714, %v7192, %v7320
        %v8006 = vsel %vm1714, %v7194, %v7322
        %v8007 = vsel %vm1714, %v7196, %v7324
        %v8008 = vsel %vm1714, %v7198, %v7326
        %v8009 = vsel %vm1714, %v7200, %v7328
        %v8010 = vsel %vm1714, %v7202, %v7330
        %v8011 = vsel %vm1714, %v7204, %v7332
        %v8012 = vsel %vm1714, %v7206, %v7334
        %v8013 = vsel %vm1714, %v7208, %v7336
        %v8014 = vsel %vm1714, %v7210, %v7338
        %v8015 = vsel %vm1714, %v7212, %v7340
        %v8016 = vsel %vm1714, %v7214, %v7342
        %v8017 = vsel %vm1714, %v7216, %v7344
        %v8018 = vsel %vm1714, %v7218, %v7346
        %v8019 = vsel %vm3857, %v7987, %v7412
        %v8020 = vsel %vm3857, %v7988, %v7414
        %v8021 = vsel %vm3857, %v7989, %v7416
        %v8022 = vsel %vm3857, %v7990, %v7418
        %v8023 = vsel %vm3857, %v7991, %v7420
        %v8024 = vsel %vm3857, %v7992, %v7422
        %v8025 = vsel %vm3857, %v7993, %v7424
        %v8026 = vsel %vm3857, %v7994, %v7426
        %v8027 = vsel %vm3857, %v7995, %v7428
        %v8028 = vsel %vm3857, %v7996, %v7430
        %v8029 = vsel %vm3857, %v7997, %v7432
        %v8030 = vsel %vm3857, %v7998, %v7434
        %v8031 = vsel %vm3857, %v7999, %v7436
        %v8032 = vsel %vm3857, %v8000, %v7438
        %v8033 = vsel %vm3857, %v8001, %v7440
        %v8034 = vsel %vm3857, %v8002, %v7442
        %v8035 = vsel %vm3857, %v8003, %v7444
        %v8036 = vsel %vm3857, %v8004, %v7446
        %v8037 = vsel %vm3857, %v8005, %v7448
        %v8038 = vsel %vm3857, %v8006, %v7450
        %v8039 = vsel %vm3857, %v8007, %v7452
        %v8040 = vsel %vm3857, %v8008, %v7454
        %v8041 = vsel %vm3857, %v8009, %v7456
        %v8042 = vsel %vm3857, %v8010, %v7458
        %v8043 = vsel %vm3857, %v8011, %v7460
        %v8044 = vsel %vm3857, %v8012, %v7462
        %v8045 = vsel %vm3857, %v8013, %v7464
        %v8046 = vsel %vm3857, %v8014, %v7466
        %v8047 = vsel %vm3857, %v8015, %v7468
        %v8048 = vsel %vm3857, %v8016, %v7470
        %v8049 = vsel %vm3857, %v8017, %v7472
        %v8050 = vsel %vm3857, %v8018, %v7474
        %v8051 = vsel %vm1878, %v8019, %v7540
        %v8052 = vsel %vm1878, %v8020, %v7542
        %v8053 = vsel %vm1878, %v8021, %v7544
        %v8054 = vsel %vm1878, %v8022, %v7546
        %v8055 = vsel %vm1878, %v8023, %v7548
        %v8056 = vsel %vm1878, %v8024, %v7550
        %v8057 = vsel %vm1878, %v8025, %v7552
        %v8058 = vsel %vm1878, %v8026, %v7554
        %v8059 = vsel %vm1878, %v8027, %v7556
        %v8060 = vsel %vm1878, %v8028, %v7558
        %v8061 = vsel %vm1878, %v8029, %v7560
        %v8062 = vsel %vm1878, %v8030, %v7562
        %v8063 = vsel %vm1878, %v8031, %v7564
        %v8064 = vsel %vm1878, %v8032, %v7566
        %v8065 = vsel %vm1878, %v8033, %v7568
        %v8066 = vsel %vm1878, %v8034, %v7570
        %v8067 = vsel %vm1878, %v8035, %v7572
        %v8068 = vsel %vm1878, %v8036, %v7574
        %v8069 = vsel %vm1878, %v8037, %v7576
        %v8070 = vsel %vm1878, %v8038, %v7578
        %v8071 = vsel %vm1878, %v8039, %v7580
        %v8072 = vsel %vm1878, %v8040, %v7582
        %v8073 = vsel %vm1878, %v8041, %v7584
        %v8074 = vsel %vm1878, %v8042, %v7586
        %v8075 = vsel %vm1878, %v8043, %v7588
        %v8076 = vsel %vm1878, %v8044, %v7590
        %v8077 = vsel %vm1878, %v8045, %v7592
        %v8078 = vsel %vm1878, %v8046, %v7594
        %v8079 = vsel %vm1878, %v8047, %v7596
        %v8080 = vsel %vm1878, %v8048, %v7598
        %v8081 = vsel %vm1878, %v8049, %v7600
        %v8082 = vsel %vm1878, %v8050, %v7602
        %v8083 = vsel %vm3792, %v7540, %v7668
        %v8084 = vsel %vm3792, %v7542, %v7670
        %v8085 = vsel %vm3792, %v7544, %v7672
        %v8086 = vsel %vm3792, %v7546, %v7674
        %v8087 = vsel %vm3792, %v7548, %v7676
        %v8088 = vsel %vm3792, %v7550, %v7678
        %v8089 = vsel %vm3792, %v7552, %v7680
        %v8090 = vsel %vm3792, %v7554, %v7682
        %v8091 = vsel %vm3792, %v7556, %v7684
        %v8092 = vsel %vm3792, %v7558, %v7686
        %v8093 = vsel %vm3792, %v7560, %v7688
        %v8094 = vsel %vm3792, %v7562, %v7690
        %v8095 = vsel %vm3792, %v7564, %v7692
        %v8096 = vsel %vm3792, %v7566, %v7694
        %v8097 = vsel %vm3792, %v7568, %v7696
        %v8098 = vsel %vm3792, %v7570, %v7698
        %v8099 = vsel %vm3792, %v7572, %v7700
        %v8100 = vsel %vm3792, %v7574, %v7702
        %v8101 = vsel %vm3792, %v7576, %v7704
        %v8102 = vsel %vm3792, %v7578, %v7706
        %v8103 = vsel %vm3792, %v7580, %v7708
        %v8104 = vsel %vm3792, %v7582, %v7710
        %v8105 = vsel %vm3792, %v7584, %v7712
        %v8106 = vsel %vm3792, %v7586, %v7714
        %v8107 = vsel %vm3792, %v7588, %v7716
        %v8108 = vsel %vm3792, %v7590, %v7718
        %v8109 = vsel %vm3792, %v7592, %v7720
        %v8110 = vsel %vm3792, %v7594, %v7722
        %v8111 = vsel %vm3792, %v7596, %v7724
        %v8112 = vsel %vm3792, %v7598, %v7726
        %v8113 = vsel %vm3792, %v7600, %v7728
        %v8114 = vsel %vm3792, %v7602, %v7730
        %v8115 = vsel %vm1779, %v8083, %v7796
        %v8116 = vsel %vm1779, %v8084, %v7798
        %v8117 = vsel %vm1779, %v8085, %v7800
        %v8118 = vsel %vm1779, %v8086, %v7802
        %v8119 = vsel %vm1779, %v8087, %v7804
        %v8120 = vsel %vm1779, %v8088, %v7806
        %v8121 = vsel %vm1779, %v8089, %v7808
        %v8122 = vsel %vm1779, %v8090, %v7810
        %v8123 = vsel %vm1779, %v8091, %v7812
        %v8124 = vsel %vm1779, %v8092, %v7814
        %v8125 = vsel %vm1779, %v8093, %v7816
        %v8126 = vsel %vm1779, %v8094, %v7818
        %v8127 = vsel %vm1779, %v8095, %v7820
        %v8128 = vsel %vm1779, %v8096, %v7822
        %v8129 = vsel %vm1779, %v8097, %v7824
        %v8130 = vsel %vm1779, %v8098, %v7826
        %v8131 = vsel %vm1779, %v8099, %v7828
        %v8132 = vsel %vm1779, %v8100, %v7830
        %v8133 = vsel %vm1779, %v8101, %v7832
        %v8134 = vsel %vm1779, %v8102, %v7834
        %v8135 = vsel %vm1779, %v8103, %v7836
        %v8136 = vsel %vm1779, %v8104, %v7838
        %v8137 = vsel %vm1779, %v8105, %v7840
        %v8138 = vsel %vm1779, %v8106, %v7842
        %v8139 = vsel %vm1779, %v8107, %v7844
        %v8140 = vsel %vm1779, %v8108, %v7846
        %v8141 = vsel %vm1779, %v8109, %v7848
        %v8142 = vsel %vm1779, %v8110, %v7850
        %v8143 = vsel %vm1779, %v8111, %v7852
        %v8144 = vsel %vm1779, %v8112, %v7854
        %v8145 = vsel %vm1779, %v8113, %v7856
        %v8146 = vsel %vm1779, %v8114, %v7858
        %v8147 = vld [vmem:[%s7] sm:$0xff]
        %v8148 = vld [vmem:[%s7 + $0x8] sm:$0xff]
        %v8149 = vld [vmem:[%s7 + $0x10] sm:$0xff]
        %v8150 = vld [vmem:[%s7 + $0x18] sm:$0xff]
        %v8151 = vld [vmem:[%s7 + $0x20] sm:$0xff]
        %v8152 = vld [vmem:[%s7 + $0x28] sm:$0xff]
        %v8153 = vld [vmem:[%s7 + $0x30] sm:$0xff]
        %v8154 = vld [vmem:[%s7 + $0x38] sm:$0xff]
        %v8155 = vld [vmem:[%s7 + $0x40] sm:$0xff]
        %v8156 = vld [vmem:[%s7 + $0x48] sm:$0xff]
        %v8157 = vld [vmem:[%s7 + $0x50] sm:$0xff]
        %v8158 = vld [vmem:[%s7 + $0x58] sm:$0xff]
        %v8159 = vld [vmem:[%s7 + $0x60] sm:$0xff]
        %v8160 = vld [vmem:[%s7 + $0x68] sm:$0xff]
        %v8161 = vld [vmem:[%s7 + $0x70] sm:$0xff]
        %v8162 = vld [vmem:[%s7 + $0x78] sm:$0xff]
        %v8163 = vld [vmem:[%s7 + $0x80] sm:$0xff]
        %v8164 = vld [vmem:[%s7 + $0x88] sm:$0xff]
        %v8165 = vld [vmem:[%s7 + $0x90] sm:$0xff]
        %v8166 = vld [vmem:[%s7 + $0x98] sm:$0xff]
        %v8167 = vld [vmem:[%s7 + $0xa0] sm:$0xff]
        %v8168 = vld [vmem:[%s7 + $0xa8] sm:$0xff]
        %v8169 = vld [vmem:[%s7 + $0xb0] sm:$0xff]
        %v8170 = vld [vmem:[%s7 + $0xb8] sm:$0xff]
        %v8171 = vld [vmem:[%s7 + $0xc0] sm:$0xff]
        %v8172 = vld [vmem:[%s7 + $0xc8] sm:$0xff]
        %v8173 = vld [vmem:[%s7 + $0xd0] sm:$0xff]
        %v8174 = vld [vmem:[%s7 + $0xd8] sm:$0xff]
        %v8175 = vld [vmem:[%s7 + $0xe0] sm:$0xff]
        %v8176 = vld [vmem:[%s7 + $0xe8] sm:$0xff]
        %v8177 = vld [vmem:[%s7 + $0xf0] sm:$0xff]
        %v8178 = vld [vmem:[%s7 + $0xf8] sm:$0xff]
        %v8179 = vld [vmem:[%s7 + $0x100] sm:$0xff]
        %v8180 = vld [vmem:[%s7 + $0x108] sm:$0xff]
        %v8181 = vld [vmem:[%s7 + $0x110] sm:$0xff]
        %v8182 = vld [vmem:[%s7 + $0x118] sm:$0xff]
        %v8183 = vld [vmem:[%s7 + $0x120] sm:$0xff]
        %v8184 = vld [vmem:[%s7 + $0x128] sm:$0xff]
        %v8185 = vld [vmem:[%s7 + $0x130] sm:$0xff]
        %v8186 = vld [vmem:[%s7 + $0x138] sm:$0xff]
        %v8187 = vld [vmem:[%s7 + $0x140] sm:$0xff]
        %v8188 = vld [vmem:[%s7 + $0x148] sm:$0xff]
        %v8189 = vld [vmem:[%s7 + $0x150] sm:$0xff]
        %v8190 = vld [vmem:[%s7 + $0x158] sm:$0xff]
        %v8191 = vld [vmem:[%s7 + $0x160] sm:$0xff]
        %v8192 = vld [vmem:[%s8] sm:$0x1]
        %v8194 = vperm.slane %v8192, 0
        %vm8196 = vcmask 850944
        %v8198 = vsel %vm8196, %v8115, 0
        %v8201 = vsel %vm8196, %v8116, 0
        %v8204 = vsel %vm8196, %v8117, 0
        %v8207 = vsel %vm8196, %v8118, 0
        %v8210 = vsel %vm8196, %v8119, 0
        %v8213 = vsel %vm8196, %v8120, 0
        %v8216 = vsel %vm8196, %v8121, 0
        %v8219 = vsel %vm8196, %v8122, 0
        %v8222 = vsel %vm8196, %v8123, 0
        %v8225 = vsel %vm8196, %v8124, 0
        %v8228 = vsel %vm8196, %v8125, 0
        %v8231 = vsel %vm8196, %v8126, 0
        %v8234 = vsel %vm8196, %v8127, 0
        %v8237 = vsel %vm8196, %v8128, 0
        %v8240 = vsel %vm8196, %v8129, 0
        %v8243 = vsel %vm8196, %v8130, 0
        %v8246 = vsel %vm8196, %v8131, 0
        %v8249 = vsel %vm8196, %v8132, 0
        %v8252 = vsel %vm8196, %v8133, 0
        %v8255 = vsel %vm8196, %v8134, 0
        %v8258 = vsel %vm8196, %v8135, 0
        %v8261 = vsel %vm8196, %v8136, 0
        %v8264 = vsel %vm8196, %v8137, 0
        %v8267 = vsel %vm8196, %v8138, 0
        %v8270 = vsel %vm8196, %v8139, 0
        %v8273 = vsel %vm8196, %v8140, 0
        %v8276 = vsel %vm8196, %v8141, 0
        %v8279 = vsel %vm8196, %v8142, 0
        %v8282 = vsel %vm8196, %v8143, 0
        %v8285 = vsel %vm8196, %v8144, 0
        %v8288 = vsel %vm8196, %v8145, 0
        %v8291 = vsel %vm8196, %v8146, 0
        %8293 = vmatpush.msra.mxu0 %v8162
        %8294 = vmatpush.msra.mxu0 %v8161
        %8295 = vmatpush.msra.mxu0 %v8160
        %8296 = vmatpush.msra.mxu0 %v8159
        %8297 = vmatpush.msra.mxu0 %v8158
        %8298 = vmatpush.msra.mxu0 %v8157
        %8299 = vmatpush.msra.mxu0 %v8156
        %8300 = vmatpush.msra.mxu0 %v8155
        %8301 = vmatpush.msra.mxu0 %v8154
        %8302 = vmatpush.msra.mxu0 %v8153
        %8303 = vmatpush.msra.mxu0 %v8152
        %8304 = vmatpush.msra.mxu0 %v8151
        %8305 = vmatpush.msra.mxu0 %v8150
        %8306 = vmatpush.msra.mxu0 %v8149
        %8307 = vmatpush.msra.mxu0 %v8148
        %8308 = vmatpush.msra.mxu0 %v8147
        %8309 = vmatmul.f32.gmra.mxu0 %v7955
        %v8310 = vpop.f32.mrf.mxu0
        %v8311 = vadd.f32 %v8194, %v8310
        %8312 = vmatmul.f32.gmra.mxu0 %v7956
        %v8313 = vpop.f32.mrf.mxu0
        %v8314 = vadd.f32 %v8194, %v8313
        %8315 = vmatmul.f32.gmra.mxu0 %v7957
        %v8316 = vpop.f32.mrf.mxu0
        %v8317 = vadd.f32 %v8194, %v8316
        %8318 = vmatmul.f32.gmra.mxu0 %v7958
        %v8319 = vpop.f32.mrf.mxu0
        %v8320 = vadd.f32 %v8194, %v8319
        %8321 = vmatmul.f32.gmra.mxu0 %v7959
        %v8322 = vpop.f32.mrf.mxu0
        %v8323 = vadd.f32 %v8194, %v8322
        %8324 = vmatmul.f32.gmra.mxu0 %v7960
        %v8325 = vpop.f32.mrf.mxu0
        %v8326 = vadd.f32 %v8194, %v8325
        %8327 = vmatmul.f32.gmra.mxu0 %v7961
        %v8328 = vpop.f32.mrf.mxu0
        %v8329 = vadd.f32 %v8194, %v8328
        %8330 = vmatmul.f32.gmra.mxu0 %v7962
        %v8331 = vpop.f32.mrf.mxu0
        %v8332 = vadd.f32 %v8194, %v8331
        %8333 = vmatmul.f32.gmra.mxu0 %v7963
        %v8334 = vpop.f32.mrf.mxu0
        %v8335 = vadd.f32 %v8194, %v8334
        %8336 = vmatmul.f32.gmra.mxu0 %v7964
        %v8337 = vpop.f32.mrf.mxu0
        %v8338 = vadd.f32 %v8194, %v8337
        %8339 = vmatmul.f32.gmra.mxu0 %v7965
        %v8340 = vpop.f32.mrf.mxu0
        %v8341 = vadd.f32 %v8194, %v8340
        %8342 = vmatmul.f32.gmra.mxu0 %v7966
        %v8343 = vpop.f32.mrf.mxu0
        %v8344 = vadd.f32 %v8194, %v8343
        %8345 = vmatmul.f32.gmra.mxu0 %v7967
        %v8346 = vpop.f32.mrf.mxu0
        %v8347 = vadd.f32 %v8194, %v8346
        %8348 = vmatmul.f32.gmra.mxu0 %v7968
        %v8349 = vpop.f32.mrf.mxu0
        %v8350 = vadd.f32 %v8194, %v8349
        %8351 = vmatmul.f32.gmra.mxu0 %v7969
        %v8352 = vpop.f32.mrf.mxu0
        %v8353 = vadd.f32 %v8194, %v8352
        %8354 = vmatmul.f32.gmra.mxu0 %v7970
        %v8355 = vpop.f32.mrf.mxu0
        %v8356 = vadd.f32 %v8194, %v8355
        %8357 = vmatmul.f32.gmra.mxu0 %v7971
        %v8358 = vpop.f32.mrf.mxu0
        %v8359 = vadd.f32 %v8194, %v8358
        %8360 = vmatmul.f32.gmra.mxu0 %v7972
        %v8361 = vpop.f32.mrf.mxu0
        %v8362 = vadd.f32 %v8194, %v8361
        %8363 = vmatmul.f32.gmra.mxu0 %v7973
        %v8364 = vpop.f32.mrf.mxu0
        %v8365 = vadd.f32 %v8194, %v8364
        %8366 = vmatmul.f32.gmra.mxu0 %v7974
        %v8367 = vpop.f32.mrf.mxu0
        %v8368 = vadd.f32 %v8194, %v8367
        %8369 = vmatmul.f32.gmra.mxu0 %v7975
        %v8370 = vpop.f32.mrf.mxu0
        %v8371 = vadd.f32 %v8194, %v8370
        %8372 = vmatmul.f32.gmra.mxu0 %v7976
        %v8373 = vpop.f32.mrf.mxu0
        %v8374 = vadd.f32 %v8194, %v8373
        %8375 = vmatmul.f32.gmra.mxu0 %v7977
        %v8376 = vpop.f32.mrf.mxu0
        %v8377 = vadd.f32 %v8194, %v8376
        %8378 = vmatmul.f32.gmra.mxu0 %v7978
        %v8379 = vpop.f32.mrf.mxu0
        %v8380 = vadd.f32 %v8194, %v8379
        %8381 = vmatmul.f32.gmra.mxu0 %v7979
        %v8382 = vpop.f32.mrf.mxu0
        %v8383 = vadd.f32 %v8194, %v8382
        %8384 = vmatmul.f32.gmra.mxu0 %v7980
        %v8385 = vpop.f32.mrf.mxu0
        %v8386 = vadd.f32 %v8194, %v8385
        %8387 = vmatmul.f32.gmra.mxu0 %v7981
        %v8388 = vpop.f32.mrf.mxu0
        %v8389 = vadd.f32 %v8194, %v8388
        %8390 = vmatmul.f32.gmra.mxu0 %v7982
        %v8391 = vpop.f32.mrf.mxu0
        %v8392 = vadd.f32 %v8194, %v8391
        %8393 = vmatmul.f32.gmra.mxu0 %v7983
        %v8394 = vpop.f32.mrf.mxu0
        %v8395 = vadd.f32 %v8194, %v8394
        %8396 = vmatmul.f32.gmra.mxu0 %v7984
        %v8397 = vpop.f32.mrf.mxu0
        %v8398 = vadd.f32 %v8194, %v8397
        %8399 = vmatmul.f32.gmra.mxu0 %v7985
        %v8400 = vpop.f32.mrf.mxu0
        %v8401 = vadd.f32 %v8194, %v8400
        %8402 = vmatmul.f32.gmra.mxu0 %v7986
        %v8403 = vpop.f32.mrf.mxu0
        %v8404 = vadd.f32 %v8194, %v8403
        %8405 = vdwg.mxu0
        %8406 = vmatpush.msra.mxu0 %v8178
        %8407 = vmatpush.msra.mxu0 %v8177
        %8408 = vmatpush.msra.mxu0 %v8176
        %8409 = vmatpush.msra.mxu0 %v8175
        %8410 = vmatpush.msra.mxu0 %v8174
        %8411 = vmatpush.msra.mxu0 %v8173
        %8412 = vmatpush.msra.mxu0 %v8172
        %8413 = vmatpush.msra.mxu0 %v8171
        %8414 = vmatpush.msra.mxu0 %v8170
        %8415 = vmatpush.msra.mxu0 %v8169
        %8416 = vmatpush.msra.mxu0 %v8168
        %8417 = vmatpush.msra.mxu0 %v8167
        %8418 = vmatpush.msra.mxu0 %v8166
        %8419 = vmatpush.msra.mxu0 %v8165
        %8420 = vmatpush.msra.mxu0 %v8164
        %8421 = vmatpush.msra.mxu0 %v8163
        %8422 = vmatmul.f32.gmra.mxu0 %v8051
        %v8423 = vpop.f32.mrf.mxu0
        %v8424 = vadd.f32 %v8311, %v8423
        %8425 = vmatmul.f32.gmra.mxu0 %v8052
        %v8426 = vpop.f32.mrf.mxu0
        %v8427 = vadd.f32 %v8314, %v8426
        %8428 = vmatmul.f32.gmra.mxu0 %v8053
        %v8429 = vpop.f32.mrf.mxu0
        %v8430 = vadd.f32 %v8317, %v8429
        %8431 = vmatmul.f32.gmra.mxu0 %v8054
        %v8432 = vpop.f32.mrf.mxu0
        %v8433 = vadd.f32 %v8320, %v8432
        %8434 = vmatmul.f32.gmra.mxu0 %v8055
        %v8435 = vpop.f32.mrf.mxu0
        %v8436 = vadd.f32 %v8323, %v8435
        %8437 = vmatmul.f32.gmra.mxu0 %v8056
        %v8438 = vpop.f32.mrf.mxu0
        %v8439 = vadd.f32 %v8326, %v8438
        %8440 = vmatmul.f32.gmra.mxu0 %v8057
        %v8441 = vpop.f32.mrf.mxu0
        %v8442 = vadd.f32 %v8329, %v8441
        %8443 = vmatmul.f32.gmra.mxu0 %v8058
        %v8444 = vpop.f32.mrf.mxu0
        %v8445 = vadd.f32 %v8332, %v8444
        %8446 = vmatmul.f32.gmra.mxu0 %v8059
        %v8447 = vpop.f32.mrf.mxu0
        %v8448 = vadd.f32 %v8335, %v8447
        %8449 = vmatmul.f32.gmra.mxu0 %v8060
        %v8450 = vpop.f32.mrf.mxu0
        %v8451 = vadd.f32 %v8338, %v8450
        %8452 = vmatmul.f32.gmra.mxu0 %v8061
        %v8453 = vpop.f32.mrf.mxu0
        %v8454 = vadd.f32 %v8341, %v8453
        %8455 = vmatmul.f32.gmra.mxu0 %v8062
        %v8456 = vpop.f32.mrf.mxu0
        %v8457 = vadd.f32 %v8344, %v8456
        %8458 = vmatmul.f32.gmra.mxu0 %v8063
        %v8459 = vpop.f32.mrf.mxu0
        %v8460 = vadd.f32 %v8347, %v8459
        %8461 = vmatmul.f32.gmra.mxu0 %v8064
        %v8462 = vpop.f32.mrf.mxu0
        %v8463 = vadd.f32 %v8350, %v8462
        %8464 = vmatmul.f32.gmra.mxu0 %v8065
        %v8465 = vpop.f32.mrf.mxu0
        %v8466 = vadd.f32 %v8353, %v8465
        %8467 = vmatmul.f32.gmra.mxu0 %v8066
        %v8468 = vpop.f32.mrf.mxu0
        %v8469 = vadd.f32 %v8356, %v8468
        %8470 = vmatmul.f32.gmra.mxu0 %v8067
        %v8471 = vpop.f32.mrf.mxu0
        %v8472 = vadd.f32 %v8359, %v8471
        %8473 = vmatmul.f32.gmra.mxu0 %v8068
        %v8474 = vpop.f32.mrf.mxu0
        %v8475 = vadd.f32 %v8362, %v8474
        %8476 = vmatmul.f32.gmra.mxu0 %v8069
        %v8477 = vpop.f32.mrf.mxu0
        %v8478 = vadd.f32 %v8365, %v8477
        %8479 = vmatmul.f32.gmra.mxu0 %v8070
        %v8480 = vpop.f32.mrf.mxu0
        %v8481 = vadd.f32 %v8368, %v8480
        %8482 = vmatmul.f32.gmra.mxu0 %v8071
        %v8483 = vpop.f32.mrf.mxu0
        %v8484 = vadd.f32 %v8371, %v8483
        %8485 = vmatmul.f32.gmra.mxu0 %v8072
        %v8486 = vpop.f32.mrf.mxu0
        %v8487 = vadd.f32 %v8374, %v8486
        %8488 = vmatmul.f32.gmra.mxu0 %v8073
        %v8489 = vpop.f32.mrf.mxu0
        %v8490 = vadd.f32 %v8377, %v8489
        %8491 = vmatmul.f32.gmra.mxu0 %v8074
        %v8492 = vpop.f32.mrf.mxu0
        %v8493 = vadd.f32 %v8380, %v8492
        %8494 = vmatmul.f32.gmra.mxu0 %v8075
        %v8495 = vpop.f32.mrf.mxu0
        %v8496 = vadd.f32 %v8383, %v8495
        %8497 = vmatmul.f32.gmra.mxu0 %v8076
        %v8498 = vpop.f32.mrf.mxu0
        %v8499 = vadd.f32 %v8386, %v8498
        %8500 = vmatmul.f32.gmra.mxu0 %v8077
        %v8501 = vpop.f32.mrf.mxu0
        %v8502 = vadd.f32 %v8389, %v8501
        %8503 = vmatmul.f32.gmra.mxu0 %v8078
        %v8504 = vpop.f32.mrf.mxu0
        %v8505 = vadd.f32 %v8392, %v8504
        %8506 = vmatmul.f32.gmra.mxu0 %v8079
        %v8507 = vpop.f32.mrf.mxu0
        %v8508 = vadd.f32 %v8395, %v8507
        %8509 = vmatmul.f32.gmra.mxu0 %v8080
        %v8510 = vpop.f32.mrf.mxu0
        %v8511 = vadd.f32 %v8398, %v8510
        %8512 = vmatmul.f32.gmra.mxu0 %v8081
        %v8513 = vpop.f32.mrf.mxu0
        %v8514 = vadd.f32 %v8401, %v8513
        %8515 = vmatmul.f32.gmra.mxu0 %v8082
        %v8516 = vpop.f32.mrf.mxu0
        %v8517 = vadd.f32 %v8404, %v8516
        %8518 = vdwg.mxu0
        %8519 = vmatpush.msra.mxu0 0.0
        %8520 = vmatpush.msra.mxu0 0.0
        %8521 = vmatpush.msra.mxu0 0.0
        %8522 = vmatpush.msra.mxu0 %v8191
        %8523 = vmatpush.msra.mxu0 %v8190
        %8524 = vmatpush.msra.mxu0 %v8189
        %8525 = vmatpush.msra.mxu0 %v8188
        %8526 = vmatpush.msra.mxu0 %v8187
        %8527 = vmatpush.msra.mxu0 %v8186
        %8528 = vmatpush.msra.mxu0 %v8185
        %8529 = vmatpush.msra.mxu0 %v8184
        %8530 = vmatpush.msra.mxu0 %v8183
        %8531 = vmatpush.msra.mxu0 %v8182
        %8532 = vmatpush.msra.mxu0 %v8181
        %8533 = vmatpush.msra.mxu0 %v8180
        %8534 = vmatpush.msra.mxu0 %v8179
        %8535 = vmatmul.f32.gmra.mxu0 %v8198
        %v8536 = vpop.f32.mrf.mxu0
        %v8537 = vadd.f32 %v8424, %v8536
        %8538 = vmatmul.f32.gmra.mxu0 %v8201
        %v8539 = vpop.f32.mrf.mxu0
        %v8540 = vadd.f32 %v8427, %v8539
        %8541 = vmatmul.f32.gmra.mxu0 %v8204
        %v8542 = vpop.f32.mrf.mxu0
        %v8543 = vadd.f32 %v8430, %v8542
        %8544 = vmatmul.f32.gmra.mxu0 %v8207
        %v8545 = vpop.f32.mrf.mxu0
        %v8546 = vadd.f32 %v8433, %v8545
        %8547 = vmatmul.f32.gmra.mxu0 %v8210
        %v8548 = vpop.f32.mrf.mxu0
        %v8549 = vadd.f32 %v8436, %v8548
        %8550 = vmatmul.f32.gmra.mxu0 %v8213
        %v8551 = vpop.f32.mrf.mxu0
        %v8552 = vadd.f32 %v8439, %v8551
        %8553 = vmatmul.f32.gmra.mxu0 %v8216
        %v8554 = vpop.f32.mrf.mxu0
        %v8555 = vadd.f32 %v8442, %v8554
        %8556 = vmatmul.f32.gmra.mxu0 %v8219
        %v8557 = vpop.f32.mrf.mxu0
        %v8558 = vadd.f32 %v8445, %v8557
        %8559 = vmatmul.f32.gmra.mxu0 %v8222
        %v8560 = vpop.f32.mrf.mxu0
        %v8561 = vadd.f32 %v8448, %v8560
        %8562 = vmatmul.f32.gmra.mxu0 %v8225
        %v8563 = vpop.f32.mrf.mxu0
        %v8564 = vadd.f32 %v8451, %v8563
        %8565 = vmatmul.f32.gmra.mxu0 %v8228
        %v8566 = vpop.f32.mrf.mxu0
        %v8567 = vadd.f32 %v8454, %v8566
        %8568 = vmatmul.f32.gmra.mxu0 %v8231
        %v8569 = vpop.f32.mrf.mxu0
        %v8570 = vadd.f32 %v8457, %v8569
        %8571 = vmatmul.f32.gmra.mxu0 %v8234
        %v8572 = vpop.f32.mrf.mxu0
        %v8573 = vadd.f32 %v8460, %v8572
        %8574 = vmatmul.f32.gmra.mxu0 %v8237
        %v8575 = vpop.f32.mrf.mxu0
        %v8576 = vadd.f32 %v8463, %v8575
        %8577 = vmatmul.f32.gmra.mxu0 %v8240
        %v8578 = vpop.f32.mrf.mxu0
        %v8579 = vadd.f32 %v8466, %v8578
        %8580 = vmatmul.f32.gmra.mxu0 %v8243
        %v8581 = vpop.f32.mrf.mxu0
        %v8582 = vadd.f32 %v8469, %v8581
        %8583 = vmatmul.f32.gmra.mxu0 %v8246
        %v8584 = vpop.f32.mrf.mxu0
        %v8585 = vadd.f32 %v8472, %v8584
        %8586 = vmatmul.f32.gmra.mxu0 %v8249
        %v8587 = vpop.f32.mrf.mxu0
        %v8588 = vadd.f32 %v8475, %v8587
        %8589 = vmatmul.f32.gmra.mxu0 %v8252
        %v8590 = vpop.f32.mrf.mxu0
        %v8591 = vadd.f32 %v8478, %v8590
        %8592 = vmatmul.f32.gmra.mxu0 %v8255
        %v8593 = vpop.f32.mrf.mxu0
        %v8594 = vadd.f32 %v8481, %v8593
        %8595 = vmatmul.f32.gmra.mxu0 %v8258
        %v8596 = vpop.f32.mrf.mxu0
        %v8597 = vadd.f32 %v8484, %v8596
        %8598 = vmatmul.f32.gmra.mxu0 %v8261
        %v8599 = vpop.f32.mrf.mxu0
        %v8600 = vadd.f32 %v8487, %v8599
        %8601 = vmatmul.f32.gmra.mxu0 %v8264
        %v8602 = vpop.f32.mrf.mxu0
        %v8603 = vadd.f32 %v8490, %v8602
        %8604 = vmatmul.f32.gmra.mxu0 %v8267
        %v8605 = vpop.f32.mrf.mxu0
        %v8606 = vadd.f32 %v8493, %v8605
        %8607 = vmatmul.f32.gmra.mxu0 %v8270
        %v8608 = vpop.f32.mrf.mxu0
        %v8609 = vadd.f32 %v8496, %v8608
        %8610 = vmatmul.f32.gmra.mxu0 %v8273
        %v8611 = vpop.f32.mrf.mxu0
        %v8612 = vadd.f32 %v8499, %v8611
        %8613 = vmatmul.f32.gmra.mxu0 %v8276
        %v8614 = vpop.f32.mrf.mxu0
        %v8615 = vadd.f32 %v8502, %v8614
        %8616 = vmatmul.f32.gmra.mxu0 %v8279
        %v8617 = vpop.f32.mrf.mxu0
        %v8618 = vadd.f32 %v8505, %v8617
        %8619 = vmatmul.f32.gmra.mxu0 %v8282
        %v8620 = vpop.f32.mrf.mxu0
        %v8621 = vadd.f32 %v8508, %v8620
        %8622 = vmatmul.f32.gmra.mxu0 %v8285
        %v8623 = vpop.f32.mrf.mxu0
        %v8624 = vadd.f32 %v8511, %v8623
        %8625 = vmatmul.f32.gmra.mxu0 %v8288
        %v8626 = vpop.f32.mrf.mxu0
        %v8627 = vadd.f32 %v8514, %v8626
        %8628 = vmatmul.f32.gmra.mxu0 %v8291
        %v8629 = vpop.f32.mrf.mxu0
        %v8630 = vadd.f32 %v8517, %v8629
        %8631 = vdwg.mxu0
        %v8632 = vmul.f32 %v8537, 0.2
        %v8633 = vmul.f32 %v8540, 0.2
        %v8634 = vmul.f32 %v8543, 0.2
        %v8635 = vmul.f32 %v8546, 0.2
        %v8636 = vmul.f32 %v8549, 0.2
        %v8637 = vmul.f32 %v8552, 0.2
        %v8638 = vmul.f32 %v8555, 0.2
        %v8639 = vmul.f32 %v8558, 0.2
        %v8640 = vmul.f32 %v8561, 0.2
        %v8641 = vmul.f32 %v8564, 0.2
        %v8642 = vmul.f32 %v8567, 0.2
        %v8643 = vmul.f32 %v8570, 0.2
        %v8644 = vmul.f32 %v8573, 0.2
        %v8645 = vmul.f32 %v8576, 0.2
        %v8646 = vmul.f32 %v8579, 0.2
        %v8647 = vmul.f32 %v8582, 0.2
        %v8648 = vmul.f32 %v8585, 0.2
        %v8649 = vmul.f32 %v8588, 0.2
        %v8650 = vmul.f32 %v8591, 0.2
        %v8651 = vmul.f32 %v8594, 0.2
        %v8652 = vmul.f32 %v8597, 0.2
        %v8653 = vmul.f32 %v8600, 0.2
        %v8654 = vmul.f32 %v8603, 0.2
        %v8655 = vmul.f32 %v8606, 0.2
        %v8656 = vmul.f32 %v8609, 0.2
        %v8657 = vmul.f32 %v8612, 0.2
        %v8658 = vmul.f32 %v8615, 0.2
        %v8659 = vmul.f32 %v8618, 0.2
        %v8660 = vmul.f32 %v8621, 0.2
        %v8661 = vmul.f32 %v8624, 0.2
        %v8662 = vmul.f32 %v8627, 0.2
        %v8663 = vmul.f32 %v8630, 0.2
        %v8664 = vmax.f32 %v8537, %v8632
        %v8665 = vmax.f32 %v8540, %v8633
        %v8666 = vmax.f32 %v8543, %v8634
        %v8667 = vmax.f32 %v8546, %v8635
        %v8668 = vmax.f32 %v8549, %v8636
        %v8669 = vmax.f32 %v8552, %v8637
        %v8670 = vmax.f32 %v8555, %v8638
        %v8671 = vmax.f32 %v8558, %v8639
        %v8672 = vmax.f32 %v8561, %v8640
        %v8673 = vmax.f32 %v8564, %v8641
        %v8674 = vmax.f32 %v8567, %v8642
        %v8675 = vmax.f32 %v8570, %v8643
        %v8676 = vmax.f32 %v8573, %v8644
        %v8677 = vmax.f32 %v8576, %v8645
        %v8678 = vmax.f32 %v8579, %v8646
        %v8679 = vmax.f32 %v8582, %v8647
        %v8680 = vmax.f32 %v8585, %v8648
        %v8681 = vmax.f32 %v8588, %v8649
        %v8682 = vmax.f32 %v8591, %v8650
        %v8683 = vmax.f32 %v8594, %v8651
        %v8684 = vmax.f32 %v8597, %v8652
        %v8685 = vmax.f32 %v8600, %v8653
        %v8686 = vmax.f32 %v8603, %v8654
        %v8687 = vmax.f32 %v8606, %v8655
        %v8688 = vmax.f32 %v8609, %v8656
        %v8689 = vmax.f32 %v8612, %v8657
        %v8690 = vmax.f32 %v8615, %v8658
        %v8691 = vmax.f32 %v8618, %v8659
        %v8692 = vmax.f32 %v8621, %v8660
        %v8693 = vmax.f32 %v8624, %v8661
        %v8694 = vmax.f32 %v8627, %v8662
        %v8695 = vmax.f32 %v8630, %v8663
        %8728 = vrot.lane.b32.xlu0 %v8664, 40
        %v8729 = vpop.permute.xlu0 %8728
        %8730 = vrot.lane.b32.xlu0 %v8665, 40
        %v8731 = vpop.permute.xlu0 %8730
        %8732 = vrot.lane.b32.xlu0 %v8666, 40
        %v8733 = vpop.permute.xlu0 %8732
        %8734 = vrot.lane.b32.xlu0 %v8667, 40
        %v8735 = vpop.permute.xlu0 %8734
        %8736 = vrot.lane.b32.xlu0 %v8668, 40
        %v8737 = vpop.permute.xlu0 %8736
        %8738 = vrot.lane.b32.xlu0 %v8669, 40
        %v8739 = vpop.permute.xlu0 %8738
        %8740 = vrot.lane.b32.xlu0 %v8670, 40
        %v8741 = vpop.permute.xlu0 %8740
        %8742 = vrot.lane.b32.xlu0 %v8671, 40
        %v8743 = vpop.permute.xlu0 %8742
        %8744 = vrot.lane.b32.xlu0 %v8672, 40
        %v8745 = vpop.permute.xlu0 %8744
        %8746 = vrot.lane.b32.xlu0 %v8673, 40
        %v8747 = vpop.permute.xlu0 %8746
        %8748 = vrot.lane.b32.xlu0 %v8674, 40
        %v8749 = vpop.permute.xlu0 %8748
        %8750 = vrot.lane.b32.xlu0 %v8675, 40
        %v8751 = vpop.permute.xlu0 %8750
        %8752 = vrot.lane.b32.xlu0 %v8676, 40
        %v8753 = vpop.permute.xlu0 %8752
        %8754 = vrot.lane.b32.xlu0 %v8677, 40
        %v8755 = vpop.permute.xlu0 %8754
        %8756 = vrot.lane.b32.xlu0 %v8678, 40
        %v8757 = vpop.permute.xlu0 %8756
        %8758 = vrot.lane.b32.xlu0 %v8679, 40
        %v8759 = vpop.permute.xlu0 %8758
        %8760 = vrot.lane.b32.xlu0 %v8680, 40
        %v8761 = vpop.permute.xlu0 %8760
        %8762 = vrot.lane.b32.xlu0 %v8681, 40
        %v8763 = vpop.permute.xlu0 %8762
        %8764 = vrot.lane.b32.xlu0 %v8682, 40
        %v8765 = vpop.permute.xlu0 %8764
        %8766 = vrot.lane.b32.xlu0 %v8683, 40
        %v8767 = vpop.permute.xlu0 %8766
        %8768 = vrot.lane.b32.xlu0 %v8684, 40
        %v8769 = vpop.permute.xlu0 %8768
        %8770 = vrot.lane.b32.xlu0 %v8685, 40
        %v8771 = vpop.permute.xlu0 %8770
        %8772 = vrot.lane.b32.xlu0 %v8686, 40
        %v8773 = vpop.permute.xlu0 %8772
        %8774 = vrot.lane.b32.xlu0 %v8687, 40
        %v8775 = vpop.permute.xlu0 %8774
        %8776 = vrot.lane.b32.xlu0 %v8688, 40
        %v8777 = vpop.permute.xlu0 %8776
        %8778 = vrot.lane.b32.xlu0 %v8689, 40
        %v8779 = vpop.permute.xlu0 %8778
        %8780 = vrot.lane.b32.xlu0 %v8690, 40
        %v8781 = vpop.permute.xlu0 %8780
        %8782 = vrot.lane.b32.xlu0 %v8691, 40
        %v8783 = vpop.permute.xlu0 %8782
        %8784 = vrot.lane.b32.xlu0 %v8692, 40
        %v8785 = vpop.permute.xlu0 %8784
        %8786 = vrot.lane.b32.xlu0 %v8693, 40
        %v8787 = vpop.permute.xlu0 %8786
        %8788 = vrot.lane.b32.xlu0 %v8694, 40
        %v8789 = vpop.permute.xlu0 %8788
        %8790 = vrot.lane.b32.xlu0 %v8695, 40
        %v8791 = vpop.permute.xlu0 %8790
        %vm8824 = vcmask 392512
        %8825 = vst.msk [vmem:[%s463 + $0x1] sm:$0xff] %vm8824, %v8729
        %8826 = vst.msk [vmem:[%s463 + $0x9] sm:$0xff] %vm8824, %v8731
        %8827 = vst.msk [vmem:[%s463 + $0x19] sm:$0xff] %vm8824, %v8733
        %8828 = vst.msk [vmem:[%s463 + $0x21] sm:$0xff] %vm8824, %v8735
        %8829 = vst.msk [vmem:[%s463 + $0x31] sm:$0xff] %vm8824, %v8737
        %8830 = vst.msk [vmem:[%s463 + $0x39] sm:$0xff] %vm8824, %v8739
        %8831 = vst.msk [vmem:[%s463 + $0x49] sm:$0xff] %vm8824, %v8741
        %8832 = vst.msk [vmem:[%s463 + $0x51] sm:$0xff] %vm8824, %v8743
        %8833 = vst.msk [vmem:[%s463 + $0x61] sm:$0xff] %vm8824, %v8745
        %8834 = vst.msk [vmem:[%s463 + $0x69] sm:$0xff] %vm8824, %v8747
        %8835 = vst.msk [vmem:[%s463 + $0x79] sm:$0xff] %vm8824, %v8749
        %8836 = vst.msk [vmem:[%s463 + $0x81] sm:$0xff] %vm8824, %v8751
        %8837 = vst.msk [vmem:[%s463 + $0x91] sm:$0xff] %vm8824, %v8753
        %8838 = vst.msk [vmem:[%s463 + $0x99] sm:$0xff] %vm8824, %v8755
        %8839 = vst.msk [vmem:[%s463 + $0xa9] sm:$0xff] %vm8824, %v8757
        %8840 = vst.msk [vmem:[%s463 + $0xb1] sm:$0xff] %vm8824, %v8759
        %8841 = vst.msk [vmem:[%s463 + $0xc1] sm:$0xff] %vm8824, %v8761
        %8842 = vst.msk [vmem:[%s463 + $0xc9] sm:$0xff] %vm8824, %v8763
        %8843 = vst.msk [vmem:[%s463 + $0xd9] sm:$0xff] %vm8824, %v8765
        %8844 = vst.msk [vmem:[%s463 + $0xe1] sm:$0xff] %vm8824, %v8767
        %8845 = vst.msk [vmem:[%s463 + $0xf1] sm:$0xff] %vm8824, %v8769
        %8846 = vst.msk [vmem:[%s463 + $0xf9] sm:$0xff] %vm8824, %v8771
        %8847 = vst.msk [vmem:[%s463 + $0x109] sm:$0xff] %vm8824, %v8773
        %8848 = vst.msk [vmem:[%s463 + $0x111] sm:$0xff] %vm8824, %v8775
        %8849 = vst.msk [vmem:[%s463 + $0x121] sm:$0xff] %vm8824, %v8777
        %8850 = vst.msk [vmem:[%s463 + $0x129] sm:$0xff] %vm8824, %v8779
        %8851 = vst.msk [vmem:[%s463 + $0x139] sm:$0xff] %vm8824, %v8781
        %8852 = vst.msk [vmem:[%s463 + $0x141] sm:$0xff] %vm8824, %v8783
        %8853 = vst.msk [vmem:[%s463 + $0x151] sm:$0xff] %vm8824, %v8785
        %8854 = vst.msk [vmem:[%s463 + $0x159] sm:$0xff] %vm8824, %v8787
        %8855 = vst.msk [vmem:[%s463 + $0x169] sm:$0xff] %vm8824, %v8789
        %8856 = vst.msk [vmem:[%s463 + $0x171] sm:$0xff] %vm8824, %v8791
        %v8857 = vld [vmem:[#allocation2] sm:$0xff]
        %v8858 = vld [vmem:[#allocation2 + $0x8] sm:$0xff]
        %v8859 = vld [vmem:[#allocation2 + $0x18] sm:$0xff]
        %v8860 = vld [vmem:[#allocation2 + $0x20] sm:$0xff]
        %v8861 = vld [vmem:[#allocation2 + $0x30] sm:$0xff]
        %v8862 = vld [vmem:[#allocation2 + $0x38] sm:$0xff]
        %v8863 = vld [vmem:[#allocation2 + $0x48] sm:$0xff]
        %v8864 = vld [vmem:[#allocation2 + $0x50] sm:$0xff]
        %v8865 = vld [vmem:[#allocation2 + $0x60] sm:$0xff]
        %v8866 = vld [vmem:[#allocation2 + $0x68] sm:$0xff]
        %v8867 = vld [vmem:[#allocation2 + $0x78] sm:$0xff]
        %v8868 = vld [vmem:[#allocation2 + $0x80] sm:$0xff]
        %v8869 = vld [vmem:[#allocation2 + $0x90] sm:$0xff]
        %v8870 = vld [vmem:[#allocation2 + $0x98] sm:$0xff]
        %v8871 = vld [vmem:[#allocation2 + $0xa8] sm:$0xff]
        %v8872 = vld [vmem:[#allocation2 + $0xb0] sm:$0xff]
        %v8873 = vld [vmem:[#allocation2 + $0xc0] sm:$0xff]
        %v8874 = vld [vmem:[#allocation2 + $0xc8] sm:$0xff]
        %v8875 = vld [vmem:[#allocation2 + $0xd8] sm:$0xff]
        %v8876 = vld [vmem:[#allocation2 + $0xe0] sm:$0xff]
        %v8877 = vld [vmem:[#allocation2 + $0xf0] sm:$0xff]
        %v8878 = vld [vmem:[#allocation2 + $0xf8] sm:$0xff]
        %v8879 = vld [vmem:[#allocation2 + $0x108] sm:$0xff]
        %v8880 = vld [vmem:[#allocation2 + $0x110] sm:$0xff]
        %v8881 = vld [vmem:[#allocation2 + $0x120] sm:$0xff]
        %v8882 = vld [vmem:[#allocation2 + $0x128] sm:$0xff]
        %v8883 = vld [vmem:[#allocation2 + $0x138] sm:$0xff]
        %v8884 = vld [vmem:[#allocation2 + $0x140] sm:$0xff]
        %v8885 = vld [vmem:[#allocation2 + $0x150] sm:$0xff]
        %v8886 = vld [vmem:[#allocation2 + $0x158] sm:$0xff]
        %v8887 = vld [vmem:[#allocation2 + $0x168] sm:$0xff]
        %v8888 = vld [vmem:[#allocation2 + $0x170] sm:$0xff]
        %v8889 = vld [vmem:[#allocation2 + $0x1] sm:$0xff]
        %v8890 = vld [vmem:[#allocation2 + $0x9] sm:$0xff]
        %v8891 = vld [vmem:[#allocation2 + $0x19] sm:$0xff]
        %v8892 = vld [vmem:[#allocation2 + $0x21] sm:$0xff]
        %v8893 = vld [vmem:[#allocation2 + $0x31] sm:$0xff]
        %v8894 = vld [vmem:[#allocation2 + $0x39] sm:$0xff]
        %v8895 = vld [vmem:[#allocation2 + $0x49] sm:$0xff]
        %v8896 = vld [vmem:[#allocation2 + $0x51] sm:$0xff]
        %v8897 = vld [vmem:[#allocation2 + $0x61] sm:$0xff]
        %v8898 = vld [vmem:[#allocation2 + $0x69] sm:$0xff]
        %v8899 = vld [vmem:[#allocation2 + $0x79] sm:$0xff]
        %v8900 = vld [vmem:[#allocation2 + $0x81] sm:$0xff]
        %v8901 = vld [vmem:[#allocation2 + $0x91] sm:$0xff]
        %v8902 = vld [vmem:[#allocation2 + $0x99] sm:$0xff]
        %v8903 = vld [vmem:[#allocation2 + $0xa9] sm:$0xff]
        %v8904 = vld [vmem:[#allocation2 + $0xb1] sm:$0xff]
        %v8905 = vld [vmem:[#allocation2 + $0xc1] sm:$0xff]
        %v8906 = vld [vmem:[#allocation2 + $0xc9] sm:$0xff]
        %v8907 = vld [vmem:[#allocation2 + $0xd9] sm:$0xff]
        %v8908 = vld [vmem:[#allocation2 + $0xe1] sm:$0xff]
        %v8909 = vld [vmem:[#allocation2 + $0xf1] sm:$0xff]
        %v8910 = vld [vmem:[#allocation2 + $0xf9] sm:$0xff]
        %v8911 = vld [vmem:[#allocation2 + $0x109] sm:$0xff]
        %v8912 = vld [vmem:[#allocation2 + $0x111] sm:$0xff]
        %v8913 = vld [vmem:[#allocation2 + $0x121] sm:$0xff]
        %v8914 = vld [vmem:[#allocation2 + $0x129] sm:$0xff]
        %v8915 = vld [vmem:[#allocation2 + $0x139] sm:$0xff]
        %v8916 = vld [vmem:[#allocation2 + $0x141] sm:$0xff]
        %v8917 = vld [vmem:[#allocation2 + $0x151] sm:$0xff]
        %v8918 = vld [vmem:[#allocation2 + $0x159] sm:$0xff]
        %v8919 = vld [vmem:[#allocation2 + $0x169] sm:$0xff]
        %v8920 = vld [vmem:[#allocation2 + $0x171] sm:$0xff]
        %v8921 = vld [vmem:[#allocation2 + $0x2] sm:$0xff]
        %v8922 = vld [vmem:[#allocation2 + $0xa] sm:$0xff]
        %v8923 = vld [vmem:[#allocation2 + $0x1a] sm:$0xff]
        %v8924 = vld [vmem:[#allocation2 + $0x22] sm:$0xff]
        %v8925 = vld [vmem:[#allocation2 + $0x32] sm:$0xff]
        %v8926 = vld [vmem:[#allocation2 + $0x3a] sm:$0xff]
        %v8927 = vld [vmem:[#allocation2 + $0x4a] sm:$0xff]
        %v8928 = vld [vmem:[#allocation2 + $0x52] sm:$0xff]
        %v8929 = vld [vmem:[#allocation2 + $0x62] sm:$0xff]
        %v8930 = vld [vmem:[#allocation2 + $0x6a] sm:$0xff]
        %v8931 = vld [vmem:[#allocation2 + $0x7a] sm:$0xff]
        %v8932 = vld [vmem:[#allocation2 + $0x82] sm:$0xff]
        %v8933 = vld [vmem:[#allocation2 + $0x92] sm:$0xff]
        %v8934 = vld [vmem:[#allocation2 + $0x9a] sm:$0xff]
        %v8935 = vld [vmem:[#allocation2 + $0xaa] sm:$0xff]
        %v8936 = vld [vmem:[#allocation2 + $0xb2] sm:$0xff]
        %v8937 = vld [vmem:[#allocation2 + $0xc2] sm:$0xff]
        %v8938 = vld [vmem:[#allocation2 + $0xca] sm:$0xff]
        %v8939 = vld [vmem:[#allocation2 + $0xda] sm:$0xff]
        %v8940 = vld [vmem:[#allocation2 + $0xe2] sm:$0xff]
        %v8941 = vld [vmem:[#allocation2 + $0xf2] sm:$0xff]
        %v8942 = vld [vmem:[#allocation2 + $0xfa] sm:$0xff]
        %v8943 = vld [vmem:[#allocation2 + $0x10a] sm:$0xff]
        %v8944 = vld [vmem:[#allocation2 + $0x112] sm:$0xff]
        %v8945 = vld [vmem:[#allocation2 + $0x122] sm:$0xff]
        %v8946 = vld [vmem:[#allocation2 + $0x12a] sm:$0xff]
        %v8947 = vld [vmem:[#allocation2 + $0x13a] sm:$0xff]
        %v8948 = vld [vmem:[#allocation2 + $0x142] sm:$0xff]
        %v8949 = vld [vmem:[#allocation2 + $0x152] sm:$0xff]
        %v8950 = vld [vmem:[#allocation2 + $0x15a] sm:$0xff]
        %v8951 = vld [vmem:[#allocation2 + $0x16a] sm:$0xff]
        %v8952 = vld [vmem:[#allocation2 + $0x172] sm:$0xff]
        %v8953 = vld [vmem:[%s463] sm:$0xff]
        %v8954 = vld [vmem:[%s463 + $0x8] sm:$0xff]
        %v8955 = vld [vmem:[%s463 + $0x18] sm:$0xff]
        %v8956 = vld [vmem:[%s463 + $0x20] sm:$0xff]
        %v8957 = vld [vmem:[%s463 + $0x30] sm:$0xff]
        %v8958 = vld [vmem:[%s463 + $0x38] sm:$0xff]
        %v8959 = vld [vmem:[%s463 + $0x48] sm:$0xff]
        %v8960 = vld [vmem:[%s463 + $0x50] sm:$0xff]
        %v8961 = vld [vmem:[%s463 + $0x60] sm:$0xff]
        %v8962 = vld [vmem:[%s463 + $0x68] sm:$0xff]
        %v8963 = vld [vmem:[%s463 + $0x78] sm:$0xff]
        %v8964 = vld [vmem:[%s463 + $0x80] sm:$0xff]
        %v8965 = vld [vmem:[%s463 + $0x90] sm:$0xff]
        %v8966 = vld [vmem:[%s463 + $0x98] sm:$0xff]
        %v8967 = vld [vmem:[%s463 + $0xa8] sm:$0xff]
        %v8968 = vld [vmem:[%s463 + $0xb0] sm:$0xff]
        %v8969 = vld [vmem:[%s463 + $0xc0] sm:$0xff]
        %v8970 = vld [vmem:[%s463 + $0xc8] sm:$0xff]
        %v8971 = vld [vmem:[%s463 + $0xd8] sm:$0xff]
        %v8972 = vld [vmem:[%s463 + $0xe0] sm:$0xff]
        %v8973 = vld [vmem:[%s463 + $0xf0] sm:$0xff]
        %v8974 = vld [vmem:[%s463 + $0xf8] sm:$0xff]
        %v8975 = vld [vmem:[%s463 + $0x108] sm:$0xff]
        %v8976 = vld [vmem:[%s463 + $0x110] sm:$0xff]
        %v8977 = vld [vmem:[%s463 + $0x120] sm:$0xff]
        %v8978 = vld [vmem:[%s463 + $0x128] sm:$0xff]
        %v8979 = vld [vmem:[%s463 + $0x138] sm:$0xff]
        %v8980 = vld [vmem:[%s463 + $0x140] sm:$0xff]
        %v8981 = vld [vmem:[%s463 + $0x150] sm:$0xff]
        %v8982 = vld [vmem:[%s463 + $0x158] sm:$0xff]
        %v8983 = vld [vmem:[%s463 + $0x168] sm:$0xff]
        %v8984 = vld [vmem:[%s463 + $0x170] sm:$0xff]
        %v8985 = vld [vmem:[%s463 + $0x1] sm:$0xff]
        %v8986 = vld [vmem:[%s463 + $0x9] sm:$0xff]
        %v8987 = vld [vmem:[%s463 + $0x19] sm:$0xff]
        %v8988 = vld [vmem:[%s463 + $0x21] sm:$0xff]
        %v8989 = vld [vmem:[%s463 + $0x31] sm:$0xff]
        %v8990 = vld [vmem:[%s463 + $0x39] sm:$0xff]
        %v8991 = vld [vmem:[%s463 + $0x49] sm:$0xff]
        %v8992 = vld [vmem:[%s463 + $0x51] sm:$0xff]
        %v8993 = vld [vmem:[%s463 + $0x61] sm:$0xff]
        %v8994 = vld [vmem:[%s463 + $0x69] sm:$0xff]
        %v8995 = vld [vmem:[%s463 + $0x79] sm:$0xff]
        %v8996 = vld [vmem:[%s463 + $0x81] sm:$0xff]
        %v8997 = vld [vmem:[%s463 + $0x91] sm:$0xff]
        %v8998 = vld [vmem:[%s463 + $0x99] sm:$0xff]
        %v8999 = vld [vmem:[%s463 + $0xa9] sm:$0xff]
        %v9000 = vld [vmem:[%s463 + $0xb1] sm:$0xff]
        %v9001 = vld [vmem:[%s463 + $0xc1] sm:$0xff]
        %v9002 = vld [vmem:[%s463 + $0xc9] sm:$0xff]
        %v9003 = vld [vmem:[%s463 + $0xd9] sm:$0xff]
        %v9004 = vld [vmem:[%s463 + $0xe1] sm:$0xff]
        %v9005 = vld [vmem:[%s463 + $0xf1] sm:$0xff]
        %v9006 = vld [vmem:[%s463 + $0xf9] sm:$0xff]
        %v9007 = vld [vmem:[%s463 + $0x109] sm:$0xff]
        %v9008 = vld [vmem:[%s463 + $0x111] sm:$0xff]
        %v9009 = vld [vmem:[%s463 + $0x121] sm:$0xff]
        %v9010 = vld [vmem:[%s463 + $0x129] sm:$0xff]
        %v9011 = vld [vmem:[%s463 + $0x139] sm:$0xff]
        %v9012 = vld [vmem:[%s463 + $0x141] sm:$0xff]
        %v9013 = vld [vmem:[%s463 + $0x151] sm:$0xff]
        %v9014 = vld [vmem:[%s463 + $0x159] sm:$0xff]
        %v9015 = vld [vmem:[%s463 + $0x169] sm:$0xff]
        %v9016 = vld [vmem:[%s463 + $0x171] sm:$0xff]
        %v9017 = vld [vmem:[%s463 + $0x2] sm:$0xff]
        %v9018 = vld [vmem:[%s463 + $0xa] sm:$0xff]
        %v9019 = vld [vmem:[%s463 + $0x1a] sm:$0xff]
        %v9020 = vld [vmem:[%s463 + $0x22] sm:$0xff]
        %v9021 = vld [vmem:[%s463 + $0x32] sm:$0xff]
        %v9022 = vld [vmem:[%s463 + $0x3a] sm:$0xff]
        %v9023 = vld [vmem:[%s463 + $0x4a] sm:$0xff]
        %v9024 = vld [vmem:[%s463 + $0x52] sm:$0xff]
        %v9025 = vld [vmem:[%s463 + $0x62] sm:$0xff]
        %v9026 = vld [vmem:[%s463 + $0x6a] sm:$0xff]
        %v9027 = vld [vmem:[%s463 + $0x7a] sm:$0xff]
        %v9028 = vld [vmem:[%s463 + $0x82] sm:$0xff]
        %v9029 = vld [vmem:[%s463 + $0x92] sm:$0xff]
        %v9030 = vld [vmem:[%s463 + $0x9a] sm:$0xff]
        %v9031 = vld [vmem:[%s463 + $0xaa] sm:$0xff]
        %v9032 = vld [vmem:[%s463 + $0xb2] sm:$0xff]
        %v9033 = vld [vmem:[%s463 + $0xc2] sm:$0xff]
        %v9034 = vld [vmem:[%s463 + $0xca] sm:$0xff]
        %v9035 = vld [vmem:[%s463 + $0xda] sm:$0xff]
        %v9036 = vld [vmem:[%s463 + $0xe2] sm:$0xff]
        %v9037 = vld [vmem:[%s463 + $0xf2] sm:$0xff]
        %v9038 = vld [vmem:[%s463 + $0xfa] sm:$0xff]
        %v9039 = vld [vmem:[%s463 + $0x10a] sm:$0xff]
        %v9040 = vld [vmem:[%s463 + $0x112] sm:$0xff]
        %v9041 = vld [vmem:[%s463 + $0x122] sm:$0xff]
        %v9042 = vld [vmem:[%s463 + $0x12a] sm:$0xff]
        %v9043 = vld [vmem:[%s463 + $0x13a] sm:$0xff]
        %v9044 = vld [vmem:[%s463 + $0x142] sm:$0xff]
        %v9045 = vld [vmem:[%s463 + $0x152] sm:$0xff]
        %v9046 = vld [vmem:[%s463 + $0x15a] sm:$0xff]
        %v9047 = vld [vmem:[%s463 + $0x16a] sm:$0xff]
        %v9048 = vld [vmem:[%s463 + $0x172] sm:$0xff]
        %v9049 = vld [vmem:[%s689] sm:$0xff]
        %v9050 = vld [vmem:[%s689 + $0x8] sm:$0xff]
        %v9051 = vld [vmem:[%s689 + $0x18] sm:$0xff]
        %v9052 = vld [vmem:[%s689 + $0x20] sm:$0xff]
        %v9053 = vld [vmem:[%s689 + $0x30] sm:$0xff]
        %v9054 = vld [vmem:[%s689 + $0x38] sm:$0xff]
        %v9055 = vld [vmem:[%s689 + $0x48] sm:$0xff]
        %v9056 = vld [vmem:[%s689 + $0x50] sm:$0xff]
        %v9057 = vld [vmem:[%s689 + $0x60] sm:$0xff]
        %v9058 = vld [vmem:[%s689 + $0x68] sm:$0xff]
        %v9059 = vld [vmem:[%s689 + $0x78] sm:$0xff]
        %v9060 = vld [vmem:[%s689 + $0x80] sm:$0xff]
        %v9061 = vld [vmem:[%s689 + $0x90] sm:$0xff]
        %v9062 = vld [vmem:[%s689 + $0x98] sm:$0xff]
        %v9063 = vld [vmem:[%s689 + $0xa8] sm:$0xff]
        %v9064 = vld [vmem:[%s689 + $0xb0] sm:$0xff]
        %v9065 = vld [vmem:[%s689 + $0xc0] sm:$0xff]
        %v9066 = vld [vmem:[%s689 + $0xc8] sm:$0xff]
        %v9067 = vld [vmem:[%s689 + $0xd8] sm:$0xff]
        %v9068 = vld [vmem:[%s689 + $0xe0] sm:$0xff]
        %v9069 = vld [vmem:[%s689 + $0xf0] sm:$0xff]
        %v9070 = vld [vmem:[%s689 + $0xf8] sm:$0xff]
        %v9071 = vld [vmem:[%s689 + $0x108] sm:$0xff]
        %v9072 = vld [vmem:[%s689 + $0x110] sm:$0xff]
        %v9073 = vld [vmem:[%s689 + $0x120] sm:$0xff]
        %v9074 = vld [vmem:[%s689 + $0x128] sm:$0xff]
        %v9075 = vld [vmem:[%s689 + $0x138] sm:$0xff]
        %v9076 = vld [vmem:[%s689 + $0x140] sm:$0xff]
        %v9077 = vld [vmem:[%s689 + $0x150] sm:$0xff]
        %v9078 = vld [vmem:[%s689 + $0x158] sm:$0xff]
        %v9079 = vld [vmem:[%s689 + $0x168] sm:$0xff]
        %v9080 = vld [vmem:[%s689 + $0x170] sm:$0xff]
        %v9081 = vld [vmem:[%s689 + $0x1] sm:$0xff]
        %v9082 = vld [vmem:[%s689 + $0x9] sm:$0xff]
        %v9083 = vld [vmem:[%s689 + $0x19] sm:$0xff]
        %v9084 = vld [vmem:[%s689 + $0x21] sm:$0xff]
        %v9085 = vld [vmem:[%s689 + $0x31] sm:$0xff]
        %v9086 = vld [vmem:[%s689 + $0x39] sm:$0xff]
        %v9087 = vld [vmem:[%s689 + $0x49] sm:$0xff]
        %v9088 = vld [vmem:[%s689 + $0x51] sm:$0xff]
        %v9089 = vld [vmem:[%s689 + $0x61] sm:$0xff]
        %v9090 = vld [vmem:[%s689 + $0x69] sm:$0xff]
        %v9091 = vld [vmem:[%s689 + $0x79] sm:$0xff]
        %v9092 = vld [vmem:[%s689 + $0x81] sm:$0xff]
        %v9093 = vld [vmem:[%s689 + $0x91] sm:$0xff]
        %v9094 = vld [vmem:[%s689 + $0x99] sm:$0xff]
        %v9095 = vld [vmem:[%s689 + $0xa9] sm:$0xff]
        %v9096 = vld [vmem:[%s689 + $0xb1] sm:$0xff]
        %v9097 = vld [vmem:[%s689 + $0xc1] sm:$0xff]
        %v9098 = vld [vmem:[%s689 + $0xc9] sm:$0xff]
        %v9099 = vld [vmem:[%s689 + $0xd9] sm:$0xff]
        %v9100 = vld [vmem:[%s689 + $0xe1] sm:$0xff]
        %v9101 = vld [vmem:[%s689 + $0xf1] sm:$0xff]
        %v9102 = vld [vmem:[%s689 + $0xf9] sm:$0xff]
        %v9103 = vld [vmem:[%s689 + $0x109] sm:$0xff]
        %v9104 = vld [vmem:[%s689 + $0x111] sm:$0xff]
        %v9105 = vld [vmem:[%s689 + $0x121] sm:$0xff]
        %v9106 = vld [vmem:[%s689 + $0x129] sm:$0xff]
        %v9107 = vld [vmem:[%s689 + $0x139] sm:$0xff]
        %v9108 = vld [vmem:[%s689 + $0x141] sm:$0xff]
        %v9109 = vld [vmem:[%s689 + $0x151] sm:$0xff]
        %v9110 = vld [vmem:[%s689 + $0x159] sm:$0xff]
        %v9111 = vld [vmem:[%s689 + $0x169] sm:$0xff]
        %v9112 = vld [vmem:[%s689 + $0x171] sm:$0xff]
        %v9113 = vld [vmem:[%s689 + $0x2] sm:$0xff]
        %v9114 = vld [vmem:[%s689 + $0xa] sm:$0xff]
        %v9115 = vld [vmem:[%s689 + $0x1a] sm:$0xff]
        %v9116 = vld [vmem:[%s689 + $0x22] sm:$0xff]
        %v9117 = vld [vmem:[%s689 + $0x32] sm:$0xff]
        %v9118 = vld [vmem:[%s689 + $0x3a] sm:$0xff]
        %v9119 = vld [vmem:[%s689 + $0x4a] sm:$0xff]
        %v9120 = vld [vmem:[%s689 + $0x52] sm:$0xff]
        %v9121 = vld [vmem:[%s689 + $0x62] sm:$0xff]
        %v9122 = vld [vmem:[%s689 + $0x6a] sm:$0xff]
        %v9123 = vld [vmem:[%s689 + $0x7a] sm:$0xff]
        %v9124 = vld [vmem:[%s689 + $0x82] sm:$0xff]
        %v9125 = vld [vmem:[%s689 + $0x92] sm:$0xff]
        %v9126 = vld [vmem:[%s689 + $0x9a] sm:$0xff]
        %v9127 = vld [vmem:[%s689 + $0xaa] sm:$0xff]
        %v9128 = vld [vmem:[%s689 + $0xb2] sm:$0xff]
        %v9129 = vld [vmem:[%s689 + $0xc2] sm:$0xff]
        %v9130 = vld [vmem:[%s689 + $0xca] sm:$0xff]
        %v9131 = vld [vmem:[%s689 + $0xda] sm:$0xff]
        %v9132 = vld [vmem:[%s689 + $0xe2] sm:$0xff]
        %v9133 = vld [vmem:[%s689 + $0xf2] sm:$0xff]
        %v9134 = vld [vmem:[%s689 + $0xfa] sm:$0xff]
        %v9135 = vld [vmem:[%s689 + $0x10a] sm:$0xff]
        %v9136 = vld [vmem:[%s689 + $0x112] sm:$0xff]
        %v9137 = vld [vmem:[%s689 + $0x122] sm:$0xff]
        %v9138 = vld [vmem:[%s689 + $0x12a] sm:$0xff]
        %v9139 = vld [vmem:[%s689 + $0x13a] sm:$0xff]
        %v9140 = vld [vmem:[%s689 + $0x142] sm:$0xff]
        %v9141 = vld [vmem:[%s689 + $0x152] sm:$0xff]
        %v9142 = vld [vmem:[%s689 + $0x15a] sm:$0xff]
        %v9143 = vld [vmem:[%s689 + $0x16a] sm:$0xff]
        %v9144 = vld [vmem:[%s689 + $0x172] sm:$0xff]
        %9177 = vrot.lane.b32.xlu0 %v8889, 48
        %v9178 = vpop.permute.xlu0 %9177
        %9179 = vrot.lane.b32.xlu0 %v8890, 48
        %v9180 = vpop.permute.xlu0 %9179
        %9181 = vrot.lane.b32.xlu0 %v8891, 48
        %v9182 = vpop.permute.xlu0 %9181
        %9183 = vrot.lane.b32.xlu0 %v8892, 48
        %v9184 = vpop.permute.xlu0 %9183
        %9185 = vrot.lane.b32.xlu0 %v8893, 48
        %v9186 = vpop.permute.xlu0 %9185
        %9187 = vrot.lane.b32.xlu0 %v8894, 48
        %v9188 = vpop.permute.xlu0 %9187
        %9189 = vrot.lane.b32.xlu0 %v8895, 48
        %v9190 = vpop.permute.xlu0 %9189
        %9191 = vrot.lane.b32.xlu0 %v8896, 48
        %v9192 = vpop.permute.xlu0 %9191
        %9193 = vrot.lane.b32.xlu0 %v8897, 48
        %v9194 = vpop.permute.xlu0 %9193
        %9195 = vrot.lane.b32.xlu0 %v8898, 48
        %v9196 = vpop.permute.xlu0 %9195
        %9197 = vrot.lane.b32.xlu0 %v8899, 48
        %v9198 = vpop.permute.xlu0 %9197
        %9199 = vrot.lane.b32.xlu0 %v8900, 48
        %v9200 = vpop.permute.xlu0 %9199
        %9201 = vrot.lane.b32.xlu0 %v8901, 48
        %v9202 = vpop.permute.xlu0 %9201
        %9203 = vrot.lane.b32.xlu0 %v8902, 48
        %v9204 = vpop.permute.xlu0 %9203
        %9205 = vrot.lane.b32.xlu0 %v8903, 48
        %v9206 = vpop.permute.xlu0 %9205
        %9207 = vrot.lane.b32.xlu0 %v8904, 48
        %v9208 = vpop.permute.xlu0 %9207
        %9209 = vrot.lane.b32.xlu0 %v8905, 48
        %v9210 = vpop.permute.xlu0 %9209
        %9211 = vrot.lane.b32.xlu0 %v8906, 48
        %v9212 = vpop.permute.xlu0 %9211
        %9213 = vrot.lane.b32.xlu0 %v8907, 48
        %v9214 = vpop.permute.xlu0 %9213
        %9215 = vrot.lane.b32.xlu0 %v8908, 48
        %v9216 = vpop.permute.xlu0 %9215
        %9217 = vrot.lane.b32.xlu0 %v8909, 48
        %v9218 = vpop.permute.xlu0 %9217
        %9219 = vrot.lane.b32.xlu0 %v8910, 48
        %v9220 = vpop.permute.xlu0 %9219
        %9221 = vrot.lane.b32.xlu0 %v8911, 48
        %v9222 = vpop.permute.xlu0 %9221
        %9223 = vrot.lane.b32.xlu0 %v8912, 48
        %v9224 = vpop.permute.xlu0 %9223
        %9225 = vrot.lane.b32.xlu0 %v8913, 48
        %v9226 = vpop.permute.xlu0 %9225
        %9227 = vrot.lane.b32.xlu0 %v8914, 48
        %v9228 = vpop.permute.xlu0 %9227
        %9229 = vrot.lane.b32.xlu0 %v8915, 48
        %v9230 = vpop.permute.xlu0 %9229
        %9231 = vrot.lane.b32.xlu0 %v8916, 48
        %v9232 = vpop.permute.xlu0 %9231
        %9233 = vrot.lane.b32.xlu0 %v8917, 48
        %v9234 = vpop.permute.xlu0 %9233
        %9235 = vrot.lane.b32.xlu0 %v8918, 48
        %v9236 = vpop.permute.xlu0 %9235
        %9237 = vrot.lane.b32.xlu0 %v8919, 48
        %v9238 = vpop.permute.xlu0 %9237
        %9239 = vrot.lane.b32.xlu0 %v8920, 48
        %v9240 = vpop.permute.xlu0 %9239
        %9305 = vrot.lane.b32.xlu0 %v8921, 96
        %v9306 = vpop.permute.xlu0 %9305
        %9307 = vrot.lane.b32.xlu0 %v8922, 96
        %v9308 = vpop.permute.xlu0 %9307
        %9309 = vrot.lane.b32.xlu0 %v8923, 96
        %v9310 = vpop.permute.xlu0 %9309
        %9311 = vrot.lane.b32.xlu0 %v8924, 96
        %v9312 = vpop.permute.xlu0 %9311
        %9313 = vrot.lane.b32.xlu0 %v8925, 96
        %v9314 = vpop.permute.xlu0 %9313
        %9315 = vrot.lane.b32.xlu0 %v8926, 96
        %v9316 = vpop.permute.xlu0 %9315
        %9317 = vrot.lane.b32.xlu0 %v8927, 96
        %v9318 = vpop.permute.xlu0 %9317
        %9319 = vrot.lane.b32.xlu0 %v8928, 96
        %v9320 = vpop.permute.xlu0 %9319
        %9321 = vrot.lane.b32.xlu0 %v8929, 96
        %v9322 = vpop.permute.xlu0 %9321
        %9323 = vrot.lane.b32.xlu0 %v8930, 96
        %v9324 = vpop.permute.xlu0 %9323
        %9325 = vrot.lane.b32.xlu0 %v8931, 96
        %v9326 = vpop.permute.xlu0 %9325
        %9327 = vrot.lane.b32.xlu0 %v8932, 96
        %v9328 = vpop.permute.xlu0 %9327
        %9329 = vrot.lane.b32.xlu0 %v8933, 96
        %v9330 = vpop.permute.xlu0 %9329
        %9331 = vrot.lane.b32.xlu0 %v8934, 96
        %v9332 = vpop.permute.xlu0 %9331
        %9333 = vrot.lane.b32.xlu0 %v8935, 96
        %v9334 = vpop.permute.xlu0 %9333
        %9335 = vrot.lane.b32.xlu0 %v8936, 96
        %v9336 = vpop.permute.xlu0 %9335
        %9337 = vrot.lane.b32.xlu0 %v8937, 96
        %v9338 = vpop.permute.xlu0 %9337
        %9339 = vrot.lane.b32.xlu0 %v8938, 96
        %v9340 = vpop.permute.xlu0 %9339
        %9341 = vrot.lane.b32.xlu0 %v8939, 96
        %v9342 = vpop.permute.xlu0 %9341
        %9343 = vrot.lane.b32.xlu0 %v8940, 96
        %v9344 = vpop.permute.xlu0 %9343
        %9345 = vrot.lane.b32.xlu0 %v8941, 96
        %v9346 = vpop.permute.xlu0 %9345
        %9347 = vrot.lane.b32.xlu0 %v8942, 96
        %v9348 = vpop.permute.xlu0 %9347
        %9349 = vrot.lane.b32.xlu0 %v8943, 96
        %v9350 = vpop.permute.xlu0 %9349
        %9351 = vrot.lane.b32.xlu0 %v8944, 96
        %v9352 = vpop.permute.xlu0 %9351
        %9353 = vrot.lane.b32.xlu0 %v8945, 96
        %v9354 = vpop.permute.xlu0 %9353
        %9355 = vrot.lane.b32.xlu0 %v8946, 96
        %v9356 = vpop.permute.xlu0 %9355
        %9357 = vrot.lane.b32.xlu0 %v8947, 96
        %v9358 = vpop.permute.xlu0 %9357
        %9359 = vrot.lane.b32.xlu0 %v8948, 96
        %v9360 = vpop.permute.xlu0 %9359
        %9361 = vrot.lane.b32.xlu0 %v8949, 96
        %v9362 = vpop.permute.xlu0 %9361
        %9363 = vrot.lane.b32.xlu0 %v8950, 96
        %v9364 = vpop.permute.xlu0 %9363
        %9365 = vrot.lane.b32.xlu0 %v8951, 96
        %v9366 = vpop.permute.xlu0 %9365
        %9367 = vrot.lane.b32.xlu0 %v8952, 96
        %v9368 = vpop.permute.xlu0 %9367
        %9433 = vrot.lane.b32.xlu0 %v8953, 16
        %v9434 = vpop.permute.xlu0 %9433
        %9435 = vrot.lane.b32.xlu0 %v8954, 16
        %v9436 = vpop.permute.xlu0 %9435
        %9437 = vrot.lane.b32.xlu0 %v8955, 16
        %v9438 = vpop.permute.xlu0 %9437
        %9439 = vrot.lane.b32.xlu0 %v8956, 16
        %v9440 = vpop.permute.xlu0 %9439
        %9441 = vrot.lane.b32.xlu0 %v8957, 16
        %v9442 = vpop.permute.xlu0 %9441
        %9443 = vrot.lane.b32.xlu0 %v8958, 16
        %v9444 = vpop.permute.xlu0 %9443
        %9445 = vrot.lane.b32.xlu0 %v8959, 16
        %v9446 = vpop.permute.xlu0 %9445
        %9447 = vrot.lane.b32.xlu0 %v8960, 16
        %v9448 = vpop.permute.xlu0 %9447
        %9449 = vrot.lane.b32.xlu0 %v8961, 16
        %v9450 = vpop.permute.xlu0 %9449
        %9451 = vrot.lane.b32.xlu0 %v8962, 16
        %v9452 = vpop.permute.xlu0 %9451
        %9453 = vrot.lane.b32.xlu0 %v8963, 16
        %v9454 = vpop.permute.xlu0 %9453
        %9455 = vrot.lane.b32.xlu0 %v8964, 16
        %v9456 = vpop.permute.xlu0 %9455
        %9457 = vrot.lane.b32.xlu0 %v8965, 16
        %v9458 = vpop.permute.xlu0 %9457
        %9459 = vrot.lane.b32.xlu0 %v8966, 16
        %v9460 = vpop.permute.xlu0 %9459
        %9461 = vrot.lane.b32.xlu0 %v8967, 16
        %v9462 = vpop.permute.xlu0 %9461
        %9463 = vrot.lane.b32.xlu0 %v8968, 16
        %v9464 = vpop.permute.xlu0 %9463
        %9465 = vrot.lane.b32.xlu0 %v8969, 16
        %v9466 = vpop.permute.xlu0 %9465
        %9467 = vrot.lane.b32.xlu0 %v8970, 16
        %v9468 = vpop.permute.xlu0 %9467
        %9469 = vrot.lane.b32.xlu0 %v8971, 16
        %v9470 = vpop.permute.xlu0 %9469
        %9471 = vrot.lane.b32.xlu0 %v8972, 16
        %v9472 = vpop.permute.xlu0 %9471
        %9473 = vrot.lane.b32.xlu0 %v8973, 16
        %v9474 = vpop.permute.xlu0 %9473
        %9475 = vrot.lane.b32.xlu0 %v8974, 16
        %v9476 = vpop.permute.xlu0 %9475
        %9477 = vrot.lane.b32.xlu0 %v8975, 16
        %v9478 = vpop.permute.xlu0 %9477
        %9479 = vrot.lane.b32.xlu0 %v8976, 16
        %v9480 = vpop.permute.xlu0 %9479
        %9481 = vrot.lane.b32.xlu0 %v8977, 16
        %v9482 = vpop.permute.xlu0 %9481
        %9483 = vrot.lane.b32.xlu0 %v8978, 16
        %v9484 = vpop.permute.xlu0 %9483
        %9485 = vrot.lane.b32.xlu0 %v8979, 16
        %v9486 = vpop.permute.xlu0 %9485
        %9487 = vrot.lane.b32.xlu0 %v8980, 16
        %v9488 = vpop.permute.xlu0 %9487
        %9489 = vrot.lane.b32.xlu0 %v8981, 16
        %v9490 = vpop.permute.xlu0 %9489
        %9491 = vrot.lane.b32.xlu0 %v8982, 16
        %v9492 = vpop.permute.xlu0 %9491
        %9493 = vrot.lane.b32.xlu0 %v8983, 16
        %v9494 = vpop.permute.xlu0 %9493
        %9495 = vrot.lane.b32.xlu0 %v8984, 16
        %v9496 = vpop.permute.xlu0 %9495
        %9561 = vrot.lane.b32.xlu0 %v8985, 64
        %v9562 = vpop.permute.xlu0 %9561
        %9563 = vrot.lane.b32.xlu0 %v8986, 64
        %v9564 = vpop.permute.xlu0 %9563
        %9565 = vrot.lane.b32.xlu0 %v8987, 64
        %v9566 = vpop.permute.xlu0 %9565
        %9567 = vrot.lane.b32.xlu0 %v8988, 64
        %v9568 = vpop.permute.xlu0 %9567
        %9569 = vrot.lane.b32.xlu0 %v8989, 64
        %v9570 = vpop.permute.xlu0 %9569
        %9571 = vrot.lane.b32.xlu0 %v8990, 64
        %v9572 = vpop.permute.xlu0 %9571
        %9573 = vrot.lane.b32.xlu0 %v8991, 64
        %v9574 = vpop.permute.xlu0 %9573
        %9575 = vrot.lane.b32.xlu0 %v8992, 64
        %v9576 = vpop.permute.xlu0 %9575
        %9577 = vrot.lane.b32.xlu0 %v8993, 64
        %v9578 = vpop.permute.xlu0 %9577
        %9579 = vrot.lane.b32.xlu0 %v8994, 64
        %v9580 = vpop.permute.xlu0 %9579
        %9581 = vrot.lane.b32.xlu0 %v8995, 64
        %v9582 = vpop.permute.xlu0 %9581
        %9583 = vrot.lane.b32.xlu0 %v8996, 64
        %v9584 = vpop.permute.xlu0 %9583
        %9585 = vrot.lane.b32.xlu0 %v8997, 64
        %v9586 = vpop.permute.xlu0 %9585
        %9587 = vrot.lane.b32.xlu0 %v8998, 64
        %v9588 = vpop.permute.xlu0 %9587
        %9589 = vrot.lane.b32.xlu0 %v8999, 64
        %v9590 = vpop.permute.xlu0 %9589
        %9591 = vrot.lane.b32.xlu0 %v9000, 64
        %v9592 = vpop.permute.xlu0 %9591
        %9593 = vrot.lane.b32.xlu0 %v9001, 64
        %v9594 = vpop.permute.xlu0 %9593
        %9595 = vrot.lane.b32.xlu0 %v9002, 64
        %v9596 = vpop.permute.xlu0 %9595
        %9597 = vrot.lane.b32.xlu0 %v9003, 64
        %v9598 = vpop.permute.xlu0 %9597
        %9599 = vrot.lane.b32.xlu0 %v9004, 64
        %v9600 = vpop.permute.xlu0 %9599
        %9601 = vrot.lane.b32.xlu0 %v9005, 64
        %v9602 = vpop.permute.xlu0 %9601
        %9603 = vrot.lane.b32.xlu0 %v9006, 64
        %v9604 = vpop.permute.xlu0 %9603
        %9605 = vrot.lane.b32.xlu0 %v9007, 64
        %v9606 = vpop.permute.xlu0 %9605
        %9607 = vrot.lane.b32.xlu0 %v9008, 64
        %v9608 = vpop.permute.xlu0 %9607
        %9609 = vrot.lane.b32.xlu0 %v9009, 64
        %v9610 = vpop.permute.xlu0 %9609
        %9611 = vrot.lane.b32.xlu0 %v9010, 64
        %v9612 = vpop.permute.xlu0 %9611
        %9613 = vrot.lane.b32.xlu0 %v9011, 64
        %v9614 = vpop.permute.xlu0 %9613
        %9615 = vrot.lane.b32.xlu0 %v9012, 64
        %v9616 = vpop.permute.xlu0 %9615
        %9617 = vrot.lane.b32.xlu0 %v9013, 64
        %v9618 = vpop.permute.xlu0 %9617
        %9619 = vrot.lane.b32.xlu0 %v9014, 64
        %v9620 = vpop.permute.xlu0 %9619
        %9621 = vrot.lane.b32.xlu0 %v9015, 64
        %v9622 = vpop.permute.xlu0 %9621
        %9623 = vrot.lane.b32.xlu0 %v9016, 64
        %v9624 = vpop.permute.xlu0 %9623
        %9689 = vrot.lane.b32.xlu0 %v9017, 112
        %v9690 = vpop.permute.xlu0 %9689
        %9691 = vrot.lane.b32.xlu0 %v9018, 112
        %v9692 = vpop.permute.xlu0 %9691
        %9693 = vrot.lane.b32.xlu0 %v9019, 112
        %v9694 = vpop.permute.xlu0 %9693
        %9695 = vrot.lane.b32.xlu0 %v9020, 112
        %v9696 = vpop.permute.xlu0 %9695
        %9697 = vrot.lane.b32.xlu0 %v9021, 112
        %v9698 = vpop.permute.xlu0 %9697
        %9699 = vrot.lane.b32.xlu0 %v9022, 112
        %v9700 = vpop.permute.xlu0 %9699
        %9701 = vrot.lane.b32.xlu0 %v9023, 112
        %v9702 = vpop.permute.xlu0 %9701
        %9703 = vrot.lane.b32.xlu0 %v9024, 112
        %v9704 = vpop.permute.xlu0 %9703
        %9705 = vrot.lane.b32.xlu0 %v9025, 112
        %v9706 = vpop.permute.xlu0 %9705
        %9707 = vrot.lane.b32.xlu0 %v9026, 112
        %v9708 = vpop.permute.xlu0 %9707
        %9709 = vrot.lane.b32.xlu0 %v9027, 112
        %v9710 = vpop.permute.xlu0 %9709
        %9711 = vrot.lane.b32.xlu0 %v9028, 112
        %v9712 = vpop.permute.xlu0 %9711
        %9713 = vrot.lane.b32.xlu0 %v9029, 112
        %v9714 = vpop.permute.xlu0 %9713
        %9715 = vrot.lane.b32.xlu0 %v9030, 112
        %v9716 = vpop.permute.xlu0 %9715
        %9717 = vrot.lane.b32.xlu0 %v9031, 112
        %v9718 = vpop.permute.xlu0 %9717
        %9719 = vrot.lane.b32.xlu0 %v9032, 112
        %v9720 = vpop.permute.xlu0 %9719
        %9721 = vrot.lane.b32.xlu0 %v9033, 112
        %v9722 = vpop.permute.xlu0 %9721
        %9723 = vrot.lane.b32.xlu0 %v9034, 112
        %v9724 = vpop.permute.xlu0 %9723
        %9725 = vrot.lane.b32.xlu0 %v9035, 112
        %v9726 = vpop.permute.xlu0 %9725
        %9727 = vrot.lane.b32.xlu0 %v9036, 112
        %v9728 = vpop.permute.xlu0 %9727
        %9729 = vrot.lane.b32.xlu0 %v9037, 112
        %v9730 = vpop.permute.xlu0 %9729
        %9731 = vrot.lane.b32.xlu0 %v9038, 112
        %v9732 = vpop.permute.xlu0 %9731
        %9733 = vrot.lane.b32.xlu0 %v9039, 112
        %v9734 = vpop.permute.xlu0 %9733
        %9735 = vrot.lane.b32.xlu0 %v9040, 112
        %v9736 = vpop.permute.xlu0 %9735
        %9737 = vrot.lane.b32.xlu0 %v9041, 112
        %v9738 = vpop.permute.xlu0 %9737
        %9739 = vrot.lane.b32.xlu0 %v9042, 112
        %v9740 = vpop.permute.xlu0 %9739
        %9741 = vrot.lane.b32.xlu0 %v9043, 112
        %v9742 = vpop.permute.xlu0 %9741
        %9743 = vrot.lane.b32.xlu0 %v9044, 112
        %v9744 = vpop.permute.xlu0 %9743
        %9745 = vrot.lane.b32.xlu0 %v9045, 112
        %v9746 = vpop.permute.xlu0 %9745
        %9747 = vrot.lane.b32.xlu0 %v9046, 112
        %v9748 = vpop.permute.xlu0 %9747
        %9749 = vrot.lane.b32.xlu0 %v9047, 112
        %v9750 = vpop.permute.xlu0 %9749
        %9751 = vrot.lane.b32.xlu0 %v9048, 112
        %v9752 = vpop.permute.xlu0 %9751
        %9817 = vrot.lane.b32.xlu0 %v9049, 32
        %v9818 = vpop.permute.xlu0 %9817
        %9819 = vrot.lane.b32.xlu0 %v9050, 32
        %v9820 = vpop.permute.xlu0 %9819
        %9821 = vrot.lane.b32.xlu0 %v9051, 32
        %v9822 = vpop.permute.xlu0 %9821
        %9823 = vrot.lane.b32.xlu0 %v9052, 32
        %v9824 = vpop.permute.xlu0 %9823
        %9825 = vrot.lane.b32.xlu0 %v9053, 32
        %v9826 = vpop.permute.xlu0 %9825
        %9827 = vrot.lane.b32.xlu0 %v9054, 32
        %v9828 = vpop.permute.xlu0 %9827
        %9829 = vrot.lane.b32.xlu0 %v9055, 32
        %v9830 = vpop.permute.xlu0 %9829
        %9831 = vrot.lane.b32.xlu0 %v9056, 32
        %v9832 = vpop.permute.xlu0 %9831
        %9833 = vrot.lane.b32.xlu0 %v9057, 32
        %v9834 = vpop.permute.xlu0 %9833
        %9835 = vrot.lane.b32.xlu0 %v9058, 32
        %v9836 = vpop.permute.xlu0 %9835
        %9837 = vrot.lane.b32.xlu0 %v9059, 32
        %v9838 = vpop.permute.xlu0 %9837
        %9839 = vrot.lane.b32.xlu0 %v9060, 32
        %v9840 = vpop.permute.xlu0 %9839
        %9841 = vrot.lane.b32.xlu0 %v9061, 32
        %v9842 = vpop.permute.xlu0 %9841
        %9843 = vrot.lane.b32.xlu0 %v9062, 32
        %v9844 = vpop.permute.xlu0 %9843
        %9845 = vrot.lane.b32.xlu0 %v9063, 32
        %v9846 = vpop.permute.xlu0 %9845
        %9847 = vrot.lane.b32.xlu0 %v9064, 32
        %v9848 = vpop.permute.xlu0 %9847
        %9849 = vrot.lane.b32.xlu0 %v9065, 32
        %v9850 = vpop.permute.xlu0 %9849
        %9851 = vrot.lane.b32.xlu0 %v9066, 32
        %v9852 = vpop.permute.xlu0 %9851
        %9853 = vrot.lane.b32.xlu0 %v9067, 32
        %v9854 = vpop.permute.xlu0 %9853
        %9855 = vrot.lane.b32.xlu0 %v9068, 32
        %v9856 = vpop.permute.xlu0 %9855
        %9857 = vrot.lane.b32.xlu0 %v9069, 32
        %v9858 = vpop.permute.xlu0 %9857
        %9859 = vrot.lane.b32.xlu0 %v9070, 32
        %v9860 = vpop.permute.xlu0 %9859
        %9861 = vrot.lane.b32.xlu0 %v9071, 32
        %v9862 = vpop.permute.xlu0 %9861
        %9863 = vrot.lane.b32.xlu0 %v9072, 32
        %v9864 = vpop.permute.xlu0 %9863
        %9865 = vrot.lane.b32.xlu0 %v9073, 32
        %v9866 = vpop.permute.xlu0 %9865
        %9867 = vrot.lane.b32.xlu0 %v9074, 32
        %v9868 = vpop.permute.xlu0 %9867
        %9869 = vrot.lane.b32.xlu0 %v9075, 32
        %v9870 = vpop.permute.xlu0 %9869
        %9871 = vrot.lane.b32.xlu0 %v9076, 32
        %v9872 = vpop.permute.xlu0 %9871
        %9873 = vrot.lane.b32.xlu0 %v9077, 32
        %v9874 = vpop.permute.xlu0 %9873
        %9875 = vrot.lane.b32.xlu0 %v9078, 32
        %v9876 = vpop.permute.xlu0 %9875
        %9877 = vrot.lane.b32.xlu0 %v9079, 32
        %v9878 = vpop.permute.xlu0 %9877
        %9879 = vrot.lane.b32.xlu0 %v9080, 32
        %v9880 = vpop.permute.xlu0 %9879
        %9945 = vrot.lane.b32.xlu0 %v9081, 80
        %v9946 = vpop.permute.xlu0 %9945
        %9947 = vrot.lane.b32.xlu0 %v9082, 80
        %v9948 = vpop.permute.xlu0 %9947
        %9949 = vrot.lane.b32.xlu0 %v9083, 80
        %v9950 = vpop.permute.xlu0 %9949
        %9951 = vrot.lane.b32.xlu0 %v9084, 80
        %v9952 = vpop.permute.xlu0 %9951
        %9953 = vrot.lane.b32.xlu0 %v9085, 80
        %v9954 = vpop.permute.xlu0 %9953
        %9955 = vrot.lane.b32.xlu0 %v9086, 80
        %v9956 = vpop.permute.xlu0 %9955
        %9957 = vrot.lane.b32.xlu0 %v9087, 80
        %v9958 = vpop.permute.xlu0 %9957
        %9959 = vrot.lane.b32.xlu0 %v9088, 80
        %v9960 = vpop.permute.xlu0 %9959
        %9961 = vrot.lane.b32.xlu0 %v9089, 80
        %v9962 = vpop.permute.xlu0 %9961
        %9963 = vrot.lane.b32.xlu0 %v9090, 80
        %v9964 = vpop.permute.xlu0 %9963
        %9965 = vrot.lane.b32.xlu0 %v9091, 80
        %v9966 = vpop.permute.xlu0 %9965
        %9967 = vrot.lane.b32.xlu0 %v9092, 80
        %v9968 = vpop.permute.xlu0 %9967
        %9969 = vrot.lane.b32.xlu0 %v9093, 80
        %v9970 = vpop.permute.xlu0 %9969
        %9971 = vrot.lane.b32.xlu0 %v9094, 80
        %v9972 = vpop.permute.xlu0 %9971
        %9973 = vrot.lane.b32.xlu0 %v9095, 80
        %v9974 = vpop.permute.xlu0 %9973
        %9975 = vrot.lane.b32.xlu0 %v9096, 80
        %v9976 = vpop.permute.xlu0 %9975
        %9977 = vrot.lane.b32.xlu0 %v9097, 80
        %v9978 = vpop.permute.xlu0 %9977
        %9979 = vrot.lane.b32.xlu0 %v9098, 80
        %v9980 = vpop.permute.xlu0 %9979
        %9981 = vrot.lane.b32.xlu0 %v9099, 80
        %v9982 = vpop.permute.xlu0 %9981
        %9983 = vrot.lane.b32.xlu0 %v9100, 80
        %v9984 = vpop.permute.xlu0 %9983
        %9985 = vrot.lane.b32.xlu0 %v9101, 80
        %v9986 = vpop.permute.xlu0 %9985
        %9987 = vrot.lane.b32.xlu0 %v9102, 80
        %v9988 = vpop.permute.xlu0 %9987
        %9989 = vrot.lane.b32.xlu0 %v9103, 80
        %v9990 = vpop.permute.xlu0 %9989
        %9991 = vrot.lane.b32.xlu0 %v9104, 80
        %v9992 = vpop.permute.xlu0 %9991
        %9993 = vrot.lane.b32.xlu0 %v9105, 80
        %v9994 = vpop.permute.xlu0 %9993
        %9995 = vrot.lane.b32.xlu0 %v9106, 80
        %v9996 = vpop.permute.xlu0 %9995
        %9997 = vrot.lane.b32.xlu0 %v9107, 80
        %v9998 = vpop.permute.xlu0 %9997
        %9999 = vrot.lane.b32.xlu0 %v9108, 80
        %v10000 = vpop.permute.xlu0 %9999
        %10001 = vrot.lane.b32.xlu0 %v9109, 80
        %v10002 = vpop.permute.xlu0 %10001
        %10003 = vrot.lane.b32.xlu0 %v9110, 80
        %v10004 = vpop.permute.xlu0 %10003
        %10005 = vrot.lane.b32.xlu0 %v9111, 80
        %v10006 = vpop.permute.xlu0 %10005
        %10007 = vrot.lane.b32.xlu0 %v9112, 80
        %v10008 = vpop.permute.xlu0 %10007
        %v10041 = vsel %vm385, %v8857, %v9178
        %v10042 = vsel %vm385, %v8858, %v9180
        %v10043 = vsel %vm385, %v8859, %v9182
        %v10044 = vsel %vm385, %v8860, %v9184
        %v10045 = vsel %vm385, %v8861, %v9186
        %v10046 = vsel %vm385, %v8862, %v9188
        %v10047 = vsel %vm385, %v8863, %v9190
        %v10048 = vsel %vm385, %v8864, %v9192
        %v10049 = vsel %vm385, %v8865, %v9194
        %v10050 = vsel %vm385, %v8866, %v9196
        %v10051 = vsel %vm385, %v8867, %v9198
        %v10052 = vsel %vm385, %v8868, %v9200
        %v10053 = vsel %vm385, %v8869, %v9202
        %v10054 = vsel %vm385, %v8870, %v9204
        %v10055 = vsel %vm385, %v8871, %v9206
        %v10056 = vsel %vm385, %v8872, %v9208
        %v10057 = vsel %vm385, %v8873, %v9210
        %v10058 = vsel %vm385, %v8874, %v9212
        %v10059 = vsel %vm385, %v8875, %v9214
        %v10060 = vsel %vm385, %v8876, %v9216
        %v10061 = vsel %vm385, %v8877, %v9218
        %v10062 = vsel %vm385, %v8878, %v9220
        %v10063 = vsel %vm385, %v8879, %v9222
        %v10064 = vsel %vm385, %v8880, %v9224
        %v10065 = vsel %vm385, %v8881, %v9226
        %v10066 = vsel %vm385, %v8882, %v9228
        %v10067 = vsel %vm385, %v8883, %v9230
        %v10068 = vsel %vm385, %v8884, %v9232
        %v10069 = vsel %vm385, %v8885, %v9234
        %v10070 = vsel %vm385, %v8886, %v9236
        %v10071 = vsel %vm385, %v8887, %v9238
        %v10072 = vsel %vm385, %v8888, %v9240
        %v10073 = vsel %vm1845, %v10041, %v9306
        %v10074 = vsel %vm1845, %v10042, %v9308
        %v10075 = vsel %vm1845, %v10043, %v9310
        %v10076 = vsel %vm1845, %v10044, %v9312
        %v10077 = vsel %vm1845, %v10045, %v9314
        %v10078 = vsel %vm1845, %v10046, %v9316
        %v10079 = vsel %vm1845, %v10047, %v9318
        %v10080 = vsel %vm1845, %v10048, %v9320
        %v10081 = vsel %vm1845, %v10049, %v9322
        %v10082 = vsel %vm1845, %v10050, %v9324
        %v10083 = vsel %vm1845, %v10051, %v9326
        %v10084 = vsel %vm1845, %v10052, %v9328
        %v10085 = vsel %vm1845, %v10053, %v9330
        %v10086 = vsel %vm1845, %v10054, %v9332
        %v10087 = vsel %vm1845, %v10055, %v9334
        %v10088 = vsel %vm1845, %v10056, %v9336
        %v10089 = vsel %vm1845, %v10057, %v9338
        %v10090 = vsel %vm1845, %v10058, %v9340
        %v10091 = vsel %vm1845, %v10059, %v9342
        %v10092 = vsel %vm1845, %v10060, %v9344
        %v10093 = vsel %vm1845, %v10061, %v9346
        %v10094 = vsel %vm1845, %v10062, %v9348
        %v10095 = vsel %vm1845, %v10063, %v9350
        %v10096 = vsel %vm1845, %v10064, %v9352
        %v10097 = vsel %vm1845, %v10065, %v9354
        %v10098 = vsel %vm1845, %v10066, %v9356
        %v10099 = vsel %vm1845, %v10067, %v9358
        %v10100 = vsel %vm1845, %v10068, %v9360
        %v10101 = vsel %vm1845, %v10069, %v9362
        %v10102 = vsel %vm1845, %v10070, %v9364
        %v10103 = vsel %vm1845, %v10071, %v9366
        %v10104 = vsel %vm1845, %v10072, %v9368
        %v10105 = vsel %vm464, %v9306, %v9434
        %v10106 = vsel %vm464, %v9308, %v9436
        %v10107 = vsel %vm464, %v9310, %v9438
        %v10108 = vsel %vm464, %v9312, %v9440
        %v10109 = vsel %vm464, %v9314, %v9442
        %v10110 = vsel %vm464, %v9316, %v9444
        %v10111 = vsel %vm464, %v9318, %v9446
        %v10112 = vsel %vm464, %v9320, %v9448
        %v10113 = vsel %vm464, %v9322, %v9450
        %v10114 = vsel %vm464, %v9324, %v9452
        %v10115 = vsel %vm464, %v9326, %v9454
        %v10116 = vsel %vm464, %v9328, %v9456
        %v10117 = vsel %vm464, %v9330, %v9458
        %v10118 = vsel %vm464, %v9332, %v9460
        %v10119 = vsel %vm464, %v9334, %v9462
        %v10120 = vsel %vm464, %v9336, %v9464
        %v10121 = vsel %vm464, %v9338, %v9466
        %v10122 = vsel %vm464, %v9340, %v9468
        %v10123 = vsel %vm464, %v9342, %v9470
        %v10124 = vsel %vm464, %v9344, %v9472
        %v10125 = vsel %vm464, %v9346, %v9474
        %v10126 = vsel %vm464, %v9348, %v9476
        %v10127 = vsel %vm464, %v9350, %v9478
        %v10128 = vsel %vm464, %v9352, %v9480
        %v10129 = vsel %vm464, %v9354, %v9482
        %v10130 = vsel %vm464, %v9356, %v9484
        %v10131 = vsel %vm464, %v9358, %v9486
        %v10132 = vsel %vm464, %v9360, %v9488
        %v10133 = vsel %vm464, %v9362, %v9490
        %v10134 = vsel %vm464, %v9364, %v9492
        %v10135 = vsel %vm464, %v9366, %v9494
        %v10136 = vsel %vm464, %v9368, %v9496
        %v10137 = vsel %vm1779, %v10105, %v9562
        %v10138 = vsel %vm1779, %v10106, %v9564
        %v10139 = vsel %vm1779, %v10107, %v9566
        %v10140 = vsel %vm1779, %v10108, %v9568
        %v10141 = vsel %vm1779, %v10109, %v9570
        %v10142 = vsel %vm1779, %v10110, %v9572
        %v10143 = vsel %vm1779, %v10111, %v9574
        %v10144 = vsel %vm1779, %v10112, %v9576
        %v10145 = vsel %vm1779, %v10113, %v9578
        %v10146 = vsel %vm1779, %v10114, %v9580
        %v10147 = vsel %vm1779, %v10115, %v9582
        %v10148 = vsel %vm1779, %v10116, %v9584
        %v10149 = vsel %vm1779, %v10117, %v9586
        %v10150 = vsel %vm1779, %v10118, %v9588
        %v10151 = vsel %vm1779, %v10119, %v9590
        %v10152 = vsel %vm1779, %v10120, %v9592
        %v10153 = vsel %vm1779, %v10121, %v9594
        %v10154 = vsel %vm1779, %v10122, %v9596
        %v10155 = vsel %vm1779, %v10123, %v9598
        %v10156 = vsel %vm1779, %v10124, %v9600
        %v10157 = vsel %vm1779, %v10125, %v9602
        %v10158 = vsel %vm1779, %v10126, %v9604
        %v10159 = vsel %vm1779, %v10127, %v9606
        %v10160 = vsel %vm1779, %v10128, %v9608
        %v10161 = vsel %vm1779, %v10129, %v9610
        %v10162 = vsel %vm1779, %v10130, %v9612
        %v10163 = vsel %vm1779, %v10131, %v9614
        %v10164 = vsel %vm1779, %v10132, %v9616
        %v10165 = vsel %vm1779, %v10133, %v9618
        %v10166 = vsel %vm1779, %v10134, %v9620
        %v10167 = vsel %vm1779, %v10135, %v9622
        %v10168 = vsel %vm1779, %v10136, %v9624
        %v10169 = vsel %vm1878, %v10137, %v9690
        %v10170 = vsel %vm1878, %v10138, %v9692
        %v10171 = vsel %vm1878, %v10139, %v9694
        %v10172 = vsel %vm1878, %v10140, %v9696
        %v10173 = vsel %vm1878, %v10141, %v9698
        %v10174 = vsel %vm1878, %v10142, %v9700
        %v10175 = vsel %vm1878, %v10143, %v9702
        %v10176 = vsel %vm1878, %v10144, %v9704
        %v10177 = vsel %vm1878, %v10145, %v9706
        %v10178 = vsel %vm1878, %v10146, %v9708
        %v10179 = vsel %vm1878, %v10147, %v9710
        %v10180 = vsel %vm1878, %v10148, %v9712
        %v10181 = vsel %vm1878, %v10149, %v9714
        %v10182 = vsel %vm1878, %v10150, %v9716
        %v10183 = vsel %vm1878, %v10151, %v9718
        %v10184 = vsel %vm1878, %v10152, %v9720
        %v10185 = vsel %vm1878, %v10153, %v9722
        %v10186 = vsel %vm1878, %v10154, %v9724
        %v10187 = vsel %vm1878, %v10155, %v9726
        %v10188 = vsel %vm1878, %v10156, %v9728
        %v10189 = vsel %vm1878, %v10157, %v9730
        %v10190 = vsel %vm1878, %v10158, %v9732
        %v10191 = vsel %vm1878, %v10159, %v9734
        %v10192 = vsel %vm1878, %v10160, %v9736
        %v10193 = vsel %vm1878, %v10161, %v9738
        %v10194 = vsel %vm1878, %v10162, %v9740
        %v10195 = vsel %vm1878, %v10163, %v9742
        %v10196 = vsel %vm1878, %v10164, %v9744
        %v10197 = vsel %vm1878, %v10165, %v9746
        %v10198 = vsel %vm1878, %v10166, %v9748
        %v10199 = vsel %vm1878, %v10167, %v9750
        %v10200 = vsel %vm1878, %v10168, %v9752
        %v10201 = vsel %vm1714, %v9690, %v9818
        %v10202 = vsel %vm1714, %v9692, %v9820
        %v10203 = vsel %vm1714, %v9694, %v9822
        %v10204 = vsel %vm1714, %v9696, %v9824
        %v10205 = vsel %vm1714, %v9698, %v9826
        %v10206 = vsel %vm1714, %v9700, %v9828
        %v10207 = vsel %vm1714, %v9702, %v9830
        %v10208 = vsel %vm1714, %v9704, %v9832
        %v10209 = vsel %vm1714, %v9706, %v9834
        %v10210 = vsel %vm1714, %v9708, %v9836
        %v10211 = vsel %vm1714, %v9710, %v9838
        %v10212 = vsel %vm1714, %v9712, %v9840
        %v10213 = vsel %vm1714, %v9714, %v9842
        %v10214 = vsel %vm1714, %v9716, %v9844
        %v10215 = vsel %vm1714, %v9718, %v9846
        %v10216 = vsel %vm1714, %v9720, %v9848
        %v10217 = vsel %vm1714, %v9722, %v9850
        %v10218 = vsel %vm1714, %v9724, %v9852
        %v10219 = vsel %vm1714, %v9726, %v9854
        %v10220 = vsel %vm1714, %v9728, %v9856
        %v10221 = vsel %vm1714, %v9730, %v9858
        %v10222 = vsel %vm1714, %v9732, %v9860
        %v10223 = vsel %vm1714, %v9734, %v9862
        %v10224 = vsel %vm1714, %v9736, %v9864
        %v10225 = vsel %vm1714, %v9738, %v9866
        %v10226 = vsel %vm1714, %v9740, %v9868
        %v10227 = vsel %vm1714, %v9742, %v9870
        %v10228 = vsel %vm1714, %v9744, %v9872
        %v10229 = vsel %vm1714, %v9746, %v9874
        %v10230 = vsel %vm1714, %v9748, %v9876
        %v10231 = vsel %vm1714, %v9750, %v9878
        %v10232 = vsel %vm1714, %v9752, %v9880
        %v10233 = vsel %vm1812, %v10201, %v9946
        %v10234 = vsel %vm1812, %v10202, %v9948
        %v10235 = vsel %vm1812, %v10203, %v9950
        %v10236 = vsel %vm1812, %v10204, %v9952
        %v10237 = vsel %vm1812, %v10205, %v9954
        %v10238 = vsel %vm1812, %v10206, %v9956
        %v10239 = vsel %vm1812, %v10207, %v9958
        %v10240 = vsel %vm1812, %v10208, %v9960
        %v10241 = vsel %vm1812, %v10209, %v9962
        %v10242 = vsel %vm1812, %v10210, %v9964
        %v10243 = vsel %vm1812, %v10211, %v9966
        %v10244 = vsel %vm1812, %v10212, %v9968
        %v10245 = vsel %vm1812, %v10213, %v9970
        %v10246 = vsel %vm1812, %v10214, %v9972
        %v10247 = vsel %vm1812, %v10215, %v9974
        %v10248 = vsel %vm1812, %v10216, %v9976
        %v10249 = vsel %vm1812, %v10217, %v9978
        %v10250 = vsel %vm1812, %v10218, %v9980
        %v10251 = vsel %vm1812, %v10219, %v9982
        %v10252 = vsel %vm1812, %v10220, %v9984
        %v10253 = vsel %vm1812, %v10221, %v9986
        %v10254 = vsel %vm1812, %v10222, %v9988
        %v10255 = vsel %vm1812, %v10223, %v9990
        %v10256 = vsel %vm1812, %v10224, %v9992
        %v10257 = vsel %vm1812, %v10225, %v9994
        %v10258 = vsel %vm1812, %v10226, %v9996
        %v10259 = vsel %vm1812, %v10227, %v9998
        %v10260 = vsel %vm1812, %v10228, %v10000
        %v10261 = vsel %vm1812, %v10229, %v10002
        %v10262 = vsel %vm1812, %v10230, %v10004
        %v10263 = vsel %vm1812, %v10231, %v10006
        %v10264 = vsel %vm1812, %v10232, %v10008
        %v10265 = vld [vmem:[%s9] sm:$0xff]
        %v10266 = vld [vmem:[%s9 + $0x8] sm:$0xff]
        %v10267 = vld [vmem:[%s9 + $0x10] sm:$0xff]
        %v10268 = vld [vmem:[%s9 + $0x18] sm:$0xff]
        %v10269 = vld [vmem:[%s9 + $0x20] sm:$0xff]
        %v10270 = vld [vmem:[%s9 + $0x28] sm:$0xff]
        %v10271 = vld [vmem:[%s9 + $0x30] sm:$0xff]
        %v10272 = vld [vmem:[%s9 + $0x38] sm:$0xff]
        %v10273 = vld [vmem:[%s9 + $0x40] sm:$0xff]
        %v10274 = vld [vmem:[%s9 + $0x48] sm:$0xff]
        %v10275 = vld [vmem:[%s9 + $0x50] sm:$0xff]
        %v10276 = vld [vmem:[%s9 + $0x58] sm:$0xff]
        %v10277 = vld [vmem:[%s9 + $0x60] sm:$0xff]
        %v10278 = vld [vmem:[%s9 + $0x68] sm:$0xff]
        %v10279 = vld [vmem:[%s9 + $0x70] sm:$0xff]
        %v10280 = vld [vmem:[%s9 + $0x78] sm:$0xff]
        %v10281 = vld [vmem:[%s9 + $0x80] sm:$0xff]
        %v10282 = vld [vmem:[%s9 + $0x88] sm:$0xff]
        %v10283 = vld [vmem:[%s9 + $0x90] sm:$0xff]
        %v10284 = vld [vmem:[%s9 + $0x98] sm:$0xff]
        %v10285 = vld [vmem:[%s9 + $0xa0] sm:$0xff]
        %v10286 = vld [vmem:[%s9 + $0xa8] sm:$0xff]
        %v10287 = vld [vmem:[%s9 + $0xb0] sm:$0xff]
        %v10288 = vld [vmem:[%s9 + $0xb8] sm:$0xff]
        %v10289 = vld [vmem:[%s9 + $0xc0] sm:$0xff]
        %v10290 = vld [vmem:[%s9 + $0xc8] sm:$0xff]
        %v10291 = vld [vmem:[%s9 + $0xd0] sm:$0xff]
        %v10292 = vld [vmem:[%s9 + $0xd8] sm:$0xff]
        %v10293 = vld [vmem:[%s9 + $0xe0] sm:$0xff]
        %v10294 = vld [vmem:[%s9 + $0xe8] sm:$0xff]
        %v10295 = vld [vmem:[%s9 + $0xf0] sm:$0xff]
        %v10296 = vld [vmem:[%s9 + $0xf8] sm:$0xff]
        %v10297 = vld [vmem:[%s9 + $0x100] sm:$0xff]
        %v10298 = vld [vmem:[%s9 + $0x108] sm:$0xff]
        %v10299 = vld [vmem:[%s9 + $0x110] sm:$0xff]
        %v10300 = vld [vmem:[%s9 + $0x118] sm:$0xff]
        %v10301 = vld [vmem:[%s9 + $0x120] sm:$0xff]
        %v10302 = vld [vmem:[%s9 + $0x128] sm:$0xff]
        %v10303 = vld [vmem:[%s9 + $0x130] sm:$0xff]
        %v10304 = vld [vmem:[%s9 + $0x138] sm:$0xff]
        %v10305 = vld [vmem:[%s9 + $0x140] sm:$0xff]
        %v10306 = vld [vmem:[%s9 + $0x148] sm:$0xff]
        %v10307 = vld [vmem:[%s9 + $0x150] sm:$0xff]
        %v10308 = vld [vmem:[%s9 + $0x158] sm:$0xff]
        %v10309 = vld [vmem:[%s9 + $0x160] sm:$0xff]
        %v10310 = vld [vmem:[%s9 + $0x168] sm:$0xff]
        %v10311 = vld [vmem:[%s9 + $0x170] sm:$0xff]
        %v10312 = vld [vmem:[%s9 + $0x178] sm:$0xff]
        %v10313 = vld [vmem:[%s9 + $0x180] sm:$0xff]
        %v10314 = vld [vmem:[%s9 + $0x188] sm:$0xff]
        %v10315 = vld [vmem:[%s9 + $0x190] sm:$0xff]
        %v10316 = vld [vmem:[%s9 + $0x198] sm:$0xff]
        %v10317 = vld [vmem:[%s9 + $0x1a0] sm:$0xff]
        %v10318 = vld [vmem:[%s9 + $0x1a8] sm:$0xff]
        %v10319 = vld [vmem:[%s10] sm:$0x1]
        %v10321 = vperm.slane %v10319, 0
        %v10324 = vsel %vm385, %v9113, 0
        %v10327 = vsel %vm385, %v9114, 0
        %v10330 = vsel %vm385, %v9115, 0
        %v10333 = vsel %vm385, %v9116, 0
        %v10336 = vsel %vm385, %v9117, 0
        %v10339 = vsel %vm385, %v9118, 0
        %v10342 = vsel %vm385, %v9119, 0
        %v10345 = vsel %vm385, %v9120, 0
        %v10348 = vsel %vm385, %v9121, 0
        %v10351 = vsel %vm385, %v9122, 0
        %v10354 = vsel %vm385, %v9123, 0
        %v10357 = vsel %vm385, %v9124, 0
        %v10360 = vsel %vm385, %v9125, 0
        %v10363 = vsel %vm385, %v9126, 0
        %v10366 = vsel %vm385, %v9127, 0
        %v10369 = vsel %vm385, %v9128, 0
        %v10372 = vsel %vm385, %v9129, 0
        %v10375 = vsel %vm385, %v9130, 0
        %v10378 = vsel %vm385, %v9131, 0
        %v10381 = vsel %vm385, %v9132, 0
        %v10384 = vsel %vm385, %v9133, 0
        %v10387 = vsel %vm385, %v9134, 0
        %v10390 = vsel %vm385, %v9135, 0
        %v10393 = vsel %vm385, %v9136, 0
        %v10396 = vsel %vm385, %v9137, 0
        %v10399 = vsel %vm385, %v9138, 0
        %v10402 = vsel %vm385, %v9139, 0
        %v10405 = vsel %vm385, %v9140, 0
        %v10408 = vsel %vm385, %v9141, 0
        %v10411 = vsel %vm385, %v9142, 0
        %v10414 = vsel %vm385, %v9143, 0
        %v10417 = vsel %vm385, %v9144, 0
        %10419 = vmatpush.msra.mxu0 %v10280
        %10420 = vmatpush.msra.mxu0 %v10279
        %10421 = vmatpush.msra.mxu0 %v10278
        %10422 = vmatpush.msra.mxu0 %v10277
        %10423 = vmatpush.msra.mxu0 %v10276
        %10424 = vmatpush.msra.mxu0 %v10275
        %10425 = vmatpush.msra.mxu0 %v10274
        %10426 = vmatpush.msra.mxu0 %v10273
        %10427 = vmatpush.msra.mxu0 %v10272
        %10428 = vmatpush.msra.mxu0 %v10271
        %10429 = vmatpush.msra.mxu0 %v10270
        %10430 = vmatpush.msra.mxu0 %v10269
        %10431 = vmatpush.msra.mxu0 %v10268
        %10432 = vmatpush.msra.mxu0 %v10267
        %10433 = vmatpush.msra.mxu0 %v10266
        %10434 = vmatpush.msra.mxu0 %v10265
        %10435 = vmatmul.f32.gmra.mxu0 %v10073
        %v10436 = vpop.f32.mrf.mxu0
        %v10437 = vadd.f32 %v10321, %v10436
        %10438 = vmatmul.f32.gmra.mxu0 %v10074
        %v10439 = vpop.f32.mrf.mxu0
        %v10440 = vadd.f32 %v10321, %v10439
        %10441 = vmatmul.f32.gmra.mxu0 %v10075
        %v10442 = vpop.f32.mrf.mxu0
        %v10443 = vadd.f32 %v10321, %v10442
        %10444 = vmatmul.f32.gmra.mxu0 %v10076
        %v10445 = vpop.f32.mrf.mxu0
        %v10446 = vadd.f32 %v10321, %v10445
        %10447 = vmatmul.f32.gmra.mxu0 %v10077
        %v10448 = vpop.f32.mrf.mxu0
        %v10449 = vadd.f32 %v10321, %v10448
        %10450 = vmatmul.f32.gmra.mxu0 %v10078
        %v10451 = vpop.f32.mrf.mxu0
        %v10452 = vadd.f32 %v10321, %v10451
        %10453 = vmatmul.f32.gmra.mxu0 %v10079
        %v10454 = vpop.f32.mrf.mxu0
        %v10455 = vadd.f32 %v10321, %v10454
        %10456 = vmatmul.f32.gmra.mxu0 %v10080
        %v10457 = vpop.f32.mrf.mxu0
        %v10458 = vadd.f32 %v10321, %v10457
        %10459 = vmatmul.f32.gmra.mxu0 %v10081
        %v10460 = vpop.f32.mrf.mxu0
        %v10461 = vadd.f32 %v10321, %v10460
        %10462 = vmatmul.f32.gmra.mxu0 %v10082
        %v10463 = vpop.f32.mrf.mxu0
        %v10464 = vadd.f32 %v10321, %v10463
        %10465 = vmatmul.f32.gmra.mxu0 %v10083
        %v10466 = vpop.f32.mrf.mxu0
        %v10467 = vadd.f32 %v10321, %v10466
        %10468 = vmatmul.f32.gmra.mxu0 %v10084
        %v10469 = vpop.f32.mrf.mxu0
        %v10470 = vadd.f32 %v10321, %v10469
        %10471 = vmatmul.f32.gmra.mxu0 %v10085
        %v10472 = vpop.f32.mrf.mxu0
        %v10473 = vadd.f32 %v10321, %v10472
        %10474 = vmatmul.f32.gmra.mxu0 %v10086
        %v10475 = vpop.f32.mrf.mxu0
        %v10476 = vadd.f32 %v10321, %v10475
        %10477 = vmatmul.f32.gmra.mxu0 %v10087
        %v10478 = vpop.f32.mrf.mxu0
        %v10479 = vadd.f32 %v10321, %v10478
        %10480 = vmatmul.f32.gmra.mxu0 %v10088
        %v10481 = vpop.f32.mrf.mxu0
        %v10482 = vadd.f32 %v10321, %v10481
        %10483 = vmatmul.f32.gmra.mxu0 %v10089
        %v10484 = vpop.f32.mrf.mxu0
        %v10485 = vadd.f32 %v10321, %v10484
        %10486 = vmatmul.f32.gmra.mxu0 %v10090
        %v10487 = vpop.f32.mrf.mxu0
        %v10488 = vadd.f32 %v10321, %v10487
        %10489 = vmatmul.f32.gmra.mxu0 %v10091
        %v10490 = vpop.f32.mrf.mxu0
        %v10491 = vadd.f32 %v10321, %v10490
        %10492 = vmatmul.f32.gmra.mxu0 %v10092
        %v10493 = vpop.f32.mrf.mxu0
        %v10494 = vadd.f32 %v10321, %v10493
        %10495 = vmatmul.f32.gmra.mxu0 %v10093
        %v10496 = vpop.f32.mrf.mxu0
        %v10497 = vadd.f32 %v10321, %v10496
        %10498 = vmatmul.f32.gmra.mxu0 %v10094
        %v10499 = vpop.f32.mrf.mxu0
        %v10500 = vadd.f32 %v10321, %v10499
        %10501 = vmatmul.f32.gmra.mxu0 %v10095
        %v10502 = vpop.f32.mrf.mxu0
        %v10503 = vadd.f32 %v10321, %v10502
        %10504 = vmatmul.f32.gmra.mxu0 %v10096
        %v10505 = vpop.f32.mrf.mxu0
        %v10506 = vadd.f32 %v10321, %v10505
        %10507 = vmatmul.f32.gmra.mxu0 %v10097
        %v10508 = vpop.f32.mrf.mxu0
        %v10509 = vadd.f32 %v10321, %v10508
        %10510 = vmatmul.f32.gmra.mxu0 %v10098
        %v10511 = vpop.f32.mrf.mxu0
        %v10512 = vadd.f32 %v10321, %v10511
        %10513 = vmatmul.f32.gmra.mxu0 %v10099
        %v10514 = vpop.f32.mrf.mxu0
        %v10515 = vadd.f32 %v10321, %v10514
        %10516 = vmatmul.f32.gmra.mxu0 %v10100
        %v10517 = vpop.f32.mrf.mxu0
        %v10518 = vadd.f32 %v10321, %v10517
        %10519 = vmatmul.f32.gmra.mxu0 %v10101
        %v10520 = vpop.f32.mrf.mxu0
        %v10521 = vadd.f32 %v10321, %v10520
        %10522 = vmatmul.f32.gmra.mxu0 %v10102
        %v10523 = vpop.f32.mrf.mxu0
        %v10524 = vadd.f32 %v10321, %v10523
        %10525 = vmatmul.f32.gmra.mxu0 %v10103
        %v10526 = vpop.f32.mrf.mxu0
        %v10527 = vadd.f32 %v10321, %v10526
        %10528 = vmatmul.f32.gmra.mxu0 %v10104
        %v10529 = vpop.f32.mrf.mxu0
        %v10530 = vadd.f32 %v10321, %v10529
        %10531 = vdwg.mxu0
        %10532 = vmatpush.msra.mxu0 %v10296
        %10533 = vmatpush.msra.mxu0 %v10295
        %10534 = vmatpush.msra.mxu0 %v10294
        %10535 = vmatpush.msra.mxu0 %v10293
        %10536 = vmatpush.msra.mxu0 %v10292
        %10537 = vmatpush.msra.mxu0 %v10291
        %10538 = vmatpush.msra.mxu0 %v10290
        %10539 = vmatpush.msra.mxu0 %v10289
        %10540 = vmatpush.msra.mxu0 %v10288
        %10541 = vmatpush.msra.mxu0 %v10287
        %10542 = vmatpush.msra.mxu0 %v10286
        %10543 = vmatpush.msra.mxu0 %v10285
        %10544 = vmatpush.msra.mxu0 %v10284
        %10545 = vmatpush.msra.mxu0 %v10283
        %10546 = vmatpush.msra.mxu0 %v10282
        %10547 = vmatpush.msra.mxu0 %v10281
        %10548 = vmatmul.f32.gmra.mxu0 %v10169
        %v10549 = vpop.f32.mrf.mxu0
        %v10550 = vadd.f32 %v10437, %v10549
        %10551 = vmatmul.f32.gmra.mxu0 %v10170
        %v10552 = vpop.f32.mrf.mxu0
        %v10553 = vadd.f32 %v10440, %v10552
        %10554 = vmatmul.f32.gmra.mxu0 %v10171
        %v10555 = vpop.f32.mrf.mxu0
        %v10556 = vadd.f32 %v10443, %v10555
        %10557 = vmatmul.f32.gmra.mxu0 %v10172
        %v10558 = vpop.f32.mrf.mxu0
        %v10559 = vadd.f32 %v10446, %v10558
        %10560 = vmatmul.f32.gmra.mxu0 %v10173
        %v10561 = vpop.f32.mrf.mxu0
        %v10562 = vadd.f32 %v10449, %v10561
        %10563 = vmatmul.f32.gmra.mxu0 %v10174
        %v10564 = vpop.f32.mrf.mxu0
        %v10565 = vadd.f32 %v10452, %v10564
        %10566 = vmatmul.f32.gmra.mxu0 %v10175
        %v10567 = vpop.f32.mrf.mxu0
        %v10568 = vadd.f32 %v10455, %v10567
        %10569 = vmatmul.f32.gmra.mxu0 %v10176
        %v10570 = vpop.f32.mrf.mxu0
        %v10571 = vadd.f32 %v10458, %v10570
        %10572 = vmatmul.f32.gmra.mxu0 %v10177
        %v10573 = vpop.f32.mrf.mxu0
        %v10574 = vadd.f32 %v10461, %v10573
        %10575 = vmatmul.f32.gmra.mxu0 %v10178
        %v10576 = vpop.f32.mrf.mxu0
        %v10577 = vadd.f32 %v10464, %v10576
        %10578 = vmatmul.f32.gmra.mxu0 %v10179
        %v10579 = vpop.f32.mrf.mxu0
        %v10580 = vadd.f32 %v10467, %v10579
        %10581 = vmatmul.f32.gmra.mxu0 %v10180
        %v10582 = vpop.f32.mrf.mxu0
        %v10583 = vadd.f32 %v10470, %v10582
        %10584 = vmatmul.f32.gmra.mxu0 %v10181
        %v10585 = vpop.f32.mrf.mxu0
        %v10586 = vadd.f32 %v10473, %v10585
        %10587 = vmatmul.f32.gmra.mxu0 %v10182
        %v10588 = vpop.f32.mrf.mxu0
        %v10589 = vadd.f32 %v10476, %v10588
        %10590 = vmatmul.f32.gmra.mxu0 %v10183
        %v10591 = vpop.f32.mrf.mxu0
        %v10592 = vadd.f32 %v10479, %v10591
        %10593 = vmatmul.f32.gmra.mxu0 %v10184
        %v10594 = vpop.f32.mrf.mxu0
        %v10595 = vadd.f32 %v10482, %v10594
        %10596 = vmatmul.f32.gmra.mxu0 %v10185
        %v10597 = vpop.f32.mrf.mxu0
        %v10598 = vadd.f32 %v10485, %v10597
        %10599 = vmatmul.f32.gmra.mxu0 %v10186
        %v10600 = vpop.f32.mrf.mxu0
        %v10601 = vadd.f32 %v10488, %v10600
        %10602 = vmatmul.f32.gmra.mxu0 %v10187
        %v10603 = vpop.f32.mrf.mxu0
        %v10604 = vadd.f32 %v10491, %v10603
        %10605 = vmatmul.f32.gmra.mxu0 %v10188
        %v10606 = vpop.f32.mrf.mxu0
        %v10607 = vadd.f32 %v10494, %v10606
        %10608 = vmatmul.f32.gmra.mxu0 %v10189
        %v10609 = vpop.f32.mrf.mxu0
        %v10610 = vadd.f32 %v10497, %v10609
        %10611 = vmatmul.f32.gmra.mxu0 %v10190
        %v10612 = vpop.f32.mrf.mxu0
        %v10613 = vadd.f32 %v10500, %v10612
        %10614 = vmatmul.f32.gmra.mxu0 %v10191
        %v10615 = vpop.f32.mrf.mxu0
        %v10616 = vadd.f32 %v10503, %v10615
        %10617 = vmatmul.f32.gmra.mxu0 %v10192
        %v10618 = vpop.f32.mrf.mxu0
        %v10619 = vadd.f32 %v10506, %v10618
        %10620 = vmatmul.f32.gmra.mxu0 %v10193
        %v10621 = vpop.f32.mrf.mxu0
        %v10622 = vadd.f32 %v10509, %v10621
        %10623 = vmatmul.f32.gmra.mxu0 %v10194
        %v10624 = vpop.f32.mrf.mxu0
        %v10625 = vadd.f32 %v10512, %v10624
        %10626 = vmatmul.f32.gmra.mxu0 %v10195
        %v10627 = vpop.f32.mrf.mxu0
        %v10628 = vadd.f32 %v10515, %v10627
        %10629 = vmatmul.f32.gmra.mxu0 %v10196
        %v10630 = vpop.f32.mrf.mxu0
        %v10631 = vadd.f32 %v10518, %v10630
        %10632 = vmatmul.f32.gmra.mxu0 %v10197
        %v10633 = vpop.f32.mrf.mxu0
        %v10634 = vadd.f32 %v10521, %v10633
        %10635 = vmatmul.f32.gmra.mxu0 %v10198
        %v10636 = vpop.f32.mrf.mxu0
        %v10637 = vadd.f32 %v10524, %v10636
        %10638 = vmatmul.f32.gmra.mxu0 %v10199
        %v10639 = vpop.f32.mrf.mxu0
        %v10640 = vadd.f32 %v10527, %v10639
        %10641 = vmatmul.f32.gmra.mxu0 %v10200
        %v10642 = vpop.f32.mrf.mxu0
        %v10643 = vadd.f32 %v10530, %v10642
        %10644 = vdwg.mxu0
        %10645 = vmatpush.msra.mxu0 %v10312
        %10646 = vmatpush.msra.mxu0 %v10311
        %10647 = vmatpush.msra.mxu0 %v10310
        %10648 = vmatpush.msra.mxu0 %v10309
        %10649 = vmatpush.msra.mxu0 %v10308
        %10650 = vmatpush.msra.mxu0 %v10307
        %10651 = vmatpush.msra.mxu0 %v10306
        %10652 = vmatpush.msra.mxu0 %v10305
        %10653 = vmatpush.msra.mxu0 %v10304
        %10654 = vmatpush.msra.mxu0 %v10303
        %10655 = vmatpush.msra.mxu0 %v10302
        %10656 = vmatpush.msra.mxu0 %v10301
        %10657 = vmatpush.msra.mxu0 %v10300
        %10658 = vmatpush.msra.mxu0 %v10299
        %10659 = vmatpush.msra.mxu0 %v10298
        %10660 = vmatpush.msra.mxu0 %v10297
        %10661 = vmatmul.f32.gmra.mxu0 %v10233
        %v10662 = vpop.f32.mrf.mxu0
        %v10663 = vadd.f32 %v10550, %v10662
        %10664 = vmatmul.f32.gmra.mxu0 %v10234
        %v10665 = vpop.f32.mrf.mxu0
        %v10666 = vadd.f32 %v10553, %v10665
        %10667 = vmatmul.f32.gmra.mxu0 %v10235
        %v10668 = vpop.f32.mrf.mxu0
        %v10669 = vadd.f32 %v10556, %v10668
        %10670 = vmatmul.f32.gmra.mxu0 %v10236
        %v10671 = vpop.f32.mrf.mxu0
        %v10672 = vadd.f32 %v10559, %v10671
        %10673 = vmatmul.f32.gmra.mxu0 %v10237
        %v10674 = vpop.f32.mrf.mxu0
        %v10675 = vadd.f32 %v10562, %v10674
        %10676 = vmatmul.f32.gmra.mxu0 %v10238
        %v10677 = vpop.f32.mrf.mxu0
        %v10678 = vadd.f32 %v10565, %v10677
        %10679 = vmatmul.f32.gmra.mxu0 %v10239
        %v10680 = vpop.f32.mrf.mxu0
        %v10681 = vadd.f32 %v10568, %v10680
        %10682 = vmatmul.f32.gmra.mxu0 %v10240
        %v10683 = vpop.f32.mrf.mxu0
        %v10684 = vadd.f32 %v10571, %v10683
        %10685 = vmatmul.f32.gmra.mxu0 %v10241
        %v10686 = vpop.f32.mrf.mxu0
        %v10687 = vadd.f32 %v10574, %v10686
        %10688 = vmatmul.f32.gmra.mxu0 %v10242
        %v10689 = vpop.f32.mrf.mxu0
        %v10690 = vadd.f32 %v10577, %v10689
        %10691 = vmatmul.f32.gmra.mxu0 %v10243
        %v10692 = vpop.f32.mrf.mxu0
        %v10693 = vadd.f32 %v10580, %v10692
        %10694 = vmatmul.f32.gmra.mxu0 %v10244
        %v10695 = vpop.f32.mrf.mxu0
        %v10696 = vadd.f32 %v10583, %v10695
        %10697 = vmatmul.f32.gmra.mxu0 %v10245
        %v10698 = vpop.f32.mrf.mxu0
        %v10699 = vadd.f32 %v10586, %v10698
        %10700 = vmatmul.f32.gmra.mxu0 %v10246
        %v10701 = vpop.f32.mrf.mxu0
        %v10702 = vadd.f32 %v10589, %v10701
        %10703 = vmatmul.f32.gmra.mxu0 %v10247
        %v10704 = vpop.f32.mrf.mxu0
        %v10705 = vadd.f32 %v10592, %v10704
        %10706 = vmatmul.f32.gmra.mxu0 %v10248
        %v10707 = vpop.f32.mrf.mxu0
        %v10708 = vadd.f32 %v10595, %v10707
        %10709 = vmatmul.f32.gmra.mxu0 %v10249
        %v10710 = vpop.f32.mrf.mxu0
        %v10711 = vadd.f32 %v10598, %v10710
        %10712 = vmatmul.f32.gmra.mxu0 %v10250
        %v10713 = vpop.f32.mrf.mxu0
        %v10714 = vadd.f32 %v10601, %v10713
        %10715 = vmatmul.f32.gmra.mxu0 %v10251
        %v10716 = vpop.f32.mrf.mxu0
        %v10717 = vadd.f32 %v10604, %v10716
        %10718 = vmatmul.f32.gmra.mxu0 %v10252
        %v10719 = vpop.f32.mrf.mxu0
        %v10720 = vadd.f32 %v10607, %v10719
        %10721 = vmatmul.f32.gmra.mxu0 %v10253
        %v10722 = vpop.f32.mrf.mxu0
        %v10723 = vadd.f32 %v10610, %v10722
        %10724 = vmatmul.f32.gmra.mxu0 %v10254
        %v10725 = vpop.f32.mrf.mxu0
        %v10726 = vadd.f32 %v10613, %v10725
        %10727 = vmatmul.f32.gmra.mxu0 %v10255
        %v10728 = vpop.f32.mrf.mxu0
        %v10729 = vadd.f32 %v10616, %v10728
        %10730 = vmatmul.f32.gmra.mxu0 %v10256
        %v10731 = vpop.f32.mrf.mxu0
        %v10732 = vadd.f32 %v10619, %v10731
        %10733 = vmatmul.f32.gmra.mxu0 %v10257
        %v10734 = vpop.f32.mrf.mxu0
        %v10735 = vadd.f32 %v10622, %v10734
        %10736 = vmatmul.f32.gmra.mxu0 %v10258
        %v10737 = vpop.f32.mrf.mxu0
        %v10738 = vadd.f32 %v10625, %v10737
        %10739 = vmatmul.f32.gmra.mxu0 %v10259
        %v10740 = vpop.f32.mrf.mxu0
        %v10741 = vadd.f32 %v10628, %v10740
        %10742 = vmatmul.f32.gmra.mxu0 %v10260
        %v10743 = vpop.f32.mrf.mxu0
        %v10744 = vadd.f32 %v10631, %v10743
        %10745 = vmatmul.f32.gmra.mxu0 %v10261
        %v10746 = vpop.f32.mrf.mxu0
        %v10747 = vadd.f32 %v10634, %v10746
        %10748 = vmatmul.f32.gmra.mxu0 %v10262
        %v10749 = vpop.f32.mrf.mxu0
        %v10750 = vadd.f32 %v10637, %v10749
        %10751 = vmatmul.f32.gmra.mxu0 %v10263
        %v10752 = vpop.f32.mrf.mxu0
        %v10753 = vadd.f32 %v10640, %v10752
        %10754 = vmatmul.f32.gmra.mxu0 %v10264
        %v10755 = vpop.f32.mrf.mxu0
        %v10756 = vadd.f32 %v10643, %v10755
        %10757 = vdwg.mxu0
        %10758 = vmatpush.msra.mxu0 0.0
        %10759 = vmatpush.msra.mxu0 0.0
        %10760 = vmatpush.msra.mxu0 0.0
        %10761 = vmatpush.msra.mxu0 0.0
        %10762 = vmatpush.msra.mxu0 0.0
        %10763 = vmatpush.msra.mxu0 0.0
        %10764 = vmatpush.msra.mxu0 0.0
        %10765 = vmatpush.msra.mxu0 0.0
        %10766 = vmatpush.msra.mxu0 0.0
        %10767 = vmatpush.msra.mxu0 0.0
        %10768 = vmatpush.msra.mxu0 %v10318
        %10769 = vmatpush.msra.mxu0 %v10317
        %10770 = vmatpush.msra.mxu0 %v10316
        %10771 = vmatpush.msra.mxu0 %v10315
        %10772 = vmatpush.msra.mxu0 %v10314
        %10773 = vmatpush.msra.mxu0 %v10313
        %10774 = vmatmul.f32.gmra.mxu0 %v10324
        %v10775 = vpop.f32.mrf.mxu0
        %v10776 = vadd.f32 %v10663, %v10775
        %10777 = vmatmul.f32.gmra.mxu0 %v10327
        %v10778 = vpop.f32.mrf.mxu0
        %v10779 = vadd.f32 %v10666, %v10778
        %10780 = vmatmul.f32.gmra.mxu0 %v10330
        %v10781 = vpop.f32.mrf.mxu0
        %v10782 = vadd.f32 %v10669, %v10781
        %10783 = vmatmul.f32.gmra.mxu0 %v10333
        %v10784 = vpop.f32.mrf.mxu0
        %v10785 = vadd.f32 %v10672, %v10784
        %10786 = vmatmul.f32.gmra.mxu0 %v10336
        %v10787 = vpop.f32.mrf.mxu0
        %v10788 = vadd.f32 %v10675, %v10787
        %10789 = vmatmul.f32.gmra.mxu0 %v10339
        %v10790 = vpop.f32.mrf.mxu0
        %v10791 = vadd.f32 %v10678, %v10790
        %10792 = vmatmul.f32.gmra.mxu0 %v10342
        %v10793 = vpop.f32.mrf.mxu0
        %v10794 = vadd.f32 %v10681, %v10793
        %10795 = vmatmul.f32.gmra.mxu0 %v10345
        %v10796 = vpop.f32.mrf.mxu0
        %v10797 = vadd.f32 %v10684, %v10796
        %10798 = vmatmul.f32.gmra.mxu0 %v10348
        %v10799 = vpop.f32.mrf.mxu0
        %v10800 = vadd.f32 %v10687, %v10799
        %10801 = vmatmul.f32.gmra.mxu0 %v10351
        %v10802 = vpop.f32.mrf.mxu0
        %v10803 = vadd.f32 %v10690, %v10802
        %10804 = vmatmul.f32.gmra.mxu0 %v10354
        %v10805 = vpop.f32.mrf.mxu0
        %v10806 = vadd.f32 %v10693, %v10805
        %10807 = vmatmul.f32.gmra.mxu0 %v10357
        %v10808 = vpop.f32.mrf.mxu0
        %v10809 = vadd.f32 %v10696, %v10808
        %10810 = vmatmul.f32.gmra.mxu0 %v10360
        %v10811 = vpop.f32.mrf.mxu0
        %v10812 = vadd.f32 %v10699, %v10811
        %10813 = vmatmul.f32.gmra.mxu0 %v10363
        %v10814 = vpop.f32.mrf.mxu0
        %v10815 = vadd.f32 %v10702, %v10814
        %10816 = vmatmul.f32.gmra.mxu0 %v10366
        %v10817 = vpop.f32.mrf.mxu0
        %v10818 = vadd.f32 %v10705, %v10817
        %10819 = vmatmul.f32.gmra.mxu0 %v10369
        %v10820 = vpop.f32.mrf.mxu0
        %v10821 = vadd.f32 %v10708, %v10820
        %10822 = vmatmul.f32.gmra.mxu0 %v10372
        %v10823 = vpop.f32.mrf.mxu0
        %v10824 = vadd.f32 %v10711, %v10823
        %10825 = vmatmul.f32.gmra.mxu0 %v10375
        %v10826 = vpop.f32.mrf.mxu0
        %v10827 = vadd.f32 %v10714, %v10826
        %10828 = vmatmul.f32.gmra.mxu0 %v10378
        %v10829 = vpop.f32.mrf.mxu0
        %v10830 = vadd.f32 %v10717, %v10829
        %10831 = vmatmul.f32.gmra.mxu0 %v10381
        %v10832 = vpop.f32.mrf.mxu0
        %v10833 = vadd.f32 %v10720, %v10832
        %10834 = vmatmul.f32.gmra.mxu0 %v10384
        %v10835 = vpop.f32.mrf.mxu0
        %v10836 = vadd.f32 %v10723, %v10835
        %10837 = vmatmul.f32.gmra.mxu0 %v10387
        %v10838 = vpop.f32.mrf.mxu0
        %v10839 = vadd.f32 %v10726, %v10838
        %10840 = vmatmul.f32.gmra.mxu0 %v10390
        %v10841 = vpop.f32.mrf.mxu0
        %v10842 = vadd.f32 %v10729, %v10841
        %10843 = vmatmul.f32.gmra.mxu0 %v10393
        %v10844 = vpop.f32.mrf.mxu0
        %v10845 = vadd.f32 %v10732, %v10844
        %10846 = vmatmul.f32.gmra.mxu0 %v10396
        %v10847 = vpop.f32.mrf.mxu0
        %v10848 = vadd.f32 %v10735, %v10847
        %10849 = vmatmul.f32.gmra.mxu0 %v10399
        %v10850 = vpop.f32.mrf.mxu0
        %v10851 = vadd.f32 %v10738, %v10850
        %10852 = vmatmul.f32.gmra.mxu0 %v10402
        %v10853 = vpop.f32.mrf.mxu0
        %v10854 = vadd.f32 %v10741, %v10853
        %10855 = vmatmul.f32.gmra.mxu0 %v10405
        %v10856 = vpop.f32.mrf.mxu0
        %v10857 = vadd.f32 %v10744, %v10856
        %10858 = vmatmul.f32.gmra.mxu0 %v10408
        %v10859 = vpop.f32.mrf.mxu0
        %v10860 = vadd.f32 %v10747, %v10859
        %10861 = vmatmul.f32.gmra.mxu0 %v10411
        %v10862 = vpop.f32.mrf.mxu0
        %v10863 = vadd.f32 %v10750, %v10862
        %10864 = vmatmul.f32.gmra.mxu0 %v10414
        %v10865 = vpop.f32.mrf.mxu0
        %v10866 = vadd.f32 %v10753, %v10865
        %10867 = vmatmul.f32.gmra.mxu0 %v10417
        %v10868 = vpop.f32.mrf.mxu0
        %v10869 = vadd.f32 %v10756, %v10868
        %10870 = vdwg.mxu0
        %v10871 = vmul.f32 %v10776, 0.2
        %v10872 = vmul.f32 %v10779, 0.2
        %v10873 = vmul.f32 %v10782, 0.2
        %v10874 = vmul.f32 %v10785, 0.2
        %v10875 = vmul.f32 %v10788, 0.2
        %v10876 = vmul.f32 %v10791, 0.2
        %v10877 = vmul.f32 %v10794, 0.2
        %v10878 = vmul.f32 %v10797, 0.2
        %v10879 = vmul.f32 %v10800, 0.2
        %v10880 = vmul.f32 %v10803, 0.2
        %v10881 = vmul.f32 %v10806, 0.2
        %v10882 = vmul.f32 %v10809, 0.2
        %v10883 = vmul.f32 %v10812, 0.2
        %v10884 = vmul.f32 %v10815, 0.2
        %v10885 = vmul.f32 %v10818, 0.2
        %v10886 = vmul.f32 %v10821, 0.2
        %v10887 = vmul.f32 %v10824, 0.2
        %v10888 = vmul.f32 %v10827, 0.2
        %v10889 = vmul.f32 %v10830, 0.2
        %v10890 = vmul.f32 %v10833, 0.2
        %v10891 = vmul.f32 %v10836, 0.2
        %v10892 = vmul.f32 %v10839, 0.2
        %v10893 = vmul.f32 %v10842, 0.2
        %v10894 = vmul.f32 %v10845, 0.2
        %v10895 = vmul.f32 %v10848, 0.2
        %v10896 = vmul.f32 %v10851, 0.2
        %v10897 = vmul.f32 %v10854, 0.2
        %v10898 = vmul.f32 %v10857, 0.2
        %v10899 = vmul.f32 %v10860, 0.2
        %v10900 = vmul.f32 %v10863, 0.2
        %v10901 = vmul.f32 %v10866, 0.2
        %v10902 = vmul.f32 %v10869, 0.2
        %v10903 = vadd.f32 %v10871, %v431
        %v10904 = vadd.f32 %v10872, %v432
        %v10905 = vadd.f32 %v10873, %v433
        %v10906 = vadd.f32 %v10874, %v434
        %v10907 = vadd.f32 %v10875, %v435
        %v10908 = vadd.f32 %v10876, %v436
        %v10909 = vadd.f32 %v10877, %v437
        %v10910 = vadd.f32 %v10878, %v438
        %v10911 = vadd.f32 %v10879, %v439
        %v10912 = vadd.f32 %v10880, %v440
        %v10913 = vadd.f32 %v10881, %v441
        %v10914 = vadd.f32 %v10882, %v442
        %v10915 = vadd.f32 %v10883, %v443
        %v10916 = vadd.f32 %v10884, %v444
        %v10917 = vadd.f32 %v10885, %v445
        %v10918 = vadd.f32 %v10886, %v446
        %v10919 = vadd.f32 %v10887, %v447
        %v10920 = vadd.f32 %v10888, %v448
        %v10921 = vadd.f32 %v10889, %v449
        %v10922 = vadd.f32 %v10890, %v450
        %v10923 = vadd.f32 %v10891, %v451
        %v10924 = vadd.f32 %v10892, %v452
        %v10925 = vadd.f32 %v10893, %v453
        %v10926 = vadd.f32 %v10894, %v454
        %v10927 = vadd.f32 %v10895, %v455
        %v10928 = vadd.f32 %v10896, %v456
        %v10929 = vadd.f32 %v10897, %v457
        %v10930 = vadd.f32 %v10898, %v458
        %v10931 = vadd.f32 %v10899, %v459
        %v10932 = vadd.f32 %v10900, %v460
        %v10933 = vadd.f32 %v10901, %v461
        %v10934 = vadd.f32 %v10902, %v462
        %10935 = vst.msk [vmem:[%s379] sm:$0xff] %vm464, %v10903
        %10936 = vst.msk [vmem:[%s379 + $0x8] sm:$0xff] %vm464, %v10904
        %10937 = vst.msk [vmem:[%s379 + $0x10] sm:$0xff] %vm464, %v10905
        %10938 = vst.msk [vmem:[%s379 + $0x18] sm:$0xff] %vm464, %v10906
        %10939 = vst.msk [vmem:[%s379 + $0x20] sm:$0xff] %vm464, %v10907
        %10940 = vst.msk [vmem:[%s379 + $0x28] sm:$0xff] %vm464, %v10908
        %10941 = vst.msk [vmem:[%s379 + $0x30] sm:$0xff] %vm464, %v10909
        %10942 = vst.msk [vmem:[%s379 + $0x38] sm:$0xff] %vm464, %v10910
        %10943 = vst.msk [vmem:[%s379 + $0x40] sm:$0xff] %vm464, %v10911
        %10944 = vst.msk [vmem:[%s379 + $0x48] sm:$0xff] %vm464, %v10912
        %10945 = vst.msk [vmem:[%s379 + $0x50] sm:$0xff] %vm464, %v10913
        %10946 = vst.msk [vmem:[%s379 + $0x58] sm:$0xff] %vm464, %v10914
        %10947 = vst.msk [vmem:[%s379 + $0x60] sm:$0xff] %vm464, %v10915
        %10948 = vst.msk [vmem:[%s379 + $0x68] sm:$0xff] %vm464, %v10916
        %10949 = vst.msk [vmem:[%s379 + $0x70] sm:$0xff] %vm464, %v10917
        %10950 = vst.msk [vmem:[%s379 + $0x78] sm:$0xff] %vm464, %v10918
        %10951 = vst.msk [vmem:[%s379 + $0x80] sm:$0xff] %vm464, %v10919
        %10952 = vst.msk [vmem:[%s379 + $0x88] sm:$0xff] %vm464, %v10920
        %10953 = vst.msk [vmem:[%s379 + $0x90] sm:$0xff] %vm464, %v10921
        %10954 = vst.msk [vmem:[%s379 + $0x98] sm:$0xff] %vm464, %v10922
        %10955 = vst.msk [vmem:[%s379 + $0xa0] sm:$0xff] %vm464, %v10923
        %10956 = vst.msk [vmem:[%s379 + $0xa8] sm:$0xff] %vm464, %v10924
        %10957 = vst.msk [vmem:[%s379 + $0xb0] sm:$0xff] %vm464, %v10925
        %10958 = vst.msk [vmem:[%s379 + $0xb8] sm:$0xff] %vm464, %v10926
        %10959 = vst.msk [vmem:[%s379 + $0xc0] sm:$0xff] %vm464, %v10927
        %10960 = vst.msk [vmem:[%s379 + $0xc8] sm:$0xff] %vm464, %v10928
        %10961 = vst.msk [vmem:[%s379 + $0xd0] sm:$0xff] %vm464, %v10929
        %10962 = vst.msk [vmem:[%s379 + $0xd8] sm:$0xff] %vm464, %v10930
        %10963 = vst.msk [vmem:[%s379 + $0xe0] sm:$0xff] %vm464, %v10931
        %10964 = vst.msk [vmem:[%s379 + $0xe8] sm:$0xff] %vm464, %v10932
        %10965 = vst.msk [vmem:[%s379 + $0xf0] sm:$0xff] %vm464, %v10933
        %10966 = vst.msk [vmem:[%s379 + $0xf8] sm:$0xff] %vm464, %v10934
        %s10967 = sand.u32 %s269, 1
        %s10968 = scalar_lea.sflag [#allocation4], %s10967
        %s10969 = sand.u32 %s269, 1
        %s10970 = smul.addr %s10969, 256
        %s10971 = scalar_lea.vmem [#allocation3], %s10970
        // Predicated region
        $region65: #{tpu_custom_call.1} parent=63 // pred_check
          %p10972 = pneg %p279
        $region66: #{tpu_custom_call.1} parent=63 // pred_check_branch
          %10974 = sbr.rel (%p10972) target = $region68
        $region67: #{tpu_custom_call.1} parent=63 // pred_region
          %10976 = vsyncadd %s10968, 0
          %s10977 = smul.addr %s25, 32
          %s10978 = smul.addr %s10977, 8
          %s10979 = scalar_lea.hbm %s11, %s10978
          %s10980 = sshll.u32 %s10971, 4
          %s10981 = int_to_ptr.vmem [resolvable:$true] %s10980
          %s10982 = sshll.u32 %s10979, 4
          %s10983 = int_to_ptr.hbm [resolvable:$true] %s10982
          %10988 = dma.vmem_to_hbm [thread:$0]  %s10981, 4096, %s10983, %s10968, 128, 128, 8
        $region68: #{tpu_custom_call.1} parent=63 // pred_fallthru
          _
      $region64: #{tpu_custom_call.1} parent=5 // pred_fallthru
        _
      %p10989 = scmp.le.s32.totalorder 2, %s20
      // Predicated region
      $region69: #{tpu_custom_call.1} parent=5 // pred_check
        %p10990 = pneg %p10989
      $region70: #{tpu_custom_call.1} parent=5 // pred_check_branch
        %10992 = sbr.rel (%p10990) target = $region72
      $region71: #{tpu_custom_call.1} parent=5 // pred_region
        %s10993 = ssub.s32 %s20, 2
        // Predicated region
        $region73: #{tpu_custom_call.1} parent=71 // pred_check
          %p10994 = pneg %p285
        $region74: #{tpu_custom_call.1} parent=71 // pred_check_branch
          %10996 = sbr.rel (%p10994) target = $region76
        $region75: #{tpu_custom_call.1} parent=71 // pred_region
          %s10997 = sand.u32 %s270, 1
          %s10998 = scalar_lea.sflag [#allocation4], %s10997
          %s10999 = sand.u32 %s270, 1
          %s11000 = smul.addr %s10999, 256
          %s11001 = scalar_lea.vmem [#allocation3], %s11000
          %11003 = dma.done %s10998, 4096
        $region76: #{tpu_custom_call.1} parent=71 // pred_fallthru
          _
      $region72: #{tpu_custom_call.1} parent=5 // pred_fallthru
        _
    $region6: #{tpu_custom_call.1} parent=1 // loop_footer
      %s24 = sadd.s32 1, %s20
    $region7: #{tpu_custom_call.1} parent=1 // loop_footer_branch
      %19 = sbr.rel target = $region3
    $region8: #{tpu_custom_call.1} parent=1 // loop_exit
      _
    %11004 = vsyncpa [#allocation4], 1
    %s11005 = scalar_lea.sflag [#allocation4], 1
    %11006 = vsyncpa %s11005, 1

</llo_original>
